<compile_context>
chip_gen: v5e
topology: v5e:2x2
jax: 0.10.0
libtpu: 0.0.40
codegen_flags: <defaults>
</compile_context>

<pallas_src>
import jax
import jax.numpy as jnp
from jax.experimental import pallas as pl
from jax.experimental.pallas import tpu as pltpu


# ---------------------------------------------------------------------------
# Kernels
# ---------------------------------------------------------------------------

def _branch_fuse_kernel(xt_ref, y_ref, bm_ref, wc_ref, wf_ref, bf_ref, o_ref):
    # Fuses:  l = segproj(deeplab(conv_seg(y)))   (composed 1x1 -> wf, bf)
    #         r = pointwise(depthwise3x3(convR(x)))  (composed -> wc, bias map)
    #         f = r + l
    # xt: (1, TH+2, W+2, Cx) halo tile of zero-padded x
    # y : (1, TH,   W,   Cy)
    # bm: (TH, W, Cout)   per-pixel bias of the composed right branch
    # wc: (9, Cx, Cout)   composed convR*depthwise*pointwise weight per tap
    # wf: (Cy, Cout), bf: (1, Cout)  composed seg-branch 1x1 chain
    th, wd, cout = o_ref.shape[1], o_ref.shape[2], o_ref.shape[3]
    xp = xt_ref[0]                                    # (TH+2, W+2, Cx)
    cx = xp.shape[-1]
    cy = y_ref.shape[-1]

    # seg branch (single fused 1x1)
    acc = jnp.dot(y_ref[0].reshape(th * wd, cy), wf_ref[...],
                  preferred_element_type=jnp.float32) + bf_ref[...]
    # right branch bias (convR bias through the in-bounds depthwise taps)
    acc = acc + bm_ref[...].reshape(th * wd, cout)
    # right branch: 9 taps accumulated in registers (single kernel invocation,
    # no grid reduction / scratch; the op is HBM-bound so MXU K-shape is moot)
    for k in range(9):
        kh, kw = k // 3, k % 3
        v = xp[kh:kh + th, kw:kw + wd, :].reshape(th * wd, cx)
        acc = acc + jnp.dot(v, wc_ref[k], preferred_element_type=jnp.float32)

    o_ref[...] = acc.reshape(1, th, wd, cout).astype(o_ref.dtype)


def _conv3x3_kernel(xt_ref, w_ref, b_ref, o_ref):
    # 3x3 conv, padding=1.  xt: (1, TH+2, W+2, Cin) halo tile of the
    # zero-padded input;  w: (9, Cin, Cout);  b: (1, Cout).
    th, wd, cout = o_ref.shape[1], o_ref.shape[2], o_ref.shape[3]
    xp = xt_ref[0]                                    # (TH+2, W+2, Cin)
    cin = xp.shape[-1]

    acc = jnp.zeros((th * wd, cout), jnp.float32)
    for k in range(9):
        kh, kw = k // 3, k % 3
        v = xp[kh:kh + th, kw:kw + wd, :].reshape(th * wd, cin)
        acc = acc + jnp.dot(v, w_ref[k], preferred_element_type=jnp.float32)

    o_ref[...] = (acc + b_ref[...]).reshape(1, th, wd, cout).astype(o_ref.dtype)


# ---------------------------------------------------------------------------
# Tiling helpers (glue)
# ---------------------------------------------------------------------------

_VMEM_LIMIT = 32 * 1024 * 1024   # explicit scoped-VMEM budget (safe on v5e/v6e/v7x)


def _pick_tile_h(h, w, target_rows=1024):
    """Largest divisor TH of H with TH*W <= target output rows per tile."""
    th = 1
    for cand in range(1, h + 1):
        if h % cand == 0 and cand * w <= target_rows:
            th = cand
    return th


def _halo_tiles(x_nhwc, th):
    """Zero-pad H/W by 1 and gather overlapping (TH+2)-row tiles.

    (N, H, W, C) -> (N*nT, TH+2, W+2, C).  Only the 2 halo rows per tile are
    duplicated in HBM (replaces the previous 9x im2col expansion).
    """
    # TODO(synk): could avoid this copy entirely with Element-indexed
    # (overlapping) BlockSpecs; kept as simple glue for robustness.
    n, h, w, c = x_nhwc.shape
    xp = jnp.pad(x_nhwc, ((0, 0), (1, 1), (1, 1), (0, 0)))
    nt = h // th
    tiles = jnp.stack([xp[:, t * th:t * th + th + 2] for t in range(nt)], axis=1)
    return tiles.reshape(n * nt, th + 2, w + 2, c), nt


# ---------------------------------------------------------------------------
# Pallas wrappers
# ---------------------------------------------------------------------------

def branch_fuse(x_nhwc, y_nhwc, wc9, bias_map, wf, bf):
    n, h, w, cx = x_nhwc.shape
    cy = y_nhwc.shape[-1]
    cout = wc9.shape[-1]
    th = _pick_tile_h(h, w)
    xt, nt = _halo_tiles(x_nhwc, th)
    bf2 = bf.reshape(1, cout)
    return pl.pallas_call(
        _branch_fuse_kernel,
        out_shape=jax.ShapeDtypeStruct((n, h, w, cout), jnp.float32),
        grid=(n, nt),
        in_specs=[
            pl.BlockSpec((1, th + 2, w + 2, cx), lambda i, t: (i * nt + t, 0, 0, 0)),
            pl.BlockSpec((1, th, w, cy), lambda i, t: (i, t, 0, 0)),
            pl.BlockSpec((th, w, cout), lambda i, t: (t, 0, 0)),
            pl.BlockSpec((9, cx, cout), lambda i, t: (0, 0, 0)),
            pl.BlockSpec((cy, cout), lambda i, t: (0, 0)),
            pl.BlockSpec((1, cout), lambda i, t: (0, 0)),
        ],
        out_specs=pl.BlockSpec((1, th, w, cout), lambda i, t: (i, t, 0, 0)),
        compiler_params=pltpu.CompilerParams(
            dimension_semantics=("parallel", "parallel"),
            vmem_limit_bytes=_VMEM_LIMIT),
    )(xt, y_nhwc, bias_map, wc9, wf, bf2)


def conv3x3(x_nhwc, w, b):
    n, h, wd, cin = x_nhwc.shape
    cout = w.shape[3]
    th = _pick_tile_h(h, wd)
    xt, nt = _halo_tiles(x_nhwc, th)
    w9 = w.reshape(9, cin, cout)
    b2 = b.reshape(1, cout)
    return pl.pallas_call(
        _conv3x3_kernel,
        out_shape=jax.ShapeDtypeStruct((n, h, wd, cout), jnp.float32),
        grid=(n, nt),
        in_specs=[
            pl.BlockSpec((1, th + 2, wd + 2, cin), lambda i, t: (i * nt + t, 0, 0, 0)),
            pl.BlockSpec((9, cin, cout), lambda i, t: (0, 0, 0)),
            pl.BlockSpec((1, cout), lambda i, t: (0, 0)),
        ],
        out_specs=pl.BlockSpec((1, th, wd, cout), lambda i, t: (i, t, 0, 0)),
        compiler_params=pltpu.CompilerParams(
            dimension_semantics=("parallel", "parallel"),
            vmem_limit_bytes=_VMEM_LIMIT),
    )(xt, w9, b2)


# ---------------------------------------------------------------------------
# Parameters & forward
# ---------------------------------------------------------------------------

def init_params(key, input_nc=4, output_nc=3, rdb_num=19, seg_dim=32):
    keys = jax.random.split(key, 16)

    def w(k, shape, scale=0.05):
        return scale * jax.random.normal(k, shape, jnp.float32)

    return {
        # conv_seg: 1x1, input_nc -> 3
        'conv_seg_w': w(keys[0], (input_nc, 3)),
        'conv_seg_b': w(keys[1], (3,)),
        # TODO(synk): deeplabv3plus_mobilenet backbone is loaded from an
        # external .pth checkpoint in the reference; replaced with a
        # deterministic 1x1 conv 3 -> num_classes(19) stand-in.
        'deeplab_w': w(keys[2], (3, rdb_num)),
        'deeplab_b': w(keys[3], (rdb_num,)),
        # TODO(synk): RDB block definition is not provided in the module;
        # treated as identity before the 1x1 projection 19 -> seg_dim.
        'segproj_w': w(keys[4], (rdb_num, seg_dim)),
        'segproj_b': w(keys[5], (seg_dim,)),
        # convR: 1x1, input_nc -> 3
        'convR_w': w(keys[6], (input_nc, 3)),
        'convR_b': w(keys[7], (3,)),
        # corse_conv: depthwise-separable 3 -> seg_dim, k=3, pad=1, bias=False
        'dw_w': w(keys[8], (3, 3, 3)),        # (kh, kw, c)
        'pw_w': w(keys[9], (3, seg_dim)),
        # combine_convs: 3x3 seg_dim->seg_dim, 3x3 seg_dim->seg_dim,
        #                3x3 seg_dim->output_nc (all pad=1, bias=True)  (HWIO)
        'c1_w': w(keys[10], (3, 3, seg_dim, seg_dim)),
        'c1_b': w(keys[11], (seg_dim,)),
        'c2_w': w(keys[12], (3, 3, seg_dim, seg_dim)),
        'c2_b': w(keys[13], (seg_dim,)),
        'c3_w': w(keys[14], (3, 3, seg_dim, output_nc)),
        'c3_b': w(keys[15], (output_nc,)),
        # note: `self.conv` in the reference is overwritten and never used in
        # forward, so it is omitted here.
    }


def skip_forward(params, x_nchw, y_nchw):
    x = jnp.transpose(x_nchw, (0, 2, 3, 1))          # NCHW -> NHWC
    y = jnp.transpose(y_nchw, (0, 2, 3, 1))
    n, h, w, cin = x.shape
    seg_dim = params['segproj_w'].shape[1]

    # --- exact algebraic fusion of the seg-branch 1x1 chain -----------------
    w1, b1 = params['conv_seg_w'], params['conv_seg_b']
    w2, b2 = params['deeplab_w'], params['deeplab_b']
    w3, b3 = params['segproj_w'], params['segproj_b']
    wf = w1 @ w2 @ w3                                 # (cin, seg_dim)
    bf = (b1 @ w2 + b2) @ w3 + b3                     # (seg_dim,)

    # --- exact algebraic fusion of convR + depthwise 3x3 + pointwise --------
    wr, br = params['convR_w'], params['convR_b']     # (cin,3), (3,)
    dw, pw = params['dw_w'], params['pw_w']           # (3,3,3), (3,seg_dim)
    w_eff = dw[..., None] * pw[None, None, :, :]      # (3,3,3,seg_dim)
    wc = jnp.einsum('ic,klco->klio', wr, w_eff)       # (3,3,cin,seg_dim)
    wc9 = wc.reshape(9, cin, seg_dim)
    # convR bias only flows through depthwise taps that land inside the image
    tap_bias = jnp.einsum('c,klco->klo', br, w_eff)   # (3,3,seg_dim)
    ones_img = jnp.pad(jnp.ones((h, w), jnp.float32), ((1, 1), (1, 1)))
    bias_map = sum(ones_img[kh:kh + h, kw:kw + w][:, :, None]
                   * tap_bias[kh, kw][None, None, :]
                   for kh in range(3) for kw in range(3))   # (h, w, seg_dim)

    # f = corse_conv(convR(x)) + seg_conv(deeplab(conv_seg(y)))   (one kernel)
    f = branch_fuse(x, y, wc9, bias_map, wf, bf)

    # y = combine_convs(f)
    h1 = conv3x3(f, params['c1_w'], params['c1_b'])
    h2 = conv3x3(h1, params['c2_w'], params['c2_b'])
    out = conv3x3(h2, params['c3_w'], params['c3_b'])

    return jnp.transpose(out, (0, 3, 1, 2))          # NHWC -> NCHW


# ---------------------------------------------------------------------------
# Pure-JAX reference (un-fused path) for a numerical sanity check
# ---------------------------------------------------------------------------

def _ref_forward(params, x_nchw, y_nchw):
    x = jnp.transpose(x_nchw, (0, 2, 3, 1))
    y = jnp.transpose(y_nchw, (0, 2, 3, 1))
    dn = ('NHWC', 'HWIO', 'NHWC')

    def conv(v, w, b=None, groups=1):
        o = jax.lax.conv_general_dilated(v, w, (1, 1), 'SAME',
                                         dimension_numbers=dn,
                                         feature_group_count=groups)
        return o if b is None else o + b

    seg = conv(y, params['conv_seg_w'][None, None], params['conv_seg_b'])
    seg = conv(seg, params['deeplab_w'][None, None], params['deeplab_b'])
    l = conv(seg, params['segproj_w'][None, None], params['segproj_b'])

    r0 = conv(x, params['convR_w'][None, None], params['convR_b'])
    r0 = conv(r0, params['dw_w'][:, :, None, :], None, groups=3)   # depthwise
    r = conv(r0, params['pw_w'][None, None], None)                 # pointwise

    f = r + l
    h1 = conv(f, params['c1_w'], params['c1_b'])
    h2 = conv(h1, params['c2_w'], params['c2_b'])
    out = conv(h2, params['c3_w'], params['c3_b'])
    return jnp.transpose(out, (0, 3, 1, 2))


if __name__ == "__main__":
    key = jax.random.PRNGKey(0)
    kx, ky, kp = jax.random.split(key, 3)

    # small shapes: batch=2, input_nc=4, spatial=16x16, output_nc=3
    x = jax.random.normal(kx, (2, 4, 16, 16), jnp.float32)
    y = jax.random.normal(ky, (2, 4, 16, 16), jnp.float32)
    params = init_params(kp, input_nc=4, output_nc=3, rdb_num=19, seg_dim=32)

    out = jax.jit(skip_forward)(params, x, y)
    jax.block_until_ready(out)
    assert out.shape == (2, 3, 16, 16), out.shape

    ref = jax.jit(_ref_forward)(params, x, y)
    jax.block_until_ready(ref)
    err = float(jnp.max(jnp.abs(out - ref)))
    assert err < 1e-2, f"mismatch vs un-fused reference: {err}"

    print("KERNEL_OK")
</pallas_src>

<mosaic_0001>
module attributes {stable_mosaic.version = 11 : i64} {
  func.func @_branch_fuse_kernel(%arg0: i32, %arg1: i32, %arg2: memref<1x18x18x4xf32, #tpu.memory_space<vmem>>, %arg3: memref<1x16x16x4xf32, #tpu.memory_space<vmem>>, %arg4: memref<16x16x32xf32, #tpu.memory_space<vmem>>, %arg5: memref<9x4x32xf32, #tpu.memory_space<vmem>>, %arg6: memref<4x32xf32, #tpu.memory_space<vmem>>, %arg7: memref<1x32xf32, #tpu.memory_space<vmem>>, %arg8: memref<1x16x16x32xf32, #tpu.memory_space<vmem>>) attributes {dimension_semantics = [#tpu.dimension_semantics<parallel>, #tpu.dimension_semantics<parallel>], iteration_bounds = array<i64: 2, 1>, scalar_prefetch = 0 : i64, scratch_operands = 0 : i64, tpu.core_type = #tpu.core_type<tc>, window_params = [{transform_indices = @transform_0, window_bounds = array<i64: 1, 18, 18, 4>}, {transform_indices = @transform_1, window_bounds = array<i64: 1, 16, 16, 4>}, {transform_indices = @transform_2, window_bounds = array<i64: 16, 16, 32>}, {pipeline_mode = #tpu.pipeline_mode<synchronous>, transform_indices = @transform_3, window_bounds = array<i64: 9, 4, 32>}, {pipeline_mode = #tpu.pipeline_mode<synchronous>, transform_indices = @transform_4, window_bounds = array<i64: 4, 32>}, {pipeline_mode = #tpu.pipeline_mode<synchronous>, transform_indices = @transform_5, window_bounds = array<i64: 1, 32>}, {transform_indices = @transform_6, window_bounds = array<i64: 1, 16, 16, 32>}]} {
    %c0 = arith.constant 0 : index
    %c0_0 = arith.constant 0 : index
    %c0_1 = arith.constant 0 : index
    %c0_2 = arith.constant 0 : index
    %0 = vector.load %arg2[%c0, %c0_0, %c0_1, %c0_2] : memref<1x18x18x4xf32, #tpu.memory_space<vmem>>, vector<1x18x18x4xf32>
    %1 = vector.shape_cast %0 : vector<1x18x18x4xf32> to vector<18x18x4xf32>
    %c0_3 = arith.constant 0 : index
    %c0_4 = arith.constant 0 : index
    %c0_5 = arith.constant 0 : index
    %c0_6 = arith.constant 0 : index
    %2 = vector.load %arg3[%c0_3, %c0_4, %c0_5, %c0_6] : memref<1x16x16x4xf32, #tpu.memory_space<vmem>>, vector<1x16x16x4xf32>
    %3 = vector.shape_cast %2 : vector<1x16x16x4xf32> to vector<16x16x4xf32>
    %4 = vector.shape_cast %3 : vector<16x16x4xf32> to vector<256x4xf32>
    %c0_7 = arith.constant 0 : index
    %c0_8 = arith.constant 0 : index
    %5 = vector.load %arg6[%c0_7, %c0_8] : memref<4x32xf32, #tpu.memory_space<vmem>>, vector<4x32xf32>
    %cst = arith.constant dense<0.000000e+00> : vector<256x32xf32>
    %6 = tpu.matmul %4, %5, %cst {dimension_numbers = #tpu.dot_dimension_numbers<[1], [0], [0], [1], [0, 0, 1, 1], [], []>} : vector<256x4xf32>, vector<4x32xf32>, vector<256x32xf32> -> vector<256x32xf32>
    %c0_9 = arith.constant 0 : index
    %c0_10 = arith.constant 0 : index
    %7 = vector.load %arg7[%c0_9, %c0_10] : memref<1x32xf32, #tpu.memory_space<vmem>>, vector<1x32xf32>
    %8 = vector.broadcast %7 : vector<1x32xf32> to vector<256x32xf32>
    %9 = arith.addf %6, %8 : vector<256x32xf32>
    %c0_11 = arith.constant 0 : index
    %c0_12 = arith.constant 0 : index
    %c0_13 = arith.constant 0 : index
    %10 = vector.load %arg4[%c0_11, %c0_12, %c0_13] : memref<16x16x32xf32, #tpu.memory_space<vmem>>, vector<16x16x32xf32>
    %11 = vector.shape_cast %10 : vector<16x16x32xf32> to vector<256x32xf32>
    %12 = arith.addf %9, %11 : vector<256x32xf32>
    %13 = vector.extract_strided_slice %1 {offsets = [0, 0, 0], sizes = [16, 16, 4], strides = [1, 1, 1]} : vector<18x18x4xf32> to vector<16x16x4xf32>
    %14 = vector.shape_cast %13 : vector<16x16x4xf32> to vector<256x4xf32>
    %c0_14 = arith.constant 0 : index
    %c0_15 = arith.constant 0 : index
    %c0_16 = arith.constant 0 : index
    %15 = vector.load %arg5[%c0_14, %c0_15, %c0_16] : memref<9x4x32xf32, #tpu.memory_space<vmem>>, vector<1x4x32xf32>
    %16 = vector.shape_cast %15 : vector<1x4x32xf32> to vector<4x32xf32>
    %cst_17 = arith.constant dense<0.000000e+00> : vector<256x32xf32>
    %17 = tpu.matmul %14, %16, %cst_17 {dimension_numbers = #tpu.dot_dimension_numbers<[1], [0], [0], [1], [0, 0, 1, 1], [], []>} : vector<256x4xf32>, vector<4x32xf32>, vector<256x32xf32> -> vector<256x32xf32>
    %18 = arith.addf %12, %17 : vector<256x32xf32>
    %19 = vector.extract_strided_slice %1 {offsets = [0, 1, 0], sizes = [16, 16, 4], strides = [1, 1, 1]} : vector<18x18x4xf32> to vector<16x16x4xf32>
    %20 = vector.shape_cast %19 : vector<16x16x4xf32> to vector<256x4xf32>
    %c1 = arith.constant 1 : index
    %c0_18 = arith.constant 0 : index
    %c0_19 = arith.constant 0 : index
    %21 = vector.load %arg5[%c1, %c0_18, %c0_19] : memref<9x4x32xf32, #tpu.memory_space<vmem>>, vector<1x4x32xf32>
    %22 = vector.shape_cast %21 : vector<1x4x32xf32> to vector<4x32xf32>
    %cst_20 = arith.constant dense<0.000000e+00> : vector<256x32xf32>
    %23 = tpu.matmul %20, %22, %cst_20 {dimension_numbers = #tpu.dot_dimension_numbers<[1], [0], [0], [1], [0, 0, 1, 1], [], []>} : vector<256x4xf32>, vector<4x32xf32>, vector<256x32xf32> -> vector<256x32xf32>
    %24 = arith.addf %18, %23 : vector<256x32xf32>
    %25 = vector.extract_strided_slice %1 {offsets = [0, 2, 0], sizes = [16, 16, 4], strides = [1, 1, 1]} : vector<18x18x4xf32> to vector<16x16x4xf32>
    %26 = vector.shape_cast %25 : vector<16x16x4xf32> to vector<256x4xf32>
    %c2 = arith.constant 2 : index
    %c0_21 = arith.constant 0 : index
    %c0_22 = arith.constant 0 : index
    %27 = vector.load %arg5[%c2, %c0_21, %c0_22] : memref<9x4x32xf32, #tpu.memory_space<vmem>>, vector<1x4x32xf32>
    %28 = vector.shape_cast %27 : vector<1x4x32xf32> to vector<4x32xf32>
    %cst_23 = arith.constant dense<0.000000e+00> : vector<256x32xf32>
    %29 = tpu.matmul %26, %28, %cst_23 {dimension_numbers = #tpu.dot_dimension_numbers<[1], [0], [0], [1], [0, 0, 1, 1], [], []>} : vector<256x4xf32>, vector<4x32xf32>, vector<256x32xf32> -> vector<256x32xf32>
    %30 = arith.addf %24, %29 : vector<256x32xf32>
    %31 = vector.extract_strided_slice %1 {offsets = [1, 0, 0], sizes = [16, 16, 4], strides = [1, 1, 1]} : vector<18x18x4xf32> to vector<16x16x4xf32>
    %32 = vector.shape_cast %31 : vector<16x16x4xf32> to vector<256x4xf32>
    %c3 = arith.constant 3 : index
    %c0_24 = arith.constant 0 : index
    %c0_25 = arith.constant 0 : index
    %33 = vector.load %arg5[%c3, %c0_24, %c0_25] : memref<9x4x32xf32, #tpu.memory_space<vmem>>, vector<1x4x32xf32>
    %34 = vector.shape_cast %33 : vector<1x4x32xf32> to vector<4x32xf32>
    %cst_26 = arith.constant dense<0.000000e+00> : vector<256x32xf32>
    %35 = tpu.matmul %32, %34, %cst_26 {dimension_numbers = #tpu.dot_dimension_numbers<[1], [0], [0], [1], [0, 0, 1, 1], [], []>} : vector<256x4xf32>, vector<4x32xf32>, vector<256x32xf32> -> vector<256x32xf32>
    %36 = arith.addf %30, %35 : vector<256x32xf32>
    %37 = vector.extract_strided_slice %1 {offsets = [1, 1, 0], sizes = [16, 16, 4], strides = [1, 1, 1]} : vector<18x18x4xf32> to vector<16x16x4xf32>
    %38 = vector.shape_cast %37 : vector<16x16x4xf32> to vector<256x4xf32>
    %c4 = arith.constant 4 : index
    %c0_27 = arith.constant 0 : index
    %c0_28 = arith.constant 0 : index
    %39 = vector.load %arg5[%c4, %c0_27, %c0_28] : memref<9x4x32xf32, #tpu.memory_space<vmem>>, vector<1x4x32xf32>
    %40 = vector.shape_cast %39 : vector<1x4x32xf32> to vector<4x32xf32>
    %cst_29 = arith.constant dense<0.000000e+00> : vector<256x32xf32>
    %41 = tpu.matmul %38, %40, %cst_29 {dimension_numbers = #tpu.dot_dimension_numbers<[1], [0], [0], [1], [0, 0, 1, 1], [], []>} : vector<256x4xf32>, vector<4x32xf32>, vector<256x32xf32> -> vector<256x32xf32>
    %42 = arith.addf %36, %41 : vector<256x32xf32>
    %43 = vector.extract_strided_slice %1 {offsets = [1, 2, 0], sizes = [16, 16, 4], strides = [1, 1, 1]} : vector<18x18x4xf32> to vector<16x16x4xf32>
    %44 = vector.shape_cast %43 : vector<16x16x4xf32> to vector<256x4xf32>
    %c5 = arith.constant 5 : index
    %c0_30 = arith.constant 0 : index
    %c0_31 = arith.constant 0 : index
    %45 = vector.load %arg5[%c5, %c0_30, %c0_31] : memref<9x4x32xf32, #tpu.memory_space<vmem>>, vector<1x4x32xf32>
    %46 = vector.shape_cast %45 : vector<1x4x32xf32> to vector<4x32xf32>
    %cst_32 = arith.constant dense<0.000000e+00> : vector<256x32xf32>
    %47 = tpu.matmul %44, %46, %cst_32 {dimension_numbers = #tpu.dot_dimension_numbers<[1], [0], [0], [1], [0, 0, 1, 1], [], []>} : vector<256x4xf32>, vector<4x32xf32>, vector<256x32xf32> -> vector<256x32xf32>
    %48 = arith.addf %42, %47 : vector<256x32xf32>
    %49 = vector.extract_strided_slice %1 {offsets = [2, 0, 0], sizes = [16, 16, 4], strides = [1, 1, 1]} : vector<18x18x4xf32> to vector<16x16x4xf32>
    %50 = vector.shape_cast %49 : vector<16x16x4xf32> to vector<256x4xf32>
    %c6 = arith.constant 6 : index
    %c0_33 = arith.constant 0 : index
    %c0_34 = arith.constant 0 : index
    %51 = vector.load %arg5[%c6, %c0_33, %c0_34] : memref<9x4x32xf32, #tpu.memory_space<vmem>>, vector<1x4x32xf32>
    %52 = vector.shape_cast %51 : vector<1x4x32xf32> to vector<4x32xf32>
    %cst_35 = arith.constant dense<0.000000e+00> : vector<256x32xf32>
    %53 = tpu.matmul %50, %52, %cst_35 {dimension_numbers = #tpu.dot_dimension_numbers<[1], [0], [0], [1], [0, 0, 1, 1], [], []>} : vector<256x4xf32>, vector<4x32xf32>, vector<256x32xf32> -> vector<256x32xf32>
    %54 = arith.addf %48, %53 : vector<256x32xf32>
    %55 = vector.extract_strided_slice %1 {offsets = [2, 1, 0], sizes = [16, 16, 4], strides = [1, 1, 1]} : vector<18x18x4xf32> to vector<16x16x4xf32>
    %56 = vector.shape_cast %55 : vector<16x16x4xf32> to vector<256x4xf32>
    %c7 = arith.constant 7 : index
    %c0_36 = arith.constant 0 : index
    %c0_37 = arith.constant 0 : index
    %57 = vector.load %arg5[%c7, %c0_36, %c0_37] : memref<9x4x32xf32, #tpu.memory_space<vmem>>, vector<1x4x32xf32>
    %58 = vector.shape_cast %57 : vector<1x4x32xf32> to vector<4x32xf32>
    %cst_38 = arith.constant dense<0.000000e+00> : vector<256x32xf32>
    %59 = tpu.matmul %56, %58, %cst_38 {dimension_numbers = #tpu.dot_dimension_numbers<[1], [0], [0], [1], [0, 0, 1, 1], [], []>} : vector<256x4xf32>, vector<4x32xf32>, vector<256x32xf32> -> vector<256x32xf32>
    %60 = arith.addf %54, %59 : vector<256x32xf32>
    %61 = vector.extract_strided_slice %1 {offsets = [2, 2, 0], sizes = [16, 16, 4], strides = [1, 1, 1]} : vector<18x18x4xf32> to vector<16x16x4xf32>
    %62 = vector.shape_cast %61 : vector<16x16x4xf32> to vector<256x4xf32>
    %c8 = arith.constant 8 : index
    %c0_39 = arith.constant 0 : index
    %c0_40 = arith.constant 0 : index
    %63 = vector.load %arg5[%c8, %c0_39, %c0_40] : memref<9x4x32xf32, #tpu.memory_space<vmem>>, vector<1x4x32xf32>
    %64 = vector.shape_cast %63 : vector<1x4x32xf32> to vector<4x32xf32>
    %cst_41 = arith.constant dense<0.000000e+00> : vector<256x32xf32>
    %65 = tpu.matmul %62, %64, %cst_41 {dimension_numbers = #tpu.dot_dimension_numbers<[1], [0], [0], [1], [0, 0, 1, 1], [], []>} : vector<256x4xf32>, vector<4x32xf32>, vector<256x32xf32> -> vector<256x32xf32>
    %66 = arith.addf %60, %65 : vector<256x32xf32>
    %67 = vector.shape_cast %66 : vector<256x32xf32> to vector<1x16x16x32xf32>
    %c0_42 = arith.constant 0 : index
    %c0_43 = arith.constant 0 : index
    %c0_44 = arith.constant 0 : index
    %c0_45 = arith.constant 0 : index
    %68 = vector.load %arg8[%c0_42, %c0_43, %c0_44, %c0_45] : memref<1x16x16x32xf32, #tpu.memory_space<vmem>>, vector<1x16x16x32xf32>
    tpu.vector_store %arg8[%c0_42, %c0_43, %c0_44, %c0_45], %67 {strides = array<i32>} : memref<1x16x16x32xf32, #tpu.memory_space<vmem>>, vector<1x16x16x32xf32>,
    return
  }
  func.func @transform_0(%arg0: i32, %arg1: i32) -> (i32, i32, i32, i32) {
    %c1_i32 = arith.constant 1 : i32
    %0 = arith.muli %arg0, %c1_i32 : i32
    %1 = arith.addi %0, %arg1 : i32
    %c0_i32 = arith.constant 0 : i32
    %c0_i32_0 = arith.constant 0 : i32
    %c0_i32_1 = arith.constant 0 : i32
    %c0_i32_2 = arith.constant 0 : i32
    return %1, %c0_i32, %c0_i32_0, %c0_i32_1 : i32, i32, i32, i32
  }
  func.func @transform_1(%arg0: i32, %arg1: i32) -> (i32, i32, i32, i32) {
    %c0_i32 = arith.constant 0 : i32
    %c0_i32_0 = arith.constant 0 : i32
    %c0_i32_1 = arith.constant 0 : i32
    return %arg0, %arg1, %c0_i32, %c0_i32_0 : i32, i32, i32, i32
  }
  func.func @transform_2(%arg0: i32, %arg1: i32) -> (i32, i32, i32) {
    %c0_i32 = arith.constant 0 : i32
    %c0_i32_0 = arith.constant 0 : i32
    %c0_i32_1 = arith.constant 0 : i32
    return %arg1, %c0_i32, %c0_i32_0 : i32, i32, i32
  }
  func.func @transform_3(%arg0: i32, %arg1: i32) -> (i32, i32, i32) {
    %c0_i32 = arith.constant 0 : i32
    %c0_i32_0 = arith.constant 0 : i32
    %c0_i32_1 = arith.constant 0 : i32
    %c0_i32_2 = arith.constant 0 : i32
    return %c0_i32, %c0_i32_0, %c0_i32_1 : i32, i32, i32
  }
  func.func @transform_4(%arg0: i32, %arg1: i32) -> (i32, i32) {
    %c0_i32 = arith.constant 0 : i32
    %c0_i32_0 = arith.constant 0 : i32
    %c0_i32_1 = arith.constant 0 : i32
    return %c0_i32, %c0_i32_0 : i32, i32
  }
  func.func @transform_5(%arg0: i32, %arg1: i32) -> (i32, i32) {
    %c0_i32 = arith.constant 0 : i32
    %c0_i32_0 = arith.constant 0 : i32
    %c0_i32_1 = arith.constant 0 : i32
    return %c0_i32, %c0_i32_0 : i32, i32
  }
  func.func @transform_6(%arg0: i32, %arg1: i32) -> (i32, i32, i32, i32) {
    %c0_i32 = arith.constant 0 : i32
    %c0_i32_0 = arith.constant 0 : i32
    %c0_i32_1 = arith.constant 0 : i32
    return %arg0, %arg1, %c0_i32, %c0_i32_0 : i32, i32, i32, i32
  }
}

module attributes {stable_mosaic.version = 11 : i64} {
  func.func @_conv3x3_kernel(%arg0: i32, %arg1: i32, %arg2: memref<1x18x18x32xf32, #tpu.memory_space<vmem>>, %arg3: memref<9x32x3xf32, #tpu.memory_space<vmem>>, %arg4: memref<1x3xf32, #tpu.memory_space<vmem>>, %arg5: memref<1x16x16x3xf32, #tpu.memory_space<vmem>>) attributes {dimension_semantics = [#tpu.dimension_semantics<parallel>, #tpu.dimension_semantics<parallel>], iteration_bounds = array<i64: 2, 1>, scalar_prefetch = 0 : i64, scratch_operands = 0 : i64, tpu.core_type = #tpu.core_type<tc>, window_params = [{transform_indices = @transform_0, window_bounds = array<i64: 1, 18, 18, 32>}, {pipeline_mode = #tpu.pipeline_mode<synchronous>, transform_indices = @transform_1, window_bounds = array<i64: 9, 32, 3>}, {pipeline_mode = #tpu.pipeline_mode<synchronous>, transform_indices = @transform_2, window_bounds = array<i64: 1, 3>}, {transform_indices = @transform_3, window_bounds = array<i64: 1, 16, 16, 3>}]} {
    %c0 = arith.constant 0 : index
    %c0_0 = arith.constant 0 : index
    %c0_1 = arith.constant 0 : index
    %c0_2 = arith.constant 0 : index
    %0 = vector.load %arg2[%c0, %c0_0, %c0_1, %c0_2] : memref<1x18x18x32xf32, #tpu.memory_space<vmem>>, vector<1x18x18x32xf32>
    %1 = vector.shape_cast %0 : vector<1x18x18x32xf32> to vector<18x18x32xf32>
    %cst = arith.constant 0.000000e+00 : f32
    %2 = vector.broadcast %cst : f32 to vector<256x3xf32>
    %3 = vector.extract_strided_slice %1 {offsets = [0, 0, 0], sizes = [16, 16, 32], strides = [1, 1, 1]} : vector<18x18x32xf32> to vector<16x16x32xf32>
    %4 = vector.shape_cast %3 : vector<16x16x32xf32> to vector<256x32xf32>
    %c0_3 = arith.constant 0 : index
    %c0_4 = arith.constant 0 : index
    %c0_5 = arith.constant 0 : index
    %5 = vector.load %arg3[%c0_3, %c0_4, %c0_5] : memref<9x32x3xf32, #tpu.memory_space<vmem>>, vector<1x32x3xf32>
    %6 = vector.shape_cast %5 : vector<1x32x3xf32> to vector<32x3xf32>
    %cst_6 = arith.constant dense<0.000000e+00> : vector<256x3xf32>
    %7 = tpu.matmul %4, %6, %cst_6 {dimension_numbers = #tpu.dot_dimension_numbers<[1], [0], [0], [1], [0, 0, 1, 1], [], []>} : vector<256x32xf32>, vector<32x3xf32>, vector<256x3xf32> -> vector<256x3xf32>
    %8 = arith.addf %2, %7 : vector<256x3xf32>
    %9 = vector.extract_strided_slice %1 {offsets = [0, 1, 0], sizes = [16, 16, 32], strides = [1, 1, 1]} : vector<18x18x32xf32> to vector<16x16x32xf32>
    %10 = vector.shape_cast %9 : vector<16x16x32xf32> to vector<256x32xf32>
    %c1 = arith.constant 1 : index
    %c0_7 = arith.constant 0 : index
    %c0_8 = arith.constant 0 : index
    %11 = vector.load %arg3[%c1, %c0_7, %c0_8] : memref<9x32x3xf32, #tpu.memory_space<vmem>>, vector<1x32x3xf32>
    %12 = vector.shape_cast %11 : vector<1x32x3xf32> to vector<32x3xf32>
    %cst_9 = arith.constant dense<0.000000e+00> : vector<256x3xf32>
    %13 = tpu.matmul %10, %12, %cst_9 {dimension_numbers = #tpu.dot_dimension_numbers<[1], [0], [0], [1], [0, 0, 1, 1], [], []>} : vector<256x32xf32>, vector<32x3xf32>, vector<256x3xf32> -> vector<256x3xf32>
    %14 = arith.addf %8, %13 : vector<256x3xf32>
    %15 = vector.extract_strided_slice %1 {offsets = [0, 2, 0], sizes = [16, 16, 32], strides = [1, 1, 1]} : vector<18x18x32xf32> to vector<16x16x32xf32>
    %16 = vector.shape_cast %15 : vector<16x16x32xf32> to vector<256x32xf32>
    %c2 = arith.constant 2 : index
    %c0_10 = arith.constant 0 : index
    %c0_11 = arith.constant 0 : index
    %17 = vector.load %arg3[%c2, %c0_10, %c0_11] : memref<9x32x3xf32, #tpu.memory_space<vmem>>, vector<1x32x3xf32>
    %18 = vector.shape_cast %17 : vector<1x32x3xf32> to vector<32x3xf32>
    %cst_12 = arith.constant dense<0.000000e+00> : vector<256x3xf32>
    %19 = tpu.matmul %16, %18, %cst_12 {dimension_numbers = #tpu.dot_dimension_numbers<[1], [0], [0], [1], [0, 0, 1, 1], [], []>} : vector<256x32xf32>, vector<32x3xf32>, vector<256x3xf32> -> vector<256x3xf32>
    %20 = arith.addf %14, %19 : vector<256x3xf32>
    %21 = vector.extract_strided_slice %1 {offsets = [1, 0, 0], sizes = [16, 16, 32], strides = [1, 1, 1]} : vector<18x18x32xf32> to vector<16x16x32xf32>
    %22 = vector.shape_cast %21 : vector<16x16x32xf32> to vector<256x32xf32>
    %c3 = arith.constant 3 : index
    %c0_13 = arith.constant 0 : index
    %c0_14 = arith.constant 0 : index
    %23 = vector.load %arg3[%c3, %c0_13, %c0_14] : memref<9x32x3xf32, #tpu.memory_space<vmem>>, vector<1x32x3xf32>
    %24 = vector.shape_cast %23 : vector<1x32x3xf32> to vector<32x3xf32>
    %cst_15 = arith.constant dense<0.000000e+00> : vector<256x3xf32>
    %25 = tpu.matmul %22, %24, %cst_15 {dimension_numbers = #tpu.dot_dimension_numbers<[1], [0], [0], [1], [0, 0, 1, 1], [], []>} : vector<256x32xf32>, vector<32x3xf32>, vector<256x3xf32> -> vector<256x3xf32>
    %26 = arith.addf %20, %25 : vector<256x3xf32>
    %27 = vector.extract_strided_slice %1 {offsets = [1, 1, 0], sizes = [16, 16, 32], strides = [1, 1, 1]} : vector<18x18x32xf32> to vector<16x16x32xf32>
    %28 = vector.shape_cast %27 : vector<16x16x32xf32> to vector<256x32xf32>
    %c4 = arith.constant 4 : index
    %c0_16 = arith.constant 0 : index
    %c0_17 = arith.constant 0 : index
    %29 = vector.load %arg3[%c4, %c0_16, %c0_17] : memref<9x32x3xf32, #tpu.memory_space<vmem>>, vector<1x32x3xf32>
    %30 = vector.shape_cast %29 : vector<1x32x3xf32> to vector<32x3xf32>
    %cst_18 = arith.constant dense<0.000000e+00> : vector<256x3xf32>
    %31 = tpu.matmul %28, %30, %cst_18 {dimension_numbers = #tpu.dot_dimension_numbers<[1], [0], [0], [1], [0, 0, 1, 1], [], []>} : vector<256x32xf32>, vector<32x3xf32>, vector<256x3xf32> -> vector<256x3xf32>
    %32 = arith.addf %26, %31 : vector<256x3xf32>
    %33 = vector.extract_strided_slice %1 {offsets = [1, 2, 0], sizes = [16, 16, 32], strides = [1, 1, 1]} : vector<18x18x32xf32> to vector<16x16x32xf32>
    %34 = vector.shape_cast %33 : vector<16x16x32xf32> to vector<256x32xf32>
    %c5 = arith.constant 5 : index
    %c0_19 = arith.constant 0 : index
    %c0_20 = arith.constant 0 : index
    %35 = vector.load %arg3[%c5, %c0_19, %c0_20] : memref<9x32x3xf32, #tpu.memory_space<vmem>>, vector<1x32x3xf32>
    %36 = vector.shape_cast %35 : vector<1x32x3xf32> to vector<32x3xf32>
    %cst_21 = arith.constant dense<0.000000e+00> : vector<256x3xf32>
    %37 = tpu.matmul %34, %36, %cst_21 {dimension_numbers = #tpu.dot_dimension_numbers<[1], [0], [0], [1], [0, 0, 1, 1], [], []>} : vector<256x32xf32>, vector<32x3xf32>, vector<256x3xf32> -> vector<256x3xf32>
    %38 = arith.addf %32, %37 : vector<256x3xf32>
    %39 = vector.extract_strided_slice %1 {offsets = [2, 0, 0], sizes = [16, 16, 32], strides = [1, 1, 1]} : vector<18x18x32xf32> to vector<16x16x32xf32>
    %40 = vector.shape_cast %39 : vector<16x16x32xf32> to vector<256x32xf32>
    %c6 = arith.constant 6 : index
    %c0_22 = arith.constant 0 : index
    %c0_23 = arith.constant 0 : index
    %41 = vector.load %arg3[%c6, %c0_22, %c0_23] : memref<9x32x3xf32, #tpu.memory_space<vmem>>, vector<1x32x3xf32>
    %42 = vector.shape_cast %41 : vector<1x32x3xf32> to vector<32x3xf32>
    %cst_24 = arith.constant dense<0.000000e+00> : vector<256x3xf32>
    %43 = tpu.matmul %40, %42, %cst_24 {dimension_numbers = #tpu.dot_dimension_numbers<[1], [0], [0], [1], [0, 0, 1, 1], [], []>} : vector<256x32xf32>, vector<32x3xf32>, vector<256x3xf32> -> vector<256x3xf32>
    %44 = arith.addf %38, %43 : vector<256x3xf32>
    %45 = vector.extract_strided_slice %1 {offsets = [2, 1, 0], sizes = [16, 16, 32], strides = [1, 1, 1]} : vector<18x18x32xf32> to vector<16x16x32xf32>
    %46 = vector.shape_cast %45 : vector<16x16x32xf32> to vector<256x32xf32>
    %c7 = arith.constant 7 : index
    %c0_25 = arith.constant 0 : index
    %c0_26 = arith.constant 0 : index
    %47 = vector.load %arg3[%c7, %c0_25, %c0_26] : memref<9x32x3xf32, #tpu.memory_space<vmem>>, vector<1x32x3xf32>
    %48 = vector.shape_cast %47 : vector<1x32x3xf32> to vector<32x3xf32>
    %cst_27 = arith.constant dense<0.000000e+00> : vector<256x3xf32>
    %49 = tpu.matmul %46, %48, %cst_27 {dimension_numbers = #tpu.dot_dimension_numbers<[1], [0], [0], [1], [0, 0, 1, 1], [], []>} : vector<256x32xf32>, vector<32x3xf32>, vector<256x3xf32> -> vector<256x3xf32>
    %50 = arith.addf %44, %49 : vector<256x3xf32>
    %51 = vector.extract_strided_slice %1 {offsets = [2, 2, 0], sizes = [16, 16, 32], strides = [1, 1, 1]} : vector<18x18x32xf32> to vector<16x16x32xf32>
    %52 = vector.shape_cast %51 : vector<16x16x32xf32> to vector<256x32xf32>
    %c8 = arith.constant 8 : index
    %c0_28 = arith.constant 0 : index
    %c0_29 = arith.constant 0 : index
    %53 = vector.load %arg3[%c8, %c0_28, %c0_29] : memref<9x32x3xf32, #tpu.memory_space<vmem>>, vector<1x32x3xf32>
    %54 = vector.shape_cast %53 : vector<1x32x3xf32> to vector<32x3xf32>
    %cst_30 = arith.constant dense<0.000000e+00> : vector<256x3xf32>
    %55 = tpu.matmul %52, %54, %cst_30 {dimension_numbers = #tpu.dot_dimension_numbers<[1], [0], [0], [1], [0, 0, 1, 1], [], []>} : vector<256x32xf32>, vector<32x3xf32>, vector<256x3xf32> -> vector<256x3xf32>
    %56 = arith.addf %50, %55 : vector<256x3xf32>
    %c0_31 = arith.constant 0 : index
    %c0_32 = arith.constant 0 : index
    %57 = vector.load %arg4[%c0_31, %c0_32] : memref<1x3xf32, #tpu.memory_space<vmem>>, vector<1x3xf32>
    %58 = vector.broadcast %57 : vector<1x3xf32> to vector<256x3xf32>
    %59 = arith.addf %56, %58 : vector<256x3xf32>
    %60 = vector.shape_cast %59 : vector<256x3xf32> to vector<1x16x16x3xf32>
    %c0_33 = arith.constant 0 : index
    %c0_34 = arith.constant 0 : index
    %c0_35 = arith.constant 0 : index
    %c0_36 = arith.constant 0 : index
    %61 = vector.load %arg5[%c0_33, %c0_34, %c0_35, %c0_36] : memref<1x16x16x3xf32, #tpu.memory_space<vmem>>, vector<1x16x16x3xf32>
    tpu.vector_store %arg5[%c0_33, %c0_34, %c0_35, %c0_36], %60 {strides = array<i32>} : memref<1x16x16x3xf32, #tpu.memory_space<vmem>>, vector<1x16x16x3xf32>,
    return
  }
  func.func @transform_0(%arg0: i32, %arg1: i32) -> (i32, i32, i32, i32) {
    %c1_i32 = arith.constant 1 : i32
    %0 = arith.muli %arg0, %c1_i32 : i32
    %1 = arith.addi %0, %arg1 : i32
    %c0_i32 = arith.constant 0 : i32
    %c0_i32_0 = arith.constant 0 : i32
    %c0_i32_1 = arith.constant 0 : i32
    %c0_i32_2 = arith.constant 0 : i32
    return %1, %c0_i32, %c0_i32_0, %c0_i32_1 : i32, i32, i32, i32
  }
  func.func @transform_1(%arg0: i32, %arg1: i32) -> (i32, i32, i32) {
    %c0_i32 = arith.constant 0 : i32
    %c0_i32_0 = arith.constant 0 : i32
    %c0_i32_1 = arith.constant 0 : i32
    %c0_i32_2 = arith.constant 0 : i32
    return %c0_i32, %c0_i32_0, %c0_i32_1 : i32, i32, i32
  }
  func.func @transform_2(%arg0: i32, %arg1: i32) -> (i32, i32) {
    %c0_i32 = arith.constant 0 : i32
    %c0_i32_0 = arith.constant 0 : i32
    %c0_i32_1 = arith.constant 0 : i32
    return %c0_i32, %c0_i32_0 : i32, i32
  }
  func.func @transform_3(%arg0: i32, %arg1: i32) -> (i32, i32, i32, i32) {
    %c0_i32 = arith.constant 0 : i32
    %c0_i32_0 = arith.constant 0 : i32
    %c0_i32_1 = arith.constant 0 : i32
    return %arg0, %arg1, %c0_i32, %c0_i32_0 : i32, i32, i32, i32
  }
}

module attributes {stable_mosaic.version = 11 : i64} {
  func.func @_conv3x3_kernel(%arg0: i32, %arg1: i32, %arg2: memref<1x18x18x32xf32, #tpu.memory_space<vmem>>, %arg3: memref<9x32x32xf32, #tpu.memory_space<vmem>>, %arg4: memref<1x32xf32, #tpu.memory_space<vmem>>, %arg5: memref<1x16x16x32xf32, #tpu.memory_space<vmem>>) attributes {dimension_semantics = [#tpu.dimension_semantics<parallel>, #tpu.dimension_semantics<parallel>], iteration_bounds = array<i64: 2, 1>, scalar_prefetch = 0 : i64, scratch_operands = 0 : i64, tpu.core_type = #tpu.core_type<tc>, window_params = [{transform_indices = @transform_0, window_bounds = array<i64: 1, 18, 18, 32>}, {pipeline_mode = #tpu.pipeline_mode<synchronous>, transform_indices = @transform_1, window_bounds = array<i64: 9, 32, 32>}, {pipeline_mode = #tpu.pipeline_mode<synchronous>, transform_indices = @transform_2, window_bounds = array<i64: 1, 32>}, {transform_indices = @transform_3, window_bounds = array<i64: 1, 16, 16, 32>}]} {
    %c0 = arith.constant 0 : index
    %c0_0 = arith.constant 0 : index
    %c0_1 = arith.constant 0 : index
    %c0_2 = arith.constant 0 : index
    %0 = vector.load %arg2[%c0, %c0_0, %c0_1, %c0_2] : memref<1x18x18x32xf32, #tpu.memory_space<vmem>>, vector<1x18x18x32xf32>
    %1 = vector.shape_cast %0 : vector<1x18x18x32xf32> to vector<18x18x32xf32>
    %cst = arith.constant 0.000000e+00 : f32
    %2 = vector.broadcast %cst : f32 to vector<256x32xf32>
    %3 = vector.extract_strided_slice %1 {offsets = [0, 0, 0], sizes = [16, 16, 32], strides = [1, 1, 1]} : vector<18x18x32xf32> to vector<16x16x32xf32>
    %4 = vector.shape_cast %3 : vector<16x16x32xf32> to vector<256x32xf32>
    %c0_3 = arith.constant 0 : index
    %c0_4 = arith.constant 0 : index
    %c0_5 = arith.constant 0 : index
    %5 = vector.load %arg3[%c0_3, %c0_4, %c0_5] : memref<9x32x32xf32, #tpu.memory_space<vmem>>, vector<1x32x32xf32>
    %6 = vector.shape_cast %5 : vector<1x32x32xf32> to vector<32x32xf32>
    %cst_6 = arith.constant dense<0.000000e+00> : vector<256x32xf32>
    %7 = tpu.matmul %4, %6, %cst_6 {dimension_numbers = #tpu.dot_dimension_numbers<[1], [0], [0], [1], [0, 0, 1, 1], [], []>} : vector<256x32xf32>, vector<32x32xf32>, vector<256x32xf32> -> vector<256x32xf32>
    %8 = arith.addf %2, %7 : vector<256x32xf32>
    %9 = vector.extract_strided_slice %1 {offsets = [0, 1, 0], sizes = [16, 16, 32], strides = [1, 1, 1]} : vector<18x18x32xf32> to vector<16x16x32xf32>
    %10 = vector.shape_cast %9 : vector<16x16x32xf32> to vector<256x32xf32>
    %c1 = arith.constant 1 : index
    %c0_7 = arith.constant 0 : index
    %c0_8 = arith.constant 0 : index
    %11 = vector.load %arg3[%c1, %c0_7, %c0_8] : memref<9x32x32xf32, #tpu.memory_space<vmem>>, vector<1x32x32xf32>
    %12 = vector.shape_cast %11 : vector<1x32x32xf32> to vector<32x32xf32>
    %cst_9 = arith.constant dense<0.000000e+00> : vector<256x32xf32>
    %13 = tpu.matmul %10, %12, %cst_9 {dimension_numbers = #tpu.dot_dimension_numbers<[1], [0], [0], [1], [0, 0, 1, 1], [], []>} : vector<256x32xf32>, vector<32x32xf32>, vector<256x32xf32> -> vector<256x32xf32>
    %14 = arith.addf %8, %13 : vector<256x32xf32>
    %15 = vector.extract_strided_slice %1 {offsets = [0, 2, 0], sizes = [16, 16, 32], strides = [1, 1, 1]} : vector<18x18x32xf32> to vector<16x16x32xf32>
    %16 = vector.shape_cast %15 : vector<16x16x32xf32> to vector<256x32xf32>
    %c2 = arith.constant 2 : index
    %c0_10 = arith.constant 0 : index
    %c0_11 = arith.constant 0 : index
    %17 = vector.load %arg3[%c2, %c0_10, %c0_11] : memref<9x32x32xf32, #tpu.memory_space<vmem>>, vector<1x32x32xf32>
    %18 = vector.shape_cast %17 : vector<1x32x32xf32> to vector<32x32xf32>
    %cst_12 = arith.constant dense<0.000000e+00> : vector<256x32xf32>
    %19 = tpu.matmul %16, %18, %cst_12 {dimension_numbers = #tpu.dot_dimension_numbers<[1], [0], [0], [1], [0, 0, 1, 1], [], []>} : vector<256x32xf32>, vector<32x32xf32>, vector<256x32xf32> -> vector<256x32xf32>
    %20 = arith.addf %14, %19 : vector<256x32xf32>
    %21 = vector.extract_strided_slice %1 {offsets = [1, 0, 0], sizes = [16, 16, 32], strides = [1, 1, 1]} : vector<18x18x32xf32> to vector<16x16x32xf32>
    %22 = vector.shape_cast %21 : vector<16x16x32xf32> to vector<256x32xf32>
    %c3 = arith.constant 3 : index
    %c0_13 = arith.constant 0 : index
    %c0_14 = arith.constant 0 : index
    %23 = vector.load %arg3[%c3, %c0_13, %c0_14] : memref<9x32x32xf32, #tpu.memory_space<vmem>>, vector<1x32x32xf32>
    %24 = vector.shape_cast %23 : vector<1x32x32xf32> to vector<32x32xf32>
    %cst_15 = arith.constant dense<0.000000e+00> : vector<256x32xf32>
    %25 = tpu.matmul %22, %24, %cst_15 {dimension_numbers = #tpu.dot_dimension_numbers<[1], [0], [0], [1], [0, 0, 1, 1], [], []>} : vector<256x32xf32>, vector<32x32xf32>, vector<256x32xf32> -> vector<256x32xf32>
    %26 = arith.addf %20, %25 : vector<256x32xf32>
    %27 = vector.extract_strided_slice %1 {offsets = [1, 1, 0], sizes = [16, 16, 32], strides = [1, 1, 1]} : vector<18x18x32xf32> to vector<16x16x32xf32>
    %28 = vector.shape_cast %27 : vector<16x16x32xf32> to vector<256x32xf32>
    %c4 = arith.constant 4 : index
    %c0_16 = arith.constant 0 : index
    %c0_17 = arith.constant 0 : index
    %29 = vector.load %arg3[%c4, %c0_16, %c0_17] : memref<9x32x32xf32, #tpu.memory_space<vmem>>, vector<1x32x32xf32>
    %30 = vector.shape_cast %29 : vector<1x32x32xf32> to vector<32x32xf32>
    %cst_18 = arith.constant dense<0.000000e+00> : vector<256x32xf32>
    %31 = tpu.matmul %28, %30, %cst_18 {dimension_numbers = #tpu.dot_dimension_numbers<[1], [0], [0], [1], [0, 0, 1, 1], [], []>} : vector<256x32xf32>, vector<32x32xf32>, vector<256x32xf32> -> vector<256x32xf32>
    %32 = arith.addf %26, %31 : vector<256x32xf32>
    %33 = vector.extract_strided_slice %1 {offsets = [1, 2, 0], sizes = [16, 16, 32], strides = [1, 1, 1]} : vector<18x18x32xf32> to vector<16x16x32xf32>
    %34 = vector.shape_cast %33 : vector<16x16x32xf32> to vector<256x32xf32>
    %c5 = arith.constant 5 : index
    %c0_19 = arith.constant 0 : index
    %c0_20 = arith.constant 0 : index
    %35 = vector.load %arg3[%c5, %c0_19, %c0_20] : memref<9x32x32xf32, #tpu.memory_space<vmem>>, vector<1x32x32xf32>
    %36 = vector.shape_cast %35 : vector<1x32x32xf32> to vector<32x32xf32>
    %cst_21 = arith.constant dense<0.000000e+00> : vector<256x32xf32>
    %37 = tpu.matmul %34, %36, %cst_21 {dimension_numbers = #tpu.dot_dimension_numbers<[1], [0], [0], [1], [0, 0, 1, 1], [], []>} : vector<256x32xf32>, vector<32x32xf32>, vector<256x32xf32> -> vector<256x32xf32>
    %38 = arith.addf %32, %37 : vector<256x32xf32>
    %39 = vector.extract_strided_slice %1 {offsets = [2, 0, 0], sizes = [16, 16, 32], strides = [1, 1, 1]} : vector<18x18x32xf32> to vector<16x16x32xf32>
    %40 = vector.shape_cast %39 : vector<16x16x32xf32> to vector<256x32xf32>
    %c6 = arith.constant 6 : index
    %c0_22 = arith.constant 0 : index
    %c0_23 = arith.constant 0 : index
    %41 = vector.load %arg3[%c6, %c0_22, %c0_23] : memref<9x32x32xf32, #tpu.memory_space<vmem>>, vector<1x32x32xf32>
    %42 = vector.shape_cast %41 : vector<1x32x32xf32> to vector<32x32xf32>
    %cst_24 = arith.constant dense<0.000000e+00> : vector<256x32xf32>
    %43 = tpu.matmul %40, %42, %cst_24 {dimension_numbers = #tpu.dot_dimension_numbers<[1], [0], [0], [1], [0, 0, 1, 1], [], []>} : vector<256x32xf32>, vector<32x32xf32>, vector<256x32xf32> -> vector<256x32xf32>
    %44 = arith.addf %38, %43 : vector<256x32xf32>
    %45 = vector.extract_strided_slice %1 {offsets = [2, 1, 0], sizes = [16, 16, 32], strides = [1, 1, 1]} : vector<18x18x32xf32> to vector<16x16x32xf32>
    %46 = vector.shape_cast %45 : vector<16x16x32xf32> to vector<256x32xf32>
    %c7 = arith.constant 7 : index
    %c0_25 = arith.constant 0 : index
    %c0_26 = arith.constant 0 : index
    %47 = vector.load %arg3[%c7, %c0_25, %c0_26] : memref<9x32x32xf32, #tpu.memory_space<vmem>>, vector<1x32x32xf32>
    %48 = vector.shape_cast %47 : vector<1x32x32xf32> to vector<32x32xf32>
    %cst_27 = arith.constant dense<0.000000e+00> : vector<256x32xf32>
    %49 = tpu.matmul %46, %48, %cst_27 {dimension_numbers = #tpu.dot_dimension_numbers<[1], [0], [0], [1], [0, 0, 1, 1], [], []>} : vector<256x32xf32>, vector<32x32xf32>, vector<256x32xf32> -> vector<256x32xf32>
    %50 = arith.addf %44, %49 : vector<256x32xf32>
    %51 = vector.extract_strided_slice %1 {offsets = [2, 2, 0], sizes = [16, 16, 32], strides = [1, 1, 1]} : vector<18x18x32xf32> to vector<16x16x32xf32>
    %52 = vector.shape_cast %51 : vector<16x16x32xf32> to vector<256x32xf32>
    %c8 = arith.constant 8 : index
    %c0_28 = arith.constant 0 : index
    %c0_29 = arith.constant 0 : index
    %53 = vector.load %arg3[%c8, %c0_28, %c0_29] : memref<9x32x32xf32, #tpu.memory_space<vmem>>, vector<1x32x32xf32>
    %54 = vector.shape_cast %53 : vector<1x32x32xf32> to vector<32x32xf32>
    %cst_30 = arith.constant dense<0.000000e+00> : vector<256x32xf32>
    %55 = tpu.matmul %52, %54, %cst_30 {dimension_numbers = #tpu.dot_dimension_numbers<[1], [0], [0], [1], [0, 0, 1, 1], [], []>} : vector<256x32xf32>, vector<32x32xf32>, vector<256x32xf32> -> vector<256x32xf32>
    %56 = arith.addf %50, %55 : vector<256x32xf32>
    %c0_31 = arith.constant 0 : index
    %c0_32 = arith.constant 0 : index
    %57 = vector.load %arg4[%c0_31, %c0_32] : memref<1x32xf32, #tpu.memory_space<vmem>>, vector<1x32xf32>
    %58 = vector.broadcast %57 : vector<1x32xf32> to vector<256x32xf32>
    %59 = arith.addf %56, %58 : vector<256x32xf32>
    %60 = vector.shape_cast %59 : vector<256x32xf32> to vector<1x16x16x32xf32>
    %c0_33 = arith.constant 0 : index
    %c0_34 = arith.constant 0 : index
    %c0_35 = arith.constant 0 : index
    %c0_36 = arith.constant 0 : index
    %61 = vector.load %arg5[%c0_33, %c0_34, %c0_35, %c0_36] : memref<1x16x16x32xf32, #tpu.memory_space<vmem>>, vector<1x16x16x32xf32>
    tpu.vector_store %arg5[%c0_33, %c0_34, %c0_35, %c0_36], %60 {strides = array<i32>} : memref<1x16x16x32xf32, #tpu.memory_space<vmem>>, vector<1x16x16x32xf32>,
    return
  }
  func.func @transform_0(%arg0: i32, %arg1: i32) -> (i32, i32, i32, i32) {
    %c1_i32 = arith.constant 1 : i32
    %0 = arith.muli %arg0, %c1_i32 : i32
    %1 = arith.addi %0, %arg1 : i32
    %c0_i32 = arith.constant 0 : i32
    %c0_i32_0 = arith.constant 0 : i32
    %c0_i32_1 = arith.constant 0 : i32
    %c0_i32_2 = arith.constant 0 : i32
    return %1, %c0_i32, %c0_i32_0, %c0_i32_1 : i32, i32, i32, i32
  }
  func.func @transform_1(%arg0: i32, %arg1: i32) -> (i32, i32, i32) {
    %c0_i32 = arith.constant 0 : i32
    %c0_i32_0 = arith.constant 0 : i32
    %c0_i32_1 = arith.constant 0 : i32
    %c0_i32_2 = arith.constant 0 : i32
    return %c0_i32, %c0_i32_0, %c0_i32_1 : i32, i32, i32
  }
  func.func @transform_2(%arg0: i32, %arg1: i32) -> (i32, i32) {
    %c0_i32 = arith.constant 0 : i32
    %c0_i32_0 = arith.constant 0 : i32
    %c0_i32_1 = arith.constant 0 : i32
    return %c0_i32, %c0_i32_0 : i32, i32
  }
  func.func @transform_3(%arg0: i32, %arg1: i32) -> (i32, i32, i32, i32) {
    %c0_i32 = arith.constant 0 : i32
    %c0_i32_0 = arith.constant 0 : i32
    %c0_i32_1 = arith.constant 0 : i32
    return %arg0, %arg1, %c0_i32, %c0_i32_0 : i32, i32, i32, i32
  }
}

</mosaic_0001>

<llo_original>
// kernel: skip_forward.7
$region0: #{skip_forward.7}
  #allocation0 [shape = 'u32[]', space=smem, size = 0x4, offset = 0x4, fixed_abs, tag = 'smem constant byte address 0x4 - core index']
  #allocation1 [shape = 'u32[72,128]{1,0:T(1,128)}', space=vmem, size = 0x9000, scoped, tag = 'internal scratch']
  %s0 = inlined_call_operand.vmem [shape: f32[2,18,18,32], index: 0, kind: input, shape index: {}]
  %s1 = inlined_call_operand.vmem [shape: f32[9,32,3], index: 1, kind: input, shape index: {}]
  %s2 = inlined_call_operand.vmem [shape: f32[1,3], index: 2, kind: input, shape index: {}]
  %s3 = inlined_call_operand.vmem [shape: f32[2,16,16,3], index: 3, kind: output, shape index: {}]
  %s4 = sld [smem:[#allocation0]]
  $region45: #{skip_forward.7} parent=0
    _
  %s6 = ssub.s32 1, %s4
  %s7 = scalar_select 0, %s6, %s4
  loop: start=0, step=1, limit=4
  $region2: #{skip_forward.7} parent=0 // loop_pre_header
    _
  $region3: #{skip_forward.7} parent=0 // loop_header
    %s9 = sphi 0, %s13
    %p10 = scmp.ge.s32.totalorder %s9, 4
    %s16 = sphi 0, %s28
    %s17 = sphi 0, %s24
    %s18 = sphi 0, %s16
    %s19 = sphi 0, %s17
    %s20 = sphi 0, %s18
    %s21 = sphi 0, %s19
    %s33 = sphi 0, %s35
    %s36 = sphi 0, %s33
    %s37 = sphi 0, %s36
    %s53 = sphi 0, %s37
    %s57 = sphi 0, %s57
    %s59 = sphi 0, %s57
    %s60 = sphi 0, %s59
    %s74 = sphi 0, %s60
    %s78 = sphi 0, %s78
    %s80 = sphi 0, %s78
    %s81 = sphi 0, %s80
    %s95 = sphi 0, %s81
    %s103 = sphi 0, %s105
    %s106 = sphi 0, %s103
    %s107 = sphi 0, %s106
    %s123 = sphi 0, %s107
  $region4: #{skip_forward.7} parent=0 // loop_header_branch
    %12 = sbr.rel (%p10) target = $region8
  $region5: #{skip_forward.7} parent=0 // loop_body
    %s14 = ssub.s32 %s9, 1
    %s15 = ssub.s32 %s9, 2
    %s22 = sadd.s32 1, %s17
    %p23 = scmp.ge.s32.totalorder %s22, 1
    %s24 = scalar_select %p23, 0, %s22
    %s25 = sadd.s32 1, %s16
    %s26 = scalar_select %p23, %s25, %s16
    %p27 = scmp.ge.s32.totalorder %s26, 2
    %s28 = scalar_select %p27, 0, %s26
    %s29 = sadd.s32 %s16, %s17
    %s30 = sadd.s32 %s28, %s24
    %s31 = ssub.s32 %s29, %s30
    %p32 = scmp.eq.s32.totalorder %s31, 0
    %s34 = sadd.s32 %s33, 1
    %s35 = scalar_select %p32, %s33, %s34
    %p38 = pneg %p32
    %p39 = scmp.eq.s32.totalorder %s9, 1
    %p40 = por %p38, %p39
    %p41 = scmp.ne.s32.totalorder %s33, %s36
    %p42 = scmp.eq.s32.totalorder %s9, 0
    %p43 = por %p41, %p42
    %p44 = scmp.ne.s32.totalorder %s33, %s36
    %p45 = scmp.eq.s32.totalorder %s14, 1
    %p46 = por %p44, %p45
    %p47 = scmp.ne.s32.totalorder %s36, %s37
    %p48 = scmp.eq.s32.totalorder %s14, 0
    %p49 = por %p47, %p48
    %p50 = scmp.ne.s32.totalorder %s36, %s37
    %p51 = scmp.eq.s32.totalorder %s15, 1
    %p52 = por %p50, %p51
    %p54 = scmp.ne.s32.totalorder %s37, %s53
    %p55 = scmp.eq.s32.totalorder %s15, 0
    %p56 = por %p54, %p55
    %s58 = sadd.s32 %s57, 1
    %p61 = scmp.eq.s32.totalorder %s9, 1
    %p62 = scmp.ne.s32.totalorder %s57, %s59
    %p63 = scmp.eq.s32.totalorder %s9, 0
    %p64 = por %p62, %p63
    %p65 = scmp.ne.s32.totalorder %s57, %s59
    %p66 = scmp.eq.s32.totalorder %s14, 1
    %p67 = por %p65, %p66
    %p68 = scmp.ne.s32.totalorder %s59, %s60
    %p69 = scmp.eq.s32.totalorder %s14, 0
    %p70 = por %p68, %p69
    %p71 = scmp.ne.s32.totalorder %s59, %s60
    %p72 = scmp.eq.s32.totalorder %s15, 1
    %p73 = por %p71, %p72
    %p75 = scmp.ne.s32.totalorder %s60, %s74
    %p76 = scmp.eq.s32.totalorder %s15, 0
    %p77 = por %p75, %p76
    %s79 = sadd.s32 %s78, 1
    %p82 = scmp.eq.s32.totalorder %s9, 1
    %p83 = scmp.ne.s32.totalorder %s78, %s80
    %p84 = scmp.eq.s32.totalorder %s9, 0
    %p85 = por %p83, %p84
    %p86 = scmp.ne.s32.totalorder %s78, %s80
    %p87 = scmp.eq.s32.totalorder %s14, 1
    %p88 = por %p86, %p87
    %p89 = scmp.ne.s32.totalorder %s80, %s81
    %p90 = scmp.eq.s32.totalorder %s14, 0
    %p91 = por %p89, %p90
    %p92 = scmp.ne.s32.totalorder %s80, %s81
    %p93 = scmp.eq.s32.totalorder %s15, 1
    %p94 = por %p92, %p93
    %p96 = scmp.ne.s32.totalorder %s81, %s95
    %p97 = scmp.eq.s32.totalorder %s15, 0
    %p98 = por %p96, %p97
    %s99 = ssub.s32 %s16, %s28
    %s100 = ssub.s32 %s17, %s24
    %s101 = sor.u32 %s99, %s100
    %p102 = scmp.eq.s32.totalorder %s101, 0
    %s104 = sadd.s32 %s103, 1
    %s105 = scalar_select %p102, %s103, %s104
    %p108 = pneg %p102
    %p109 = scmp.eq.s32.totalorder %s9, 1
    %p110 = por %p108, %p109
    %p111 = scmp.ne.s32.totalorder %s103, %s106
    %p112 = scmp.eq.s32.totalorder %s9, 0
    %p113 = por %p111, %p112
    %p114 = scmp.ne.s32.totalorder %s103, %s106
    %p115 = scmp.eq.s32.totalorder %s14, 1
    %p116 = por %p114, %p115
    %p117 = scmp.ne.s32.totalorder %s106, %s107
    %p118 = scmp.eq.s32.totalorder %s14, 0
    %p119 = por %p117, %p118
    %p120 = scmp.ne.s32.totalorder %s106, %s107
    %p121 = scmp.eq.s32.totalorder %s15, 1
    %p122 = por %p120, %p121
    %p124 = scmp.ne.s32.totalorder %s107, %s123
    %p125 = scmp.eq.s32.totalorder %s15, 0
    %p126 = por %p124, %p125
    %p127 = scmp.le.s32.totalorder 1, %s9
    %p128 = scmp.lt.s32.totalorder %s9, 3
    %p129 = pnand %p127, %p128
    %p130 = pneg %p129
    // Predicated region
    $region9: #{skip_forward.7} parent=5 // pred_check
      _
    $region10: #{skip_forward.7} parent=5 // pred_check_branch
      %132 = sbr.rel (%p129) target = $region12
    $region11: #{skip_forward.7} parent=5 // pred_region
      %s133 = ssub.s32 %s9, 1
      // Predicated region
      $region13: #{skip_forward.7} parent=11 // pred_check
        %p134 = pneg %p70
      $region14: #{skip_forward.7} parent=11 // pred_check_branch
        %136 = sbr.rel (%p134) target = $region16
      $region15: #{skip_forward.7} parent=11 // pred_region
        _
      $region16: #{skip_forward.7} parent=11 // pred_fallthru
        _
      // Predicated region
      $region17: #{skip_forward.7} parent=11 // pred_check
        %p137 = pneg %p91
      $region18: #{skip_forward.7} parent=11 // pred_check_branch
        %139 = sbr.rel (%p137) target = $region20
      $region19: #{skip_forward.7} parent=11 // pred_region
        _
      $region20: #{skip_forward.7} parent=11 // pred_fallthru
        _
    $region12: #{skip_forward.7} parent=5 // pred_fallthru
      _
    %p140 = scmp.lt.s32.totalorder %s9, 2
    // Predicated region
    $region21: #{skip_forward.7} parent=5 // pred_check
      %p141 = pneg %p140
    $region22: #{skip_forward.7} parent=5 // pred_check_branch
      %143 = sbr.rel (%p141) target = $region24
    $region23: #{skip_forward.7} parent=5 // pred_region
      // Predicated region
      $region25: #{skip_forward.7} parent=23 // pred_check
        %p144 = pneg %p43
      $region26: #{skip_forward.7} parent=23 // pred_check_branch
        %146 = sbr.rel (%p144) target = $region28
      $region27: #{skip_forward.7} parent=23 // pred_region
        %s147 = sadd.s32 %s16, %s17
        %p148 = scmp.lt.s32.totalorder %s147, 1
        %s149 = scalar_select %p148, %s147, 1
        %s150 = smul.addr %s149, 54
        %s151 = smul.addr %s150, 8
        %s152 = scalar_lea.vmem %s0, %s151
        %s153 = sadd.s32 %s16, %s17
      $region28: #{skip_forward.7} parent=23 // pred_fallthru
        _
    $region24: #{skip_forward.7} parent=5 // pred_fallthru
      _
    %p154 = scmp.le.s32.totalorder 1, %s9
    %p155 = scmp.lt.s32.totalorder %s9, 3
    %p156 = pnand %p154, %p155
    %p157 = pneg %p156
    // Predicated region
    $region29: #{skip_forward.7} parent=5 // pred_check
      _
    $region30: #{skip_forward.7} parent=5 // pred_check_branch
      %159 = sbr.rel (%p156) target = $region32
    $region31: #{skip_forward.7} parent=5 // pred_region
      %s160 = ssub.s32 %s9, 1
      %s161 = sadd.s32 %s18, %s19
      %p162 = scmp.lt.s32.totalorder %s161, 1
      %s163 = scalar_select %p162, %s161, 1
      %s164 = smul.addr %s163, 54
      %s165 = smul.addr %s164, 8
      %s166 = scalar_lea.vmem %s0, %s165
      %p167 = pneg %p49
      %p168 = pneg %p46
      %p169 = pneg %p70
      %p170 = pneg %p67
      %p171 = pneg %p91
      %p172 = pneg %p88
      %p173 = pneg %p119
      %p174 = pneg %p116
      %s175 = smul.u32 16, %s19
      %p176 = scmp.lt.s32.totalorder %s18, 1
      %s177 = scalar_select %p176, %s18, 1
      %p178 = scmp.lt.s32.totalorder %s175, 15
      %s179 = scalar_select %p178, %s175, 15
      %s180 = smul.addr %s179, 2
      %s181 = smul.addr %s177, 32
      %s182 = sadd.s32 %s180, %s181
      %s183 = smul.addr %s182, 8
      %s184 = scalar_lea.vmem %s3, %s183
      %s185 = sadd.s32 %s18, %s19
      %p186 = scmp.lt.s32.totalorder %s185, 1
      %s187 = scalar_select %p186, %s185, 1
      %s188 = smul.addr %s187, 54
      %s189 = smul.addr %s188, 8
      %s190 = scalar_lea.vmem %s0, %s189
      %s191 = sadd.s32 %s18, %s19
      %s192 = smul.u32 16, %s19
      %p193 = scmp.lt.s32.totalorder %s18, 1
      %s194 = scalar_select %p193, %s18, 1
      %p195 = scmp.lt.s32.totalorder %s192, 15
      %s196 = scalar_select %p195, %s192, 15
      %s197 = smul.addr %s196, 2
      %s198 = smul.addr %s194, 32
      %s199 = sadd.s32 %s197, %s198
      %s200 = smul.addr %s199, 8
      %s201 = scalar_lea.vmem %s3, %s200
      %s202 = smul.u32 16, %s19
      %v203 = vld [vmem:[%s190] sm:$0xff]
      %v204 = vld [vmem:[%s190 + $0x8] sm:$0xff]
      %v205 = vld [vmem:[%s190 + $0x10] sm:$0x3]
      %v206 = vld [vmem:[%s190 + $0x18] sm:$0xff]
      %v207 = vld [vmem:[%s190 + $0x20] sm:$0xff]
      %v208 = vld [vmem:[%s190 + $0x28] sm:$0x3]
      %v209 = vld [vmem:[%s190 + $0x30] sm:$0xff]
      %v210 = vld [vmem:[%s190 + $0x38] sm:$0xff]
      %v211 = vld [vmem:[%s190 + $0x40] sm:$0x3]
      %v212 = vld [vmem:[%s190 + $0x48] sm:$0xff]
      %v213 = vld [vmem:[%s190 + $0x50] sm:$0xff]
      %v214 = vld [vmem:[%s190 + $0x58] sm:$0x3]
      %v215 = vld [vmem:[%s190 + $0x60] sm:$0xff]
      %v216 = vld [vmem:[%s190 + $0x68] sm:$0xff]
      %v217 = vld [vmem:[%s190 + $0x70] sm:$0x3]
      %v218 = vld [vmem:[%s190 + $0x78] sm:$0xff]
      %v219 = vld [vmem:[%s190 + $0x80] sm:$0xff]
      %v220 = vld [vmem:[%s190 + $0x88] sm:$0x3]
      %v221 = vld [vmem:[%s190 + $0x90] sm:$0xff]
      %v222 = vld [vmem:[%s190 + $0x98] sm:$0xff]
      %v223 = vld [vmem:[%s190 + $0xa0] sm:$0x3]
      %v224 = vld [vmem:[%s190 + $0xa8] sm:$0xff]
      %v225 = vld [vmem:[%s190 + $0xb0] sm:$0xff]
      %v226 = vld [vmem:[%s190 + $0xb8] sm:$0x3]
      %v227 = vld [vmem:[%s190 + $0xc0] sm:$0xff]
      %v228 = vld [vmem:[%s190 + $0xc8] sm:$0xff]
      %v229 = vld [vmem:[%s190 + $0xd0] sm:$0x3]
      %v230 = vld [vmem:[%s190 + $0xd8] sm:$0xff]
      %v231 = vld [vmem:[%s190 + $0xe0] sm:$0xff]
      %v232 = vld [vmem:[%s190 + $0xe8] sm:$0x3]
      %v233 = vld [vmem:[%s190 + $0xf0] sm:$0xff]
      %v234 = vld [vmem:[%s190 + $0xf8] sm:$0xff]
      %v235 = vld [vmem:[%s190 + $0x100] sm:$0x3]
      %v236 = vld [vmem:[%s190 + $0x108] sm:$0xff]
      %v237 = vld [vmem:[%s190 + $0x110] sm:$0xff]
      %v238 = vld [vmem:[%s190 + $0x118] sm:$0x3]
      %v239 = vld [vmem:[%s190 + $0x120] sm:$0xff]
      %v240 = vld [vmem:[%s190 + $0x128] sm:$0xff]
      %v241 = vld [vmem:[%s190 + $0x130] sm:$0x3]
      %v242 = vld [vmem:[%s190 + $0x138] sm:$0xff]
      %v243 = vld [vmem:[%s190 + $0x140] sm:$0xff]
      %v244 = vld [vmem:[%s190 + $0x148] sm:$0x3]
      %v245 = vld [vmem:[%s190 + $0x150] sm:$0xff]
      %v246 = vld [vmem:[%s190 + $0x158] sm:$0xff]
      %v247 = vld [vmem:[%s190 + $0x160] sm:$0x3]
      %v248 = vld [vmem:[%s190 + $0x168] sm:$0xff]
      %v249 = vld [vmem:[%s190 + $0x170] sm:$0xff]
      %v250 = vld [vmem:[%s190 + $0x178] sm:$0x3]
      %v251 = vld [vmem:[%s190 + $0x180] sm:$0xff]
      %v252 = vld [vmem:[%s190 + $0x188] sm:$0xff]
      %v253 = vld [vmem:[%s190 + $0x190] sm:$0x3]
      %v254 = vld [vmem:[%s190 + $0x198] sm:$0xff]
      %v255 = vld [vmem:[%s190 + $0x1a0] sm:$0xff]
      %v256 = vld [vmem:[%s190 + $0x1a8] sm:$0x3]
      %v257 = vld [vmem:[%s1] sm:$0xff]
      %v258 = vld [vmem:[%s1 + $0x8] sm:$0xff]
      %v259 = vld [vmem:[%s1 + $0x10] sm:$0xff]
      %v260 = vld [vmem:[%s1 + $0x18] sm:$0xff]
      %vm309 = vcmask 1046528
      %v310 = vrot.slane %v203, 1
      %v311 = vrot.slane %v204, 1
      %v312 = vsel %vm309, %v310, %v311
      %v313 = vrot.slane %v205, 1
      %v314 = vsel %vm309, %v311, %v313
      %v315 = vrot.slane %v206, 1
      %v316 = vrot.slane %v207, 1
      %v317 = vsel %vm309, %v315, %v316
      %v318 = vrot.slane %v208, 1
      %v319 = vsel %vm309, %v316, %v318
      %v320 = vrot.slane %v209, 1
      %v321 = vrot.slane %v210, 1
      %v322 = vsel %vm309, %v320, %v321
      %v323 = vrot.slane %v211, 1
      %v324 = vsel %vm309, %v321, %v323
      %v325 = vrot.slane %v212, 1
      %v326 = vrot.slane %v213, 1
      %v327 = vsel %vm309, %v325, %v326
      %v328 = vrot.slane %v214, 1
      %v329 = vsel %vm309, %v326, %v328
      %v330 = vrot.slane %v215, 1
      %v331 = vrot.slane %v216, 1
      %v332 = vsel %vm309, %v330, %v331
      %v333 = vrot.slane %v217, 1
      %v334 = vsel %vm309, %v331, %v333
      %v335 = vrot.slane %v218, 1
      %v336 = vrot.slane %v219, 1
      %v337 = vsel %vm309, %v335, %v336
      %v338 = vrot.slane %v220, 1
      %v339 = vsel %vm309, %v336, %v338
      %v340 = vrot.slane %v221, 1
      %v341 = vrot.slane %v222, 1
      %v342 = vsel %vm309, %v340, %v341
      %v343 = vrot.slane %v223, 1
      %v344 = vsel %vm309, %v341, %v343
      %v345 = vrot.slane %v224, 1
      %v346 = vrot.slane %v225, 1
      %v347 = vsel %vm309, %v345, %v346
      %v348 = vrot.slane %v226, 1
      %v349 = vsel %vm309, %v346, %v348
      %v350 = vrot.slane %v227, 1
      %v351 = vrot.slane %v228, 1
      %v352 = vsel %vm309, %v350, %v351
      %v353 = vrot.slane %v229, 1
      %v354 = vsel %vm309, %v351, %v353
      %v355 = vrot.slane %v230, 1
      %v356 = vrot.slane %v231, 1
      %v357 = vsel %vm309, %v355, %v356
      %v358 = vrot.slane %v232, 1
      %v359 = vsel %vm309, %v356, %v358
      %v360 = vrot.slane %v233, 1
      %v361 = vrot.slane %v234, 1
      %v362 = vsel %vm309, %v360, %v361
      %v363 = vrot.slane %v235, 1
      %v364 = vsel %vm309, %v361, %v363
      %v365 = vrot.slane %v236, 1
      %v366 = vrot.slane %v237, 1
      %v367 = vsel %vm309, %v365, %v366
      %v368 = vrot.slane %v238, 1
      %v369 = vsel %vm309, %v366, %v368
      %v370 = vrot.slane %v239, 1
      %v371 = vrot.slane %v240, 1
      %v372 = vsel %vm309, %v370, %v371
      %v373 = vrot.slane %v241, 1
      %v374 = vsel %vm309, %v371, %v373
      %v375 = vrot.slane %v242, 1
      %v376 = vrot.slane %v243, 1
      %v377 = vsel %vm309, %v375, %v376
      %v378 = vrot.slane %v244, 1
      %v379 = vsel %vm309, %v376, %v378
      %v380 = vrot.slane %v245, 1
      %v381 = vrot.slane %v246, 1
      %v382 = vsel %vm309, %v380, %v381
      %v383 = vrot.slane %v247, 1
      %v384 = vsel %vm309, %v381, %v383
      %v385 = vrot.slane %v248, 1
      %v386 = vrot.slane %v249, 1
      %v387 = vsel %vm309, %v385, %v386
      %v388 = vrot.slane %v250, 1
      %v389 = vsel %vm309, %v386, %v388
      %s390 = scalar_lea.vmem %s1, 32
      %v391 = vld [vmem:[%s390] sm:$0xff]
      %v392 = vld [vmem:[%s390 + $0x8] sm:$0xff]
      %v393 = vld [vmem:[%s390 + $0x10] sm:$0xff]
      %v394 = vld [vmem:[%s390 + $0x18] sm:$0xff]
      %vm395 = vcmask 261120
      %v396 = vsel %vm395, %v312, 0
      %v398 = vsel %vm395, %v314, 0
      %v400 = vsel %vm395, %v317, 0
      %v402 = vsel %vm395, %v319, 0
      %v404 = vsel %vm395, %v322, 0
      %v406 = vsel %vm395, %v324, 0
      %v408 = vsel %vm395, %v327, 0
      %v410 = vsel %vm395, %v329, 0
      %v412 = vsel %vm395, %v332, 0
      %v414 = vsel %vm395, %v334, 0
      %v416 = vsel %vm395, %v337, 0
      %v418 = vsel %vm395, %v339, 0
      %v420 = vsel %vm395, %v342, 0
      %v422 = vsel %vm395, %v344, 0
      %v424 = vsel %vm395, %v347, 0
      %v426 = vsel %vm395, %v349, 0
      %v428 = vsel %vm395, %v352, 0
      %v430 = vsel %vm395, %v354, 0
      %v432 = vsel %vm395, %v357, 0
      %v434 = vsel %vm395, %v359, 0
      %v436 = vsel %vm395, %v362, 0
      %v438 = vsel %vm395, %v364, 0
      %v440 = vsel %vm395, %v367, 0
      %v442 = vsel %vm395, %v369, 0
      %v444 = vsel %vm395, %v372, 0
      %v446 = vsel %vm395, %v374, 0
      %v448 = vsel %vm395, %v377, 0
      %v450 = vsel %vm395, %v379, 0
      %v452 = vsel %vm395, %v382, 0
      %v454 = vsel %vm395, %v384, 0
      %v456 = vsel %vm395, %v387, 0
      %v458 = vsel %vm395, %v389, 0
      %460 = vmatpush.msra.mxu0 0.0
      %461 = vmatpush.msra.mxu0 0.0
      %462 = vmatpush.msra.mxu0 0.0
      %463 = vmatpush.msra.mxu0 0.0
      %464 = vmatpush.msra.mxu0 0.0
      %465 = vmatpush.msra.mxu0 0.0
      %466 = vmatpush.msra.mxu0 0.0
      %467 = vmatpush.msra.mxu0 0.0
      %468 = vmatpush.msra.mxu0 0.0
      %469 = vmatpush.msra.mxu0 0.0
      %470 = vmatpush.msra.mxu0 0.0
      %471 = vmatpush.msra.mxu0 0.0
      %472 = vmatpush.msra.mxu0 %v394
      %473 = vmatpush.msra.mxu0 %v393
      %474 = vmatpush.msra.mxu0 %v392
      %475 = vmatpush.msra.mxu0 %v391
      %476 = vmatmul.f32.gmra.mxu0 %v396
      %v477 = vpop.f32.mrf.mxu0
      %v478 = vadd.f32 0.0, %v477
      %479 = vmatmul.f32.gmra.mxu0 %v398
      %v480 = vpop.f32.mrf.mxu0
      %v481 = vadd.f32 0.0, %v480
      %482 = vmatmul.f32.gmra.mxu0 %v400
      %v483 = vpop.f32.mrf.mxu0
      %v484 = vadd.f32 0.0, %v483
      %485 = vmatmul.f32.gmra.mxu0 %v402
      %v486 = vpop.f32.mrf.mxu0
      %v487 = vadd.f32 0.0, %v486
      %488 = vmatmul.f32.gmra.mxu0 %v404
      %v489 = vpop.f32.mrf.mxu0
      %v490 = vadd.f32 0.0, %v489
      %491 = vmatmul.f32.gmra.mxu0 %v406
      %v492 = vpop.f32.mrf.mxu0
      %v493 = vadd.f32 0.0, %v492
      %494 = vmatmul.f32.gmra.mxu0 %v408
      %v495 = vpop.f32.mrf.mxu0
      %v496 = vadd.f32 0.0, %v495
      %497 = vmatmul.f32.gmra.mxu0 %v410
      %v498 = vpop.f32.mrf.mxu0
      %v499 = vadd.f32 0.0, %v498
      %500 = vmatmul.f32.gmra.mxu0 %v412
      %v501 = vpop.f32.mrf.mxu0
      %v502 = vadd.f32 0.0, %v501
      %503 = vmatmul.f32.gmra.mxu0 %v414
      %v504 = vpop.f32.mrf.mxu0
      %v505 = vadd.f32 0.0, %v504
      %506 = vmatmul.f32.gmra.mxu0 %v416
      %v507 = vpop.f32.mrf.mxu0
      %v508 = vadd.f32 0.0, %v507
      %509 = vmatmul.f32.gmra.mxu0 %v418
      %v510 = vpop.f32.mrf.mxu0
      %v511 = vadd.f32 0.0, %v510
      %512 = vmatmul.f32.gmra.mxu0 %v420
      %v513 = vpop.f32.mrf.mxu0
      %v514 = vadd.f32 0.0, %v513
      %515 = vmatmul.f32.gmra.mxu0 %v422
      %v516 = vpop.f32.mrf.mxu0
      %v517 = vadd.f32 0.0, %v516
      %518 = vmatmul.f32.gmra.mxu0 %v424
      %v519 = vpop.f32.mrf.mxu0
      %v520 = vadd.f32 0.0, %v519
      %521 = vmatmul.f32.gmra.mxu0 %v426
      %v522 = vpop.f32.mrf.mxu0
      %v523 = vadd.f32 0.0, %v522
      %524 = vmatmul.f32.gmra.mxu0 %v428
      %v525 = vpop.f32.mrf.mxu0
      %v526 = vadd.f32 0.0, %v525
      %527 = vmatmul.f32.gmra.mxu0 %v430
      %v528 = vpop.f32.mrf.mxu0
      %v529 = vadd.f32 0.0, %v528
      %530 = vmatmul.f32.gmra.mxu0 %v432
      %v531 = vpop.f32.mrf.mxu0
      %v532 = vadd.f32 0.0, %v531
      %533 = vmatmul.f32.gmra.mxu0 %v434
      %v534 = vpop.f32.mrf.mxu0
      %v535 = vadd.f32 0.0, %v534
      %536 = vmatmul.f32.gmra.mxu0 %v436
      %v537 = vpop.f32.mrf.mxu0
      %v538 = vadd.f32 0.0, %v537
      %539 = vmatmul.f32.gmra.mxu0 %v438
      %v540 = vpop.f32.mrf.mxu0
      %v541 = vadd.f32 0.0, %v540
      %542 = vmatmul.f32.gmra.mxu0 %v440
      %v543 = vpop.f32.mrf.mxu0
      %v544 = vadd.f32 0.0, %v543
      %545 = vmatmul.f32.gmra.mxu0 %v442
      %v546 = vpop.f32.mrf.mxu0
      %v547 = vadd.f32 0.0, %v546
      %548 = vmatmul.f32.gmra.mxu0 %v444
      %v549 = vpop.f32.mrf.mxu0
      %v550 = vadd.f32 0.0, %v549
      %551 = vmatmul.f32.gmra.mxu0 %v446
      %v552 = vpop.f32.mrf.mxu0
      %v553 = vadd.f32 0.0, %v552
      %554 = vmatmul.f32.gmra.mxu0 %v448
      %v555 = vpop.f32.mrf.mxu0
      %v556 = vadd.f32 0.0, %v555
      %557 = vmatmul.f32.gmra.mxu0 %v450
      %v558 = vpop.f32.mrf.mxu0
      %v559 = vadd.f32 0.0, %v558
      %560 = vmatmul.f32.gmra.mxu0 %v452
      %v561 = vpop.f32.mrf.mxu0
      %v562 = vadd.f32 0.0, %v561
      %563 = vmatmul.f32.gmra.mxu0 %v454
      %v564 = vpop.f32.mrf.mxu0
      %v565 = vadd.f32 0.0, %v564
      %566 = vmatmul.f32.gmra.mxu0 %v456
      %v567 = vpop.f32.mrf.mxu0
      %v568 = vadd.f32 0.0, %v567
      %569 = vmatmul.f32.gmra.mxu0 %v458
      %v570 = vpop.f32.mrf.mxu0
      %v571 = vadd.f32 0.0, %v570
      %572 = vdwg.mxu0
      %v573 = vsel %vm395, %v203, 0
      %v575 = vsel %vm395, %v204, 0
      %v577 = vsel %vm395, %v206, 0
      %v579 = vsel %vm395, %v207, 0
      %v581 = vsel %vm395, %v209, 0
      %v583 = vsel %vm395, %v210, 0
      %v585 = vsel %vm395, %v212, 0
      %v587 = vsel %vm395, %v213, 0
      %v589 = vsel %vm395, %v215, 0
      %v591 = vsel %vm395, %v216, 0
      %v593 = vsel %vm395, %v218, 0
      %v595 = vsel %vm395, %v219, 0
      %v597 = vsel %vm395, %v221, 0
      %v599 = vsel %vm395, %v222, 0
      %v601 = vsel %vm395, %v224, 0
      %v603 = vsel %vm395, %v225, 0
      %v605 = vsel %vm395, %v227, 0
      %v607 = vsel %vm395, %v228, 0
      %v609 = vsel %vm395, %v230, 0
      %v611 = vsel %vm395, %v231, 0
      %v613 = vsel %vm395, %v233, 0
      %v615 = vsel %vm395, %v234, 0
      %v617 = vsel %vm395, %v236, 0
      %v619 = vsel %vm395, %v237, 0
      %v621 = vsel %vm395, %v239, 0
      %v623 = vsel %vm395, %v240, 0
      %v625 = vsel %vm395, %v242, 0
      %v627 = vsel %vm395, %v243, 0
      %v629 = vsel %vm395, %v245, 0
      %v631 = vsel %vm395, %v246, 0
      %v633 = vsel %vm395, %v248, 0
      %v635 = vsel %vm395, %v249, 0
      %637 = vmatpush.msra.mxu0 0.0
      %638 = vmatpush.msra.mxu0 0.0
      %639 = vmatpush.msra.mxu0 0.0
      %640 = vmatpush.msra.mxu0 0.0
      %641 = vmatpush.msra.mxu0 0.0
      %642 = vmatpush.msra.mxu0 0.0
      %643 = vmatpush.msra.mxu0 0.0
      %644 = vmatpush.msra.mxu0 0.0
      %645 = vmatpush.msra.mxu0 0.0
      %646 = vmatpush.msra.mxu0 0.0
      %647 = vmatpush.msra.mxu0 0.0
      %648 = vmatpush.msra.mxu0 0.0
      %649 = vmatpush.msra.mxu0 %v260
      %650 = vmatpush.msra.mxu0 %v259
      %651 = vmatpush.msra.mxu0 %v258
      %652 = vmatpush.msra.mxu0 %v257
      %653 = vmatmul.f32.gmra.mxu0 %v573
      %v654 = vpop.f32.mrf.mxu0
      %v655 = vadd.f32 %v478, %v654
      %656 = vmatmul.f32.gmra.mxu0 %v575
      %v657 = vpop.f32.mrf.mxu0
      %v658 = vadd.f32 %v481, %v657
      %659 = vmatmul.f32.gmra.mxu0 %v577
      %v660 = vpop.f32.mrf.mxu0
      %v661 = vadd.f32 %v484, %v660
      %662 = vmatmul.f32.gmra.mxu0 %v579
      %v663 = vpop.f32.mrf.mxu0
      %v664 = vadd.f32 %v487, %v663
      %665 = vmatmul.f32.gmra.mxu0 %v581
      %v666 = vpop.f32.mrf.mxu0
      %v667 = vadd.f32 %v490, %v666
      %668 = vmatmul.f32.gmra.mxu0 %v583
      %v669 = vpop.f32.mrf.mxu0
      %v670 = vadd.f32 %v493, %v669
      %671 = vmatmul.f32.gmra.mxu0 %v585
      %v672 = vpop.f32.mrf.mxu0
      %v673 = vadd.f32 %v496, %v672
      %674 = vmatmul.f32.gmra.mxu0 %v587
      %v675 = vpop.f32.mrf.mxu0
      %v676 = vadd.f32 %v499, %v675
      %677 = vmatmul.f32.gmra.mxu0 %v589
      %v678 = vpop.f32.mrf.mxu0
      %v679 = vadd.f32 %v502, %v678
      %680 = vmatmul.f32.gmra.mxu0 %v591
      %v681 = vpop.f32.mrf.mxu0
      %v682 = vadd.f32 %v505, %v681
      %683 = vmatmul.f32.gmra.mxu0 %v593
      %v684 = vpop.f32.mrf.mxu0
      %v685 = vadd.f32 %v508, %v684
      %686 = vmatmul.f32.gmra.mxu0 %v595
      %v687 = vpop.f32.mrf.mxu0
      %v688 = vadd.f32 %v511, %v687
      %689 = vmatmul.f32.gmra.mxu0 %v597
      %v690 = vpop.f32.mrf.mxu0
      %v691 = vadd.f32 %v514, %v690
      %692 = vmatmul.f32.gmra.mxu0 %v599
      %v693 = vpop.f32.mrf.mxu0
      %v694 = vadd.f32 %v517, %v693
      %695 = vmatmul.f32.gmra.mxu0 %v601
      %v696 = vpop.f32.mrf.mxu0
      %v697 = vadd.f32 %v520, %v696
      %698 = vmatmul.f32.gmra.mxu0 %v603
      %v699 = vpop.f32.mrf.mxu0
      %v700 = vadd.f32 %v523, %v699
      %701 = vmatmul.f32.gmra.mxu0 %v605
      %v702 = vpop.f32.mrf.mxu0
      %v703 = vadd.f32 %v526, %v702
      %704 = vmatmul.f32.gmra.mxu0 %v607
      %v705 = vpop.f32.mrf.mxu0
      %v706 = vadd.f32 %v529, %v705
      %707 = vmatmul.f32.gmra.mxu0 %v609
      %v708 = vpop.f32.mrf.mxu0
      %v709 = vadd.f32 %v532, %v708
      %710 = vmatmul.f32.gmra.mxu0 %v611
      %v711 = vpop.f32.mrf.mxu0
      %v712 = vadd.f32 %v535, %v711
      %713 = vmatmul.f32.gmra.mxu0 %v613
      %v714 = vpop.f32.mrf.mxu0
      %v715 = vadd.f32 %v538, %v714
      %716 = vmatmul.f32.gmra.mxu0 %v615
      %v717 = vpop.f32.mrf.mxu0
      %v718 = vadd.f32 %v541, %v717
      %719 = vmatmul.f32.gmra.mxu0 %v617
      %v720 = vpop.f32.mrf.mxu0
      %v721 = vadd.f32 %v544, %v720
      %722 = vmatmul.f32.gmra.mxu0 %v619
      %v723 = vpop.f32.mrf.mxu0
      %v724 = vadd.f32 %v547, %v723
      %725 = vmatmul.f32.gmra.mxu0 %v621
      %v726 = vpop.f32.mrf.mxu0
      %v727 = vadd.f32 %v550, %v726
      %728 = vmatmul.f32.gmra.mxu0 %v623
      %v729 = vpop.f32.mrf.mxu0
      %v730 = vadd.f32 %v553, %v729
      %731 = vmatmul.f32.gmra.mxu0 %v625
      %v732 = vpop.f32.mrf.mxu0
      %v733 = vadd.f32 %v556, %v732
      %734 = vmatmul.f32.gmra.mxu0 %v627
      %v735 = vpop.f32.mrf.mxu0
      %v736 = vadd.f32 %v559, %v735
      %737 = vmatmul.f32.gmra.mxu0 %v629
      %v738 = vpop.f32.mrf.mxu0
      %v739 = vadd.f32 %v562, %v738
      %740 = vmatmul.f32.gmra.mxu0 %v631
      %v741 = vpop.f32.mrf.mxu0
      %v742 = vadd.f32 %v565, %v741
      %743 = vmatmul.f32.gmra.mxu0 %v633
      %v744 = vpop.f32.mrf.mxu0
      %v745 = vadd.f32 %v568, %v744
      %746 = vmatmul.f32.gmra.mxu0 %v635
      %v747 = vpop.f32.mrf.mxu0
      %v748 = vadd.f32 %v571, %v747
      %749 = vdwg.mxu0
      %vm750 = vcmask 1045504
      %v751 = vrot.slane %v203, 2
      %v752 = vrot.slane %v204, 2
      %v753 = vsel %vm750, %v751, %v752
      %v754 = vrot.slane %v205, 2
      %v755 = vsel %vm750, %v752, %v754
      %v756 = vrot.slane %v206, 2
      %v757 = vrot.slane %v207, 2
      %v758 = vsel %vm750, %v756, %v757
      %v759 = vrot.slane %v208, 2
      %v760 = vsel %vm750, %v757, %v759
      %v761 = vrot.slane %v209, 2
      %v762 = vrot.slane %v210, 2
      %v763 = vsel %vm750, %v761, %v762
      %v764 = vrot.slane %v211, 2
      %v765 = vsel %vm750, %v762, %v764
      %v766 = vrot.slane %v212, 2
      %v767 = vrot.slane %v213, 2
      %v768 = vsel %vm750, %v766, %v767
      %v769 = vrot.slane %v214, 2
      %v770 = vsel %vm750, %v767, %v769
      %v771 = vrot.slane %v215, 2
      %v772 = vrot.slane %v216, 2
      %v773 = vsel %vm750, %v771, %v772
      %v774 = vrot.slane %v217, 2
      %v775 = vsel %vm750, %v772, %v774
      %v776 = vrot.slane %v218, 2
      %v777 = vrot.slane %v219, 2
      %v778 = vsel %vm750, %v776, %v777
      %v779 = vrot.slane %v220, 2
      %v780 = vsel %vm750, %v777, %v779
      %v781 = vrot.slane %v221, 2
      %v782 = vrot.slane %v222, 2
      %v783 = vsel %vm750, %v781, %v782
      %v784 = vrot.slane %v223, 2
      %v785 = vsel %vm750, %v782, %v784
      %v786 = vrot.slane %v224, 2
      %v787 = vrot.slane %v225, 2
      %v788 = vsel %vm750, %v786, %v787
      %v789 = vrot.slane %v226, 2
      %v790 = vsel %vm750, %v787, %v789
      %v791 = vrot.slane %v227, 2
      %v792 = vrot.slane %v228, 2
      %v793 = vsel %vm750, %v791, %v792
      %v794 = vrot.slane %v229, 2
      %v795 = vsel %vm750, %v792, %v794
      %v796 = vrot.slane %v230, 2
      %v797 = vrot.slane %v231, 2
      %v798 = vsel %vm750, %v796, %v797
      %v799 = vrot.slane %v232, 2
      %v800 = vsel %vm750, %v797, %v799
      %v801 = vrot.slane %v233, 2
      %v802 = vrot.slane %v234, 2
      %v803 = vsel %vm750, %v801, %v802
      %v804 = vrot.slane %v235, 2
      %v805 = vsel %vm750, %v802, %v804
      %v806 = vrot.slane %v236, 2
      %v807 = vrot.slane %v237, 2
      %v808 = vsel %vm750, %v806, %v807
      %v809 = vrot.slane %v238, 2
      %v810 = vsel %vm750, %v807, %v809
      %v811 = vrot.slane %v239, 2
      %v812 = vrot.slane %v240, 2
      %v813 = vsel %vm750, %v811, %v812
      %v814 = vrot.slane %v241, 2
      %v815 = vsel %vm750, %v812, %v814
      %v816 = vrot.slane %v242, 2
      %v817 = vrot.slane %v243, 2
      %v818 = vsel %vm750, %v816, %v817
      %v819 = vrot.slane %v244, 2
      %v820 = vsel %vm750, %v817, %v819
      %v821 = vrot.slane %v245, 2
      %v822 = vrot.slane %v246, 2
      %v823 = vsel %vm750, %v821, %v822
      %v824 = vrot.slane %v247, 2
      %v825 = vsel %vm750, %v822, %v824
      %v826 = vrot.slane %v248, 2
      %v827 = vrot.slane %v249, 2
      %v828 = vsel %vm750, %v826, %v827
      %v829 = vrot.slane %v250, 2
      %v830 = vsel %vm750, %v827, %v829
      %s831 = scalar_lea.vmem %s1, 64
      %v832 = vld [vmem:[%s831] sm:$0xff]
      %v833 = vld [vmem:[%s831 + $0x8] sm:$0xff]
      %v834 = vld [vmem:[%s831 + $0x10] sm:$0xff]
      %v835 = vld [vmem:[%s831 + $0x18] sm:$0xff]
      %v836 = vsel %vm395, %v753, 0
      %v838 = vsel %vm395, %v755, 0
      %v840 = vsel %vm395, %v758, 0
      %v842 = vsel %vm395, %v760, 0
      %v844 = vsel %vm395, %v763, 0
      %v846 = vsel %vm395, %v765, 0
      %v848 = vsel %vm395, %v768, 0
      %v850 = vsel %vm395, %v770, 0
      %v852 = vsel %vm395, %v773, 0
      %v854 = vsel %vm395, %v775, 0
      %v856 = vsel %vm395, %v778, 0
      %v858 = vsel %vm395, %v780, 0
      %v860 = vsel %vm395, %v783, 0
      %v862 = vsel %vm395, %v785, 0
      %v864 = vsel %vm395, %v788, 0
      %v866 = vsel %vm395, %v790, 0
      %v868 = vsel %vm395, %v793, 0
      %v870 = vsel %vm395, %v795, 0
      %v872 = vsel %vm395, %v798, 0
      %v874 = vsel %vm395, %v800, 0
      %v876 = vsel %vm395, %v803, 0
      %v878 = vsel %vm395, %v805, 0
      %v880 = vsel %vm395, %v808, 0
      %v882 = vsel %vm395, %v810, 0
      %v884 = vsel %vm395, %v813, 0
      %v886 = vsel %vm395, %v815, 0
      %v888 = vsel %vm395, %v818, 0
      %v890 = vsel %vm395, %v820, 0
      %v892 = vsel %vm395, %v823, 0
      %v894 = vsel %vm395, %v825, 0
      %v896 = vsel %vm395, %v828, 0
      %v898 = vsel %vm395, %v830, 0
      %900 = vmatpush.msra.mxu0 0.0
      %901 = vmatpush.msra.mxu0 0.0
      %902 = vmatpush.msra.mxu0 0.0
      %903 = vmatpush.msra.mxu0 0.0
      %904 = vmatpush.msra.mxu0 0.0
      %905 = vmatpush.msra.mxu0 0.0
      %906 = vmatpush.msra.mxu0 0.0
      %907 = vmatpush.msra.mxu0 0.0
      %908 = vmatpush.msra.mxu0 0.0
      %909 = vmatpush.msra.mxu0 0.0
      %910 = vmatpush.msra.mxu0 0.0
      %911 = vmatpush.msra.mxu0 0.0
      %912 = vmatpush.msra.mxu0 %v835
      %913 = vmatpush.msra.mxu0 %v834
      %914 = vmatpush.msra.mxu0 %v833
      %915 = vmatpush.msra.mxu0 %v832
      %916 = vmatmul.f32.gmra.mxu0 %v836
      %v917 = vpop.f32.mrf.mxu0
      %v918 = vadd.f32 0.0, %v917
      %919 = vmatmul.f32.gmra.mxu0 %v838
      %v920 = vpop.f32.mrf.mxu0
      %v921 = vadd.f32 0.0, %v920
      %922 = vmatmul.f32.gmra.mxu0 %v840
      %v923 = vpop.f32.mrf.mxu0
      %v924 = vadd.f32 0.0, %v923
      %925 = vmatmul.f32.gmra.mxu0 %v842
      %v926 = vpop.f32.mrf.mxu0
      %v927 = vadd.f32 0.0, %v926
      %928 = vmatmul.f32.gmra.mxu0 %v844
      %v929 = vpop.f32.mrf.mxu0
      %v930 = vadd.f32 0.0, %v929
      %931 = vmatmul.f32.gmra.mxu0 %v846
      %v932 = vpop.f32.mrf.mxu0
      %v933 = vadd.f32 0.0, %v932
      %934 = vmatmul.f32.gmra.mxu0 %v848
      %v935 = vpop.f32.mrf.mxu0
      %v936 = vadd.f32 0.0, %v935
      %937 = vmatmul.f32.gmra.mxu0 %v850
      %v938 = vpop.f32.mrf.mxu0
      %v939 = vadd.f32 0.0, %v938
      %940 = vmatmul.f32.gmra.mxu0 %v852
      %v941 = vpop.f32.mrf.mxu0
      %v942 = vadd.f32 0.0, %v941
      %943 = vmatmul.f32.gmra.mxu0 %v854
      %v944 = vpop.f32.mrf.mxu0
      %v945 = vadd.f32 0.0, %v944
      %946 = vmatmul.f32.gmra.mxu0 %v856
      %v947 = vpop.f32.mrf.mxu0
      %v948 = vadd.f32 0.0, %v947
      %949 = vmatmul.f32.gmra.mxu0 %v858
      %v950 = vpop.f32.mrf.mxu0
      %v951 = vadd.f32 0.0, %v950
      %952 = vmatmul.f32.gmra.mxu0 %v860
      %v953 = vpop.f32.mrf.mxu0
      %v954 = vadd.f32 0.0, %v953
      %955 = vmatmul.f32.gmra.mxu0 %v862
      %v956 = vpop.f32.mrf.mxu0
      %v957 = vadd.f32 0.0, %v956
      %958 = vmatmul.f32.gmra.mxu0 %v864
      %v959 = vpop.f32.mrf.mxu0
      %v960 = vadd.f32 0.0, %v959
      %961 = vmatmul.f32.gmra.mxu0 %v866
      %v962 = vpop.f32.mrf.mxu0
      %v963 = vadd.f32 0.0, %v962
      %964 = vmatmul.f32.gmra.mxu0 %v868
      %v965 = vpop.f32.mrf.mxu0
      %v966 = vadd.f32 0.0, %v965
      %967 = vmatmul.f32.gmra.mxu0 %v870
      %v968 = vpop.f32.mrf.mxu0
      %v969 = vadd.f32 0.0, %v968
      %970 = vmatmul.f32.gmra.mxu0 %v872
      %v971 = vpop.f32.mrf.mxu0
      %v972 = vadd.f32 0.0, %v971
      %973 = vmatmul.f32.gmra.mxu0 %v874
      %v974 = vpop.f32.mrf.mxu0
      %v975 = vadd.f32 0.0, %v974
      %976 = vmatmul.f32.gmra.mxu0 %v876
      %v977 = vpop.f32.mrf.mxu0
      %v978 = vadd.f32 0.0, %v977
      %979 = vmatmul.f32.gmra.mxu0 %v878
      %v980 = vpop.f32.mrf.mxu0
      %v981 = vadd.f32 0.0, %v980
      %982 = vmatmul.f32.gmra.mxu0 %v880
      %v983 = vpop.f32.mrf.mxu0
      %v984 = vadd.f32 0.0, %v983
      %985 = vmatmul.f32.gmra.mxu0 %v882
      %v986 = vpop.f32.mrf.mxu0
      %v987 = vadd.f32 0.0, %v986
      %988 = vmatmul.f32.gmra.mxu0 %v884
      %v989 = vpop.f32.mrf.mxu0
      %v990 = vadd.f32 0.0, %v989
      %991 = vmatmul.f32.gmra.mxu0 %v886
      %v992 = vpop.f32.mrf.mxu0
      %v993 = vadd.f32 0.0, %v992
      %994 = vmatmul.f32.gmra.mxu0 %v888
      %v995 = vpop.f32.mrf.mxu0
      %v996 = vadd.f32 0.0, %v995
      %997 = vmatmul.f32.gmra.mxu0 %v890
      %v998 = vpop.f32.mrf.mxu0
      %v999 = vadd.f32 0.0, %v998
      %1000 = vmatmul.f32.gmra.mxu0 %v892
      %v1001 = vpop.f32.mrf.mxu0
      %v1002 = vadd.f32 0.0, %v1001
      %1003 = vmatmul.f32.gmra.mxu0 %v894
      %v1004 = vpop.f32.mrf.mxu0
      %v1005 = vadd.f32 0.0, %v1004
      %1006 = vmatmul.f32.gmra.mxu0 %v896
      %v1007 = vpop.f32.mrf.mxu0
      %v1008 = vadd.f32 0.0, %v1007
      %1009 = vmatmul.f32.gmra.mxu0 %v898
      %v1010 = vpop.f32.mrf.mxu0
      %v1011 = vadd.f32 0.0, %v1010
      %1012 = vdwg.mxu0
      %v1013 = vadd.f32 %v655, %v918
      %v1014 = vadd.f32 %v658, %v921
      %v1015 = vadd.f32 %v661, %v924
      %v1016 = vadd.f32 %v664, %v927
      %v1017 = vadd.f32 %v667, %v930
      %v1018 = vadd.f32 %v670, %v933
      %v1019 = vadd.f32 %v673, %v936
      %v1020 = vadd.f32 %v676, %v939
      %v1021 = vadd.f32 %v679, %v942
      %v1022 = vadd.f32 %v682, %v945
      %v1023 = vadd.f32 %v685, %v948
      %v1024 = vadd.f32 %v688, %v951
      %v1025 = vadd.f32 %v691, %v954
      %v1026 = vadd.f32 %v694, %v957
      %v1027 = vadd.f32 %v697, %v960
      %v1028 = vadd.f32 %v700, %v963
      %v1029 = vadd.f32 %v703, %v966
      %v1030 = vadd.f32 %v706, %v969
      %v1031 = vadd.f32 %v709, %v972
      %v1032 = vadd.f32 %v712, %v975
      %v1033 = vadd.f32 %v715, %v978
      %v1034 = vadd.f32 %v718, %v981
      %v1035 = vadd.f32 %v721, %v984
      %v1036 = vadd.f32 %v724, %v987
      %v1037 = vadd.f32 %v727, %v990
      %v1038 = vadd.f32 %v730, %v993
      %v1039 = vadd.f32 %v733, %v996
      %v1040 = vadd.f32 %v736, %v999
      %v1041 = vadd.f32 %v739, %v1002
      %v1042 = vadd.f32 %v742, %v1005
      %v1043 = vadd.f32 %v745, %v1008
      %v1044 = vadd.f32 %v748, %v1011
      %s1045 = scalar_lea.vmem %s1, 96
      %v1046 = vld [vmem:[%s1045] sm:$0xff]
      %v1047 = vld [vmem:[%s1045 + $0x8] sm:$0xff]
      %v1048 = vld [vmem:[%s1045 + $0x10] sm:$0xff]
      %v1049 = vld [vmem:[%s1045 + $0x18] sm:$0xff]
      %v1051 = vsel %vm395, %v251, 0
      %v1054 = vsel %vm395, %v252, 0
      %1056 = vmatpush.msra.mxu0 0.0
      %1057 = vmatpush.msra.mxu0 0.0
      %1058 = vmatpush.msra.mxu0 0.0
      %1059 = vmatpush.msra.mxu0 0.0
      %1060 = vmatpush.msra.mxu0 0.0
      %1061 = vmatpush.msra.mxu0 0.0
      %1062 = vmatpush.msra.mxu0 0.0
      %1063 = vmatpush.msra.mxu0 0.0
      %1064 = vmatpush.msra.mxu0 0.0
      %1065 = vmatpush.msra.mxu0 0.0
      %1066 = vmatpush.msra.mxu0 0.0
      %1067 = vmatpush.msra.mxu0 0.0
      %1068 = vmatpush.msra.mxu0 %v1049
      %1069 = vmatpush.msra.mxu0 %v1048
      %1070 = vmatpush.msra.mxu0 %v1047
      %1071 = vmatpush.msra.mxu0 %v1046
      %1072 = vmatmul.f32.gmra.mxu0 %v577
      %v1073 = vpop.f32.mrf.mxu0
      %v1074 = vadd.f32 0.0, %v1073
      %1075 = vmatmul.f32.gmra.mxu0 %v579
      %v1076 = vpop.f32.mrf.mxu0
      %v1077 = vadd.f32 0.0, %v1076
      %1078 = vmatmul.f32.gmra.mxu0 %v581
      %v1079 = vpop.f32.mrf.mxu0
      %v1080 = vadd.f32 0.0, %v1079
      %1081 = vmatmul.f32.gmra.mxu0 %v583
      %v1082 = vpop.f32.mrf.mxu0
      %v1083 = vadd.f32 0.0, %v1082
      %1084 = vmatmul.f32.gmra.mxu0 %v585
      %v1085 = vpop.f32.mrf.mxu0
      %v1086 = vadd.f32 0.0, %v1085
      %1087 = vmatmul.f32.gmra.mxu0 %v587
      %v1088 = vpop.f32.mrf.mxu0
      %v1089 = vadd.f32 0.0, %v1088
      %1090 = vmatmul.f32.gmra.mxu0 %v589
      %v1091 = vpop.f32.mrf.mxu0
      %v1092 = vadd.f32 0.0, %v1091
      %1093 = vmatmul.f32.gmra.mxu0 %v591
      %v1094 = vpop.f32.mrf.mxu0
      %v1095 = vadd.f32 0.0, %v1094
      %1096 = vmatmul.f32.gmra.mxu0 %v593
      %v1097 = vpop.f32.mrf.mxu0
      %v1098 = vadd.f32 0.0, %v1097
      %1099 = vmatmul.f32.gmra.mxu0 %v595
      %v1100 = vpop.f32.mrf.mxu0
      %v1101 = vadd.f32 0.0, %v1100
      %1102 = vmatmul.f32.gmra.mxu0 %v597
      %v1103 = vpop.f32.mrf.mxu0
      %v1104 = vadd.f32 0.0, %v1103
      %1105 = vmatmul.f32.gmra.mxu0 %v599
      %v1106 = vpop.f32.mrf.mxu0
      %v1107 = vadd.f32 0.0, %v1106
      %1108 = vmatmul.f32.gmra.mxu0 %v601
      %v1109 = vpop.f32.mrf.mxu0
      %v1110 = vadd.f32 0.0, %v1109
      %1111 = vmatmul.f32.gmra.mxu0 %v603
      %v1112 = vpop.f32.mrf.mxu0
      %v1113 = vadd.f32 0.0, %v1112
      %1114 = vmatmul.f32.gmra.mxu0 %v605
      %v1115 = vpop.f32.mrf.mxu0
      %v1116 = vadd.f32 0.0, %v1115
      %1117 = vmatmul.f32.gmra.mxu0 %v607
      %v1118 = vpop.f32.mrf.mxu0
      %v1119 = vadd.f32 0.0, %v1118
      %1120 = vmatmul.f32.gmra.mxu0 %v609
      %v1121 = vpop.f32.mrf.mxu0
      %v1122 = vadd.f32 0.0, %v1121
      %1123 = vmatmul.f32.gmra.mxu0 %v611
      %v1124 = vpop.f32.mrf.mxu0
      %v1125 = vadd.f32 0.0, %v1124
      %1126 = vmatmul.f32.gmra.mxu0 %v613
      %v1127 = vpop.f32.mrf.mxu0
      %v1128 = vadd.f32 0.0, %v1127
      %1129 = vmatmul.f32.gmra.mxu0 %v615
      %v1130 = vpop.f32.mrf.mxu0
      %v1131 = vadd.f32 0.0, %v1130
      %1132 = vmatmul.f32.gmra.mxu0 %v617
      %v1133 = vpop.f32.mrf.mxu0
      %v1134 = vadd.f32 0.0, %v1133
      %1135 = vmatmul.f32.gmra.mxu0 %v619
      %v1136 = vpop.f32.mrf.mxu0
      %v1137 = vadd.f32 0.0, %v1136
      %1138 = vmatmul.f32.gmra.mxu0 %v621
      %v1139 = vpop.f32.mrf.mxu0
      %v1140 = vadd.f32 0.0, %v1139
      %1141 = vmatmul.f32.gmra.mxu0 %v623
      %v1142 = vpop.f32.mrf.mxu0
      %v1143 = vadd.f32 0.0, %v1142
      %1144 = vmatmul.f32.gmra.mxu0 %v625
      %v1145 = vpop.f32.mrf.mxu0
      %v1146 = vadd.f32 0.0, %v1145
      %1147 = vmatmul.f32.gmra.mxu0 %v627
      %v1148 = vpop.f32.mrf.mxu0
      %v1149 = vadd.f32 0.0, %v1148
      %1150 = vmatmul.f32.gmra.mxu0 %v629
      %v1151 = vpop.f32.mrf.mxu0
      %v1152 = vadd.f32 0.0, %v1151
      %1153 = vmatmul.f32.gmra.mxu0 %v631
      %v1154 = vpop.f32.mrf.mxu0
      %v1155 = vadd.f32 0.0, %v1154
      %1156 = vmatmul.f32.gmra.mxu0 %v633
      %v1157 = vpop.f32.mrf.mxu0
      %v1158 = vadd.f32 0.0, %v1157
      %1159 = vmatmul.f32.gmra.mxu0 %v635
      %v1160 = vpop.f32.mrf.mxu0
      %v1161 = vadd.f32 0.0, %v1160
      %1162 = vmatmul.f32.gmra.mxu0 %v1051
      %v1163 = vpop.f32.mrf.mxu0
      %v1164 = vadd.f32 0.0, %v1163
      %1165 = vmatmul.f32.gmra.mxu0 %v1054
      %v1166 = vpop.f32.mrf.mxu0
      %v1167 = vadd.f32 0.0, %v1166
      %1168 = vdwg.mxu0
      %v1169 = vadd.f32 %v1013, %v1074
      %v1170 = vadd.f32 %v1014, %v1077
      %v1171 = vadd.f32 %v1015, %v1080
      %v1172 = vadd.f32 %v1016, %v1083
      %v1173 = vadd.f32 %v1017, %v1086
      %v1174 = vadd.f32 %v1018, %v1089
      %v1175 = vadd.f32 %v1019, %v1092
      %v1176 = vadd.f32 %v1020, %v1095
      %v1177 = vadd.f32 %v1021, %v1098
      %v1178 = vadd.f32 %v1022, %v1101
      %v1179 = vadd.f32 %v1023, %v1104
      %v1180 = vadd.f32 %v1024, %v1107
      %v1181 = vadd.f32 %v1025, %v1110
      %v1182 = vadd.f32 %v1026, %v1113
      %v1183 = vadd.f32 %v1027, %v1116
      %v1184 = vadd.f32 %v1028, %v1119
      %v1185 = vadd.f32 %v1029, %v1122
      %v1186 = vadd.f32 %v1030, %v1125
      %v1187 = vadd.f32 %v1031, %v1128
      %v1188 = vadd.f32 %v1032, %v1131
      %v1189 = vadd.f32 %v1033, %v1134
      %v1190 = vadd.f32 %v1034, %v1137
      %v1191 = vadd.f32 %v1035, %v1140
      %v1192 = vadd.f32 %v1036, %v1143
      %v1193 = vadd.f32 %v1037, %v1146
      %v1194 = vadd.f32 %v1038, %v1149
      %v1195 = vadd.f32 %v1039, %v1152
      %v1196 = vadd.f32 %v1040, %v1155
      %v1197 = vadd.f32 %v1041, %v1158
      %v1198 = vadd.f32 %v1042, %v1161
      %v1199 = vadd.f32 %v1043, %v1164
      %v1200 = vadd.f32 %v1044, %v1167
      %v1202 = vrot.slane %v251, 1
      %v1203 = vrot.slane %v252, 1
      %v1204 = vsel %vm309, %v1202, %v1203
      %v1205 = vrot.slane %v253, 1
      %v1206 = vsel %vm309, %v1203, %v1205
      %s1207 = scalar_lea.vmem %s1, 128
      %v1208 = vld [vmem:[%s1207] sm:$0xff]
      %v1209 = vld [vmem:[%s1207 + $0x8] sm:$0xff]
      %v1210 = vld [vmem:[%s1207 + $0x10] sm:$0xff]
      %v1211 = vld [vmem:[%s1207 + $0x18] sm:$0xff]
      %v1212 = vsel %vm395, %v1204, 0
      %v1214 = vsel %vm395, %v1206, 0
      %1216 = vmatpush.msra.mxu0 0.0
      %1217 = vmatpush.msra.mxu0 0.0
      %1218 = vmatpush.msra.mxu0 0.0
      %1219 = vmatpush.msra.mxu0 0.0
      %1220 = vmatpush.msra.mxu0 0.0
      %1221 = vmatpush.msra.mxu0 0.0
      %1222 = vmatpush.msra.mxu0 0.0
      %1223 = vmatpush.msra.mxu0 0.0
      %1224 = vmatpush.msra.mxu0 0.0
      %1225 = vmatpush.msra.mxu0 0.0
      %1226 = vmatpush.msra.mxu0 0.0
      %1227 = vmatpush.msra.mxu0 0.0
      %1228 = vmatpush.msra.mxu0 %v1211
      %1229 = vmatpush.msra.mxu0 %v1210
      %1230 = vmatpush.msra.mxu0 %v1209
      %1231 = vmatpush.msra.mxu0 %v1208
      %1232 = vmatmul.f32.gmra.mxu0 %v400
      %v1233 = vpop.f32.mrf.mxu0
      %v1234 = vadd.f32 0.0, %v1233
      %1235 = vmatmul.f32.gmra.mxu0 %v402
      %v1236 = vpop.f32.mrf.mxu0
      %v1237 = vadd.f32 0.0, %v1236
      %1238 = vmatmul.f32.gmra.mxu0 %v404
      %v1239 = vpop.f32.mrf.mxu0
      %v1240 = vadd.f32 0.0, %v1239
      %1241 = vmatmul.f32.gmra.mxu0 %v406
      %v1242 = vpop.f32.mrf.mxu0
      %v1243 = vadd.f32 0.0, %v1242
      %1244 = vmatmul.f32.gmra.mxu0 %v408
      %v1245 = vpop.f32.mrf.mxu0
      %v1246 = vadd.f32 0.0, %v1245
      %1247 = vmatmul.f32.gmra.mxu0 %v410
      %v1248 = vpop.f32.mrf.mxu0
      %v1249 = vadd.f32 0.0, %v1248
      %1250 = vmatmul.f32.gmra.mxu0 %v412
      %v1251 = vpop.f32.mrf.mxu0
      %v1252 = vadd.f32 0.0, %v1251
      %1253 = vmatmul.f32.gmra.mxu0 %v414
      %v1254 = vpop.f32.mrf.mxu0
      %v1255 = vadd.f32 0.0, %v1254
      %1256 = vmatmul.f32.gmra.mxu0 %v416
      %v1257 = vpop.f32.mrf.mxu0
      %v1258 = vadd.f32 0.0, %v1257
      %1259 = vmatmul.f32.gmra.mxu0 %v418
      %v1260 = vpop.f32.mrf.mxu0
      %v1261 = vadd.f32 0.0, %v1260
      %1262 = vmatmul.f32.gmra.mxu0 %v420
      %v1263 = vpop.f32.mrf.mxu0
      %v1264 = vadd.f32 0.0, %v1263
      %1265 = vmatmul.f32.gmra.mxu0 %v422
      %v1266 = vpop.f32.mrf.mxu0
      %v1267 = vadd.f32 0.0, %v1266
      %1268 = vmatmul.f32.gmra.mxu0 %v424
      %v1269 = vpop.f32.mrf.mxu0
      %v1270 = vadd.f32 0.0, %v1269
      %1271 = vmatmul.f32.gmra.mxu0 %v426
      %v1272 = vpop.f32.mrf.mxu0
      %v1273 = vadd.f32 0.0, %v1272
      %1274 = vmatmul.f32.gmra.mxu0 %v428
      %v1275 = vpop.f32.mrf.mxu0
      %v1276 = vadd.f32 0.0, %v1275
      %1277 = vmatmul.f32.gmra.mxu0 %v430
      %v1278 = vpop.f32.mrf.mxu0
      %v1279 = vadd.f32 0.0, %v1278
      %1280 = vmatmul.f32.gmra.mxu0 %v432
      %v1281 = vpop.f32.mrf.mxu0
      %v1282 = vadd.f32 0.0, %v1281
      %1283 = vmatmul.f32.gmra.mxu0 %v434
      %v1284 = vpop.f32.mrf.mxu0
      %v1285 = vadd.f32 0.0, %v1284
      %1286 = vmatmul.f32.gmra.mxu0 %v436
      %v1287 = vpop.f32.mrf.mxu0
      %v1288 = vadd.f32 0.0, %v1287
      %1289 = vmatmul.f32.gmra.mxu0 %v438
      %v1290 = vpop.f32.mrf.mxu0
      %v1291 = vadd.f32 0.0, %v1290
      %1292 = vmatmul.f32.gmra.mxu0 %v440
      %v1293 = vpop.f32.mrf.mxu0
      %v1294 = vadd.f32 0.0, %v1293
      %1295 = vmatmul.f32.gmra.mxu0 %v442
      %v1296 = vpop.f32.mrf.mxu0
      %v1297 = vadd.f32 0.0, %v1296
      %1298 = vmatmul.f32.gmra.mxu0 %v444
      %v1299 = vpop.f32.mrf.mxu0
      %v1300 = vadd.f32 0.0, %v1299
      %1301 = vmatmul.f32.gmra.mxu0 %v446
      %v1302 = vpop.f32.mrf.mxu0
      %v1303 = vadd.f32 0.0, %v1302
      %1304 = vmatmul.f32.gmra.mxu0 %v448
      %v1305 = vpop.f32.mrf.mxu0
      %v1306 = vadd.f32 0.0, %v1305
      %1307 = vmatmul.f32.gmra.mxu0 %v450
      %v1308 = vpop.f32.mrf.mxu0
      %v1309 = vadd.f32 0.0, %v1308
      %1310 = vmatmul.f32.gmra.mxu0 %v452
      %v1311 = vpop.f32.mrf.mxu0
      %v1312 = vadd.f32 0.0, %v1311
      %1313 = vmatmul.f32.gmra.mxu0 %v454
      %v1314 = vpop.f32.mrf.mxu0
      %v1315 = vadd.f32 0.0, %v1314
      %1316 = vmatmul.f32.gmra.mxu0 %v456
      %v1317 = vpop.f32.mrf.mxu0
      %v1318 = vadd.f32 0.0, %v1317
      %1319 = vmatmul.f32.gmra.mxu0 %v458
      %v1320 = vpop.f32.mrf.mxu0
      %v1321 = vadd.f32 0.0, %v1320
      %1322 = vmatmul.f32.gmra.mxu0 %v1212
      %v1323 = vpop.f32.mrf.mxu0
      %v1324 = vadd.f32 0.0, %v1323
      %1325 = vmatmul.f32.gmra.mxu0 %v1214
      %v1326 = vpop.f32.mrf.mxu0
      %v1327 = vadd.f32 0.0, %v1326
      %1328 = vdwg.mxu0
      %v1329 = vadd.f32 %v1169, %v1234
      %v1330 = vadd.f32 %v1170, %v1237
      %v1331 = vadd.f32 %v1171, %v1240
      %v1332 = vadd.f32 %v1172, %v1243
      %v1333 = vadd.f32 %v1173, %v1246
      %v1334 = vadd.f32 %v1174, %v1249
      %v1335 = vadd.f32 %v1175, %v1252
      %v1336 = vadd.f32 %v1176, %v1255
      %v1337 = vadd.f32 %v1177, %v1258
      %v1338 = vadd.f32 %v1178, %v1261
      %v1339 = vadd.f32 %v1179, %v1264
      %v1340 = vadd.f32 %v1180, %v1267
      %v1341 = vadd.f32 %v1181, %v1270
      %v1342 = vadd.f32 %v1182, %v1273
      %v1343 = vadd.f32 %v1183, %v1276
      %v1344 = vadd.f32 %v1184, %v1279
      %v1345 = vadd.f32 %v1185, %v1282
      %v1346 = vadd.f32 %v1186, %v1285
      %v1347 = vadd.f32 %v1187, %v1288
      %v1348 = vadd.f32 %v1188, %v1291
      %v1349 = vadd.f32 %v1189, %v1294
      %v1350 = vadd.f32 %v1190, %v1297
      %v1351 = vadd.f32 %v1191, %v1300
      %v1352 = vadd.f32 %v1192, %v1303
      %v1353 = vadd.f32 %v1193, %v1306
      %v1354 = vadd.f32 %v1194, %v1309
      %v1355 = vadd.f32 %v1195, %v1312
      %v1356 = vadd.f32 %v1196, %v1315
      %v1357 = vadd.f32 %v1197, %v1318
      %v1358 = vadd.f32 %v1198, %v1321
      %v1359 = vadd.f32 %v1199, %v1324
      %v1360 = vadd.f32 %v1200, %v1327
      %v1361 = vrot.slane %v251, 2
      %v1362 = vrot.slane %v252, 2
      %v1363 = vsel %vm750, %v1361, %v1362
      %v1364 = vrot.slane %v253, 2
      %v1365 = vsel %vm750, %v1362, %v1364
      %s1366 = scalar_lea.vmem %s1, 160
      %v1367 = vld [vmem:[%s1366] sm:$0xff]
      %v1368 = vld [vmem:[%s1366 + $0x8] sm:$0xff]
      %v1369 = vld [vmem:[%s1366 + $0x10] sm:$0xff]
      %v1370 = vld [vmem:[%s1366 + $0x18] sm:$0xff]
      %v1371 = vsel %vm395, %v1363, 0
      %v1373 = vsel %vm395, %v1365, 0
      %1375 = vmatpush.msra.mxu0 0.0
      %1376 = vmatpush.msra.mxu0 0.0
      %1377 = vmatpush.msra.mxu0 0.0
      %1378 = vmatpush.msra.mxu0 0.0
      %1379 = vmatpush.msra.mxu0 0.0
      %1380 = vmatpush.msra.mxu0 0.0
      %1381 = vmatpush.msra.mxu0 0.0
      %1382 = vmatpush.msra.mxu0 0.0
      %1383 = vmatpush.msra.mxu0 0.0
      %1384 = vmatpush.msra.mxu0 0.0
      %1385 = vmatpush.msra.mxu0 0.0
      %1386 = vmatpush.msra.mxu0 0.0
      %1387 = vmatpush.msra.mxu0 %v1370
      %1388 = vmatpush.msra.mxu0 %v1369
      %1389 = vmatpush.msra.mxu0 %v1368
      %1390 = vmatpush.msra.mxu0 %v1367
      %1391 = vmatmul.f32.gmra.mxu0 %v840
      %v1392 = vpop.f32.mrf.mxu0
      %v1393 = vadd.f32 0.0, %v1392
      %1394 = vmatmul.f32.gmra.mxu0 %v842
      %v1395 = vpop.f32.mrf.mxu0
      %v1396 = vadd.f32 0.0, %v1395
      %1397 = vmatmul.f32.gmra.mxu0 %v844
      %v1398 = vpop.f32.mrf.mxu0
      %v1399 = vadd.f32 0.0, %v1398
      %1400 = vmatmul.f32.gmra.mxu0 %v846
      %v1401 = vpop.f32.mrf.mxu0
      %v1402 = vadd.f32 0.0, %v1401
      %1403 = vmatmul.f32.gmra.mxu0 %v848
      %v1404 = vpop.f32.mrf.mxu0
      %v1405 = vadd.f32 0.0, %v1404
      %1406 = vmatmul.f32.gmra.mxu0 %v850
      %v1407 = vpop.f32.mrf.mxu0
      %v1408 = vadd.f32 0.0, %v1407
      %1409 = vmatmul.f32.gmra.mxu0 %v852
      %v1410 = vpop.f32.mrf.mxu0
      %v1411 = vadd.f32 0.0, %v1410
      %1412 = vmatmul.f32.gmra.mxu0 %v854
      %v1413 = vpop.f32.mrf.mxu0
      %v1414 = vadd.f32 0.0, %v1413
      %1415 = vmatmul.f32.gmra.mxu0 %v856
      %v1416 = vpop.f32.mrf.mxu0
      %v1417 = vadd.f32 0.0, %v1416
      %1418 = vmatmul.f32.gmra.mxu0 %v858
      %v1419 = vpop.f32.mrf.mxu0
      %v1420 = vadd.f32 0.0, %v1419
      %1421 = vmatmul.f32.gmra.mxu0 %v860
      %v1422 = vpop.f32.mrf.mxu0
      %v1423 = vadd.f32 0.0, %v1422
      %1424 = vmatmul.f32.gmra.mxu0 %v862
      %v1425 = vpop.f32.mrf.mxu0
      %v1426 = vadd.f32 0.0, %v1425
      %1427 = vmatmul.f32.gmra.mxu0 %v864
      %v1428 = vpop.f32.mrf.mxu0
      %v1429 = vadd.f32 0.0, %v1428
      %1430 = vmatmul.f32.gmra.mxu0 %v866
      %v1431 = vpop.f32.mrf.mxu0
      %v1432 = vadd.f32 0.0, %v1431
      %1433 = vmatmul.f32.gmra.mxu0 %v868
      %v1434 = vpop.f32.mrf.mxu0
      %v1435 = vadd.f32 0.0, %v1434
      %1436 = vmatmul.f32.gmra.mxu0 %v870
      %v1437 = vpop.f32.mrf.mxu0
      %v1438 = vadd.f32 0.0, %v1437
      %1439 = vmatmul.f32.gmra.mxu0 %v872
      %v1440 = vpop.f32.mrf.mxu0
      %v1441 = vadd.f32 0.0, %v1440
      %1442 = vmatmul.f32.gmra.mxu0 %v874
      %v1443 = vpop.f32.mrf.mxu0
      %v1444 = vadd.f32 0.0, %v1443
      %1445 = vmatmul.f32.gmra.mxu0 %v876
      %v1446 = vpop.f32.mrf.mxu0
      %v1447 = vadd.f32 0.0, %v1446
      %1448 = vmatmul.f32.gmra.mxu0 %v878
      %v1449 = vpop.f32.mrf.mxu0
      %v1450 = vadd.f32 0.0, %v1449
      %1451 = vmatmul.f32.gmra.mxu0 %v880
      %v1452 = vpop.f32.mrf.mxu0
      %v1453 = vadd.f32 0.0, %v1452
      %1454 = vmatmul.f32.gmra.mxu0 %v882
      %v1455 = vpop.f32.mrf.mxu0
      %v1456 = vadd.f32 0.0, %v1455
      %1457 = vmatmul.f32.gmra.mxu0 %v884
      %v1458 = vpop.f32.mrf.mxu0
      %v1459 = vadd.f32 0.0, %v1458
      %1460 = vmatmul.f32.gmra.mxu0 %v886
      %v1461 = vpop.f32.mrf.mxu0
      %v1462 = vadd.f32 0.0, %v1461
      %1463 = vmatmul.f32.gmra.mxu0 %v888
      %v1464 = vpop.f32.mrf.mxu0
      %v1465 = vadd.f32 0.0, %v1464
      %1466 = vmatmul.f32.gmra.mxu0 %v890
      %v1467 = vpop.f32.mrf.mxu0
      %v1468 = vadd.f32 0.0, %v1467
      %1469 = vmatmul.f32.gmra.mxu0 %v892
      %v1470 = vpop.f32.mrf.mxu0
      %v1471 = vadd.f32 0.0, %v1470
      %1472 = vmatmul.f32.gmra.mxu0 %v894
      %v1473 = vpop.f32.mrf.mxu0
      %v1474 = vadd.f32 0.0, %v1473
      %1475 = vmatmul.f32.gmra.mxu0 %v896
      %v1476 = vpop.f32.mrf.mxu0
      %v1477 = vadd.f32 0.0, %v1476
      %1478 = vmatmul.f32.gmra.mxu0 %v898
      %v1479 = vpop.f32.mrf.mxu0
      %v1480 = vadd.f32 0.0, %v1479
      %1481 = vmatmul.f32.gmra.mxu0 %v1371
      %v1482 = vpop.f32.mrf.mxu0
      %v1483 = vadd.f32 0.0, %v1482
      %1484 = vmatmul.f32.gmra.mxu0 %v1373
      %v1485 = vpop.f32.mrf.mxu0
      %v1486 = vadd.f32 0.0, %v1485
      %1487 = vdwg.mxu0
      %v1488 = vadd.f32 %v1329, %v1393
      %v1489 = vadd.f32 %v1330, %v1396
      %v1490 = vadd.f32 %v1331, %v1399
      %v1491 = vadd.f32 %v1332, %v1402
      %v1492 = vadd.f32 %v1333, %v1405
      %v1493 = vadd.f32 %v1334, %v1408
      %v1494 = vadd.f32 %v1335, %v1411
      %v1495 = vadd.f32 %v1336, %v1414
      %v1496 = vadd.f32 %v1337, %v1417
      %v1497 = vadd.f32 %v1338, %v1420
      %v1498 = vadd.f32 %v1339, %v1423
      %v1499 = vadd.f32 %v1340, %v1426
      %v1500 = vadd.f32 %v1341, %v1429
      %v1501 = vadd.f32 %v1342, %v1432
      %v1502 = vadd.f32 %v1343, %v1435
      %v1503 = vadd.f32 %v1344, %v1438
      %v1504 = vadd.f32 %v1345, %v1441
      %v1505 = vadd.f32 %v1346, %v1444
      %v1506 = vadd.f32 %v1347, %v1447
      %v1507 = vadd.f32 %v1348, %v1450
      %v1508 = vadd.f32 %v1349, %v1453
      %v1509 = vadd.f32 %v1350, %v1456
      %v1510 = vadd.f32 %v1351, %v1459
      %v1511 = vadd.f32 %v1352, %v1462
      %v1512 = vadd.f32 %v1353, %v1465
      %v1513 = vadd.f32 %v1354, %v1468
      %v1514 = vadd.f32 %v1355, %v1471
      %v1515 = vadd.f32 %v1356, %v1474
      %v1516 = vadd.f32 %v1357, %v1477
      %v1517 = vadd.f32 %v1358, %v1480
      %v1518 = vadd.f32 %v1359, %v1483
      %v1519 = vadd.f32 %v1360, %v1486
      %s1520 = scalar_lea.vmem %s1, 192
      %v1521 = vld [vmem:[%s1520] sm:$0xff]
      %v1522 = vld [vmem:[%s1520 + $0x8] sm:$0xff]
      %v1523 = vld [vmem:[%s1520 + $0x10] sm:$0xff]
      %v1524 = vld [vmem:[%s1520 + $0x18] sm:$0xff]
      %v1526 = vsel %vm395, %v254, 0
      %v1529 = vsel %vm395, %v255, 0
      %1531 = vmatpush.msra.mxu0 0.0
      %1532 = vmatpush.msra.mxu0 0.0
      %1533 = vmatpush.msra.mxu0 0.0
      %1534 = vmatpush.msra.mxu0 0.0
      %1535 = vmatpush.msra.mxu0 0.0
      %1536 = vmatpush.msra.mxu0 0.0
      %1537 = vmatpush.msra.mxu0 0.0
      %1538 = vmatpush.msra.mxu0 0.0
      %1539 = vmatpush.msra.mxu0 0.0
      %1540 = vmatpush.msra.mxu0 0.0
      %1541 = vmatpush.msra.mxu0 0.0
      %1542 = vmatpush.msra.mxu0 0.0
      %1543 = vmatpush.msra.mxu0 %v1524
      %1544 = vmatpush.msra.mxu0 %v1523
      %1545 = vmatpush.msra.mxu0 %v1522
      %1546 = vmatpush.msra.mxu0 %v1521
      %1547 = vmatmul.f32.gmra.mxu0 %v581
      %v1548 = vpop.f32.mrf.mxu0
      %v1549 = vadd.f32 0.0, %v1548
      %1550 = vmatmul.f32.gmra.mxu0 %v583
      %v1551 = vpop.f32.mrf.mxu0
      %v1552 = vadd.f32 0.0, %v1551
      %1553 = vmatmul.f32.gmra.mxu0 %v585
      %v1554 = vpop.f32.mrf.mxu0
      %v1555 = vadd.f32 0.0, %v1554
      %1556 = vmatmul.f32.gmra.mxu0 %v587
      %v1557 = vpop.f32.mrf.mxu0
      %v1558 = vadd.f32 0.0, %v1557
      %1559 = vmatmul.f32.gmra.mxu0 %v589
      %v1560 = vpop.f32.mrf.mxu0
      %v1561 = vadd.f32 0.0, %v1560
      %1562 = vmatmul.f32.gmra.mxu0 %v591
      %v1563 = vpop.f32.mrf.mxu0
      %v1564 = vadd.f32 0.0, %v1563
      %1565 = vmatmul.f32.gmra.mxu0 %v593
      %v1566 = vpop.f32.mrf.mxu0
      %v1567 = vadd.f32 0.0, %v1566
      %1568 = vmatmul.f32.gmra.mxu0 %v595
      %v1569 = vpop.f32.mrf.mxu0
      %v1570 = vadd.f32 0.0, %v1569
      %1571 = vmatmul.f32.gmra.mxu0 %v597
      %v1572 = vpop.f32.mrf.mxu0
      %v1573 = vadd.f32 0.0, %v1572
      %1574 = vmatmul.f32.gmra.mxu0 %v599
      %v1575 = vpop.f32.mrf.mxu0
      %v1576 = vadd.f32 0.0, %v1575
      %1577 = vmatmul.f32.gmra.mxu0 %v601
      %v1578 = vpop.f32.mrf.mxu0
      %v1579 = vadd.f32 0.0, %v1578
      %1580 = vmatmul.f32.gmra.mxu0 %v603
      %v1581 = vpop.f32.mrf.mxu0
      %v1582 = vadd.f32 0.0, %v1581
      %1583 = vmatmul.f32.gmra.mxu0 %v605
      %v1584 = vpop.f32.mrf.mxu0
      %v1585 = vadd.f32 0.0, %v1584
      %1586 = vmatmul.f32.gmra.mxu0 %v607
      %v1587 = vpop.f32.mrf.mxu0
      %v1588 = vadd.f32 0.0, %v1587
      %1589 = vmatmul.f32.gmra.mxu0 %v609
      %v1590 = vpop.f32.mrf.mxu0
      %v1591 = vadd.f32 0.0, %v1590
      %1592 = vmatmul.f32.gmra.mxu0 %v611
      %v1593 = vpop.f32.mrf.mxu0
      %v1594 = vadd.f32 0.0, %v1593
      %1595 = vmatmul.f32.gmra.mxu0 %v613
      %v1596 = vpop.f32.mrf.mxu0
      %v1597 = vadd.f32 0.0, %v1596
      %1598 = vmatmul.f32.gmra.mxu0 %v615
      %v1599 = vpop.f32.mrf.mxu0
      %v1600 = vadd.f32 0.0, %v1599
      %1601 = vmatmul.f32.gmra.mxu0 %v617
      %v1602 = vpop.f32.mrf.mxu0
      %v1603 = vadd.f32 0.0, %v1602
      %1604 = vmatmul.f32.gmra.mxu0 %v619
      %v1605 = vpop.f32.mrf.mxu0
      %v1606 = vadd.f32 0.0, %v1605
      %1607 = vmatmul.f32.gmra.mxu0 %v621
      %v1608 = vpop.f32.mrf.mxu0
      %v1609 = vadd.f32 0.0, %v1608
      %1610 = vmatmul.f32.gmra.mxu0 %v623
      %v1611 = vpop.f32.mrf.mxu0
      %v1612 = vadd.f32 0.0, %v1611
      %1613 = vmatmul.f32.gmra.mxu0 %v625
      %v1614 = vpop.f32.mrf.mxu0
      %v1615 = vadd.f32 0.0, %v1614
      %1616 = vmatmul.f32.gmra.mxu0 %v627
      %v1617 = vpop.f32.mrf.mxu0
      %v1618 = vadd.f32 0.0, %v1617
      %1619 = vmatmul.f32.gmra.mxu0 %v629
      %v1620 = vpop.f32.mrf.mxu0
      %v1621 = vadd.f32 0.0, %v1620
      %1622 = vmatmul.f32.gmra.mxu0 %v631
      %v1623 = vpop.f32.mrf.mxu0
      %v1624 = vadd.f32 0.0, %v1623
      %1625 = vmatmul.f32.gmra.mxu0 %v633
      %v1626 = vpop.f32.mrf.mxu0
      %v1627 = vadd.f32 0.0, %v1626
      %1628 = vmatmul.f32.gmra.mxu0 %v635
      %v1629 = vpop.f32.mrf.mxu0
      %v1630 = vadd.f32 0.0, %v1629
      %1631 = vmatmul.f32.gmra.mxu0 %v1051
      %v1632 = vpop.f32.mrf.mxu0
      %v1633 = vadd.f32 0.0, %v1632
      %1634 = vmatmul.f32.gmra.mxu0 %v1054
      %v1635 = vpop.f32.mrf.mxu0
      %v1636 = vadd.f32 0.0, %v1635
      %1637 = vmatmul.f32.gmra.mxu0 %v1526
      %v1638 = vpop.f32.mrf.mxu0
      %v1639 = vadd.f32 0.0, %v1638
      %1640 = vmatmul.f32.gmra.mxu0 %v1529
      %v1641 = vpop.f32.mrf.mxu0
      %v1642 = vadd.f32 0.0, %v1641
      %1643 = vdwg.mxu0
      %v1644 = vadd.f32 %v1488, %v1549
      %v1645 = vadd.f32 %v1489, %v1552
      %v1646 = vadd.f32 %v1490, %v1555
      %v1647 = vadd.f32 %v1491, %v1558
      %v1648 = vadd.f32 %v1492, %v1561
      %v1649 = vadd.f32 %v1493, %v1564
      %v1650 = vadd.f32 %v1494, %v1567
      %v1651 = vadd.f32 %v1495, %v1570
      %v1652 = vadd.f32 %v1496, %v1573
      %v1653 = vadd.f32 %v1497, %v1576
      %v1654 = vadd.f32 %v1498, %v1579
      %v1655 = vadd.f32 %v1499, %v1582
      %v1656 = vadd.f32 %v1500, %v1585
      %v1657 = vadd.f32 %v1501, %v1588
      %v1658 = vadd.f32 %v1502, %v1591
      %v1659 = vadd.f32 %v1503, %v1594
      %v1660 = vadd.f32 %v1504, %v1597
      %v1661 = vadd.f32 %v1505, %v1600
      %v1662 = vadd.f32 %v1506, %v1603
      %v1663 = vadd.f32 %v1507, %v1606
      %v1664 = vadd.f32 %v1508, %v1609
      %v1665 = vadd.f32 %v1509, %v1612
      %v1666 = vadd.f32 %v1510, %v1615
      %v1667 = vadd.f32 %v1511, %v1618
      %v1668 = vadd.f32 %v1512, %v1621
      %v1669 = vadd.f32 %v1513, %v1624
      %v1670 = vadd.f32 %v1514, %v1627
      %v1671 = vadd.f32 %v1515, %v1630
      %v1672 = vadd.f32 %v1516, %v1633
      %v1673 = vadd.f32 %v1517, %v1636
      %v1674 = vadd.f32 %v1518, %v1639
      %v1675 = vadd.f32 %v1519, %v1642
      %v1677 = vrot.slane %v254, 1
      %v1678 = vrot.slane %v255, 1
      %v1679 = vsel %vm309, %v1677, %v1678
      %v1680 = vrot.slane %v256, 1
      %v1681 = vsel %vm309, %v1678, %v1680
      %s1682 = scalar_lea.vmem %s1, 224
      %v1683 = vld [vmem:[%s1682] sm:$0xff]
      %v1684 = vld [vmem:[%s1682 + $0x8] sm:$0xff]
      %v1685 = vld [vmem:[%s1682 + $0x10] sm:$0xff]
      %v1686 = vld [vmem:[%s1682 + $0x18] sm:$0xff]
      %v1687 = vsel %vm395, %v1679, 0
      %v1689 = vsel %vm395, %v1681, 0
      %1691 = vmatpush.msra.mxu0 0.0
      %1692 = vmatpush.msra.mxu0 0.0
      %1693 = vmatpush.msra.mxu0 0.0
      %1694 = vmatpush.msra.mxu0 0.0
      %1695 = vmatpush.msra.mxu0 0.0
      %1696 = vmatpush.msra.mxu0 0.0
      %1697 = vmatpush.msra.mxu0 0.0
      %1698 = vmatpush.msra.mxu0 0.0
      %1699 = vmatpush.msra.mxu0 0.0
      %1700 = vmatpush.msra.mxu0 0.0
      %1701 = vmatpush.msra.mxu0 0.0
      %1702 = vmatpush.msra.mxu0 0.0
      %1703 = vmatpush.msra.mxu0 %v1686
      %1704 = vmatpush.msra.mxu0 %v1685
      %1705 = vmatpush.msra.mxu0 %v1684
      %1706 = vmatpush.msra.mxu0 %v1683
      %1707 = vmatmul.f32.gmra.mxu0 %v404
      %v1708 = vpop.f32.mrf.mxu0
      %v1709 = vadd.f32 0.0, %v1708
      %1710 = vmatmul.f32.gmra.mxu0 %v406
      %v1711 = vpop.f32.mrf.mxu0
      %v1712 = vadd.f32 0.0, %v1711
      %1713 = vmatmul.f32.gmra.mxu0 %v408
      %v1714 = vpop.f32.mrf.mxu0
      %v1715 = vadd.f32 0.0, %v1714
      %1716 = vmatmul.f32.gmra.mxu0 %v410
      %v1717 = vpop.f32.mrf.mxu0
      %v1718 = vadd.f32 0.0, %v1717
      %1719 = vmatmul.f32.gmra.mxu0 %v412
      %v1720 = vpop.f32.mrf.mxu0
      %v1721 = vadd.f32 0.0, %v1720
      %1722 = vmatmul.f32.gmra.mxu0 %v414
      %v1723 = vpop.f32.mrf.mxu0
      %v1724 = vadd.f32 0.0, %v1723
      %1725 = vmatmul.f32.gmra.mxu0 %v416
      %v1726 = vpop.f32.mrf.mxu0
      %v1727 = vadd.f32 0.0, %v1726
      %1728 = vmatmul.f32.gmra.mxu0 %v418
      %v1729 = vpop.f32.mrf.mxu0
      %v1730 = vadd.f32 0.0, %v1729
      %1731 = vmatmul.f32.gmra.mxu0 %v420
      %v1732 = vpop.f32.mrf.mxu0
      %v1733 = vadd.f32 0.0, %v1732
      %1734 = vmatmul.f32.gmra.mxu0 %v422
      %v1735 = vpop.f32.mrf.mxu0
      %v1736 = vadd.f32 0.0, %v1735
      %1737 = vmatmul.f32.gmra.mxu0 %v424
      %v1738 = vpop.f32.mrf.mxu0
      %v1739 = vadd.f32 0.0, %v1738
      %1740 = vmatmul.f32.gmra.mxu0 %v426
      %v1741 = vpop.f32.mrf.mxu0
      %v1742 = vadd.f32 0.0, %v1741
      %1743 = vmatmul.f32.gmra.mxu0 %v428
      %v1744 = vpop.f32.mrf.mxu0
      %v1745 = vadd.f32 0.0, %v1744
      %1746 = vmatmul.f32.gmra.mxu0 %v430
      %v1747 = vpop.f32.mrf.mxu0
      %v1748 = vadd.f32 0.0, %v1747
      %1749 = vmatmul.f32.gmra.mxu0 %v432
      %v1750 = vpop.f32.mrf.mxu0
      %v1751 = vadd.f32 0.0, %v1750
      %1752 = vmatmul.f32.gmra.mxu0 %v434
      %v1753 = vpop.f32.mrf.mxu0
      %v1754 = vadd.f32 0.0, %v1753
      %1755 = vmatmul.f32.gmra.mxu0 %v436
      %v1756 = vpop.f32.mrf.mxu0
      %v1757 = vadd.f32 0.0, %v1756
      %1758 = vmatmul.f32.gmra.mxu0 %v438
      %v1759 = vpop.f32.mrf.mxu0
      %v1760 = vadd.f32 0.0, %v1759
      %1761 = vmatmul.f32.gmra.mxu0 %v440
      %v1762 = vpop.f32.mrf.mxu0
      %v1763 = vadd.f32 0.0, %v1762
      %1764 = vmatmul.f32.gmra.mxu0 %v442
      %v1765 = vpop.f32.mrf.mxu0
      %v1766 = vadd.f32 0.0, %v1765
      %1767 = vmatmul.f32.gmra.mxu0 %v444
      %v1768 = vpop.f32.mrf.mxu0
      %v1769 = vadd.f32 0.0, %v1768
      %1770 = vmatmul.f32.gmra.mxu0 %v446
      %v1771 = vpop.f32.mrf.mxu0
      %v1772 = vadd.f32 0.0, %v1771
      %1773 = vmatmul.f32.gmra.mxu0 %v448
      %v1774 = vpop.f32.mrf.mxu0
      %v1775 = vadd.f32 0.0, %v1774
      %1776 = vmatmul.f32.gmra.mxu0 %v450
      %v1777 = vpop.f32.mrf.mxu0
      %v1778 = vadd.f32 0.0, %v1777
      %1779 = vmatmul.f32.gmra.mxu0 %v452
      %v1780 = vpop.f32.mrf.mxu0
      %v1781 = vadd.f32 0.0, %v1780
      %1782 = vmatmul.f32.gmra.mxu0 %v454
      %v1783 = vpop.f32.mrf.mxu0
      %v1784 = vadd.f32 0.0, %v1783
      %1785 = vmatmul.f32.gmra.mxu0 %v456
      %v1786 = vpop.f32.mrf.mxu0
      %v1787 = vadd.f32 0.0, %v1786
      %1788 = vmatmul.f32.gmra.mxu0 %v458
      %v1789 = vpop.f32.mrf.mxu0
      %v1790 = vadd.f32 0.0, %v1789
      %1791 = vmatmul.f32.gmra.mxu0 %v1212
      %v1792 = vpop.f32.mrf.mxu0
      %v1793 = vadd.f32 0.0, %v1792
      %1794 = vmatmul.f32.gmra.mxu0 %v1214
      %v1795 = vpop.f32.mrf.mxu0
      %v1796 = vadd.f32 0.0, %v1795
      %1797 = vmatmul.f32.gmra.mxu0 %v1687
      %v1798 = vpop.f32.mrf.mxu0
      %v1799 = vadd.f32 0.0, %v1798
      %1800 = vmatmul.f32.gmra.mxu0 %v1689
      %v1801 = vpop.f32.mrf.mxu0
      %v1802 = vadd.f32 0.0, %v1801
      %1803 = vdwg.mxu0
      %v1804 = vadd.f32 %v1644, %v1709
      %v1805 = vadd.f32 %v1645, %v1712
      %v1806 = vadd.f32 %v1646, %v1715
      %v1807 = vadd.f32 %v1647, %v1718
      %v1808 = vadd.f32 %v1648, %v1721
      %v1809 = vadd.f32 %v1649, %v1724
      %v1810 = vadd.f32 %v1650, %v1727
      %v1811 = vadd.f32 %v1651, %v1730
      %v1812 = vadd.f32 %v1652, %v1733
      %v1813 = vadd.f32 %v1653, %v1736
      %v1814 = vadd.f32 %v1654, %v1739
      %v1815 = vadd.f32 %v1655, %v1742
      %v1816 = vadd.f32 %v1656, %v1745
      %v1817 = vadd.f32 %v1657, %v1748
      %v1818 = vadd.f32 %v1658, %v1751
      %v1819 = vadd.f32 %v1659, %v1754
      %v1820 = vadd.f32 %v1660, %v1757
      %v1821 = vadd.f32 %v1661, %v1760
      %v1822 = vadd.f32 %v1662, %v1763
      %v1823 = vadd.f32 %v1663, %v1766
      %v1824 = vadd.f32 %v1664, %v1769
      %v1825 = vadd.f32 %v1665, %v1772
      %v1826 = vadd.f32 %v1666, %v1775
      %v1827 = vadd.f32 %v1667, %v1778
      %v1828 = vadd.f32 %v1668, %v1781
      %v1829 = vadd.f32 %v1669, %v1784
      %v1830 = vadd.f32 %v1670, %v1787
      %v1831 = vadd.f32 %v1671, %v1790
      %v1832 = vadd.f32 %v1672, %v1793
      %v1833 = vadd.f32 %v1673, %v1796
      %v1834 = vadd.f32 %v1674, %v1799
      %v1835 = vadd.f32 %v1675, %v1802
      %v1836 = vrot.slane %v254, 2
      %v1837 = vrot.slane %v255, 2
      %v1838 = vsel %vm750, %v1836, %v1837
      %v1839 = vrot.slane %v256, 2
      %v1840 = vsel %vm750, %v1837, %v1839
      %s1841 = scalar_lea.vmem %s1, 256
      %v1842 = vld [vmem:[%s1841] sm:$0xff]
      %v1843 = vld [vmem:[%s1841 + $0x8] sm:$0xff]
      %v1844 = vld [vmem:[%s1841 + $0x10] sm:$0xff]
      %v1845 = vld [vmem:[%s1841 + $0x18] sm:$0xff]
      %v1846 = vsel %vm395, %v1838, 0
      %v1848 = vsel %vm395, %v1840, 0
      %1850 = vmatpush.msra.mxu0 0.0
      %1851 = vmatpush.msra.mxu0 0.0
      %1852 = vmatpush.msra.mxu0 0.0
      %1853 = vmatpush.msra.mxu0 0.0
      %1854 = vmatpush.msra.mxu0 0.0
      %1855 = vmatpush.msra.mxu0 0.0
      %1856 = vmatpush.msra.mxu0 0.0
      %1857 = vmatpush.msra.mxu0 0.0
      %1858 = vmatpush.msra.mxu0 0.0
      %1859 = vmatpush.msra.mxu0 0.0
      %1860 = vmatpush.msra.mxu0 0.0
      %1861 = vmatpush.msra.mxu0 0.0
      %1862 = vmatpush.msra.mxu0 %v1845
      %1863 = vmatpush.msra.mxu0 %v1844
      %1864 = vmatpush.msra.mxu0 %v1843
      %1865 = vmatpush.msra.mxu0 %v1842
      %1866 = vmatmul.f32.gmra.mxu0 %v844
      %v1867 = vpop.f32.mrf.mxu0
      %v1868 = vadd.f32 0.0, %v1867
      %1869 = vmatmul.f32.gmra.mxu0 %v846
      %v1870 = vpop.f32.mrf.mxu0
      %v1871 = vadd.f32 0.0, %v1870
      %1872 = vmatmul.f32.gmra.mxu0 %v848
      %v1873 = vpop.f32.mrf.mxu0
      %v1874 = vadd.f32 0.0, %v1873
      %1875 = vmatmul.f32.gmra.mxu0 %v850
      %v1876 = vpop.f32.mrf.mxu0
      %v1877 = vadd.f32 0.0, %v1876
      %1878 = vmatmul.f32.gmra.mxu0 %v852
      %v1879 = vpop.f32.mrf.mxu0
      %v1880 = vadd.f32 0.0, %v1879
      %1881 = vmatmul.f32.gmra.mxu0 %v854
      %v1882 = vpop.f32.mrf.mxu0
      %v1883 = vadd.f32 0.0, %v1882
      %1884 = vmatmul.f32.gmra.mxu0 %v856
      %v1885 = vpop.f32.mrf.mxu0
      %v1886 = vadd.f32 0.0, %v1885
      %1887 = vmatmul.f32.gmra.mxu0 %v858
      %v1888 = vpop.f32.mrf.mxu0
      %v1889 = vadd.f32 0.0, %v1888
      %1890 = vmatmul.f32.gmra.mxu0 %v860
      %v1891 = vpop.f32.mrf.mxu0
      %v1892 = vadd.f32 0.0, %v1891
      %1893 = vmatmul.f32.gmra.mxu0 %v862
      %v1894 = vpop.f32.mrf.mxu0
      %v1895 = vadd.f32 0.0, %v1894
      %1896 = vmatmul.f32.gmra.mxu0 %v864
      %v1897 = vpop.f32.mrf.mxu0
      %v1898 = vadd.f32 0.0, %v1897
      %1899 = vmatmul.f32.gmra.mxu0 %v866
      %v1900 = vpop.f32.mrf.mxu0
      %v1901 = vadd.f32 0.0, %v1900
      %1902 = vmatmul.f32.gmra.mxu0 %v868
      %v1903 = vpop.f32.mrf.mxu0
      %v1904 = vadd.f32 0.0, %v1903
      %1905 = vmatmul.f32.gmra.mxu0 %v870
      %v1906 = vpop.f32.mrf.mxu0
      %v1907 = vadd.f32 0.0, %v1906
      %1908 = vmatmul.f32.gmra.mxu0 %v872
      %v1909 = vpop.f32.mrf.mxu0
      %v1910 = vadd.f32 0.0, %v1909
      %1911 = vmatmul.f32.gmra.mxu0 %v874
      %v1912 = vpop.f32.mrf.mxu0
      %v1913 = vadd.f32 0.0, %v1912
      %1914 = vmatmul.f32.gmra.mxu0 %v876
      %v1915 = vpop.f32.mrf.mxu0
      %v1916 = vadd.f32 0.0, %v1915
      %1917 = vmatmul.f32.gmra.mxu0 %v878
      %v1918 = vpop.f32.mrf.mxu0
      %v1919 = vadd.f32 0.0, %v1918
      %1920 = vmatmul.f32.gmra.mxu0 %v880
      %v1921 = vpop.f32.mrf.mxu0
      %v1922 = vadd.f32 0.0, %v1921
      %1923 = vmatmul.f32.gmra.mxu0 %v882
      %v1924 = vpop.f32.mrf.mxu0
      %v1925 = vadd.f32 0.0, %v1924
      %1926 = vmatmul.f32.gmra.mxu0 %v884
      %v1927 = vpop.f32.mrf.mxu0
      %v1928 = vadd.f32 0.0, %v1927
      %1929 = vmatmul.f32.gmra.mxu0 %v886
      %v1930 = vpop.f32.mrf.mxu0
      %v1931 = vadd.f32 0.0, %v1930
      %1932 = vmatmul.f32.gmra.mxu0 %v888
      %v1933 = vpop.f32.mrf.mxu0
      %v1934 = vadd.f32 0.0, %v1933
      %1935 = vmatmul.f32.gmra.mxu0 %v890
      %v1936 = vpop.f32.mrf.mxu0
      %v1937 = vadd.f32 0.0, %v1936
      %1938 = vmatmul.f32.gmra.mxu0 %v892
      %v1939 = vpop.f32.mrf.mxu0
      %v1940 = vadd.f32 0.0, %v1939
      %1941 = vmatmul.f32.gmra.mxu0 %v894
      %v1942 = vpop.f32.mrf.mxu0
      %v1943 = vadd.f32 0.0, %v1942
      %1944 = vmatmul.f32.gmra.mxu0 %v896
      %v1945 = vpop.f32.mrf.mxu0
      %v1946 = vadd.f32 0.0, %v1945
      %1947 = vmatmul.f32.gmra.mxu0 %v898
      %v1948 = vpop.f32.mrf.mxu0
      %v1949 = vadd.f32 0.0, %v1948
      %1950 = vmatmul.f32.gmra.mxu0 %v1371
      %v1951 = vpop.f32.mrf.mxu0
      %v1952 = vadd.f32 0.0, %v1951
      %1953 = vmatmul.f32.gmra.mxu0 %v1373
      %v1954 = vpop.f32.mrf.mxu0
      %v1955 = vadd.f32 0.0, %v1954
      %1956 = vmatmul.f32.gmra.mxu0 %v1846
      %v1957 = vpop.f32.mrf.mxu0
      %v1958 = vadd.f32 0.0, %v1957
      %1959 = vmatmul.f32.gmra.mxu0 %v1848
      %v1960 = vpop.f32.mrf.mxu0
      %v1961 = vadd.f32 0.0, %v1960
      %1962 = vdwg.mxu0
      %v1963 = vadd.f32 %v1804, %v1868
      %v1964 = vadd.f32 %v1805, %v1871
      %v1965 = vadd.f32 %v1806, %v1874
      %v1966 = vadd.f32 %v1807, %v1877
      %v1967 = vadd.f32 %v1808, %v1880
      %v1968 = vadd.f32 %v1809, %v1883
      %v1969 = vadd.f32 %v1810, %v1886
      %v1970 = vadd.f32 %v1811, %v1889
      %v1971 = vadd.f32 %v1812, %v1892
      %v1972 = vadd.f32 %v1813, %v1895
      %v1973 = vadd.f32 %v1814, %v1898
      %v1974 = vadd.f32 %v1815, %v1901
      %v1975 = vadd.f32 %v1816, %v1904
      %v1976 = vadd.f32 %v1817, %v1907
      %v1977 = vadd.f32 %v1818, %v1910
      %v1978 = vadd.f32 %v1819, %v1913
      %v1979 = vadd.f32 %v1820, %v1916
      %v1980 = vadd.f32 %v1821, %v1919
      %v1981 = vadd.f32 %v1822, %v1922
      %v1982 = vadd.f32 %v1823, %v1925
      %v1983 = vadd.f32 %v1824, %v1928
      %v1984 = vadd.f32 %v1825, %v1931
      %v1985 = vadd.f32 %v1826, %v1934
      %v1986 = vadd.f32 %v1827, %v1937
      %v1987 = vadd.f32 %v1828, %v1940
      %v1988 = vadd.f32 %v1829, %v1943
      %v1989 = vadd.f32 %v1830, %v1946
      %v1990 = vadd.f32 %v1831, %v1949
      %v1991 = vadd.f32 %v1832, %v1952
      %v1992 = vadd.f32 %v1833, %v1955
      %v1993 = vadd.f32 %v1834, %v1958
      %v1994 = vadd.f32 %v1835, %v1961
      %v1995 = vld [vmem:[%s2] sm:$0x1]
      %v1997 = vperm.slane %v1995, 0
      %v1999 = vadd.f32 %v1963, %v1997
      %v2000 = vadd.f32 %v1964, %v1997
      %v2001 = vadd.f32 %v1965, %v1997
      %v2002 = vadd.f32 %v1966, %v1997
      %v2003 = vadd.f32 %v1967, %v1997
      %v2004 = vadd.f32 %v1968, %v1997
      %v2005 = vadd.f32 %v1969, %v1997
      %v2006 = vadd.f32 %v1970, %v1997
      %v2007 = vadd.f32 %v1971, %v1997
      %v2008 = vadd.f32 %v1972, %v1997
      %v2009 = vadd.f32 %v1973, %v1997
      %v2010 = vadd.f32 %v1974, %v1997
      %v2011 = vadd.f32 %v1975, %v1997
      %v2012 = vadd.f32 %v1976, %v1997
      %v2013 = vadd.f32 %v1977, %v1997
      %v2014 = vadd.f32 %v1978, %v1997
      %v2015 = vadd.f32 %v1979, %v1997
      %v2016 = vadd.f32 %v1980, %v1997
      %v2017 = vadd.f32 %v1981, %v1997
      %v2018 = vadd.f32 %v1982, %v1997
      %v2019 = vadd.f32 %v1983, %v1997
      %v2020 = vadd.f32 %v1984, %v1997
      %v2021 = vadd.f32 %v1985, %v1997
      %v2022 = vadd.f32 %v1986, %v1997
      %v2023 = vadd.f32 %v1987, %v1997
      %v2024 = vadd.f32 %v1988, %v1997
      %v2025 = vadd.f32 %v1989, %v1997
      %v2026 = vadd.f32 %v1990, %v1997
      %v2027 = vadd.f32 %v1991, %v1997
      %v2028 = vadd.f32 %v1992, %v1997
      %v2029 = vadd.f32 %v1993, %v1997
      %v2030 = vadd.f32 %v1994, %v1997
      %vm2031 = vcmask 23552
      %2032 = vst.msk [vmem:[%s201] sm:$0xff] %vm2031, %v1999
      %2033 = vst.msk [vmem:[%s201 + $0x8] sm:$0xff] %vm2031, %v2000
      %2034 = vst.msk [vmem:[%s201 + $0x10] sm:$0xff] %vm2031, %v2001
      %2035 = vst.msk [vmem:[%s201 + $0x18] sm:$0xff] %vm2031, %v2002
      %2036 = vst.msk [vmem:[%s201 + $0x20] sm:$0xff] %vm2031, %v2003
      %2037 = vst.msk [vmem:[%s201 + $0x28] sm:$0xff] %vm2031, %v2004
      %2038 = vst.msk [vmem:[%s201 + $0x30] sm:$0xff] %vm2031, %v2005
      %2039 = vst.msk [vmem:[%s201 + $0x38] sm:$0xff] %vm2031, %v2006
      %2040 = vst.msk [vmem:[%s201 + $0x40] sm:$0xff] %vm2031, %v2007
      %2041 = vst.msk [vmem:[%s201 + $0x48] sm:$0xff] %vm2031, %v2008
      %2042 = vst.msk [vmem:[%s201 + $0x50] sm:$0xff] %vm2031, %v2009
      %2043 = vst.msk [vmem:[%s201 + $0x58] sm:$0xff] %vm2031, %v2010
      %2044 = vst.msk [vmem:[%s201 + $0x60] sm:$0xff] %vm2031, %v2011
      %2045 = vst.msk [vmem:[%s201 + $0x68] sm:$0xff] %vm2031, %v2012
      %2046 = vst.msk [vmem:[%s201 + $0x70] sm:$0xff] %vm2031, %v2013
      %2047 = vst.msk [vmem:[%s201 + $0x78] sm:$0xff] %vm2031, %v2014
      %2048 = vst.msk [vmem:[%s201 + $0x80] sm:$0xff] %vm2031, %v2015
      %2049 = vst.msk [vmem:[%s201 + $0x88] sm:$0xff] %vm2031, %v2016
      %2050 = vst.msk [vmem:[%s201 + $0x90] sm:$0xff] %vm2031, %v2017
      %2051 = vst.msk [vmem:[%s201 + $0x98] sm:$0xff] %vm2031, %v2018
      %2052 = vst.msk [vmem:[%s201 + $0xa0] sm:$0xff] %vm2031, %v2019
      %2053 = vst.msk [vmem:[%s201 + $0xa8] sm:$0xff] %vm2031, %v2020
      %2054 = vst.msk [vmem:[%s201 + $0xb0] sm:$0xff] %vm2031, %v2021
      %2055 = vst.msk [vmem:[%s201 + $0xb8] sm:$0xff] %vm2031, %v2022
      %2056 = vst.msk [vmem:[%s201 + $0xc0] sm:$0xff] %vm2031, %v2023
      %2057 = vst.msk [vmem:[%s201 + $0xc8] sm:$0xff] %vm2031, %v2024
      %2058 = vst.msk [vmem:[%s201 + $0xd0] sm:$0xff] %vm2031, %v2025
      %2059 = vst.msk [vmem:[%s201 + $0xd8] sm:$0xff] %vm2031, %v2026
      %2060 = vst.msk [vmem:[%s201 + $0xe0] sm:$0xff] %vm2031, %v2027
      %2061 = vst.msk [vmem:[%s201 + $0xe8] sm:$0xff] %vm2031, %v2028
      %2062 = vst.msk [vmem:[%s201 + $0xf0] sm:$0xff] %vm2031, %v2029
      %2063 = vst.msk [vmem:[%s201 + $0xf8] sm:$0xff] %vm2031, %v2030
      %s2064 = smul.u32 16, %s19
      %p2065 = scmp.lt.s32.totalorder %s18, 1
      %s2066 = scalar_select %p2065, %s18, 1
      %p2067 = scmp.lt.s32.totalorder %s2064, 15
      %s2068 = scalar_select %p2067, %s2064, 15
      %s2069 = smul.addr %s2068, 2
      %s2070 = smul.addr %s2066, 32
      %s2071 = sadd.s32 %s2069, %s2070
      %s2072 = smul.addr %s2071, 8
      %s2073 = scalar_lea.vmem %s3, %s2072
      // Predicated region
      $region33: #{skip_forward.7} parent=31 // pred_check
        %p2074 = pneg %p116
      $region34: #{skip_forward.7} parent=31 // pred_check_branch
        %2076 = sbr.rel (%p2074) target = $region36
      $region35: #{skip_forward.7} parent=31 // pred_region
        %s2077 = smul.u32 16, %s19
      $region36: #{skip_forward.7} parent=31 // pred_fallthru
        _
    $region32: #{skip_forward.7} parent=5 // pred_fallthru
      _
    %p2078 = scmp.le.s32.totalorder 2, %s9
    // Predicated region
    $region37: #{skip_forward.7} parent=5 // pred_check
      %p2079 = pneg %p2078
    $region38: #{skip_forward.7} parent=5 // pred_check_branch
      %2081 = sbr.rel (%p2079) target = $region40
    $region39: #{skip_forward.7} parent=5 // pred_region
      %s2082 = ssub.s32 %s9, 2
      // Predicated region
      $region41: #{skip_forward.7} parent=39 // pred_check
        %p2083 = pneg %p122
      $region42: #{skip_forward.7} parent=39 // pred_check_branch
        %2085 = sbr.rel (%p2083) target = $region44
      $region43: #{skip_forward.7} parent=39 // pred_region
        %s2086 = smul.u32 16, %s21
        %p2087 = scmp.lt.s32.totalorder %s20, 1
        %s2088 = scalar_select %p2087, %s20, 1
        %p2089 = scmp.lt.s32.totalorder %s2086, 15
        %s2090 = scalar_select %p2089, %s2086, 15
        %s2091 = smul.addr %s2090, 2
        %s2092 = smul.addr %s2088, 32
        %s2093 = sadd.s32 %s2091, %s2092
        %s2094 = smul.addr %s2093, 8
        %s2095 = scalar_lea.vmem %s3, %s2094
      $region44: #{skip_forward.7} parent=39 // pred_fallthru
        _
    $region40: #{skip_forward.7} parent=5 // pred_fallthru
      _
  $region6: #{skip_forward.7} parent=0 // loop_footer
    %s13 = sadd.s32 1, %s9
  $region7: #{skip_forward.7} parent=0 // loop_footer_branch
    %8 = sbr.rel target = $region3
  $region8: #{skip_forward.7} parent=0 // loop_exit
    _

// kernel: skip_forward.5
$region0: #{skip_forward.5}
  #allocation0 [shape = 'u32[]', space=smem, size = 0x4, offset = 0x4, fixed_abs, tag = 'smem constant byte address 0x4 - core index']
  #allocation1 [shape = 'u32[72,128]{1,0:T(1,128)}', space=vmem, size = 0x9000, scoped, tag = 'internal scratch']
  %s0 = inlined_call_operand.vmem [shape: f32[2,18,18,32], index: 0, kind: input, shape index: {}]
  %s1 = inlined_call_operand.vmem [shape: f32[9,32,32], index: 1, kind: input, shape index: {}]
  %s2 = inlined_call_operand.vmem [shape: f32[1,32], index: 2, kind: input, shape index: {}]
  %s3 = inlined_call_operand.vmem [shape: f32[2,16,16,32], index: 3, kind: output, shape index: {}]
  %s4 = sld [smem:[#allocation0]]
  $region45: #{skip_forward.5} parent=0
    _
  %s6 = ssub.s32 1, %s4
  %s7 = scalar_select 0, %s6, %s4
  loop: start=0, step=1, limit=4
  $region2: #{skip_forward.5} parent=0 // loop_pre_header
    _
  $region3: #{skip_forward.5} parent=0 // loop_header
    %s9 = sphi 0, %s13
    %p10 = scmp.ge.s32.totalorder %s9, 4
    %s16 = sphi 0, %s28
    %s17 = sphi 0, %s24
    %s18 = sphi 0, %s16
    %s19 = sphi 0, %s17
    %s20 = sphi 0, %s18
    %s21 = sphi 0, %s19
    %s33 = sphi 0, %s35
    %s36 = sphi 0, %s33
    %s37 = sphi 0, %s36
    %s53 = sphi 0, %s37
    %s57 = sphi 0, %s57
    %s59 = sphi 0, %s57
    %s60 = sphi 0, %s59
    %s74 = sphi 0, %s60
    %s78 = sphi 0, %s78
    %s80 = sphi 0, %s78
    %s81 = sphi 0, %s80
    %s95 = sphi 0, %s81
    %s103 = sphi 0, %s105
    %s106 = sphi 0, %s103
    %s107 = sphi 0, %s106
    %s123 = sphi 0, %s107
  $region4: #{skip_forward.5} parent=0 // loop_header_branch
    %12 = sbr.rel (%p10) target = $region8
  $region5: #{skip_forward.5} parent=0 // loop_body
    %s14 = ssub.s32 %s9, 1
    %s15 = ssub.s32 %s9, 2
    %s22 = sadd.s32 1, %s17
    %p23 = scmp.ge.s32.totalorder %s22, 1
    %s24 = scalar_select %p23, 0, %s22
    %s25 = sadd.s32 1, %s16
    %s26 = scalar_select %p23, %s25, %s16
    %p27 = scmp.ge.s32.totalorder %s26, 2
    %s28 = scalar_select %p27, 0, %s26
    %s29 = sadd.s32 %s16, %s17
    %s30 = sadd.s32 %s28, %s24
    %s31 = ssub.s32 %s29, %s30
    %p32 = scmp.eq.s32.totalorder %s31, 0
    %s34 = sadd.s32 %s33, 1
    %s35 = scalar_select %p32, %s33, %s34
    %p38 = pneg %p32
    %p39 = scmp.eq.s32.totalorder %s9, 1
    %p40 = por %p38, %p39
    %p41 = scmp.ne.s32.totalorder %s33, %s36
    %p42 = scmp.eq.s32.totalorder %s9, 0
    %p43 = por %p41, %p42
    %p44 = scmp.ne.s32.totalorder %s33, %s36
    %p45 = scmp.eq.s32.totalorder %s14, 1
    %p46 = por %p44, %p45
    %p47 = scmp.ne.s32.totalorder %s36, %s37
    %p48 = scmp.eq.s32.totalorder %s14, 0
    %p49 = por %p47, %p48
    %p50 = scmp.ne.s32.totalorder %s36, %s37
    %p51 = scmp.eq.s32.totalorder %s15, 1
    %p52 = por %p50, %p51
    %p54 = scmp.ne.s32.totalorder %s37, %s53
    %p55 = scmp.eq.s32.totalorder %s15, 0
    %p56 = por %p54, %p55
    %s58 = sadd.s32 %s57, 1
    %p61 = scmp.eq.s32.totalorder %s9, 1
    %p62 = scmp.ne.s32.totalorder %s57, %s59
    %p63 = scmp.eq.s32.totalorder %s9, 0
    %p64 = por %p62, %p63
    %p65 = scmp.ne.s32.totalorder %s57, %s59
    %p66 = scmp.eq.s32.totalorder %s14, 1
    %p67 = por %p65, %p66
    %p68 = scmp.ne.s32.totalorder %s59, %s60
    %p69 = scmp.eq.s32.totalorder %s14, 0
    %p70 = por %p68, %p69
    %p71 = scmp.ne.s32.totalorder %s59, %s60
    %p72 = scmp.eq.s32.totalorder %s15, 1
    %p73 = por %p71, %p72
    %p75 = scmp.ne.s32.totalorder %s60, %s74
    %p76 = scmp.eq.s32.totalorder %s15, 0
    %p77 = por %p75, %p76
    %s79 = sadd.s32 %s78, 1
    %p82 = scmp.eq.s32.totalorder %s9, 1
    %p83 = scmp.ne.s32.totalorder %s78, %s80
    %p84 = scmp.eq.s32.totalorder %s9, 0
    %p85 = por %p83, %p84
    %p86 = scmp.ne.s32.totalorder %s78, %s80
    %p87 = scmp.eq.s32.totalorder %s14, 1
    %p88 = por %p86, %p87
    %p89 = scmp.ne.s32.totalorder %s80, %s81
    %p90 = scmp.eq.s32.totalorder %s14, 0
    %p91 = por %p89, %p90
    %p92 = scmp.ne.s32.totalorder %s80, %s81
    %p93 = scmp.eq.s32.totalorder %s15, 1
    %p94 = por %p92, %p93
    %p96 = scmp.ne.s32.totalorder %s81, %s95
    %p97 = scmp.eq.s32.totalorder %s15, 0
    %p98 = por %p96, %p97
    %s99 = ssub.s32 %s16, %s28
    %s100 = ssub.s32 %s17, %s24
    %s101 = sor.u32 %s99, %s100
    %p102 = scmp.eq.s32.totalorder %s101, 0
    %s104 = sadd.s32 %s103, 1
    %s105 = scalar_select %p102, %s103, %s104
    %p108 = pneg %p102
    %p109 = scmp.eq.s32.totalorder %s9, 1
    %p110 = por %p108, %p109
    %p111 = scmp.ne.s32.totalorder %s103, %s106
    %p112 = scmp.eq.s32.totalorder %s9, 0
    %p113 = por %p111, %p112
    %p114 = scmp.ne.s32.totalorder %s103, %s106
    %p115 = scmp.eq.s32.totalorder %s14, 1
    %p116 = por %p114, %p115
    %p117 = scmp.ne.s32.totalorder %s106, %s107
    %p118 = scmp.eq.s32.totalorder %s14, 0
    %p119 = por %p117, %p118
    %p120 = scmp.ne.s32.totalorder %s106, %s107
    %p121 = scmp.eq.s32.totalorder %s15, 1
    %p122 = por %p120, %p121
    %p124 = scmp.ne.s32.totalorder %s107, %s123
    %p125 = scmp.eq.s32.totalorder %s15, 0
    %p126 = por %p124, %p125
    %p127 = scmp.le.s32.totalorder 1, %s9
    %p128 = scmp.lt.s32.totalorder %s9, 3
    %p129 = pnand %p127, %p128
    %p130 = pneg %p129
    // Predicated region
    $region9: #{skip_forward.5} parent=5 // pred_check
      _
    $region10: #{skip_forward.5} parent=5 // pred_check_branch
      %132 = sbr.rel (%p129) target = $region12
    $region11: #{skip_forward.5} parent=5 // pred_region
      %s133 = ssub.s32 %s9, 1
      // Predicated region
      $region13: #{skip_forward.5} parent=11 // pred_check
        %p134 = pneg %p70
      $region14: #{skip_forward.5} parent=11 // pred_check_branch
        %136 = sbr.rel (%p134) target = $region16
      $region15: #{skip_forward.5} parent=11 // pred_region
        _
      $region16: #{skip_forward.5} parent=11 // pred_fallthru
        _
      // Predicated region
      $region17: #{skip_forward.5} parent=11 // pred_check
        %p137 = pneg %p91
      $region18: #{skip_forward.5} parent=11 // pred_check_branch
        %139 = sbr.rel (%p137) target = $region20
      $region19: #{skip_forward.5} parent=11 // pred_region
        _
      $region20: #{skip_forward.5} parent=11 // pred_fallthru
        _
    $region12: #{skip_forward.5} parent=5 // pred_fallthru
      _
    %p140 = scmp.lt.s32.totalorder %s9, 2
    // Predicated region
    $region21: #{skip_forward.5} parent=5 // pred_check
      %p141 = pneg %p140
    $region22: #{skip_forward.5} parent=5 // pred_check_branch
      %143 = sbr.rel (%p141) target = $region24
    $region23: #{skip_forward.5} parent=5 // pred_region
      // Predicated region
      $region25: #{skip_forward.5} parent=23 // pred_check
        %p144 = pneg %p43
      $region26: #{skip_forward.5} parent=23 // pred_check_branch
        %146 = sbr.rel (%p144) target = $region28
      $region27: #{skip_forward.5} parent=23 // pred_region
        %s147 = sadd.s32 %s16, %s17
        %p148 = scmp.lt.s32.totalorder %s147, 1
        %s149 = scalar_select %p148, %s147, 1
        %s150 = smul.addr %s149, 54
        %s151 = smul.addr %s150, 8
        %s152 = scalar_lea.vmem %s0, %s151
        %s153 = sadd.s32 %s16, %s17
      $region28: #{skip_forward.5} parent=23 // pred_fallthru
        _
    $region24: #{skip_forward.5} parent=5 // pred_fallthru
      _
    %p154 = scmp.le.s32.totalorder 1, %s9
    %p155 = scmp.lt.s32.totalorder %s9, 3
    %p156 = pnand %p154, %p155
    %p157 = pneg %p156
    // Predicated region
    $region29: #{skip_forward.5} parent=5 // pred_check
      _
    $region30: #{skip_forward.5} parent=5 // pred_check_branch
      %159 = sbr.rel (%p156) target = $region32
    $region31: #{skip_forward.5} parent=5 // pred_region
      %s160 = ssub.s32 %s9, 1
      %s161 = sadd.s32 %s18, %s19
      %p162 = scmp.lt.s32.totalorder %s161, 1
      %s163 = scalar_select %p162, %s161, 1
      %s164 = smul.addr %s163, 54
      %s165 = smul.addr %s164, 8
      %s166 = scalar_lea.vmem %s0, %s165
      %p167 = pneg %p49
      %p168 = pneg %p46
      %p169 = pneg %p70
      %p170 = pneg %p67
      %p171 = pneg %p91
      %p172 = pneg %p88
      %p173 = pneg %p119
      %p174 = pneg %p116
      %s175 = smul.u32 16, %s19
      %p176 = scmp.lt.s32.totalorder %s18, 1
      %s177 = scalar_select %p176, %s18, 1
      %p178 = scmp.lt.s32.totalorder %s175, 15
      %s179 = scalar_select %p178, %s175, 15
      %s180 = smul.addr %s179, 2
      %s181 = smul.addr %s177, 32
      %s182 = sadd.s32 %s180, %s181
      %s183 = smul.addr %s182, 8
      %s184 = scalar_lea.vmem %s3, %s183
      %s185 = sadd.s32 %s18, %s19
      %p186 = scmp.lt.s32.totalorder %s185, 1
      %s187 = scalar_select %p186, %s185, 1
      %s188 = smul.addr %s187, 54
      %s189 = smul.addr %s188, 8
      %s190 = scalar_lea.vmem %s0, %s189
      %s191 = sadd.s32 %s18, %s19
      %s192 = smul.u32 16, %s19
      %p193 = scmp.lt.s32.totalorder %s18, 1
      %s194 = scalar_select %p193, %s18, 1
      %p195 = scmp.lt.s32.totalorder %s192, 15
      %s196 = scalar_select %p195, %s192, 15
      %s197 = smul.addr %s196, 2
      %s198 = smul.addr %s194, 32
      %s199 = sadd.s32 %s197, %s198
      %s200 = smul.addr %s199, 8
      %s201 = scalar_lea.vmem %s3, %s200
      %s202 = smul.u32 16, %s19
      %v203 = vld [vmem:[%s190] sm:$0xff]
      %v204 = vld [vmem:[%s190 + $0x8] sm:$0xff]
      %v205 = vld [vmem:[%s190 + $0x10] sm:$0x3]
      %v206 = vld [vmem:[%s190 + $0x18] sm:$0xff]
      %v207 = vld [vmem:[%s190 + $0x20] sm:$0xff]
      %v208 = vld [vmem:[%s190 + $0x28] sm:$0x3]
      %v209 = vld [vmem:[%s190 + $0x30] sm:$0xff]
      %v210 = vld [vmem:[%s190 + $0x38] sm:$0xff]
      %v211 = vld [vmem:[%s190 + $0x40] sm:$0x3]
      %v212 = vld [vmem:[%s190 + $0x48] sm:$0xff]
      %v213 = vld [vmem:[%s190 + $0x50] sm:$0xff]
      %v214 = vld [vmem:[%s190 + $0x58] sm:$0x3]
      %v215 = vld [vmem:[%s190 + $0x60] sm:$0xff]
      %v216 = vld [vmem:[%s190 + $0x68] sm:$0xff]
      %v217 = vld [vmem:[%s190 + $0x70] sm:$0x3]
      %v218 = vld [vmem:[%s190 + $0x78] sm:$0xff]
      %v219 = vld [vmem:[%s190 + $0x80] sm:$0xff]
      %v220 = vld [vmem:[%s190 + $0x88] sm:$0x3]
      %v221 = vld [vmem:[%s190 + $0x90] sm:$0xff]
      %v222 = vld [vmem:[%s190 + $0x98] sm:$0xff]
      %v223 = vld [vmem:[%s190 + $0xa0] sm:$0x3]
      %v224 = vld [vmem:[%s190 + $0xa8] sm:$0xff]
      %v225 = vld [vmem:[%s190 + $0xb0] sm:$0xff]
      %v226 = vld [vmem:[%s190 + $0xb8] sm:$0x3]
      %v227 = vld [vmem:[%s190 + $0xc0] sm:$0xff]
      %v228 = vld [vmem:[%s190 + $0xc8] sm:$0xff]
      %v229 = vld [vmem:[%s190 + $0xd0] sm:$0x3]
      %v230 = vld [vmem:[%s190 + $0xd8] sm:$0xff]
      %v231 = vld [vmem:[%s190 + $0xe0] sm:$0xff]
      %v232 = vld [vmem:[%s190 + $0xe8] sm:$0x3]
      %v233 = vld [vmem:[%s190 + $0xf0] sm:$0xff]
      %v234 = vld [vmem:[%s190 + $0xf8] sm:$0xff]
      %v235 = vld [vmem:[%s190 + $0x100] sm:$0x3]
      %v236 = vld [vmem:[%s190 + $0x108] sm:$0xff]
      %v237 = vld [vmem:[%s190 + $0x110] sm:$0xff]
      %v238 = vld [vmem:[%s190 + $0x118] sm:$0x3]
      %v239 = vld [vmem:[%s190 + $0x120] sm:$0xff]
      %v240 = vld [vmem:[%s190 + $0x128] sm:$0xff]
      %v241 = vld [vmem:[%s190 + $0x130] sm:$0x3]
      %v242 = vld [vmem:[%s190 + $0x138] sm:$0xff]
      %v243 = vld [vmem:[%s190 + $0x140] sm:$0xff]
      %v244 = vld [vmem:[%s190 + $0x148] sm:$0x3]
      %v245 = vld [vmem:[%s190 + $0x150] sm:$0xff]
      %v246 = vld [vmem:[%s190 + $0x158] sm:$0xff]
      %v247 = vld [vmem:[%s190 + $0x160] sm:$0x3]
      %v248 = vld [vmem:[%s190 + $0x168] sm:$0xff]
      %v249 = vld [vmem:[%s190 + $0x170] sm:$0xff]
      %v250 = vld [vmem:[%s190 + $0x178] sm:$0x3]
      %v251 = vld [vmem:[%s190 + $0x180] sm:$0xff]
      %v252 = vld [vmem:[%s190 + $0x188] sm:$0xff]
      %v253 = vld [vmem:[%s190 + $0x190] sm:$0x3]
      %v254 = vld [vmem:[%s190 + $0x198] sm:$0xff]
      %v255 = vld [vmem:[%s190 + $0x1a0] sm:$0xff]
      %v256 = vld [vmem:[%s190 + $0x1a8] sm:$0x3]
      %v257 = vld [vmem:[%s1] sm:$0xff]
      %v258 = vld [vmem:[%s1 + $0x8] sm:$0xff]
      %v259 = vld [vmem:[%s1 + $0x10] sm:$0xff]
      %v260 = vld [vmem:[%s1 + $0x18] sm:$0xff]
      %vm309 = vcmask 1046528
      %v310 = vrot.slane %v203, 1
      %v311 = vrot.slane %v204, 1
      %v312 = vsel %vm309, %v310, %v311
      %v313 = vrot.slane %v205, 1
      %v314 = vsel %vm309, %v311, %v313
      %v315 = vrot.slane %v206, 1
      %v316 = vrot.slane %v207, 1
      %v317 = vsel %vm309, %v315, %v316
      %v318 = vrot.slane %v208, 1
      %v319 = vsel %vm309, %v316, %v318
      %v320 = vrot.slane %v209, 1
      %v321 = vrot.slane %v210, 1
      %v322 = vsel %vm309, %v320, %v321
      %v323 = vrot.slane %v211, 1
      %v324 = vsel %vm309, %v321, %v323
      %v325 = vrot.slane %v212, 1
      %v326 = vrot.slane %v213, 1
      %v327 = vsel %vm309, %v325, %v326
      %v328 = vrot.slane %v214, 1
      %v329 = vsel %vm309, %v326, %v328
      %v330 = vrot.slane %v215, 1
      %v331 = vrot.slane %v216, 1
      %v332 = vsel %vm309, %v330, %v331
      %v333 = vrot.slane %v217, 1
      %v334 = vsel %vm309, %v331, %v333
      %v335 = vrot.slane %v218, 1
      %v336 = vrot.slane %v219, 1
      %v337 = vsel %vm309, %v335, %v336
      %v338 = vrot.slane %v220, 1
      %v339 = vsel %vm309, %v336, %v338
      %v340 = vrot.slane %v221, 1
      %v341 = vrot.slane %v222, 1
      %v342 = vsel %vm309, %v340, %v341
      %v343 = vrot.slane %v223, 1
      %v344 = vsel %vm309, %v341, %v343
      %v345 = vrot.slane %v224, 1
      %v346 = vrot.slane %v225, 1
      %v347 = vsel %vm309, %v345, %v346
      %v348 = vrot.slane %v226, 1
      %v349 = vsel %vm309, %v346, %v348
      %v350 = vrot.slane %v227, 1
      %v351 = vrot.slane %v228, 1
      %v352 = vsel %vm309, %v350, %v351
      %v353 = vrot.slane %v229, 1
      %v354 = vsel %vm309, %v351, %v353
      %v355 = vrot.slane %v230, 1
      %v356 = vrot.slane %v231, 1
      %v357 = vsel %vm309, %v355, %v356
      %v358 = vrot.slane %v232, 1
      %v359 = vsel %vm309, %v356, %v358
      %v360 = vrot.slane %v233, 1
      %v361 = vrot.slane %v234, 1
      %v362 = vsel %vm309, %v360, %v361
      %v363 = vrot.slane %v235, 1
      %v364 = vsel %vm309, %v361, %v363
      %v365 = vrot.slane %v236, 1
      %v366 = vrot.slane %v237, 1
      %v367 = vsel %vm309, %v365, %v366
      %v368 = vrot.slane %v238, 1
      %v369 = vsel %vm309, %v366, %v368
      %v370 = vrot.slane %v239, 1
      %v371 = vrot.slane %v240, 1
      %v372 = vsel %vm309, %v370, %v371
      %v373 = vrot.slane %v241, 1
      %v374 = vsel %vm309, %v371, %v373
      %v375 = vrot.slane %v242, 1
      %v376 = vrot.slane %v243, 1
      %v377 = vsel %vm309, %v375, %v376
      %v378 = vrot.slane %v244, 1
      %v379 = vsel %vm309, %v376, %v378
      %v380 = vrot.slane %v245, 1
      %v381 = vrot.slane %v246, 1
      %v382 = vsel %vm309, %v380, %v381
      %v383 = vrot.slane %v247, 1
      %v384 = vsel %vm309, %v381, %v383
      %v385 = vrot.slane %v248, 1
      %v386 = vrot.slane %v249, 1
      %v387 = vsel %vm309, %v385, %v386
      %v388 = vrot.slane %v250, 1
      %v389 = vsel %vm309, %v386, %v388
      %s390 = scalar_lea.vmem %s1, 32
      %v391 = vld [vmem:[%s390] sm:$0xff]
      %v392 = vld [vmem:[%s390 + $0x8] sm:$0xff]
      %v393 = vld [vmem:[%s390 + $0x10] sm:$0xff]
      %v394 = vld [vmem:[%s390 + $0x18] sm:$0xff]
      %vm395 = vcmask 261120
      %v396 = vsel %vm395, %v312, 0
      %v398 = vsel %vm395, %v314, 0
      %v400 = vsel %vm395, %v317, 0
      %v402 = vsel %vm395, %v319, 0
      %v404 = vsel %vm395, %v322, 0
      %v406 = vsel %vm395, %v324, 0
      %v408 = vsel %vm395, %v327, 0
      %v410 = vsel %vm395, %v329, 0
      %v412 = vsel %vm395, %v332, 0
      %v414 = vsel %vm395, %v334, 0
      %v416 = vsel %vm395, %v337, 0
      %v418 = vsel %vm395, %v339, 0
      %v420 = vsel %vm395, %v342, 0
      %v422 = vsel %vm395, %v344, 0
      %v424 = vsel %vm395, %v347, 0
      %v426 = vsel %vm395, %v349, 0
      %v428 = vsel %vm395, %v352, 0
      %v430 = vsel %vm395, %v354, 0
      %v432 = vsel %vm395, %v357, 0
      %v434 = vsel %vm395, %v359, 0
      %v436 = vsel %vm395, %v362, 0
      %v438 = vsel %vm395, %v364, 0
      %v440 = vsel %vm395, %v367, 0
      %v442 = vsel %vm395, %v369, 0
      %v444 = vsel %vm395, %v372, 0
      %v446 = vsel %vm395, %v374, 0
      %v448 = vsel %vm395, %v377, 0
      %v450 = vsel %vm395, %v379, 0
      %v452 = vsel %vm395, %v382, 0
      %v454 = vsel %vm395, %v384, 0
      %v456 = vsel %vm395, %v387, 0
      %v458 = vsel %vm395, %v389, 0
      %460 = vmatpush.msra.mxu0 0.0
      %461 = vmatpush.msra.mxu0 0.0
      %462 = vmatpush.msra.mxu0 0.0
      %463 = vmatpush.msra.mxu0 0.0
      %464 = vmatpush.msra.mxu0 0.0
      %465 = vmatpush.msra.mxu0 0.0
      %466 = vmatpush.msra.mxu0 0.0
      %467 = vmatpush.msra.mxu0 0.0
      %468 = vmatpush.msra.mxu0 0.0
      %469 = vmatpush.msra.mxu0 0.0
      %470 = vmatpush.msra.mxu0 0.0
      %471 = vmatpush.msra.mxu0 0.0
      %472 = vmatpush.msra.mxu0 %v394
      %473 = vmatpush.msra.mxu0 %v393
      %474 = vmatpush.msra.mxu0 %v392
      %475 = vmatpush.msra.mxu0 %v391
      %476 = vmatmul.f32.gmra.mxu0 %v396
      %v477 = vpop.f32.mrf.mxu0
      %v478 = vadd.f32 0.0, %v477
      %479 = vmatmul.f32.gmra.mxu0 %v398
      %v480 = vpop.f32.mrf.mxu0
      %v481 = vadd.f32 0.0, %v480
      %482 = vmatmul.f32.gmra.mxu0 %v400
      %v483 = vpop.f32.mrf.mxu0
      %v484 = vadd.f32 0.0, %v483
      %485 = vmatmul.f32.gmra.mxu0 %v402
      %v486 = vpop.f32.mrf.mxu0
      %v487 = vadd.f32 0.0, %v486
      %488 = vmatmul.f32.gmra.mxu0 %v404
      %v489 = vpop.f32.mrf.mxu0
      %v490 = vadd.f32 0.0, %v489
      %491 = vmatmul.f32.gmra.mxu0 %v406
      %v492 = vpop.f32.mrf.mxu0
      %v493 = vadd.f32 0.0, %v492
      %494 = vmatmul.f32.gmra.mxu0 %v408
      %v495 = vpop.f32.mrf.mxu0
      %v496 = vadd.f32 0.0, %v495
      %497 = vmatmul.f32.gmra.mxu0 %v410
      %v498 = vpop.f32.mrf.mxu0
      %v499 = vadd.f32 0.0, %v498
      %500 = vmatmul.f32.gmra.mxu0 %v412
      %v501 = vpop.f32.mrf.mxu0
      %v502 = vadd.f32 0.0, %v501
      %503 = vmatmul.f32.gmra.mxu0 %v414
      %v504 = vpop.f32.mrf.mxu0
      %v505 = vadd.f32 0.0, %v504
      %506 = vmatmul.f32.gmra.mxu0 %v416
      %v507 = vpop.f32.mrf.mxu0
      %v508 = vadd.f32 0.0, %v507
      %509 = vmatmul.f32.gmra.mxu0 %v418
      %v510 = vpop.f32.mrf.mxu0
      %v511 = vadd.f32 0.0, %v510
      %512 = vmatmul.f32.gmra.mxu0 %v420
      %v513 = vpop.f32.mrf.mxu0
      %v514 = vadd.f32 0.0, %v513
      %515 = vmatmul.f32.gmra.mxu0 %v422
      %v516 = vpop.f32.mrf.mxu0
      %v517 = vadd.f32 0.0, %v516
      %518 = vmatmul.f32.gmra.mxu0 %v424
      %v519 = vpop.f32.mrf.mxu0
      %v520 = vadd.f32 0.0, %v519
      %521 = vmatmul.f32.gmra.mxu0 %v426
      %v522 = vpop.f32.mrf.mxu0
      %v523 = vadd.f32 0.0, %v522
      %524 = vmatmul.f32.gmra.mxu0 %v428
      %v525 = vpop.f32.mrf.mxu0
      %v526 = vadd.f32 0.0, %v525
      %527 = vmatmul.f32.gmra.mxu0 %v430
      %v528 = vpop.f32.mrf.mxu0
      %v529 = vadd.f32 0.0, %v528
      %530 = vmatmul.f32.gmra.mxu0 %v432
      %v531 = vpop.f32.mrf.mxu0
      %v532 = vadd.f32 0.0, %v531
      %533 = vmatmul.f32.gmra.mxu0 %v434
      %v534 = vpop.f32.mrf.mxu0
      %v535 = vadd.f32 0.0, %v534
      %536 = vmatmul.f32.gmra.mxu0 %v436
      %v537 = vpop.f32.mrf.mxu0
      %v538 = vadd.f32 0.0, %v537
      %539 = vmatmul.f32.gmra.mxu0 %v438
      %v540 = vpop.f32.mrf.mxu0
      %v541 = vadd.f32 0.0, %v540
      %542 = vmatmul.f32.gmra.mxu0 %v440
      %v543 = vpop.f32.mrf.mxu0
      %v544 = vadd.f32 0.0, %v543
      %545 = vmatmul.f32.gmra.mxu0 %v442
      %v546 = vpop.f32.mrf.mxu0
      %v547 = vadd.f32 0.0, %v546
      %548 = vmatmul.f32.gmra.mxu0 %v444
      %v549 = vpop.f32.mrf.mxu0
      %v550 = vadd.f32 0.0, %v549
      %551 = vmatmul.f32.gmra.mxu0 %v446
      %v552 = vpop.f32.mrf.mxu0
      %v553 = vadd.f32 0.0, %v552
      %554 = vmatmul.f32.gmra.mxu0 %v448
      %v555 = vpop.f32.mrf.mxu0
      %v556 = vadd.f32 0.0, %v555
      %557 = vmatmul.f32.gmra.mxu0 %v450
      %v558 = vpop.f32.mrf.mxu0
      %v559 = vadd.f32 0.0, %v558
      %560 = vmatmul.f32.gmra.mxu0 %v452
      %v561 = vpop.f32.mrf.mxu0
      %v562 = vadd.f32 0.0, %v561
      %563 = vmatmul.f32.gmra.mxu0 %v454
      %v564 = vpop.f32.mrf.mxu0
      %v565 = vadd.f32 0.0, %v564
      %566 = vmatmul.f32.gmra.mxu0 %v456
      %v567 = vpop.f32.mrf.mxu0
      %v568 = vadd.f32 0.0, %v567
      %569 = vmatmul.f32.gmra.mxu0 %v458
      %v570 = vpop.f32.mrf.mxu0
      %v571 = vadd.f32 0.0, %v570
      %572 = vdwg.mxu0
      %v573 = vsel %vm395, %v203, 0
      %v575 = vsel %vm395, %v204, 0
      %v577 = vsel %vm395, %v206, 0
      %v579 = vsel %vm395, %v207, 0
      %v581 = vsel %vm395, %v209, 0
      %v583 = vsel %vm395, %v210, 0
      %v585 = vsel %vm395, %v212, 0
      %v587 = vsel %vm395, %v213, 0
      %v589 = vsel %vm395, %v215, 0
      %v591 = vsel %vm395, %v216, 0
      %v593 = vsel %vm395, %v218, 0
      %v595 = vsel %vm395, %v219, 0
      %v597 = vsel %vm395, %v221, 0
      %v599 = vsel %vm395, %v222, 0
      %v601 = vsel %vm395, %v224, 0
      %v603 = vsel %vm395, %v225, 0
      %v605 = vsel %vm395, %v227, 0
      %v607 = vsel %vm395, %v228, 0
      %v609 = vsel %vm395, %v230, 0
      %v611 = vsel %vm395, %v231, 0
      %v613 = vsel %vm395, %v233, 0
      %v615 = vsel %vm395, %v234, 0
      %v617 = vsel %vm395, %v236, 0
      %v619 = vsel %vm395, %v237, 0
      %v621 = vsel %vm395, %v239, 0
      %v623 = vsel %vm395, %v240, 0
      %v625 = vsel %vm395, %v242, 0
      %v627 = vsel %vm395, %v243, 0
      %v629 = vsel %vm395, %v245, 0
      %v631 = vsel %vm395, %v246, 0
      %v633 = vsel %vm395, %v248, 0
      %v635 = vsel %vm395, %v249, 0
      %637 = vmatpush.msra.mxu0 0.0
      %638 = vmatpush.msra.mxu0 0.0
      %639 = vmatpush.msra.mxu0 0.0
      %640 = vmatpush.msra.mxu0 0.0
      %641 = vmatpush.msra.mxu0 0.0
      %642 = vmatpush.msra.mxu0 0.0
      %643 = vmatpush.msra.mxu0 0.0
      %644 = vmatpush.msra.mxu0 0.0
      %645 = vmatpush.msra.mxu0 0.0
      %646 = vmatpush.msra.mxu0 0.0
      %647 = vmatpush.msra.mxu0 0.0
      %648 = vmatpush.msra.mxu0 0.0
      %649 = vmatpush.msra.mxu0 %v260
      %650 = vmatpush.msra.mxu0 %v259
      %651 = vmatpush.msra.mxu0 %v258
      %652 = vmatpush.msra.mxu0 %v257
      %653 = vmatmul.f32.gmra.mxu0 %v573
      %v654 = vpop.f32.mrf.mxu0
      %v655 = vadd.f32 %v478, %v654
      %656 = vmatmul.f32.gmra.mxu0 %v575
      %v657 = vpop.f32.mrf.mxu0
      %v658 = vadd.f32 %v481, %v657
      %659 = vmatmul.f32.gmra.mxu0 %v577
      %v660 = vpop.f32.mrf.mxu0
      %v661 = vadd.f32 %v484, %v660
      %662 = vmatmul.f32.gmra.mxu0 %v579
      %v663 = vpop.f32.mrf.mxu0
      %v664 = vadd.f32 %v487, %v663
      %665 = vmatmul.f32.gmra.mxu0 %v581
      %v666 = vpop.f32.mrf.mxu0
      %v667 = vadd.f32 %v490, %v666
      %668 = vmatmul.f32.gmra.mxu0 %v583
      %v669 = vpop.f32.mrf.mxu0
      %v670 = vadd.f32 %v493, %v669
      %671 = vmatmul.f32.gmra.mxu0 %v585
      %v672 = vpop.f32.mrf.mxu0
      %v673 = vadd.f32 %v496, %v672
      %674 = vmatmul.f32.gmra.mxu0 %v587
      %v675 = vpop.f32.mrf.mxu0
      %v676 = vadd.f32 %v499, %v675
      %677 = vmatmul.f32.gmra.mxu0 %v589
      %v678 = vpop.f32.mrf.mxu0
      %v679 = vadd.f32 %v502, %v678
      %680 = vmatmul.f32.gmra.mxu0 %v591
      %v681 = vpop.f32.mrf.mxu0
      %v682 = vadd.f32 %v505, %v681
      %683 = vmatmul.f32.gmra.mxu0 %v593
      %v684 = vpop.f32.mrf.mxu0
      %v685 = vadd.f32 %v508, %v684
      %686 = vmatmul.f32.gmra.mxu0 %v595
      %v687 = vpop.f32.mrf.mxu0
      %v688 = vadd.f32 %v511, %v687
      %689 = vmatmul.f32.gmra.mxu0 %v597
      %v690 = vpop.f32.mrf.mxu0
      %v691 = vadd.f32 %v514, %v690
      %692 = vmatmul.f32.gmra.mxu0 %v599
      %v693 = vpop.f32.mrf.mxu0
      %v694 = vadd.f32 %v517, %v693
      %695 = vmatmul.f32.gmra.mxu0 %v601
      %v696 = vpop.f32.mrf.mxu0
      %v697 = vadd.f32 %v520, %v696
      %698 = vmatmul.f32.gmra.mxu0 %v603
      %v699 = vpop.f32.mrf.mxu0
      %v700 = vadd.f32 %v523, %v699
      %701 = vmatmul.f32.gmra.mxu0 %v605
      %v702 = vpop.f32.mrf.mxu0
      %v703 = vadd.f32 %v526, %v702
      %704 = vmatmul.f32.gmra.mxu0 %v607
      %v705 = vpop.f32.mrf.mxu0
      %v706 = vadd.f32 %v529, %v705
      %707 = vmatmul.f32.gmra.mxu0 %v609
      %v708 = vpop.f32.mrf.mxu0
      %v709 = vadd.f32 %v532, %v708
      %710 = vmatmul.f32.gmra.mxu0 %v611
      %v711 = vpop.f32.mrf.mxu0
      %v712 = vadd.f32 %v535, %v711
      %713 = vmatmul.f32.gmra.mxu0 %v613
      %v714 = vpop.f32.mrf.mxu0
      %v715 = vadd.f32 %v538, %v714
      %716 = vmatmul.f32.gmra.mxu0 %v615
      %v717 = vpop.f32.mrf.mxu0
      %v718 = vadd.f32 %v541, %v717
      %719 = vmatmul.f32.gmra.mxu0 %v617
      %v720 = vpop.f32.mrf.mxu0
      %v721 = vadd.f32 %v544, %v720
      %722 = vmatmul.f32.gmra.mxu0 %v619
      %v723 = vpop.f32.mrf.mxu0
      %v724 = vadd.f32 %v547, %v723
      %725 = vmatmul.f32.gmra.mxu0 %v621
      %v726 = vpop.f32.mrf.mxu0
      %v727 = vadd.f32 %v550, %v726
      %728 = vmatmul.f32.gmra.mxu0 %v623
      %v729 = vpop.f32.mrf.mxu0
      %v730 = vadd.f32 %v553, %v729
      %731 = vmatmul.f32.gmra.mxu0 %v625
      %v732 = vpop.f32.mrf.mxu0
      %v733 = vadd.f32 %v556, %v732
      %734 = vmatmul.f32.gmra.mxu0 %v627
      %v735 = vpop.f32.mrf.mxu0
      %v736 = vadd.f32 %v559, %v735
      %737 = vmatmul.f32.gmra.mxu0 %v629
      %v738 = vpop.f32.mrf.mxu0
      %v739 = vadd.f32 %v562, %v738
      %740 = vmatmul.f32.gmra.mxu0 %v631
      %v741 = vpop.f32.mrf.mxu0
      %v742 = vadd.f32 %v565, %v741
      %743 = vmatmul.f32.gmra.mxu0 %v633
      %v744 = vpop.f32.mrf.mxu0
      %v745 = vadd.f32 %v568, %v744
      %746 = vmatmul.f32.gmra.mxu0 %v635
      %v747 = vpop.f32.mrf.mxu0
      %v748 = vadd.f32 %v571, %v747
      %749 = vdwg.mxu0
      %vm750 = vcmask 1045504
      %v751 = vrot.slane %v203, 2
      %v752 = vrot.slane %v204, 2
      %v753 = vsel %vm750, %v751, %v752
      %v754 = vrot.slane %v205, 2
      %v755 = vsel %vm750, %v752, %v754
      %v756 = vrot.slane %v206, 2
      %v757 = vrot.slane %v207, 2
      %v758 = vsel %vm750, %v756, %v757
      %v759 = vrot.slane %v208, 2
      %v760 = vsel %vm750, %v757, %v759
      %v761 = vrot.slane %v209, 2
      %v762 = vrot.slane %v210, 2
      %v763 = vsel %vm750, %v761, %v762
      %v764 = vrot.slane %v211, 2
      %v765 = vsel %vm750, %v762, %v764
      %v766 = vrot.slane %v212, 2
      %v767 = vrot.slane %v213, 2
      %v768 = vsel %vm750, %v766, %v767
      %v769 = vrot.slane %v214, 2
      %v770 = vsel %vm750, %v767, %v769
      %v771 = vrot.slane %v215, 2
      %v772 = vrot.slane %v216, 2
      %v773 = vsel %vm750, %v771, %v772
      %v774 = vrot.slane %v217, 2
      %v775 = vsel %vm750, %v772, %v774
      %v776 = vrot.slane %v218, 2
      %v777 = vrot.slane %v219, 2
      %v778 = vsel %vm750, %v776, %v777
      %v779 = vrot.slane %v220, 2
      %v780 = vsel %vm750, %v777, %v779
      %v781 = vrot.slane %v221, 2
      %v782 = vrot.slane %v222, 2
      %v783 = vsel %vm750, %v781, %v782
      %v784 = vrot.slane %v223, 2
      %v785 = vsel %vm750, %v782, %v784
      %v786 = vrot.slane %v224, 2
      %v787 = vrot.slane %v225, 2
      %v788 = vsel %vm750, %v786, %v787
      %v789 = vrot.slane %v226, 2
      %v790 = vsel %vm750, %v787, %v789
      %v791 = vrot.slane %v227, 2
      %v792 = vrot.slane %v228, 2
      %v793 = vsel %vm750, %v791, %v792
      %v794 = vrot.slane %v229, 2
      %v795 = vsel %vm750, %v792, %v794
      %v796 = vrot.slane %v230, 2
      %v797 = vrot.slane %v231, 2
      %v798 = vsel %vm750, %v796, %v797
      %v799 = vrot.slane %v232, 2
      %v800 = vsel %vm750, %v797, %v799
      %v801 = vrot.slane %v233, 2
      %v802 = vrot.slane %v234, 2
      %v803 = vsel %vm750, %v801, %v802
      %v804 = vrot.slane %v235, 2
      %v805 = vsel %vm750, %v802, %v804
      %v806 = vrot.slane %v236, 2
      %v807 = vrot.slane %v237, 2
      %v808 = vsel %vm750, %v806, %v807
      %v809 = vrot.slane %v238, 2
      %v810 = vsel %vm750, %v807, %v809
      %v811 = vrot.slane %v239, 2
      %v812 = vrot.slane %v240, 2
      %v813 = vsel %vm750, %v811, %v812
      %v814 = vrot.slane %v241, 2
      %v815 = vsel %vm750, %v812, %v814
      %v816 = vrot.slane %v242, 2
      %v817 = vrot.slane %v243, 2
      %v818 = vsel %vm750, %v816, %v817
      %v819 = vrot.slane %v244, 2
      %v820 = vsel %vm750, %v817, %v819
      %v821 = vrot.slane %v245, 2
      %v822 = vrot.slane %v246, 2
      %v823 = vsel %vm750, %v821, %v822
      %v824 = vrot.slane %v247, 2
      %v825 = vsel %vm750, %v822, %v824
      %v826 = vrot.slane %v248, 2
      %v827 = vrot.slane %v249, 2
      %v828 = vsel %vm750, %v826, %v827
      %v829 = vrot.slane %v250, 2
      %v830 = vsel %vm750, %v827, %v829
      %s831 = scalar_lea.vmem %s1, 64
      %v832 = vld [vmem:[%s831] sm:$0xff]
      %v833 = vld [vmem:[%s831 + $0x8] sm:$0xff]
      %v834 = vld [vmem:[%s831 + $0x10] sm:$0xff]
      %v835 = vld [vmem:[%s831 + $0x18] sm:$0xff]
      %v836 = vsel %vm395, %v753, 0
      %v838 = vsel %vm395, %v755, 0
      %v840 = vsel %vm395, %v758, 0
      %v842 = vsel %vm395, %v760, 0
      %v844 = vsel %vm395, %v763, 0
      %v846 = vsel %vm395, %v765, 0
      %v848 = vsel %vm395, %v768, 0
      %v850 = vsel %vm395, %v770, 0
      %v852 = vsel %vm395, %v773, 0
      %v854 = vsel %vm395, %v775, 0
      %v856 = vsel %vm395, %v778, 0
      %v858 = vsel %vm395, %v780, 0
      %v860 = vsel %vm395, %v783, 0
      %v862 = vsel %vm395, %v785, 0
      %v864 = vsel %vm395, %v788, 0
      %v866 = vsel %vm395, %v790, 0
      %v868 = vsel %vm395, %v793, 0
      %v870 = vsel %vm395, %v795, 0
      %v872 = vsel %vm395, %v798, 0
      %v874 = vsel %vm395, %v800, 0
      %v876 = vsel %vm395, %v803, 0
      %v878 = vsel %vm395, %v805, 0
      %v880 = vsel %vm395, %v808, 0
      %v882 = vsel %vm395, %v810, 0
      %v884 = vsel %vm395, %v813, 0
      %v886 = vsel %vm395, %v815, 0
      %v888 = vsel %vm395, %v818, 0
      %v890 = vsel %vm395, %v820, 0
      %v892 = vsel %vm395, %v823, 0
      %v894 = vsel %vm395, %v825, 0
      %v896 = vsel %vm395, %v828, 0
      %v898 = vsel %vm395, %v830, 0
      %900 = vmatpush.msra.mxu0 0.0
      %901 = vmatpush.msra.mxu0 0.0
      %902 = vmatpush.msra.mxu0 0.0
      %903 = vmatpush.msra.mxu0 0.0
      %904 = vmatpush.msra.mxu0 0.0
      %905 = vmatpush.msra.mxu0 0.0
      %906 = vmatpush.msra.mxu0 0.0
      %907 = vmatpush.msra.mxu0 0.0
      %908 = vmatpush.msra.mxu0 0.0
      %909 = vmatpush.msra.mxu0 0.0
      %910 = vmatpush.msra.mxu0 0.0
      %911 = vmatpush.msra.mxu0 0.0
      %912 = vmatpush.msra.mxu0 %v835
      %913 = vmatpush.msra.mxu0 %v834
      %914 = vmatpush.msra.mxu0 %v833
      %915 = vmatpush.msra.mxu0 %v832
      %916 = vmatmul.f32.gmra.mxu0 %v836
      %v917 = vpop.f32.mrf.mxu0
      %v918 = vadd.f32 0.0, %v917
      %919 = vmatmul.f32.gmra.mxu0 %v838
      %v920 = vpop.f32.mrf.mxu0
      %v921 = vadd.f32 0.0, %v920
      %922 = vmatmul.f32.gmra.mxu0 %v840
      %v923 = vpop.f32.mrf.mxu0
      %v924 = vadd.f32 0.0, %v923
      %925 = vmatmul.f32.gmra.mxu0 %v842
      %v926 = vpop.f32.mrf.mxu0
      %v927 = vadd.f32 0.0, %v926
      %928 = vmatmul.f32.gmra.mxu0 %v844
      %v929 = vpop.f32.mrf.mxu0
      %v930 = vadd.f32 0.0, %v929
      %931 = vmatmul.f32.gmra.mxu0 %v846
      %v932 = vpop.f32.mrf.mxu0
      %v933 = vadd.f32 0.0, %v932
      %934 = vmatmul.f32.gmra.mxu0 %v848
      %v935 = vpop.f32.mrf.mxu0
      %v936 = vadd.f32 0.0, %v935
      %937 = vmatmul.f32.gmra.mxu0 %v850
      %v938 = vpop.f32.mrf.mxu0
      %v939 = vadd.f32 0.0, %v938
      %940 = vmatmul.f32.gmra.mxu0 %v852
      %v941 = vpop.f32.mrf.mxu0
      %v942 = vadd.f32 0.0, %v941
      %943 = vmatmul.f32.gmra.mxu0 %v854
      %v944 = vpop.f32.mrf.mxu0
      %v945 = vadd.f32 0.0, %v944
      %946 = vmatmul.f32.gmra.mxu0 %v856
      %v947 = vpop.f32.mrf.mxu0
      %v948 = vadd.f32 0.0, %v947
      %949 = vmatmul.f32.gmra.mxu0 %v858
      %v950 = vpop.f32.mrf.mxu0
      %v951 = vadd.f32 0.0, %v950
      %952 = vmatmul.f32.gmra.mxu0 %v860
      %v953 = vpop.f32.mrf.mxu0
      %v954 = vadd.f32 0.0, %v953
      %955 = vmatmul.f32.gmra.mxu0 %v862
      %v956 = vpop.f32.mrf.mxu0
      %v957 = vadd.f32 0.0, %v956
      %958 = vmatmul.f32.gmra.mxu0 %v864
      %v959 = vpop.f32.mrf.mxu0
      %v960 = vadd.f32 0.0, %v959
      %961 = vmatmul.f32.gmra.mxu0 %v866
      %v962 = vpop.f32.mrf.mxu0
      %v963 = vadd.f32 0.0, %v962
      %964 = vmatmul.f32.gmra.mxu0 %v868
      %v965 = vpop.f32.mrf.mxu0
      %v966 = vadd.f32 0.0, %v965
      %967 = vmatmul.f32.gmra.mxu0 %v870
      %v968 = vpop.f32.mrf.mxu0
      %v969 = vadd.f32 0.0, %v968
      %970 = vmatmul.f32.gmra.mxu0 %v872
      %v971 = vpop.f32.mrf.mxu0
      %v972 = vadd.f32 0.0, %v971
      %973 = vmatmul.f32.gmra.mxu0 %v874
      %v974 = vpop.f32.mrf.mxu0
      %v975 = vadd.f32 0.0, %v974
      %976 = vmatmul.f32.gmra.mxu0 %v876
      %v977 = vpop.f32.mrf.mxu0
      %v978 = vadd.f32 0.0, %v977
      %979 = vmatmul.f32.gmra.mxu0 %v878
      %v980 = vpop.f32.mrf.mxu0
      %v981 = vadd.f32 0.0, %v980
      %982 = vmatmul.f32.gmra.mxu0 %v880
      %v983 = vpop.f32.mrf.mxu0
      %v984 = vadd.f32 0.0, %v983
      %985 = vmatmul.f32.gmra.mxu0 %v882
      %v986 = vpop.f32.mrf.mxu0
      %v987 = vadd.f32 0.0, %v986
      %988 = vmatmul.f32.gmra.mxu0 %v884
      %v989 = vpop.f32.mrf.mxu0
      %v990 = vadd.f32 0.0, %v989
      %991 = vmatmul.f32.gmra.mxu0 %v886
      %v992 = vpop.f32.mrf.mxu0
      %v993 = vadd.f32 0.0, %v992
      %994 = vmatmul.f32.gmra.mxu0 %v888
      %v995 = vpop.f32.mrf.mxu0
      %v996 = vadd.f32 0.0, %v995
      %997 = vmatmul.f32.gmra.mxu0 %v890
      %v998 = vpop.f32.mrf.mxu0
      %v999 = vadd.f32 0.0, %v998
      %1000 = vmatmul.f32.gmra.mxu0 %v892
      %v1001 = vpop.f32.mrf.mxu0
      %v1002 = vadd.f32 0.0, %v1001
      %1003 = vmatmul.f32.gmra.mxu0 %v894
      %v1004 = vpop.f32.mrf.mxu0
      %v1005 = vadd.f32 0.0, %v1004
      %1006 = vmatmul.f32.gmra.mxu0 %v896
      %v1007 = vpop.f32.mrf.mxu0
      %v1008 = vadd.f32 0.0, %v1007
      %1009 = vmatmul.f32.gmra.mxu0 %v898
      %v1010 = vpop.f32.mrf.mxu0
      %v1011 = vadd.f32 0.0, %v1010
      %1012 = vdwg.mxu0
      %v1013 = vadd.f32 %v655, %v918
      %v1014 = vadd.f32 %v658, %v921
      %v1015 = vadd.f32 %v661, %v924
      %v1016 = vadd.f32 %v664, %v927
      %v1017 = vadd.f32 %v667, %v930
      %v1018 = vadd.f32 %v670, %v933
      %v1019 = vadd.f32 %v673, %v936
      %v1020 = vadd.f32 %v676, %v939
      %v1021 = vadd.f32 %v679, %v942
      %v1022 = vadd.f32 %v682, %v945
      %v1023 = vadd.f32 %v685, %v948
      %v1024 = vadd.f32 %v688, %v951
      %v1025 = vadd.f32 %v691, %v954
      %v1026 = vadd.f32 %v694, %v957
      %v1027 = vadd.f32 %v697, %v960
      %v1028 = vadd.f32 %v700, %v963
      %v1029 = vadd.f32 %v703, %v966
      %v1030 = vadd.f32 %v706, %v969
      %v1031 = vadd.f32 %v709, %v972
      %v1032 = vadd.f32 %v712, %v975
      %v1033 = vadd.f32 %v715, %v978
      %v1034 = vadd.f32 %v718, %v981
      %v1035 = vadd.f32 %v721, %v984
      %v1036 = vadd.f32 %v724, %v987
      %v1037 = vadd.f32 %v727, %v990
      %v1038 = vadd.f32 %v730, %v993
      %v1039 = vadd.f32 %v733, %v996
      %v1040 = vadd.f32 %v736, %v999
      %v1041 = vadd.f32 %v739, %v1002
      %v1042 = vadd.f32 %v742, %v1005
      %v1043 = vadd.f32 %v745, %v1008
      %v1044 = vadd.f32 %v748, %v1011
      %s1045 = scalar_lea.vmem %s1, 96
      %v1046 = vld [vmem:[%s1045] sm:$0xff]
      %v1047 = vld [vmem:[%s1045 + $0x8] sm:$0xff]
      %v1048 = vld [vmem:[%s1045 + $0x10] sm:$0xff]
      %v1049 = vld [vmem:[%s1045 + $0x18] sm:$0xff]
      %v1051 = vsel %vm395, %v251, 0
      %v1054 = vsel %vm395, %v252, 0
      %1056 = vmatpush.msra.mxu0 0.0
      %1057 = vmatpush.msra.mxu0 0.0
      %1058 = vmatpush.msra.mxu0 0.0
      %1059 = vmatpush.msra.mxu0 0.0
      %1060 = vmatpush.msra.mxu0 0.0
      %1061 = vmatpush.msra.mxu0 0.0
      %1062 = vmatpush.msra.mxu0 0.0
      %1063 = vmatpush.msra.mxu0 0.0
      %1064 = vmatpush.msra.mxu0 0.0
      %1065 = vmatpush.msra.mxu0 0.0
      %1066 = vmatpush.msra.mxu0 0.0
      %1067 = vmatpush.msra.mxu0 0.0
      %1068 = vmatpush.msra.mxu0 %v1049
      %1069 = vmatpush.msra.mxu0 %v1048
      %1070 = vmatpush.msra.mxu0 %v1047
      %1071 = vmatpush.msra.mxu0 %v1046
      %1072 = vmatmul.f32.gmra.mxu0 %v577
      %v1073 = vpop.f32.mrf.mxu0
      %v1074 = vadd.f32 0.0, %v1073
      %1075 = vmatmul.f32.gmra.mxu0 %v579
      %v1076 = vpop.f32.mrf.mxu0
      %v1077 = vadd.f32 0.0, %v1076
      %1078 = vmatmul.f32.gmra.mxu0 %v581
      %v1079 = vpop.f32.mrf.mxu0
      %v1080 = vadd.f32 0.0, %v1079
      %1081 = vmatmul.f32.gmra.mxu0 %v583
      %v1082 = vpop.f32.mrf.mxu0
      %v1083 = vadd.f32 0.0, %v1082
      %1084 = vmatmul.f32.gmra.mxu0 %v585
      %v1085 = vpop.f32.mrf.mxu0
      %v1086 = vadd.f32 0.0, %v1085
      %1087 = vmatmul.f32.gmra.mxu0 %v587
      %v1088 = vpop.f32.mrf.mxu0
      %v1089 = vadd.f32 0.0, %v1088
      %1090 = vmatmul.f32.gmra.mxu0 %v589
      %v1091 = vpop.f32.mrf.mxu0
      %v1092 = vadd.f32 0.0, %v1091
      %1093 = vmatmul.f32.gmra.mxu0 %v591
      %v1094 = vpop.f32.mrf.mxu0
      %v1095 = vadd.f32 0.0, %v1094
      %1096 = vmatmul.f32.gmra.mxu0 %v593
      %v1097 = vpop.f32.mrf.mxu0
      %v1098 = vadd.f32 0.0, %v1097
      %1099 = vmatmul.f32.gmra.mxu0 %v595
      %v1100 = vpop.f32.mrf.mxu0
      %v1101 = vadd.f32 0.0, %v1100
      %1102 = vmatmul.f32.gmra.mxu0 %v597
      %v1103 = vpop.f32.mrf.mxu0
      %v1104 = vadd.f32 0.0, %v1103
      %1105 = vmatmul.f32.gmra.mxu0 %v599
      %v1106 = vpop.f32.mrf.mxu0
      %v1107 = vadd.f32 0.0, %v1106
      %1108 = vmatmul.f32.gmra.mxu0 %v601
      %v1109 = vpop.f32.mrf.mxu0
      %v1110 = vadd.f32 0.0, %v1109
      %1111 = vmatmul.f32.gmra.mxu0 %v603
      %v1112 = vpop.f32.mrf.mxu0
      %v1113 = vadd.f32 0.0, %v1112
      %1114 = vmatmul.f32.gmra.mxu0 %v605
      %v1115 = vpop.f32.mrf.mxu0
      %v1116 = vadd.f32 0.0, %v1115
      %1117 = vmatmul.f32.gmra.mxu0 %v607
      %v1118 = vpop.f32.mrf.mxu0
      %v1119 = vadd.f32 0.0, %v1118
      %1120 = vmatmul.f32.gmra.mxu0 %v609
      %v1121 = vpop.f32.mrf.mxu0
      %v1122 = vadd.f32 0.0, %v1121
      %1123 = vmatmul.f32.gmra.mxu0 %v611
      %v1124 = vpop.f32.mrf.mxu0
      %v1125 = vadd.f32 0.0, %v1124
      %1126 = vmatmul.f32.gmra.mxu0 %v613
      %v1127 = vpop.f32.mrf.mxu0
      %v1128 = vadd.f32 0.0, %v1127
      %1129 = vmatmul.f32.gmra.mxu0 %v615
      %v1130 = vpop.f32.mrf.mxu0
      %v1131 = vadd.f32 0.0, %v1130
      %1132 = vmatmul.f32.gmra.mxu0 %v617
      %v1133 = vpop.f32.mrf.mxu0
      %v1134 = vadd.f32 0.0, %v1133
      %1135 = vmatmul.f32.gmra.mxu0 %v619
      %v1136 = vpop.f32.mrf.mxu0
      %v1137 = vadd.f32 0.0, %v1136
      %1138 = vmatmul.f32.gmra.mxu0 %v621
      %v1139 = vpop.f32.mrf.mxu0
      %v1140 = vadd.f32 0.0, %v1139
      %1141 = vmatmul.f32.gmra.mxu0 %v623
      %v1142 = vpop.f32.mrf.mxu0
      %v1143 = vadd.f32 0.0, %v1142
      %1144 = vmatmul.f32.gmra.mxu0 %v625
      %v1145 = vpop.f32.mrf.mxu0
      %v1146 = vadd.f32 0.0, %v1145
      %1147 = vmatmul.f32.gmra.mxu0 %v627
      %v1148 = vpop.f32.mrf.mxu0
      %v1149 = vadd.f32 0.0, %v1148
      %1150 = vmatmul.f32.gmra.mxu0 %v629
      %v1151 = vpop.f32.mrf.mxu0
      %v1152 = vadd.f32 0.0, %v1151
      %1153 = vmatmul.f32.gmra.mxu0 %v631
      %v1154 = vpop.f32.mrf.mxu0
      %v1155 = vadd.f32 0.0, %v1154
      %1156 = vmatmul.f32.gmra.mxu0 %v633
      %v1157 = vpop.f32.mrf.mxu0
      %v1158 = vadd.f32 0.0, %v1157
      %1159 = vmatmul.f32.gmra.mxu0 %v635
      %v1160 = vpop.f32.mrf.mxu0
      %v1161 = vadd.f32 0.0, %v1160
      %1162 = vmatmul.f32.gmra.mxu0 %v1051
      %v1163 = vpop.f32.mrf.mxu0
      %v1164 = vadd.f32 0.0, %v1163
      %1165 = vmatmul.f32.gmra.mxu0 %v1054
      %v1166 = vpop.f32.mrf.mxu0
      %v1167 = vadd.f32 0.0, %v1166
      %1168 = vdwg.mxu0
      %v1169 = vadd.f32 %v1013, %v1074
      %v1170 = vadd.f32 %v1014, %v1077
      %v1171 = vadd.f32 %v1015, %v1080
      %v1172 = vadd.f32 %v1016, %v1083
      %v1173 = vadd.f32 %v1017, %v1086
      %v1174 = vadd.f32 %v1018, %v1089
      %v1175 = vadd.f32 %v1019, %v1092
      %v1176 = vadd.f32 %v1020, %v1095
      %v1177 = vadd.f32 %v1021, %v1098
      %v1178 = vadd.f32 %v1022, %v1101
      %v1179 = vadd.f32 %v1023, %v1104
      %v1180 = vadd.f32 %v1024, %v1107
      %v1181 = vadd.f32 %v1025, %v1110
      %v1182 = vadd.f32 %v1026, %v1113
      %v1183 = vadd.f32 %v1027, %v1116
      %v1184 = vadd.f32 %v1028, %v1119
      %v1185 = vadd.f32 %v1029, %v1122
      %v1186 = vadd.f32 %v1030, %v1125
      %v1187 = vadd.f32 %v1031, %v1128
      %v1188 = vadd.f32 %v1032, %v1131
      %v1189 = vadd.f32 %v1033, %v1134
      %v1190 = vadd.f32 %v1034, %v1137
      %v1191 = vadd.f32 %v1035, %v1140
      %v1192 = vadd.f32 %v1036, %v1143
      %v1193 = vadd.f32 %v1037, %v1146
      %v1194 = vadd.f32 %v1038, %v1149
      %v1195 = vadd.f32 %v1039, %v1152
      %v1196 = vadd.f32 %v1040, %v1155
      %v1197 = vadd.f32 %v1041, %v1158
      %v1198 = vadd.f32 %v1042, %v1161
      %v1199 = vadd.f32 %v1043, %v1164
      %v1200 = vadd.f32 %v1044, %v1167
      %v1202 = vrot.slane %v251, 1
      %v1203 = vrot.slane %v252, 1
      %v1204 = vsel %vm309, %v1202, %v1203
      %v1205 = vrot.slane %v253, 1
      %v1206 = vsel %vm309, %v1203, %v1205
      %s1207 = scalar_lea.vmem %s1, 128
      %v1208 = vld [vmem:[%s1207] sm:$0xff]
      %v1209 = vld [vmem:[%s1207 + $0x8] sm:$0xff]
      %v1210 = vld [vmem:[%s1207 + $0x10] sm:$0xff]
      %v1211 = vld [vmem:[%s1207 + $0x18] sm:$0xff]
      %v1212 = vsel %vm395, %v1204, 0
      %v1214 = vsel %vm395, %v1206, 0
      %1216 = vmatpush.msra.mxu0 0.0
      %1217 = vmatpush.msra.mxu0 0.0
      %1218 = vmatpush.msra.mxu0 0.0
      %1219 = vmatpush.msra.mxu0 0.0
      %1220 = vmatpush.msra.mxu0 0.0
      %1221 = vmatpush.msra.mxu0 0.0
      %1222 = vmatpush.msra.mxu0 0.0
      %1223 = vmatpush.msra.mxu0 0.0
      %1224 = vmatpush.msra.mxu0 0.0
      %1225 = vmatpush.msra.mxu0 0.0
      %1226 = vmatpush.msra.mxu0 0.0
      %1227 = vmatpush.msra.mxu0 0.0
      %1228 = vmatpush.msra.mxu0 %v1211
      %1229 = vmatpush.msra.mxu0 %v1210
      %1230 = vmatpush.msra.mxu0 %v1209
      %1231 = vmatpush.msra.mxu0 %v1208
      %1232 = vmatmul.f32.gmra.mxu0 %v400
      %v1233 = vpop.f32.mrf.mxu0
      %v1234 = vadd.f32 0.0, %v1233
      %1235 = vmatmul.f32.gmra.mxu0 %v402
      %v1236 = vpop.f32.mrf.mxu0
      %v1237 = vadd.f32 0.0, %v1236
      %1238 = vmatmul.f32.gmra.mxu0 %v404
      %v1239 = vpop.f32.mrf.mxu0
      %v1240 = vadd.f32 0.0, %v1239
      %1241 = vmatmul.f32.gmra.mxu0 %v406
      %v1242 = vpop.f32.mrf.mxu0
      %v1243 = vadd.f32 0.0, %v1242
      %1244 = vmatmul.f32.gmra.mxu0 %v408
      %v1245 = vpop.f32.mrf.mxu0
      %v1246 = vadd.f32 0.0, %v1245
      %1247 = vmatmul.f32.gmra.mxu0 %v410
      %v1248 = vpop.f32.mrf.mxu0
      %v1249 = vadd.f32 0.0, %v1248
      %1250 = vmatmul.f32.gmra.mxu0 %v412
      %v1251 = vpop.f32.mrf.mxu0
      %v1252 = vadd.f32 0.0, %v1251
      %1253 = vmatmul.f32.gmra.mxu0 %v414
      %v1254 = vpop.f32.mrf.mxu0
      %v1255 = vadd.f32 0.0, %v1254
      %1256 = vmatmul.f32.gmra.mxu0 %v416
      %v1257 = vpop.f32.mrf.mxu0
      %v1258 = vadd.f32 0.0, %v1257
      %1259 = vmatmul.f32.gmra.mxu0 %v418
      %v1260 = vpop.f32.mrf.mxu0
      %v1261 = vadd.f32 0.0, %v1260
      %1262 = vmatmul.f32.gmra.mxu0 %v420
      %v1263 = vpop.f32.mrf.mxu0
      %v1264 = vadd.f32 0.0, %v1263
      %1265 = vmatmul.f32.gmra.mxu0 %v422
      %v1266 = vpop.f32.mrf.mxu0
      %v1267 = vadd.f32 0.0, %v1266
      %1268 = vmatmul.f32.gmra.mxu0 %v424
      %v1269 = vpop.f32.mrf.mxu0
      %v1270 = vadd.f32 0.0, %v1269
      %1271 = vmatmul.f32.gmra.mxu0 %v426
      %v1272 = vpop.f32.mrf.mxu0
      %v1273 = vadd.f32 0.0, %v1272
      %1274 = vmatmul.f32.gmra.mxu0 %v428
      %v1275 = vpop.f32.mrf.mxu0
      %v1276 = vadd.f32 0.0, %v1275
      %1277 = vmatmul.f32.gmra.mxu0 %v430
      %v1278 = vpop.f32.mrf.mxu0
      %v1279 = vadd.f32 0.0, %v1278
      %1280 = vmatmul.f32.gmra.mxu0 %v432
      %v1281 = vpop.f32.mrf.mxu0
      %v1282 = vadd.f32 0.0, %v1281
      %1283 = vmatmul.f32.gmra.mxu0 %v434
      %v1284 = vpop.f32.mrf.mxu0
      %v1285 = vadd.f32 0.0, %v1284
      %1286 = vmatmul.f32.gmra.mxu0 %v436
      %v1287 = vpop.f32.mrf.mxu0
      %v1288 = vadd.f32 0.0, %v1287
      %1289 = vmatmul.f32.gmra.mxu0 %v438
      %v1290 = vpop.f32.mrf.mxu0
      %v1291 = vadd.f32 0.0, %v1290
      %1292 = vmatmul.f32.gmra.mxu0 %v440
      %v1293 = vpop.f32.mrf.mxu0
      %v1294 = vadd.f32 0.0, %v1293
      %1295 = vmatmul.f32.gmra.mxu0 %v442
      %v1296 = vpop.f32.mrf.mxu0
      %v1297 = vadd.f32 0.0, %v1296
      %1298 = vmatmul.f32.gmra.mxu0 %v444
      %v1299 = vpop.f32.mrf.mxu0
      %v1300 = vadd.f32 0.0, %v1299
      %1301 = vmatmul.f32.gmra.mxu0 %v446
      %v1302 = vpop.f32.mrf.mxu0
      %v1303 = vadd.f32 0.0, %v1302
      %1304 = vmatmul.f32.gmra.mxu0 %v448
      %v1305 = vpop.f32.mrf.mxu0
      %v1306 = vadd.f32 0.0, %v1305
      %1307 = vmatmul.f32.gmra.mxu0 %v450
      %v1308 = vpop.f32.mrf.mxu0
      %v1309 = vadd.f32 0.0, %v1308
      %1310 = vmatmul.f32.gmra.mxu0 %v452
      %v1311 = vpop.f32.mrf.mxu0
      %v1312 = vadd.f32 0.0, %v1311
      %1313 = vmatmul.f32.gmra.mxu0 %v454
      %v1314 = vpop.f32.mrf.mxu0
      %v1315 = vadd.f32 0.0, %v1314
      %1316 = vmatmul.f32.gmra.mxu0 %v456
      %v1317 = vpop.f32.mrf.mxu0
      %v1318 = vadd.f32 0.0, %v1317
      %1319 = vmatmul.f32.gmra.mxu0 %v458
      %v1320 = vpop.f32.mrf.mxu0
      %v1321 = vadd.f32 0.0, %v1320
      %1322 = vmatmul.f32.gmra.mxu0 %v1212
      %v1323 = vpop.f32.mrf.mxu0
      %v1324 = vadd.f32 0.0, %v1323
      %1325 = vmatmul.f32.gmra.mxu0 %v1214
      %v1326 = vpop.f32.mrf.mxu0
      %v1327 = vadd.f32 0.0, %v1326
      %1328 = vdwg.mxu0
      %v1329 = vadd.f32 %v1169, %v1234
      %v1330 = vadd.f32 %v1170, %v1237
      %v1331 = vadd.f32 %v1171, %v1240
      %v1332 = vadd.f32 %v1172, %v1243
      %v1333 = vadd.f32 %v1173, %v1246
      %v1334 = vadd.f32 %v1174, %v1249
      %v1335 = vadd.f32 %v1175, %v1252
      %v1336 = vadd.f32 %v1176, %v1255
      %v1337 = vadd.f32 %v1177, %v1258
      %v1338 = vadd.f32 %v1178, %v1261
      %v1339 = vadd.f32 %v1179, %v1264
      %v1340 = vadd.f32 %v1180, %v1267
      %v1341 = vadd.f32 %v1181, %v1270
      %v1342 = vadd.f32 %v1182, %v1273
      %v1343 = vadd.f32 %v1183, %v1276
      %v1344 = vadd.f32 %v1184, %v1279
      %v1345 = vadd.f32 %v1185, %v1282
      %v1346 = vadd.f32 %v1186, %v1285
      %v1347 = vadd.f32 %v1187, %v1288
      %v1348 = vadd.f32 %v1188, %v1291
      %v1349 = vadd.f32 %v1189, %v1294
      %v1350 = vadd.f32 %v1190, %v1297
      %v1351 = vadd.f32 %v1191, %v1300
      %v1352 = vadd.f32 %v1192, %v1303
      %v1353 = vadd.f32 %v1193, %v1306
      %v1354 = vadd.f32 %v1194, %v1309
      %v1355 = vadd.f32 %v1195, %v1312
      %v1356 = vadd.f32 %v1196, %v1315
      %v1357 = vadd.f32 %v1197, %v1318
      %v1358 = vadd.f32 %v1198, %v1321
      %v1359 = vadd.f32 %v1199, %v1324
      %v1360 = vadd.f32 %v1200, %v1327
      %v1361 = vrot.slane %v251, 2
      %v1362 = vrot.slane %v252, 2
      %v1363 = vsel %vm750, %v1361, %v1362
      %v1364 = vrot.slane %v253, 2
      %v1365 = vsel %vm750, %v1362, %v1364
      %s1366 = scalar_lea.vmem %s1, 160
      %v1367 = vld [vmem:[%s1366] sm:$0xff]
      %v1368 = vld [vmem:[%s1366 + $0x8] sm:$0xff]
      %v1369 = vld [vmem:[%s1366 + $0x10] sm:$0xff]
      %v1370 = vld [vmem:[%s1366 + $0x18] sm:$0xff]
      %v1371 = vsel %vm395, %v1363, 0
      %v1373 = vsel %vm395, %v1365, 0
      %1375 = vmatpush.msra.mxu0 0.0
      %1376 = vmatpush.msra.mxu0 0.0
      %1377 = vmatpush.msra.mxu0 0.0
      %1378 = vmatpush.msra.mxu0 0.0
      %1379 = vmatpush.msra.mxu0 0.0
      %1380 = vmatpush.msra.mxu0 0.0
      %1381 = vmatpush.msra.mxu0 0.0
      %1382 = vmatpush.msra.mxu0 0.0
      %1383 = vmatpush.msra.mxu0 0.0
      %1384 = vmatpush.msra.mxu0 0.0
      %1385 = vmatpush.msra.mxu0 0.0
      %1386 = vmatpush.msra.mxu0 0.0
      %1387 = vmatpush.msra.mxu0 %v1370
      %1388 = vmatpush.msra.mxu0 %v1369
      %1389 = vmatpush.msra.mxu0 %v1368
      %1390 = vmatpush.msra.mxu0 %v1367
      %1391 = vmatmul.f32.gmra.mxu0 %v840
      %v1392 = vpop.f32.mrf.mxu0
      %v1393 = vadd.f32 0.0, %v1392
      %1394 = vmatmul.f32.gmra.mxu0 %v842
      %v1395 = vpop.f32.mrf.mxu0
      %v1396 = vadd.f32 0.0, %v1395
      %1397 = vmatmul.f32.gmra.mxu0 %v844
      %v1398 = vpop.f32.mrf.mxu0
      %v1399 = vadd.f32 0.0, %v1398
      %1400 = vmatmul.f32.gmra.mxu0 %v846
      %v1401 = vpop.f32.mrf.mxu0
      %v1402 = vadd.f32 0.0, %v1401
      %1403 = vmatmul.f32.gmra.mxu0 %v848
      %v1404 = vpop.f32.mrf.mxu0
      %v1405 = vadd.f32 0.0, %v1404
      %1406 = vmatmul.f32.gmra.mxu0 %v850
      %v1407 = vpop.f32.mrf.mxu0
      %v1408 = vadd.f32 0.0, %v1407
      %1409 = vmatmul.f32.gmra.mxu0 %v852
      %v1410 = vpop.f32.mrf.mxu0
      %v1411 = vadd.f32 0.0, %v1410
      %1412 = vmatmul.f32.gmra.mxu0 %v854
      %v1413 = vpop.f32.mrf.mxu0
      %v1414 = vadd.f32 0.0, %v1413
      %1415 = vmatmul.f32.gmra.mxu0 %v856
      %v1416 = vpop.f32.mrf.mxu0
      %v1417 = vadd.f32 0.0, %v1416
      %1418 = vmatmul.f32.gmra.mxu0 %v858
      %v1419 = vpop.f32.mrf.mxu0
      %v1420 = vadd.f32 0.0, %v1419
      %1421 = vmatmul.f32.gmra.mxu0 %v860
      %v1422 = vpop.f32.mrf.mxu0
      %v1423 = vadd.f32 0.0, %v1422
      %1424 = vmatmul.f32.gmra.mxu0 %v862
      %v1425 = vpop.f32.mrf.mxu0
      %v1426 = vadd.f32 0.0, %v1425
      %1427 = vmatmul.f32.gmra.mxu0 %v864
      %v1428 = vpop.f32.mrf.mxu0
      %v1429 = vadd.f32 0.0, %v1428
      %1430 = vmatmul.f32.gmra.mxu0 %v866
      %v1431 = vpop.f32.mrf.mxu0
      %v1432 = vadd.f32 0.0, %v1431
      %1433 = vmatmul.f32.gmra.mxu0 %v868
      %v1434 = vpop.f32.mrf.mxu0
      %v1435 = vadd.f32 0.0, %v1434
      %1436 = vmatmul.f32.gmra.mxu0 %v870
      %v1437 = vpop.f32.mrf.mxu0
      %v1438 = vadd.f32 0.0, %v1437
      %1439 = vmatmul.f32.gmra.mxu0 %v872
      %v1440 = vpop.f32.mrf.mxu0
      %v1441 = vadd.f32 0.0, %v1440
      %1442 = vmatmul.f32.gmra.mxu0 %v874
      %v1443 = vpop.f32.mrf.mxu0
      %v1444 = vadd.f32 0.0, %v1443
      %1445 = vmatmul.f32.gmra.mxu0 %v876
      %v1446 = vpop.f32.mrf.mxu0
      %v1447 = vadd.f32 0.0, %v1446
      %1448 = vmatmul.f32.gmra.mxu0 %v878
      %v1449 = vpop.f32.mrf.mxu0
      %v1450 = vadd.f32 0.0, %v1449
      %1451 = vmatmul.f32.gmra.mxu0 %v880
      %v1452 = vpop.f32.mrf.mxu0
      %v1453 = vadd.f32 0.0, %v1452
      %1454 = vmatmul.f32.gmra.mxu0 %v882
      %v1455 = vpop.f32.mrf.mxu0
      %v1456 = vadd.f32 0.0, %v1455
      %1457 = vmatmul.f32.gmra.mxu0 %v884
      %v1458 = vpop.f32.mrf.mxu0
      %v1459 = vadd.f32 0.0, %v1458
      %1460 = vmatmul.f32.gmra.mxu0 %v886
      %v1461 = vpop.f32.mrf.mxu0
      %v1462 = vadd.f32 0.0, %v1461
      %1463 = vmatmul.f32.gmra.mxu0 %v888
      %v1464 = vpop.f32.mrf.mxu0
      %v1465 = vadd.f32 0.0, %v1464
      %1466 = vmatmul.f32.gmra.mxu0 %v890
      %v1467 = vpop.f32.mrf.mxu0
      %v1468 = vadd.f32 0.0, %v1467
      %1469 = vmatmul.f32.gmra.mxu0 %v892
      %v1470 = vpop.f32.mrf.mxu0
      %v1471 = vadd.f32 0.0, %v1470
      %1472 = vmatmul.f32.gmra.mxu0 %v894
      %v1473 = vpop.f32.mrf.mxu0
      %v1474 = vadd.f32 0.0, %v1473
      %1475 = vmatmul.f32.gmra.mxu0 %v896
      %v1476 = vpop.f32.mrf.mxu0
      %v1477 = vadd.f32 0.0, %v1476
      %1478 = vmatmul.f32.gmra.mxu0 %v898
      %v1479 = vpop.f32.mrf.mxu0
      %v1480 = vadd.f32 0.0, %v1479
      %1481 = vmatmul.f32.gmra.mxu0 %v1371
      %v1482 = vpop.f32.mrf.mxu0
      %v1483 = vadd.f32 0.0, %v1482
      %1484 = vmatmul.f32.gmra.mxu0 %v1373
      %v1485 = vpop.f32.mrf.mxu0
      %v1486 = vadd.f32 0.0, %v1485
      %1487 = vdwg.mxu0
      %v1488 = vadd.f32 %v1329, %v1393
      %v1489 = vadd.f32 %v1330, %v1396
      %v1490 = vadd.f32 %v1331, %v1399
      %v1491 = vadd.f32 %v1332, %v1402
      %v1492 = vadd.f32 %v1333, %v1405
      %v1493 = vadd.f32 %v1334, %v1408
      %v1494 = vadd.f32 %v1335, %v1411
      %v1495 = vadd.f32 %v1336, %v1414
      %v1496 = vadd.f32 %v1337, %v1417
      %v1497 = vadd.f32 %v1338, %v1420
      %v1498 = vadd.f32 %v1339, %v1423
      %v1499 = vadd.f32 %v1340, %v1426
      %v1500 = vadd.f32 %v1341, %v1429
      %v1501 = vadd.f32 %v1342, %v1432
      %v1502 = vadd.f32 %v1343, %v1435
      %v1503 = vadd.f32 %v1344, %v1438
      %v1504 = vadd.f32 %v1345, %v1441
      %v1505 = vadd.f32 %v1346, %v1444
      %v1506 = vadd.f32 %v1347, %v1447
      %v1507 = vadd.f32 %v1348, %v1450
      %v1508 = vadd.f32 %v1349, %v1453
      %v1509 = vadd.f32 %v1350, %v1456
      %v1510 = vadd.f32 %v1351, %v1459
      %v1511 = vadd.f32 %v1352, %v1462
      %v1512 = vadd.f32 %v1353, %v1465
      %v1513 = vadd.f32 %v1354, %v1468
      %v1514 = vadd.f32 %v1355, %v1471
      %v1515 = vadd.f32 %v1356, %v1474
      %v1516 = vadd.f32 %v1357, %v1477
      %v1517 = vadd.f32 %v1358, %v1480
      %v1518 = vadd.f32 %v1359, %v1483
      %v1519 = vadd.f32 %v1360, %v1486
      %s1520 = scalar_lea.vmem %s1, 192
      %v1521 = vld [vmem:[%s1520] sm:$0xff]
      %v1522 = vld [vmem:[%s1520 + $0x8] sm:$0xff]
      %v1523 = vld [vmem:[%s1520 + $0x10] sm:$0xff]
      %v1524 = vld [vmem:[%s1520 + $0x18] sm:$0xff]
      %v1526 = vsel %vm395, %v254, 0
      %v1529 = vsel %vm395, %v255, 0
      %1531 = vmatpush.msra.mxu0 0.0
      %1532 = vmatpush.msra.mxu0 0.0
      %1533 = vmatpush.msra.mxu0 0.0
      %1534 = vmatpush.msra.mxu0 0.0
      %1535 = vmatpush.msra.mxu0 0.0
      %1536 = vmatpush.msra.mxu0 0.0
      %1537 = vmatpush.msra.mxu0 0.0
      %1538 = vmatpush.msra.mxu0 0.0
      %1539 = vmatpush.msra.mxu0 0.0
      %1540 = vmatpush.msra.mxu0 0.0
      %1541 = vmatpush.msra.mxu0 0.0
      %1542 = vmatpush.msra.mxu0 0.0
      %1543 = vmatpush.msra.mxu0 %v1524
      %1544 = vmatpush.msra.mxu0 %v1523
      %1545 = vmatpush.msra.mxu0 %v1522
      %1546 = vmatpush.msra.mxu0 %v1521
      %1547 = vmatmul.f32.gmra.mxu0 %v581
      %v1548 = vpop.f32.mrf.mxu0
      %v1549 = vadd.f32 0.0, %v1548
      %1550 = vmatmul.f32.gmra.mxu0 %v583
      %v1551 = vpop.f32.mrf.mxu0
      %v1552 = vadd.f32 0.0, %v1551
      %1553 = vmatmul.f32.gmra.mxu0 %v585
      %v1554 = vpop.f32.mrf.mxu0
      %v1555 = vadd.f32 0.0, %v1554
      %1556 = vmatmul.f32.gmra.mxu0 %v587
      %v1557 = vpop.f32.mrf.mxu0
      %v1558 = vadd.f32 0.0, %v1557
      %1559 = vmatmul.f32.gmra.mxu0 %v589
      %v1560 = vpop.f32.mrf.mxu0
      %v1561 = vadd.f32 0.0, %v1560
      %1562 = vmatmul.f32.gmra.mxu0 %v591
      %v1563 = vpop.f32.mrf.mxu0
      %v1564 = vadd.f32 0.0, %v1563
      %1565 = vmatmul.f32.gmra.mxu0 %v593
      %v1566 = vpop.f32.mrf.mxu0
      %v1567 = vadd.f32 0.0, %v1566
      %1568 = vmatmul.f32.gmra.mxu0 %v595
      %v1569 = vpop.f32.mrf.mxu0
      %v1570 = vadd.f32 0.0, %v1569
      %1571 = vmatmul.f32.gmra.mxu0 %v597
      %v1572 = vpop.f32.mrf.mxu0
      %v1573 = vadd.f32 0.0, %v1572
      %1574 = vmatmul.f32.gmra.mxu0 %v599
      %v1575 = vpop.f32.mrf.mxu0
      %v1576 = vadd.f32 0.0, %v1575
      %1577 = vmatmul.f32.gmra.mxu0 %v601
      %v1578 = vpop.f32.mrf.mxu0
      %v1579 = vadd.f32 0.0, %v1578
      %1580 = vmatmul.f32.gmra.mxu0 %v603
      %v1581 = vpop.f32.mrf.mxu0
      %v1582 = vadd.f32 0.0, %v1581
      %1583 = vmatmul.f32.gmra.mxu0 %v605
      %v1584 = vpop.f32.mrf.mxu0
      %v1585 = vadd.f32 0.0, %v1584
      %1586 = vmatmul.f32.gmra.mxu0 %v607
      %v1587 = vpop.f32.mrf.mxu0
      %v1588 = vadd.f32 0.0, %v1587
      %1589 = vmatmul.f32.gmra.mxu0 %v609
      %v1590 = vpop.f32.mrf.mxu0
      %v1591 = vadd.f32 0.0, %v1590
      %1592 = vmatmul.f32.gmra.mxu0 %v611
      %v1593 = vpop.f32.mrf.mxu0
      %v1594 = vadd.f32 0.0, %v1593
      %1595 = vmatmul.f32.gmra.mxu0 %v613
      %v1596 = vpop.f32.mrf.mxu0
      %v1597 = vadd.f32 0.0, %v1596
      %1598 = vmatmul.f32.gmra.mxu0 %v615
      %v1599 = vpop.f32.mrf.mxu0
      %v1600 = vadd.f32 0.0, %v1599
      %1601 = vmatmul.f32.gmra.mxu0 %v617
      %v1602 = vpop.f32.mrf.mxu0
      %v1603 = vadd.f32 0.0, %v1602
      %1604 = vmatmul.f32.gmra.mxu0 %v619
      %v1605 = vpop.f32.mrf.mxu0
      %v1606 = vadd.f32 0.0, %v1605
      %1607 = vmatmul.f32.gmra.mxu0 %v621
      %v1608 = vpop.f32.mrf.mxu0
      %v1609 = vadd.f32 0.0, %v1608
      %1610 = vmatmul.f32.gmra.mxu0 %v623
      %v1611 = vpop.f32.mrf.mxu0
      %v1612 = vadd.f32 0.0, %v1611
      %1613 = vmatmul.f32.gmra.mxu0 %v625
      %v1614 = vpop.f32.mrf.mxu0
      %v1615 = vadd.f32 0.0, %v1614
      %1616 = vmatmul.f32.gmra.mxu0 %v627
      %v1617 = vpop.f32.mrf.mxu0
      %v1618 = vadd.f32 0.0, %v1617
      %1619 = vmatmul.f32.gmra.mxu0 %v629
      %v1620 = vpop.f32.mrf.mxu0
      %v1621 = vadd.f32 0.0, %v1620
      %1622 = vmatmul.f32.gmra.mxu0 %v631
      %v1623 = vpop.f32.mrf.mxu0
      %v1624 = vadd.f32 0.0, %v1623
      %1625 = vmatmul.f32.gmra.mxu0 %v633
      %v1626 = vpop.f32.mrf.mxu0
      %v1627 = vadd.f32 0.0, %v1626
      %1628 = vmatmul.f32.gmra.mxu0 %v635
      %v1629 = vpop.f32.mrf.mxu0
      %v1630 = vadd.f32 0.0, %v1629
      %1631 = vmatmul.f32.gmra.mxu0 %v1051
      %v1632 = vpop.f32.mrf.mxu0
      %v1633 = vadd.f32 0.0, %v1632
      %1634 = vmatmul.f32.gmra.mxu0 %v1054
      %v1635 = vpop.f32.mrf.mxu0
      %v1636 = vadd.f32 0.0, %v1635
      %1637 = vmatmul.f32.gmra.mxu0 %v1526
      %v1638 = vpop.f32.mrf.mxu0
      %v1639 = vadd.f32 0.0, %v1638
      %1640 = vmatmul.f32.gmra.mxu0 %v1529
      %v1641 = vpop.f32.mrf.mxu0
      %v1642 = vadd.f32 0.0, %v1641
      %1643 = vdwg.mxu0
      %v1644 = vadd.f32 %v1488, %v1549
      %v1645 = vadd.f32 %v1489, %v1552
      %v1646 = vadd.f32 %v1490, %v1555
      %v1647 = vadd.f32 %v1491, %v1558
      %v1648 = vadd.f32 %v1492, %v1561
      %v1649 = vadd.f32 %v1493, %v1564
      %v1650 = vadd.f32 %v1494, %v1567
      %v1651 = vadd.f32 %v1495, %v1570
      %v1652 = vadd.f32 %v1496, %v1573
      %v1653 = vadd.f32 %v1497, %v1576
      %v1654 = vadd.f32 %v1498, %v1579
      %v1655 = vadd.f32 %v1499, %v1582
      %v1656 = vadd.f32 %v1500, %v1585
      %v1657 = vadd.f32 %v1501, %v1588
      %v1658 = vadd.f32 %v1502, %v1591
      %v1659 = vadd.f32 %v1503, %v1594
      %v1660 = vadd.f32 %v1504, %v1597
      %v1661 = vadd.f32 %v1505, %v1600
      %v1662 = vadd.f32 %v1506, %v1603
      %v1663 = vadd.f32 %v1507, %v1606
      %v1664 = vadd.f32 %v1508, %v1609
      %v1665 = vadd.f32 %v1509, %v1612
      %v1666 = vadd.f32 %v1510, %v1615
      %v1667 = vadd.f32 %v1511, %v1618
      %v1668 = vadd.f32 %v1512, %v1621
      %v1669 = vadd.f32 %v1513, %v1624
      %v1670 = vadd.f32 %v1514, %v1627
      %v1671 = vadd.f32 %v1515, %v1630
      %v1672 = vadd.f32 %v1516, %v1633
      %v1673 = vadd.f32 %v1517, %v1636
      %v1674 = vadd.f32 %v1518, %v1639
      %v1675 = vadd.f32 %v1519, %v1642
      %v1677 = vrot.slane %v254, 1
      %v1678 = vrot.slane %v255, 1
      %v1679 = vsel %vm309, %v1677, %v1678
      %v1680 = vrot.slane %v256, 1
      %v1681 = vsel %vm309, %v1678, %v1680
      %s1682 = scalar_lea.vmem %s1, 224
      %v1683 = vld [vmem:[%s1682] sm:$0xff]
      %v1684 = vld [vmem:[%s1682 + $0x8] sm:$0xff]
      %v1685 = vld [vmem:[%s1682 + $0x10] sm:$0xff]
      %v1686 = vld [vmem:[%s1682 + $0x18] sm:$0xff]
      %v1687 = vsel %vm395, %v1679, 0
      %v1689 = vsel %vm395, %v1681, 0
      %1691 = vmatpush.msra.mxu0 0.0
      %1692 = vmatpush.msra.mxu0 0.0
      %1693 = vmatpush.msra.mxu0 0.0
      %1694 = vmatpush.msra.mxu0 0.0
      %1695 = vmatpush.msra.mxu0 0.0
      %1696 = vmatpush.msra.mxu0 0.0
      %1697 = vmatpush.msra.mxu0 0.0
      %1698 = vmatpush.msra.mxu0 0.0
      %1699 = vmatpush.msra.mxu0 0.0
      %1700 = vmatpush.msra.mxu0 0.0
      %1701 = vmatpush.msra.mxu0 0.0
      %1702 = vmatpush.msra.mxu0 0.0
      %1703 = vmatpush.msra.mxu0 %v1686
      %1704 = vmatpush.msra.mxu0 %v1685
      %1705 = vmatpush.msra.mxu0 %v1684
      %1706 = vmatpush.msra.mxu0 %v1683
      %1707 = vmatmul.f32.gmra.mxu0 %v404
      %v1708 = vpop.f32.mrf.mxu0
      %v1709 = vadd.f32 0.0, %v1708
      %1710 = vmatmul.f32.gmra.mxu0 %v406
      %v1711 = vpop.f32.mrf.mxu0
      %v1712 = vadd.f32 0.0, %v1711
      %1713 = vmatmul.f32.gmra.mxu0 %v408
      %v1714 = vpop.f32.mrf.mxu0
      %v1715 = vadd.f32 0.0, %v1714
      %1716 = vmatmul.f32.gmra.mxu0 %v410
      %v1717 = vpop.f32.mrf.mxu0
      %v1718 = vadd.f32 0.0, %v1717
      %1719 = vmatmul.f32.gmra.mxu0 %v412
      %v1720 = vpop.f32.mrf.mxu0
      %v1721 = vadd.f32 0.0, %v1720
      %1722 = vmatmul.f32.gmra.mxu0 %v414
      %v1723 = vpop.f32.mrf.mxu0
      %v1724 = vadd.f32 0.0, %v1723
      %1725 = vmatmul.f32.gmra.mxu0 %v416
      %v1726 = vpop.f32.mrf.mxu0
      %v1727 = vadd.f32 0.0, %v1726
      %1728 = vmatmul.f32.gmra.mxu0 %v418
      %v1729 = vpop.f32.mrf.mxu0
      %v1730 = vadd.f32 0.0, %v1729
      %1731 = vmatmul.f32.gmra.mxu0 %v420
      %v1732 = vpop.f32.mrf.mxu0
      %v1733 = vadd.f32 0.0, %v1732
      %1734 = vmatmul.f32.gmra.mxu0 %v422
      %v1735 = vpop.f32.mrf.mxu0
      %v1736 = vadd.f32 0.0, %v1735
      %1737 = vmatmul.f32.gmra.mxu0 %v424
      %v1738 = vpop.f32.mrf.mxu0
      %v1739 = vadd.f32 0.0, %v1738
      %1740 = vmatmul.f32.gmra.mxu0 %v426
      %v1741 = vpop.f32.mrf.mxu0
      %v1742 = vadd.f32 0.0, %v1741
      %1743 = vmatmul.f32.gmra.mxu0 %v428
      %v1744 = vpop.f32.mrf.mxu0
      %v1745 = vadd.f32 0.0, %v1744
      %1746 = vmatmul.f32.gmra.mxu0 %v430
      %v1747 = vpop.f32.mrf.mxu0
      %v1748 = vadd.f32 0.0, %v1747
      %1749 = vmatmul.f32.gmra.mxu0 %v432
      %v1750 = vpop.f32.mrf.mxu0
      %v1751 = vadd.f32 0.0, %v1750
      %1752 = vmatmul.f32.gmra.mxu0 %v434
      %v1753 = vpop.f32.mrf.mxu0
      %v1754 = vadd.f32 0.0, %v1753
      %1755 = vmatmul.f32.gmra.mxu0 %v436
      %v1756 = vpop.f32.mrf.mxu0
      %v1757 = vadd.f32 0.0, %v1756
      %1758 = vmatmul.f32.gmra.mxu0 %v438
      %v1759 = vpop.f32.mrf.mxu0
      %v1760 = vadd.f32 0.0, %v1759
      %1761 = vmatmul.f32.gmra.mxu0 %v440
      %v1762 = vpop.f32.mrf.mxu0
      %v1763 = vadd.f32 0.0, %v1762
      %1764 = vmatmul.f32.gmra.mxu0 %v442
      %v1765 = vpop.f32.mrf.mxu0
      %v1766 = vadd.f32 0.0, %v1765
      %1767 = vmatmul.f32.gmra.mxu0 %v444
      %v1768 = vpop.f32.mrf.mxu0
      %v1769 = vadd.f32 0.0, %v1768
      %1770 = vmatmul.f32.gmra.mxu0 %v446
      %v1771 = vpop.f32.mrf.mxu0
      %v1772 = vadd.f32 0.0, %v1771
      %1773 = vmatmul.f32.gmra.mxu0 %v448
      %v1774 = vpop.f32.mrf.mxu0
      %v1775 = vadd.f32 0.0, %v1774
      %1776 = vmatmul.f32.gmra.mxu0 %v450
      %v1777 = vpop.f32.mrf.mxu0
      %v1778 = vadd.f32 0.0, %v1777
      %1779 = vmatmul.f32.gmra.mxu0 %v452
      %v1780 = vpop.f32.mrf.mxu0
      %v1781 = vadd.f32 0.0, %v1780
      %1782 = vmatmul.f32.gmra.mxu0 %v454
      %v1783 = vpop.f32.mrf.mxu0
      %v1784 = vadd.f32 0.0, %v1783
      %1785 = vmatmul.f32.gmra.mxu0 %v456
      %v1786 = vpop.f32.mrf.mxu0
      %v1787 = vadd.f32 0.0, %v1786
      %1788 = vmatmul.f32.gmra.mxu0 %v458
      %v1789 = vpop.f32.mrf.mxu0
      %v1790 = vadd.f32 0.0, %v1789
      %1791 = vmatmul.f32.gmra.mxu0 %v1212
      %v1792 = vpop.f32.mrf.mxu0
      %v1793 = vadd.f32 0.0, %v1792
      %1794 = vmatmul.f32.gmra.mxu0 %v1214
      %v1795 = vpop.f32.mrf.mxu0
      %v1796 = vadd.f32 0.0, %v1795
      %1797 = vmatmul.f32.gmra.mxu0 %v1687
      %v1798 = vpop.f32.mrf.mxu0
      %v1799 = vadd.f32 0.0, %v1798
      %1800 = vmatmul.f32.gmra.mxu0 %v1689
      %v1801 = vpop.f32.mrf.mxu0
      %v1802 = vadd.f32 0.0, %v1801
      %1803 = vdwg.mxu0
      %v1804 = vadd.f32 %v1644, %v1709
      %v1805 = vadd.f32 %v1645, %v1712
      %v1806 = vadd.f32 %v1646, %v1715
      %v1807 = vadd.f32 %v1647, %v1718
      %v1808 = vadd.f32 %v1648, %v1721
      %v1809 = vadd.f32 %v1649, %v1724
      %v1810 = vadd.f32 %v1650, %v1727
      %v1811 = vadd.f32 %v1651, %v1730
      %v1812 = vadd.f32 %v1652, %v1733
      %v1813 = vadd.f32 %v1653, %v1736
      %v1814 = vadd.f32 %v1654, %v1739
      %v1815 = vadd.f32 %v1655, %v1742
      %v1816 = vadd.f32 %v1656, %v1745
      %v1817 = vadd.f32 %v1657, %v1748
      %v1818 = vadd.f32 %v1658, %v1751
      %v1819 = vadd.f32 %v1659, %v1754
      %v1820 = vadd.f32 %v1660, %v1757
      %v1821 = vadd.f32 %v1661, %v1760
      %v1822 = vadd.f32 %v1662, %v1763
      %v1823 = vadd.f32 %v1663, %v1766
      %v1824 = vadd.f32 %v1664, %v1769
      %v1825 = vadd.f32 %v1665, %v1772
      %v1826 = vadd.f32 %v1666, %v1775
      %v1827 = vadd.f32 %v1667, %v1778
      %v1828 = vadd.f32 %v1668, %v1781
      %v1829 = vadd.f32 %v1669, %v1784
      %v1830 = vadd.f32 %v1670, %v1787
      %v1831 = vadd.f32 %v1671, %v1790
      %v1832 = vadd.f32 %v1672, %v1793
      %v1833 = vadd.f32 %v1673, %v1796
      %v1834 = vadd.f32 %v1674, %v1799
      %v1835 = vadd.f32 %v1675, %v1802
      %v1836 = vrot.slane %v254, 2
      %v1837 = vrot.slane %v255, 2
      %v1838 = vsel %vm750, %v1836, %v1837
      %v1839 = vrot.slane %v256, 2
      %v1840 = vsel %vm750, %v1837, %v1839
      %s1841 = scalar_lea.vmem %s1, 256
      %v1842 = vld [vmem:[%s1841] sm:$0xff]
      %v1843 = vld [vmem:[%s1841 + $0x8] sm:$0xff]
      %v1844 = vld [vmem:[%s1841 + $0x10] sm:$0xff]
      %v1845 = vld [vmem:[%s1841 + $0x18] sm:$0xff]
      %v1846 = vsel %vm395, %v1838, 0
      %v1848 = vsel %vm395, %v1840, 0
      %1850 = vmatpush.msra.mxu0 0.0
      %1851 = vmatpush.msra.mxu0 0.0
      %1852 = vmatpush.msra.mxu0 0.0
      %1853 = vmatpush.msra.mxu0 0.0
      %1854 = vmatpush.msra.mxu0 0.0
      %1855 = vmatpush.msra.mxu0 0.0
      %1856 = vmatpush.msra.mxu0 0.0
      %1857 = vmatpush.msra.mxu0 0.0
      %1858 = vmatpush.msra.mxu0 0.0
      %1859 = vmatpush.msra.mxu0 0.0
      %1860 = vmatpush.msra.mxu0 0.0
      %1861 = vmatpush.msra.mxu0 0.0
      %1862 = vmatpush.msra.mxu0 %v1845
      %1863 = vmatpush.msra.mxu0 %v1844
      %1864 = vmatpush.msra.mxu0 %v1843
      %1865 = vmatpush.msra.mxu0 %v1842
      %1866 = vmatmul.f32.gmra.mxu0 %v844
      %v1867 = vpop.f32.mrf.mxu0
      %v1868 = vadd.f32 0.0, %v1867
      %1869 = vmatmul.f32.gmra.mxu0 %v846
      %v1870 = vpop.f32.mrf.mxu0
      %v1871 = vadd.f32 0.0, %v1870
      %1872 = vmatmul.f32.gmra.mxu0 %v848
      %v1873 = vpop.f32.mrf.mxu0
      %v1874 = vadd.f32 0.0, %v1873
      %1875 = vmatmul.f32.gmra.mxu0 %v850
      %v1876 = vpop.f32.mrf.mxu0
      %v1877 = vadd.f32 0.0, %v1876
      %1878 = vmatmul.f32.gmra.mxu0 %v852
      %v1879 = vpop.f32.mrf.mxu0
      %v1880 = vadd.f32 0.0, %v1879
      %1881 = vmatmul.f32.gmra.mxu0 %v854
      %v1882 = vpop.f32.mrf.mxu0
      %v1883 = vadd.f32 0.0, %v1882
      %1884 = vmatmul.f32.gmra.mxu0 %v856
      %v1885 = vpop.f32.mrf.mxu0
      %v1886 = vadd.f32 0.0, %v1885
      %1887 = vmatmul.f32.gmra.mxu0 %v858
      %v1888 = vpop.f32.mrf.mxu0
      %v1889 = vadd.f32 0.0, %v1888
      %1890 = vmatmul.f32.gmra.mxu0 %v860
      %v1891 = vpop.f32.mrf.mxu0
      %v1892 = vadd.f32 0.0, %v1891
      %1893 = vmatmul.f32.gmra.mxu0 %v862
      %v1894 = vpop.f32.mrf.mxu0
      %v1895 = vadd.f32 0.0, %v1894
      %1896 = vmatmul.f32.gmra.mxu0 %v864
      %v1897 = vpop.f32.mrf.mxu0
      %v1898 = vadd.f32 0.0, %v1897
      %1899 = vmatmul.f32.gmra.mxu0 %v866
      %v1900 = vpop.f32.mrf.mxu0
      %v1901 = vadd.f32 0.0, %v1900
      %1902 = vmatmul.f32.gmra.mxu0 %v868
      %v1903 = vpop.f32.mrf.mxu0
      %v1904 = vadd.f32 0.0, %v1903
      %1905 = vmatmul.f32.gmra.mxu0 %v870
      %v1906 = vpop.f32.mrf.mxu0
      %v1907 = vadd.f32 0.0, %v1906
      %1908 = vmatmul.f32.gmra.mxu0 %v872
      %v1909 = vpop.f32.mrf.mxu0
      %v1910 = vadd.f32 0.0, %v1909
      %1911 = vmatmul.f32.gmra.mxu0 %v874
      %v1912 = vpop.f32.mrf.mxu0
      %v1913 = vadd.f32 0.0, %v1912
      %1914 = vmatmul.f32.gmra.mxu0 %v876
      %v1915 = vpop.f32.mrf.mxu0
      %v1916 = vadd.f32 0.0, %v1915
      %1917 = vmatmul.f32.gmra.mxu0 %v878
      %v1918 = vpop.f32.mrf.mxu0
      %v1919 = vadd.f32 0.0, %v1918
      %1920 = vmatmul.f32.gmra.mxu0 %v880
      %v1921 = vpop.f32.mrf.mxu0
      %v1922 = vadd.f32 0.0, %v1921
      %1923 = vmatmul.f32.gmra.mxu0 %v882
      %v1924 = vpop.f32.mrf.mxu0
      %v1925 = vadd.f32 0.0, %v1924
      %1926 = vmatmul.f32.gmra.mxu0 %v884
      %v1927 = vpop.f32.mrf.mxu0
      %v1928 = vadd.f32 0.0, %v1927
      %1929 = vmatmul.f32.gmra.mxu0 %v886
      %v1930 = vpop.f32.mrf.mxu0
      %v1931 = vadd.f32 0.0, %v1930
      %1932 = vmatmul.f32.gmra.mxu0 %v888
      %v1933 = vpop.f32.mrf.mxu0
      %v1934 = vadd.f32 0.0, %v1933
      %1935 = vmatmul.f32.gmra.mxu0 %v890
      %v1936 = vpop.f32.mrf.mxu0
      %v1937 = vadd.f32 0.0, %v1936
      %1938 = vmatmul.f32.gmra.mxu0 %v892
      %v1939 = vpop.f32.mrf.mxu0
      %v1940 = vadd.f32 0.0, %v1939
      %1941 = vmatmul.f32.gmra.mxu0 %v894
      %v1942 = vpop.f32.mrf.mxu0
      %v1943 = vadd.f32 0.0, %v1942
      %1944 = vmatmul.f32.gmra.mxu0 %v896
      %v1945 = vpop.f32.mrf.mxu0
      %v1946 = vadd.f32 0.0, %v1945
      %1947 = vmatmul.f32.gmra.mxu0 %v898
      %v1948 = vpop.f32.mrf.mxu0
      %v1949 = vadd.f32 0.0, %v1948
      %1950 = vmatmul.f32.gmra.mxu0 %v1371
      %v1951 = vpop.f32.mrf.mxu0
      %v1952 = vadd.f32 0.0, %v1951
      %1953 = vmatmul.f32.gmra.mxu0 %v1373
      %v1954 = vpop.f32.mrf.mxu0
      %v1955 = vadd.f32 0.0, %v1954
      %1956 = vmatmul.f32.gmra.mxu0 %v1846
      %v1957 = vpop.f32.mrf.mxu0
      %v1958 = vadd.f32 0.0, %v1957
      %1959 = vmatmul.f32.gmra.mxu0 %v1848
      %v1960 = vpop.f32.mrf.mxu0
      %v1961 = vadd.f32 0.0, %v1960
      %1962 = vdwg.mxu0
      %v1963 = vadd.f32 %v1804, %v1868
      %v1964 = vadd.f32 %v1805, %v1871
      %v1965 = vadd.f32 %v1806, %v1874
      %v1966 = vadd.f32 %v1807, %v1877
      %v1967 = vadd.f32 %v1808, %v1880
      %v1968 = vadd.f32 %v1809, %v1883
      %v1969 = vadd.f32 %v1810, %v1886
      %v1970 = vadd.f32 %v1811, %v1889
      %v1971 = vadd.f32 %v1812, %v1892
      %v1972 = vadd.f32 %v1813, %v1895
      %v1973 = vadd.f32 %v1814, %v1898
      %v1974 = vadd.f32 %v1815, %v1901
      %v1975 = vadd.f32 %v1816, %v1904
      %v1976 = vadd.f32 %v1817, %v1907
      %v1977 = vadd.f32 %v1818, %v1910
      %v1978 = vadd.f32 %v1819, %v1913
      %v1979 = vadd.f32 %v1820, %v1916
      %v1980 = vadd.f32 %v1821, %v1919
      %v1981 = vadd.f32 %v1822, %v1922
      %v1982 = vadd.f32 %v1823, %v1925
      %v1983 = vadd.f32 %v1824, %v1928
      %v1984 = vadd.f32 %v1825, %v1931
      %v1985 = vadd.f32 %v1826, %v1934
      %v1986 = vadd.f32 %v1827, %v1937
      %v1987 = vadd.f32 %v1828, %v1940
      %v1988 = vadd.f32 %v1829, %v1943
      %v1989 = vadd.f32 %v1830, %v1946
      %v1990 = vadd.f32 %v1831, %v1949
      %v1991 = vadd.f32 %v1832, %v1952
      %v1992 = vadd.f32 %v1833, %v1955
      %v1993 = vadd.f32 %v1834, %v1958
      %v1994 = vadd.f32 %v1835, %v1961
      %v1995 = vld [vmem:[%s2] sm:$0x1]
      %v1997 = vperm.slane %v1995, 0
      %v1999 = vadd.f32 %v1963, %v1997
      %v2000 = vadd.f32 %v1964, %v1997
      %v2001 = vadd.f32 %v1965, %v1997
      %v2002 = vadd.f32 %v1966, %v1997
      %v2003 = vadd.f32 %v1967, %v1997
      %v2004 = vadd.f32 %v1968, %v1997
      %v2005 = vadd.f32 %v1969, %v1997
      %v2006 = vadd.f32 %v1970, %v1997
      %v2007 = vadd.f32 %v1971, %v1997
      %v2008 = vadd.f32 %v1972, %v1997
      %v2009 = vadd.f32 %v1973, %v1997
      %v2010 = vadd.f32 %v1974, %v1997
      %v2011 = vadd.f32 %v1975, %v1997
      %v2012 = vadd.f32 %v1976, %v1997
      %v2013 = vadd.f32 %v1977, %v1997
      %v2014 = vadd.f32 %v1978, %v1997
      %v2015 = vadd.f32 %v1979, %v1997
      %v2016 = vadd.f32 %v1980, %v1997
      %v2017 = vadd.f32 %v1981, %v1997
      %v2018 = vadd.f32 %v1982, %v1997
      %v2019 = vadd.f32 %v1983, %v1997
      %v2020 = vadd.f32 %v1984, %v1997
      %v2021 = vadd.f32 %v1985, %v1997
      %v2022 = vadd.f32 %v1986, %v1997
      %v2023 = vadd.f32 %v1987, %v1997
      %v2024 = vadd.f32 %v1988, %v1997
      %v2025 = vadd.f32 %v1989, %v1997
      %v2026 = vadd.f32 %v1990, %v1997
      %v2027 = vadd.f32 %v1991, %v1997
      %v2028 = vadd.f32 %v1992, %v1997
      %v2029 = vadd.f32 %v1993, %v1997
      %v2030 = vadd.f32 %v1994, %v1997
      %2031 = vst.msk [vmem:[%s201] sm:$0xff] %vm395, %v1999
      %2032 = vst.msk [vmem:[%s201 + $0x8] sm:$0xff] %vm395, %v2000
      %2033 = vst.msk [vmem:[%s201 + $0x10] sm:$0xff] %vm395, %v2001
      %2034 = vst.msk [vmem:[%s201 + $0x18] sm:$0xff] %vm395, %v2002
      %2035 = vst.msk [vmem:[%s201 + $0x20] sm:$0xff] %vm395, %v2003
      %2036 = vst.msk [vmem:[%s201 + $0x28] sm:$0xff] %vm395, %v2004
      %2037 = vst.msk [vmem:[%s201 + $0x30] sm:$0xff] %vm395, %v2005
      %2038 = vst.msk [vmem:[%s201 + $0x38] sm:$0xff] %vm395, %v2006
      %2039 = vst.msk [vmem:[%s201 + $0x40] sm:$0xff] %vm395, %v2007
      %2040 = vst.msk [vmem:[%s201 + $0x48] sm:$0xff] %vm395, %v2008
      %2041 = vst.msk [vmem:[%s201 + $0x50] sm:$0xff] %vm395, %v2009
      %2042 = vst.msk [vmem:[%s201 + $0x58] sm:$0xff] %vm395, %v2010
      %2043 = vst.msk [vmem:[%s201 + $0x60] sm:$0xff] %vm395, %v2011
      %2044 = vst.msk [vmem:[%s201 + $0x68] sm:$0xff] %vm395, %v2012
      %2045 = vst.msk [vmem:[%s201 + $0x70] sm:$0xff] %vm395, %v2013
      %2046 = vst.msk [vmem:[%s201 + $0x78] sm:$0xff] %vm395, %v2014
      %2047 = vst.msk [vmem:[%s201 + $0x80] sm:$0xff] %vm395, %v2015
      %2048 = vst.msk [vmem:[%s201 + $0x88] sm:$0xff] %vm395, %v2016
      %2049 = vst.msk [vmem:[%s201 + $0x90] sm:$0xff] %vm395, %v2017
      %2050 = vst.msk [vmem:[%s201 + $0x98] sm:$0xff] %vm395, %v2018
      %2051 = vst.msk [vmem:[%s201 + $0xa0] sm:$0xff] %vm395, %v2019
      %2052 = vst.msk [vmem:[%s201 + $0xa8] sm:$0xff] %vm395, %v2020
      %2053 = vst.msk [vmem:[%s201 + $0xb0] sm:$0xff] %vm395, %v2021
      %2054 = vst.msk [vmem:[%s201 + $0xb8] sm:$0xff] %vm395, %v2022
      %2055 = vst.msk [vmem:[%s201 + $0xc0] sm:$0xff] %vm395, %v2023
      %2056 = vst.msk [vmem:[%s201 + $0xc8] sm:$0xff] %vm395, %v2024
      %2057 = vst.msk [vmem:[%s201 + $0xd0] sm:$0xff] %vm395, %v2025
      %2058 = vst.msk [vmem:[%s201 + $0xd8] sm:$0xff] %vm395, %v2026
      %2059 = vst.msk [vmem:[%s201 + $0xe0] sm:$0xff] %vm395, %v2027
      %2060 = vst.msk [vmem:[%s201 + $0xe8] sm:$0xff] %vm395, %v2028
      %2061 = vst.msk [vmem:[%s201 + $0xf0] sm:$0xff] %vm395, %v2029
      %2062 = vst.msk [vmem:[%s201 + $0xf8] sm:$0xff] %vm395, %v2030
      %s2063 = smul.u32 16, %s19
      %p2064 = scmp.lt.s32.totalorder %s18, 1
      %s2065 = scalar_select %p2064, %s18, 1
      %p2066 = scmp.lt.s32.totalorder %s2063, 15
      %s2067 = scalar_select %p2066, %s2063, 15
      %s2068 = smul.addr %s2067, 2
      %s2069 = smul.addr %s2065, 32
      %s2070 = sadd.s32 %s2068, %s2069
      %s2071 = smul.addr %s2070, 8
      %s2072 = scalar_lea.vmem %s3, %s2071
      // Predicated region
      $region33: #{skip_forward.5} parent=31 // pred_check
        %p2073 = pneg %p116
      $region34: #{skip_forward.5} parent=31 // pred_check_branch
        %2075 = sbr.rel (%p2073) target = $region36
      $region35: #{skip_forward.5} parent=31 // pred_region
        %s2076 = smul.u32 16, %s19
      $region36: #{skip_forward.5} parent=31 // pred_fallthru
        _
    $region32: #{skip_forward.5} parent=5 // pred_fallthru
      _
    %p2077 = scmp.le.s32.totalorder 2, %s9
    // Predicated region
    $region37: #{skip_forward.5} parent=5 // pred_check
      %p2078 = pneg %p2077
    $region38: #{skip_forward.5} parent=5 // pred_check_branch
      %2080 = sbr.rel (%p2078) target = $region40
    $region39: #{skip_forward.5} parent=5 // pred_region
      %s2081 = ssub.s32 %s9, 2
      // Predicated region
      $region41: #{skip_forward.5} parent=39 // pred_check
        %p2082 = pneg %p122
      $region42: #{skip_forward.5} parent=39 // pred_check_branch
        %2084 = sbr.rel (%p2082) target = $region44
      $region43: #{skip_forward.5} parent=39 // pred_region
        %s2085 = smul.u32 16, %s21
        %p2086 = scmp.lt.s32.totalorder %s20, 1
        %s2087 = scalar_select %p2086, %s20, 1
        %p2088 = scmp.lt.s32.totalorder %s2085, 15
        %s2089 = scalar_select %p2088, %s2085, 15
        %s2090 = smul.addr %s2089, 2
        %s2091 = smul.addr %s2087, 32
        %s2092 = sadd.s32 %s2090, %s2091
        %s2093 = smul.addr %s2092, 8
        %s2094 = scalar_lea.vmem %s3, %s2093
      $region44: #{skip_forward.5} parent=39 // pred_fallthru
        _
    $region40: #{skip_forward.5} parent=5 // pred_fallthru
      _
  $region6: #{skip_forward.5} parent=0 // loop_footer
    %s13 = sadd.s32 1, %s9
  $region7: #{skip_forward.5} parent=0 // loop_footer_branch
    %8 = sbr.rel target = $region3
  $region8: #{skip_forward.5} parent=0 // loop_exit
    _

// kernel: skip_forward.4
$region0: #{skip_forward.4}
  #allocation0 [shape = 'u32[]', space=smem, size = 0x4, offset = 0x4, fixed_abs, tag = 'smem constant byte address 0x4 - core index']
  #allocation1 [shape = 'u32[72,128]{1,0:T(1,128)}', space=vmem, size = 0x9000, scoped, tag = 'internal scratch']
  %s0 = inlined_call_operand.vmem [shape: f32[2,18,18,4], index: 0, kind: input, shape index: {}]
  %s1 = inlined_call_operand.vmem [shape: f32[2,16,16,4], index: 1, kind: input, shape index: {}]
  %s2 = inlined_call_operand.vmem [shape: f32[16,16,32], index: 2, kind: input, shape index: {}]
  %s3 = inlined_call_operand.vmem [shape: f32[9,4,32], index: 3, kind: input, shape index: {}]
  %s4 = inlined_call_operand.vmem [shape: f32[4,32], index: 4, kind: input, shape index: {}]
  %s5 = inlined_call_operand.vmem [shape: f32[1,32], index: 5, kind: input, shape index: {}]
  %s6 = inlined_call_operand.vmem [shape: f32[2,16,16,32], index: 6, kind: output, shape index: {}]
  %s7 = sld [smem:[#allocation0]]
  $region57: #{skip_forward.4} parent=0
    _
  %s9 = ssub.s32 1, %s7
  %s10 = scalar_select 0, %s9, %s7
  loop: start=0, step=1, limit=4
  $region2: #{skip_forward.4} parent=0 // loop_pre_header
    _
  $region3: #{skip_forward.4} parent=0 // loop_header
    %s12 = sphi 0, %s16
    %p13 = scmp.ge.s32.totalorder %s12, 4
    %s19 = sphi 0, %s31
    %s20 = sphi 0, %s27
    %s21 = sphi 0, %s19
    %s22 = sphi 0, %s20
    %s23 = sphi 0, %s21
    %s24 = sphi 0, %s22
    %s36 = sphi 0, %s38
    %s39 = sphi 0, %s36
    %s40 = sphi 0, %s39
    %s56 = sphi 0, %s40
    %s64 = sphi 0, %s66
    %s67 = sphi 0, %s64
    %s68 = sphi 0, %s67
    %s84 = sphi 0, %s68
    %s90 = sphi 0, %s92
    %s93 = sphi 0, %s90
    %s94 = sphi 0, %s93
    %s110 = sphi 0, %s94
    %s114 = sphi 0, %s114
    %s116 = sphi 0, %s114
    %s117 = sphi 0, %s116
    %s131 = sphi 0, %s117
    %s135 = sphi 0, %s135
    %s137 = sphi 0, %s135
    %s138 = sphi 0, %s137
    %s152 = sphi 0, %s138
    %s156 = sphi 0, %s156
    %s158 = sphi 0, %s156
    %s159 = sphi 0, %s158
    %s173 = sphi 0, %s159
    %s181 = sphi 0, %s183
    %s184 = sphi 0, %s181
    %s185 = sphi 0, %s184
    %s201 = sphi 0, %s185
  $region4: #{skip_forward.4} parent=0 // loop_header_branch
    %15 = sbr.rel (%p13) target = $region8
  $region5: #{skip_forward.4} parent=0 // loop_body
    %s17 = ssub.s32 %s12, 1
    %s18 = ssub.s32 %s12, 2
    %s25 = sadd.s32 1, %s20
    %p26 = scmp.ge.s32.totalorder %s25, 1
    %s27 = scalar_select %p26, 0, %s25
    %s28 = sadd.s32 1, %s19
    %s29 = scalar_select %p26, %s28, %s19
    %p30 = scmp.ge.s32.totalorder %s29, 2
    %s31 = scalar_select %p30, 0, %s29
    %s32 = sadd.s32 %s19, %s20
    %s33 = sadd.s32 %s31, %s27
    %s34 = ssub.s32 %s32, %s33
    %p35 = scmp.eq.s32.totalorder %s34, 0
    %s37 = sadd.s32 %s36, 1
    %s38 = scalar_select %p35, %s36, %s37
    %p41 = pneg %p35
    %p42 = scmp.eq.s32.totalorder %s12, 1
    %p43 = por %p41, %p42
    %p44 = scmp.ne.s32.totalorder %s36, %s39
    %p45 = scmp.eq.s32.totalorder %s12, 0
    %p46 = por %p44, %p45
    %p47 = scmp.ne.s32.totalorder %s36, %s39
    %p48 = scmp.eq.s32.totalorder %s17, 1
    %p49 = por %p47, %p48
    %p50 = scmp.ne.s32.totalorder %s39, %s40
    %p51 = scmp.eq.s32.totalorder %s17, 0
    %p52 = por %p50, %p51
    %p53 = scmp.ne.s32.totalorder %s39, %s40
    %p54 = scmp.eq.s32.totalorder %s18, 1
    %p55 = por %p53, %p54
    %p57 = scmp.ne.s32.totalorder %s40, %s56
    %p58 = scmp.eq.s32.totalorder %s18, 0
    %p59 = por %p57, %p58
    %s60 = ssub.s32 %s19, %s31
    %s61 = ssub.s32 %s20, %s27
    %s62 = sor.u32 %s60, %s61
    %p63 = scmp.eq.s32.totalorder %s62, 0
    %s65 = sadd.s32 %s64, 1
    %s66 = scalar_select %p63, %s64, %s65
    %p69 = pneg %p63
    %p70 = scmp.eq.s32.totalorder %s12, 1
    %p71 = por %p69, %p70
    %p72 = scmp.ne.s32.totalorder %s64, %s67
    %p73 = scmp.eq.s32.totalorder %s12, 0
    %p74 = por %p72, %p73
    %p75 = scmp.ne.s32.totalorder %s64, %s67
    %p76 = scmp.eq.s32.totalorder %s17, 1
    %p77 = por %p75, %p76
    %p78 = scmp.ne.s32.totalorder %s67, %s68
    %p79 = scmp.eq.s32.totalorder %s17, 0
    %p80 = por %p78, %p79
    %p81 = scmp.ne.s32.totalorder %s67, %s68
    %p82 = scmp.eq.s32.totalorder %s18, 1
    %p83 = por %p81, %p82
    %p85 = scmp.ne.s32.totalorder %s68, %s84
    %p86 = scmp.eq.s32.totalorder %s18, 0
    %p87 = por %p85, %p86
    %s88 = ssub.s32 %s20, %s27
    %p89 = scmp.eq.s32.totalorder %s88, 0
    %s91 = sadd.s32 %s90, 1
    %s92 = scalar_select %p89, %s90, %s91
    %p95 = pneg %p89
    %p96 = scmp.eq.s32.totalorder %s12, 1
    %p97 = por %p95, %p96
    %p98 = scmp.ne.s32.totalorder %s90, %s93
    %p99 = scmp.eq.s32.totalorder %s12, 0
    %p100 = por %p98, %p99
    %p101 = scmp.ne.s32.totalorder %s90, %s93
    %p102 = scmp.eq.s32.totalorder %s17, 1
    %p103 = por %p101, %p102
    %p104 = scmp.ne.s32.totalorder %s93, %s94
    %p105 = scmp.eq.s32.totalorder %s17, 0
    %p106 = por %p104, %p105
    %p107 = scmp.ne.s32.totalorder %s93, %s94
    %p108 = scmp.eq.s32.totalorder %s18, 1
    %p109 = por %p107, %p108
    %p111 = scmp.ne.s32.totalorder %s94, %s110
    %p112 = scmp.eq.s32.totalorder %s18, 0
    %p113 = por %p111, %p112
    %s115 = sadd.s32 %s114, 1
    %p118 = scmp.eq.s32.totalorder %s12, 1
    %p119 = scmp.ne.s32.totalorder %s114, %s116
    %p120 = scmp.eq.s32.totalorder %s12, 0
    %p121 = por %p119, %p120
    %p122 = scmp.ne.s32.totalorder %s114, %s116
    %p123 = scmp.eq.s32.totalorder %s17, 1
    %p124 = por %p122, %p123
    %p125 = scmp.ne.s32.totalorder %s116, %s117
    %p126 = scmp.eq.s32.totalorder %s17, 0
    %p127 = por %p125, %p126
    %p128 = scmp.ne.s32.totalorder %s116, %s117
    %p129 = scmp.eq.s32.totalorder %s18, 1
    %p130 = por %p128, %p129
    %p132 = scmp.ne.s32.totalorder %s117, %s131
    %p133 = scmp.eq.s32.totalorder %s18, 0
    %p134 = por %p132, %p133
    %s136 = sadd.s32 %s135, 1
    %p139 = scmp.eq.s32.totalorder %s12, 1
    %p140 = scmp.ne.s32.totalorder %s135, %s137
    %p141 = scmp.eq.s32.totalorder %s12, 0
    %p142 = por %p140, %p141
    %p143 = scmp.ne.s32.totalorder %s135, %s137
    %p144 = scmp.eq.s32.totalorder %s17, 1
    %p145 = por %p143, %p144
    %p146 = scmp.ne.s32.totalorder %s137, %s138
    %p147 = scmp.eq.s32.totalorder %s17, 0
    %p148 = por %p146, %p147
    %p149 = scmp.ne.s32.totalorder %s137, %s138
    %p150 = scmp.eq.s32.totalorder %s18, 1
    %p151 = por %p149, %p150
    %p153 = scmp.ne.s32.totalorder %s138, %s152
    %p154 = scmp.eq.s32.totalorder %s18, 0
    %p155 = por %p153, %p154
    %s157 = sadd.s32 %s156, 1
    %p160 = scmp.eq.s32.totalorder %s12, 1
    %p161 = scmp.ne.s32.totalorder %s156, %s158
    %p162 = scmp.eq.s32.totalorder %s12, 0
    %p163 = por %p161, %p162
    %p164 = scmp.ne.s32.totalorder %s156, %s158
    %p165 = scmp.eq.s32.totalorder %s17, 1
    %p166 = por %p164, %p165
    %p167 = scmp.ne.s32.totalorder %s158, %s159
    %p168 = scmp.eq.s32.totalorder %s17, 0
    %p169 = por %p167, %p168
    %p170 = scmp.ne.s32.totalorder %s158, %s159
    %p171 = scmp.eq.s32.totalorder %s18, 1
    %p172 = por %p170, %p171
    %p174 = scmp.ne.s32.totalorder %s159, %s173
    %p175 = scmp.eq.s32.totalorder %s18, 0
    %p176 = por %p174, %p175
    %s177 = ssub.s32 %s19, %s31
    %s178 = ssub.s32 %s20, %s27
    %s179 = sor.u32 %s177, %s178
    %p180 = scmp.eq.s32.totalorder %s179, 0
    %s182 = sadd.s32 %s181, 1
    %s183 = scalar_select %p180, %s181, %s182
    %p186 = pneg %p180
    %p187 = scmp.eq.s32.totalorder %s12, 1
    %p188 = por %p186, %p187
    %p189 = scmp.ne.s32.totalorder %s181, %s184
    %p190 = scmp.eq.s32.totalorder %s12, 0
    %p191 = por %p189, %p190
    %p192 = scmp.ne.s32.totalorder %s181, %s184
    %p193 = scmp.eq.s32.totalorder %s17, 1
    %p194 = por %p192, %p193
    %p195 = scmp.ne.s32.totalorder %s184, %s185
    %p196 = scmp.eq.s32.totalorder %s17, 0
    %p197 = por %p195, %p196
    %p198 = scmp.ne.s32.totalorder %s184, %s185
    %p199 = scmp.eq.s32.totalorder %s18, 1
    %p200 = por %p198, %p199
    %p202 = scmp.ne.s32.totalorder %s185, %s201
    %p203 = scmp.eq.s32.totalorder %s18, 0
    %p204 = por %p202, %p203
    %p205 = scmp.le.s32.totalorder 1, %s12
    %p206 = scmp.lt.s32.totalorder %s12, 3
    %p207 = pnand %p205, %p206
    %p208 = pneg %p207
    // Predicated region
    $region9: #{skip_forward.4} parent=5 // pred_check
      _
    $region10: #{skip_forward.4} parent=5 // pred_check_branch
      %210 = sbr.rel (%p207) target = $region12
    $region11: #{skip_forward.4} parent=5 // pred_region
      %s211 = ssub.s32 %s12, 1
      // Predicated region
      $region13: #{skip_forward.4} parent=11 // pred_check
        %p212 = pneg %p106
      $region14: #{skip_forward.4} parent=11 // pred_check_branch
        %214 = sbr.rel (%p212) target = $region16
      $region15: #{skip_forward.4} parent=11 // pred_region
        %s215 = smul.u32 16, %s22
        %p216 = scmp.lt.s32.totalorder %s215, 15
        %s217 = scalar_select %p216, %s215, 15
        %s218 = smul.addr %s217, 2
        %s219 = smul.addr %s218, 8
        %s220 = scalar_lea.vmem %s2, %s219
        %s221 = smul.u32 16, %s22
      $region16: #{skip_forward.4} parent=11 // pred_fallthru
        _
      // Predicated region
      $region17: #{skip_forward.4} parent=11 // pred_check
        %p222 = pneg %p127
      $region18: #{skip_forward.4} parent=11 // pred_check_branch
        %224 = sbr.rel (%p222) target = $region20
      $region19: #{skip_forward.4} parent=11 // pred_region
        _
      $region20: #{skip_forward.4} parent=11 // pred_fallthru
        _
      // Predicated region
      $region21: #{skip_forward.4} parent=11 // pred_check
        %p225 = pneg %p148
      $region22: #{skip_forward.4} parent=11 // pred_check_branch
        %227 = sbr.rel (%p225) target = $region24
      $region23: #{skip_forward.4} parent=11 // pred_region
        _
      $region24: #{skip_forward.4} parent=11 // pred_fallthru
        _
      // Predicated region
      $region25: #{skip_forward.4} parent=11 // pred_check
        %p228 = pneg %p169
      $region26: #{skip_forward.4} parent=11 // pred_check_branch
        %230 = sbr.rel (%p228) target = $region28
      $region27: #{skip_forward.4} parent=11 // pred_region
        _
      $region28: #{skip_forward.4} parent=11 // pred_fallthru
        _
    $region12: #{skip_forward.4} parent=5 // pred_fallthru
      _
    %p231 = scmp.lt.s32.totalorder %s12, 2
    // Predicated region
    $region29: #{skip_forward.4} parent=5 // pred_check
      %p232 = pneg %p231
    $region30: #{skip_forward.4} parent=5 // pred_check_branch
      %234 = sbr.rel (%p232) target = $region32
    $region31: #{skip_forward.4} parent=5 // pred_region
      // Predicated region
      $region33: #{skip_forward.4} parent=31 // pred_check
        %p235 = pneg %p46
      $region34: #{skip_forward.4} parent=31 // pred_check_branch
        %237 = sbr.rel (%p235) target = $region36
      $region35: #{skip_forward.4} parent=31 // pred_region
        %s238 = sadd.s32 %s19, %s20
        %p239 = scmp.lt.s32.totalorder %s238, 1
        %s240 = scalar_select %p239, %s238, 1
        %s241 = smul.addr %s240, 54
        %s242 = smul.addr %s241, 8
        %s243 = scalar_lea.vmem %s0, %s242
        %s244 = sadd.s32 %s19, %s20
      $region36: #{skip_forward.4} parent=31 // pred_fallthru
        _
      // Predicated region
      $region37: #{skip_forward.4} parent=31 // pred_check
        %p245 = pneg %p74
      $region38: #{skip_forward.4} parent=31 // pred_check_branch
        %247 = sbr.rel (%p245) target = $region40
      $region39: #{skip_forward.4} parent=31 // pred_region
        %s248 = smul.u32 16, %s20
        %p249 = scmp.lt.s32.totalorder %s19, 1
        %s250 = scalar_select %p249, %s19, 1
        %p251 = scmp.lt.s32.totalorder %s248, 15
        %s252 = scalar_select %p251, %s248, 15
        %s253 = smul.addr %s252, 2
        %s254 = smul.addr %s250, 32
        %s255 = sadd.s32 %s253, %s254
        %s256 = smul.addr %s255, 8
        %s257 = scalar_lea.vmem %s1, %s256
        %s258 = smul.u32 16, %s20
      $region40: #{skip_forward.4} parent=31 // pred_fallthru
        _
    $region32: #{skip_forward.4} parent=5 // pred_fallthru
      _
    %p259 = scmp.le.s32.totalorder 1, %s12
    %p260 = scmp.lt.s32.totalorder %s12, 3
    %p261 = pnand %p259, %p260
    %p262 = pneg %p261
    // Predicated region
    $region41: #{skip_forward.4} parent=5 // pred_check
      _
    $region42: #{skip_forward.4} parent=5 // pred_check_branch
      %264 = sbr.rel (%p261) target = $region44
    $region43: #{skip_forward.4} parent=5 // pred_region
      %s265 = ssub.s32 %s12, 1
      %s266 = sadd.s32 %s21, %s22
      %p267 = scmp.lt.s32.totalorder %s266, 1
      %s268 = scalar_select %p267, %s266, 1
      %s269 = smul.addr %s268, 54
      %s270 = smul.addr %s269, 8
      %s271 = scalar_lea.vmem %s0, %s270
      %p272 = pneg %p52
      %p273 = pneg %p49
      %s274 = smul.u32 16, %s22
      %p275 = scmp.lt.s32.totalorder %s21, 1
      %s276 = scalar_select %p275, %s21, 1
      %p277 = scmp.lt.s32.totalorder %s274, 15
      %s278 = scalar_select %p277, %s274, 15
      %s279 = smul.addr %s278, 2
      %s280 = smul.addr %s276, 32
      %s281 = sadd.s32 %s279, %s280
      %s282 = smul.addr %s281, 8
      %s283 = scalar_lea.vmem %s1, %s282
      %p284 = pneg %p80
      %p285 = pneg %p77
      %s286 = smul.u32 16, %s22
      %p287 = scmp.lt.s32.totalorder %s286, 15
      %s288 = scalar_select %p287, %s286, 15
      %s289 = smul.addr %s288, 2
      %s290 = smul.addr %s289, 8
      %s291 = scalar_lea.vmem %s2, %s290
      %p292 = pneg %p106
      %p293 = pneg %p103
      %p294 = pneg %p127
      %p295 = pneg %p124
      %p296 = pneg %p148
      %p297 = pneg %p145
      %p298 = pneg %p169
      %p299 = pneg %p166
      %p300 = pneg %p197
      %p301 = pneg %p194
      %s302 = smul.u32 16, %s22
      %p303 = scmp.lt.s32.totalorder %s21, 1
      %s304 = scalar_select %p303, %s21, 1
      %p305 = scmp.lt.s32.totalorder %s302, 15
      %s306 = scalar_select %p305, %s302, 15
      %s307 = smul.addr %s306, 2
      %s308 = smul.addr %s304, 32
      %s309 = sadd.s32 %s307, %s308
      %s310 = smul.addr %s309, 8
      %s311 = scalar_lea.vmem %s6, %s310
      %s312 = sadd.s32 %s21, %s22
      %p313 = scmp.lt.s32.totalorder %s312, 1
      %s314 = scalar_select %p313, %s312, 1
      %s315 = smul.addr %s314, 54
      %s316 = smul.addr %s315, 8
      %s317 = scalar_lea.vmem %s0, %s316
      %s318 = sadd.s32 %s21, %s22
      %s319 = smul.u32 16, %s22
      %p320 = scmp.lt.s32.totalorder %s21, 1
      %s321 = scalar_select %p320, %s21, 1
      %p322 = scmp.lt.s32.totalorder %s319, 15
      %s323 = scalar_select %p322, %s319, 15
      %s324 = smul.addr %s323, 2
      %s325 = smul.addr %s321, 32
      %s326 = sadd.s32 %s324, %s325
      %s327 = smul.addr %s326, 8
      %s328 = scalar_lea.vmem %s1, %s327
      %s329 = smul.u32 16, %s22
      %s330 = smul.u32 16, %s22
      %p331 = scmp.lt.s32.totalorder %s330, 15
      %s332 = scalar_select %p331, %s330, 15
      %s333 = smul.addr %s332, 2
      %s334 = smul.addr %s333, 8
      %s335 = scalar_lea.vmem %s2, %s334
      %s336 = smul.u32 16, %s22
      %s337 = smul.u32 16, %s22
      %p338 = scmp.lt.s32.totalorder %s21, 1
      %s339 = scalar_select %p338, %s21, 1
      %p340 = scmp.lt.s32.totalorder %s337, 15
      %s341 = scalar_select %p340, %s337, 15
      %s342 = smul.addr %s341, 2
      %s343 = smul.addr %s339, 32
      %s344 = sadd.s32 %s342, %s343
      %s345 = smul.addr %s344, 8
      %s346 = scalar_lea.vmem %s6, %s345
      %s347 = smul.u32 16, %s22
      %v348 = vld [vmem:[%s317] sm:$0xff]
      %v349 = vld [vmem:[%s317 + $0x8] sm:$0xff]
      %v350 = vld [vmem:[%s317 + $0x10] sm:$0x3]
      %v351 = vld [vmem:[%s317 + $0x18] sm:$0xff]
      %v352 = vld [vmem:[%s317 + $0x20] sm:$0xff]
      %v353 = vld [vmem:[%s317 + $0x28] sm:$0x3]
      %v354 = vld [vmem:[%s317 + $0x30] sm:$0xff]
      %v355 = vld [vmem:[%s317 + $0x38] sm:$0xff]
      %v356 = vld [vmem:[%s317 + $0x40] sm:$0x3]
      %v357 = vld [vmem:[%s317 + $0x48] sm:$0xff]
      %v358 = vld [vmem:[%s317 + $0x50] sm:$0xff]
      %v359 = vld [vmem:[%s317 + $0x58] sm:$0x3]
      %v360 = vld [vmem:[%s317 + $0x60] sm:$0xff]
      %v361 = vld [vmem:[%s317 + $0x68] sm:$0xff]
      %v362 = vld [vmem:[%s317 + $0x70] sm:$0x3]
      %v363 = vld [vmem:[%s317 + $0x78] sm:$0xff]
      %v364 = vld [vmem:[%s317 + $0x80] sm:$0xff]
      %v365 = vld [vmem:[%s317 + $0x88] sm:$0x3]
      %v366 = vld [vmem:[%s317 + $0x90] sm:$0xff]
      %v367 = vld [vmem:[%s317 + $0x98] sm:$0xff]
      %v368 = vld [vmem:[%s317 + $0xa0] sm:$0x3]
      %v369 = vld [vmem:[%s317 + $0xa8] sm:$0xff]
      %v370 = vld [vmem:[%s317 + $0xb0] sm:$0xff]
      %v371 = vld [vmem:[%s317 + $0xb8] sm:$0x3]
      %v372 = vld [vmem:[%s317 + $0xc0] sm:$0xff]
      %v373 = vld [vmem:[%s317 + $0xc8] sm:$0xff]
      %v374 = vld [vmem:[%s317 + $0xd0] sm:$0x3]
      %v375 = vld [vmem:[%s317 + $0xd8] sm:$0xff]
      %v376 = vld [vmem:[%s317 + $0xe0] sm:$0xff]
      %v377 = vld [vmem:[%s317 + $0xe8] sm:$0x3]
      %v378 = vld [vmem:[%s317 + $0xf0] sm:$0xff]
      %v379 = vld [vmem:[%s317 + $0xf8] sm:$0xff]
      %v380 = vld [vmem:[%s317 + $0x100] sm:$0x3]
      %v381 = vld [vmem:[%s317 + $0x108] sm:$0xff]
      %v382 = vld [vmem:[%s317 + $0x110] sm:$0xff]
      %v383 = vld [vmem:[%s317 + $0x118] sm:$0x3]
      %v384 = vld [vmem:[%s317 + $0x120] sm:$0xff]
      %v385 = vld [vmem:[%s317 + $0x128] sm:$0xff]
      %v386 = vld [vmem:[%s317 + $0x130] sm:$0x3]
      %v387 = vld [vmem:[%s317 + $0x138] sm:$0xff]
      %v388 = vld [vmem:[%s317 + $0x140] sm:$0xff]
      %v389 = vld [vmem:[%s317 + $0x148] sm:$0x3]
      %v390 = vld [vmem:[%s317 + $0x150] sm:$0xff]
      %v391 = vld [vmem:[%s317 + $0x158] sm:$0xff]
      %v392 = vld [vmem:[%s317 + $0x160] sm:$0x3]
      %v393 = vld [vmem:[%s317 + $0x168] sm:$0xff]
      %v394 = vld [vmem:[%s317 + $0x170] sm:$0xff]
      %v395 = vld [vmem:[%s317 + $0x178] sm:$0x3]
      %v396 = vld [vmem:[%s317 + $0x180] sm:$0xff]
      %v397 = vld [vmem:[%s317 + $0x188] sm:$0xff]
      %v398 = vld [vmem:[%s317 + $0x190] sm:$0x3]
      %v399 = vld [vmem:[%s317 + $0x198] sm:$0xff]
      %v400 = vld [vmem:[%s317 + $0x1a0] sm:$0xff]
      %v401 = vld [vmem:[%s317 + $0x1a8] sm:$0x3]
      %v402 = vld [vmem:[%s328] sm:$0xff]
      %v403 = vld [vmem:[%s328 + $0x8] sm:$0xff]
      %v404 = vld [vmem:[%s328 + $0x10] sm:$0xff]
      %v405 = vld [vmem:[%s328 + $0x18] sm:$0xff]
      %v406 = vld [vmem:[%s328 + $0x20] sm:$0xff]
      %v407 = vld [vmem:[%s328 + $0x28] sm:$0xff]
      %v408 = vld [vmem:[%s328 + $0x30] sm:$0xff]
      %v409 = vld [vmem:[%s328 + $0x38] sm:$0xff]
      %v410 = vld [vmem:[%s328 + $0x40] sm:$0xff]
      %v411 = vld [vmem:[%s328 + $0x48] sm:$0xff]
      %v412 = vld [vmem:[%s328 + $0x50] sm:$0xff]
      %v413 = vld [vmem:[%s328 + $0x58] sm:$0xff]
      %v414 = vld [vmem:[%s328 + $0x60] sm:$0xff]
      %v415 = vld [vmem:[%s328 + $0x68] sm:$0xff]
      %v416 = vld [vmem:[%s328 + $0x70] sm:$0xff]
      %v417 = vld [vmem:[%s328 + $0x78] sm:$0xff]
      %v418 = vld [vmem:[%s328 + $0x80] sm:$0xff]
      %v419 = vld [vmem:[%s328 + $0x88] sm:$0xff]
      %v420 = vld [vmem:[%s328 + $0x90] sm:$0xff]
      %v421 = vld [vmem:[%s328 + $0x98] sm:$0xff]
      %v422 = vld [vmem:[%s328 + $0xa0] sm:$0xff]
      %v423 = vld [vmem:[%s328 + $0xa8] sm:$0xff]
      %v424 = vld [vmem:[%s328 + $0xb0] sm:$0xff]
      %v425 = vld [vmem:[%s328 + $0xb8] sm:$0xff]
      %v426 = vld [vmem:[%s328 + $0xc0] sm:$0xff]
      %v427 = vld [vmem:[%s328 + $0xc8] sm:$0xff]
      %v428 = vld [vmem:[%s328 + $0xd0] sm:$0xff]
      %v429 = vld [vmem:[%s328 + $0xd8] sm:$0xff]
      %v430 = vld [vmem:[%s328 + $0xe0] sm:$0xff]
      %v431 = vld [vmem:[%s328 + $0xe8] sm:$0xff]
      %v432 = vld [vmem:[%s328 + $0xf0] sm:$0xff]
      %v433 = vld [vmem:[%s328 + $0xf8] sm:$0xff]
      %v434 = vld [vmem:[%s4] sm:$0xf]
      %v435 = vld [vmem:[%s5] sm:$0x1]
      %v437 = vperm.slane %v435, 0
      %vm439 = vcmask 31744
      %v441 = vsel %vm439, %v402, 0
      %v444 = vsel %vm439, %v403, 0
      %v447 = vsel %vm439, %v404, 0
      %v450 = vsel %vm439, %v405, 0
      %v453 = vsel %vm439, %v406, 0
      %v456 = vsel %vm439, %v407, 0
      %v459 = vsel %vm439, %v408, 0
      %v462 = vsel %vm439, %v409, 0
      %v465 = vsel %vm439, %v410, 0
      %v468 = vsel %vm439, %v411, 0
      %v471 = vsel %vm439, %v412, 0
      %v474 = vsel %vm439, %v413, 0
      %v477 = vsel %vm439, %v414, 0
      %v480 = vsel %vm439, %v415, 0
      %v483 = vsel %vm439, %v416, 0
      %v486 = vsel %vm439, %v417, 0
      %v489 = vsel %vm439, %v418, 0
      %v492 = vsel %vm439, %v419, 0
      %v495 = vsel %vm439, %v420, 0
      %v498 = vsel %vm439, %v421, 0
      %v501 = vsel %vm439, %v422, 0
      %v504 = vsel %vm439, %v423, 0
      %v507 = vsel %vm439, %v424, 0
      %v510 = vsel %vm439, %v425, 0
      %v513 = vsel %vm439, %v426, 0
      %v516 = vsel %vm439, %v427, 0
      %v519 = vsel %vm439, %v428, 0
      %v522 = vsel %vm439, %v429, 0
      %v525 = vsel %vm439, %v430, 0
      %v528 = vsel %vm439, %v431, 0
      %v531 = vsel %vm439, %v432, 0
      %v534 = vsel %vm439, %v433, 0
      %vm536 = vcmask 1043456
      %v538 = vsel %vm536, %v434, 0
      %540 = vmatpush.msra.mxu0 0.0
      %541 = vmatpush.msra.mxu0 0.0
      %542 = vmatpush.msra.mxu0 0.0
      %543 = vmatpush.msra.mxu0 0.0
      %544 = vmatpush.msra.mxu0 0.0
      %545 = vmatpush.msra.mxu0 0.0
      %546 = vmatpush.msra.mxu0 0.0
      %547 = vmatpush.msra.mxu0 0.0
      %548 = vmatpush.msra.mxu0 0.0
      %549 = vmatpush.msra.mxu0 0.0
      %550 = vmatpush.msra.mxu0 0.0
      %551 = vmatpush.msra.mxu0 0.0
      %552 = vmatpush.msra.mxu0 0.0
      %553 = vmatpush.msra.mxu0 0.0
      %554 = vmatpush.msra.mxu0 0.0
      %555 = vmatpush.msra.mxu0 %v538
      %556 = vmatmul.f32.gmra.mxu0 %v441
      %v557 = vpop.f32.mrf.mxu0
      %v558 = vadd.f32 %v437, %v557
      %559 = vmatmul.f32.gmra.mxu0 %v444
      %v560 = vpop.f32.mrf.mxu0
      %v561 = vadd.f32 %v437, %v560
      %562 = vmatmul.f32.gmra.mxu0 %v447
      %v563 = vpop.f32.mrf.mxu0
      %v564 = vadd.f32 %v437, %v563
      %565 = vmatmul.f32.gmra.mxu0 %v450
      %v566 = vpop.f32.mrf.mxu0
      %v567 = vadd.f32 %v437, %v566
      %568 = vmatmul.f32.gmra.mxu0 %v453
      %v569 = vpop.f32.mrf.mxu0
      %v570 = vadd.f32 %v437, %v569
      %571 = vmatmul.f32.gmra.mxu0 %v456
      %v572 = vpop.f32.mrf.mxu0
      %v573 = vadd.f32 %v437, %v572
      %574 = vmatmul.f32.gmra.mxu0 %v459
      %v575 = vpop.f32.mrf.mxu0
      %v576 = vadd.f32 %v437, %v575
      %577 = vmatmul.f32.gmra.mxu0 %v462
      %v578 = vpop.f32.mrf.mxu0
      %v579 = vadd.f32 %v437, %v578
      %580 = vmatmul.f32.gmra.mxu0 %v465
      %v581 = vpop.f32.mrf.mxu0
      %v582 = vadd.f32 %v437, %v581
      %583 = vmatmul.f32.gmra.mxu0 %v468
      %v584 = vpop.f32.mrf.mxu0
      %v585 = vadd.f32 %v437, %v584
      %586 = vmatmul.f32.gmra.mxu0 %v471
      %v587 = vpop.f32.mrf.mxu0
      %v588 = vadd.f32 %v437, %v587
      %589 = vmatmul.f32.gmra.mxu0 %v474
      %v590 = vpop.f32.mrf.mxu0
      %v591 = vadd.f32 %v437, %v590
      %592 = vmatmul.f32.gmra.mxu0 %v477
      %v593 = vpop.f32.mrf.mxu0
      %v594 = vadd.f32 %v437, %v593
      %595 = vmatmul.f32.gmra.mxu0 %v480
      %v596 = vpop.f32.mrf.mxu0
      %v597 = vadd.f32 %v437, %v596
      %598 = vmatmul.f32.gmra.mxu0 %v483
      %v599 = vpop.f32.mrf.mxu0
      %v600 = vadd.f32 %v437, %v599
      %601 = vmatmul.f32.gmra.mxu0 %v486
      %v602 = vpop.f32.mrf.mxu0
      %v603 = vadd.f32 %v437, %v602
      %604 = vmatmul.f32.gmra.mxu0 %v489
      %v605 = vpop.f32.mrf.mxu0
      %v606 = vadd.f32 %v437, %v605
      %607 = vmatmul.f32.gmra.mxu0 %v492
      %v608 = vpop.f32.mrf.mxu0
      %v609 = vadd.f32 %v437, %v608
      %610 = vmatmul.f32.gmra.mxu0 %v495
      %v611 = vpop.f32.mrf.mxu0
      %v612 = vadd.f32 %v437, %v611
      %613 = vmatmul.f32.gmra.mxu0 %v498
      %v614 = vpop.f32.mrf.mxu0
      %v615 = vadd.f32 %v437, %v614
      %616 = vmatmul.f32.gmra.mxu0 %v501
      %v617 = vpop.f32.mrf.mxu0
      %v618 = vadd.f32 %v437, %v617
      %619 = vmatmul.f32.gmra.mxu0 %v504
      %v620 = vpop.f32.mrf.mxu0
      %v621 = vadd.f32 %v437, %v620
      %622 = vmatmul.f32.gmra.mxu0 %v507
      %v623 = vpop.f32.mrf.mxu0
      %v624 = vadd.f32 %v437, %v623
      %625 = vmatmul.f32.gmra.mxu0 %v510
      %v626 = vpop.f32.mrf.mxu0
      %v627 = vadd.f32 %v437, %v626
      %628 = vmatmul.f32.gmra.mxu0 %v513
      %v629 = vpop.f32.mrf.mxu0
      %v630 = vadd.f32 %v437, %v629
      %631 = vmatmul.f32.gmra.mxu0 %v516
      %v632 = vpop.f32.mrf.mxu0
      %v633 = vadd.f32 %v437, %v632
      %634 = vmatmul.f32.gmra.mxu0 %v519
      %v635 = vpop.f32.mrf.mxu0
      %v636 = vadd.f32 %v437, %v635
      %637 = vmatmul.f32.gmra.mxu0 %v522
      %v638 = vpop.f32.mrf.mxu0
      %v639 = vadd.f32 %v437, %v638
      %640 = vmatmul.f32.gmra.mxu0 %v525
      %v641 = vpop.f32.mrf.mxu0
      %v642 = vadd.f32 %v437, %v641
      %643 = vmatmul.f32.gmra.mxu0 %v528
      %v644 = vpop.f32.mrf.mxu0
      %v645 = vadd.f32 %v437, %v644
      %646 = vmatmul.f32.gmra.mxu0 %v531
      %v647 = vpop.f32.mrf.mxu0
      %v648 = vadd.f32 %v437, %v647
      %649 = vmatmul.f32.gmra.mxu0 %v534
      %v650 = vpop.f32.mrf.mxu0
      %v651 = vadd.f32 %v437, %v650
      %652 = vdwg.mxu0
      %v653 = vld [vmem:[%s335] sm:$0xff]
      %v654 = vld [vmem:[%s335 + $0x8] sm:$0xff]
      %v655 = vld [vmem:[%s335 + $0x10] sm:$0xff]
      %v656 = vld [vmem:[%s335 + $0x18] sm:$0xff]
      %v657 = vld [vmem:[%s335 + $0x20] sm:$0xff]
      %v658 = vld [vmem:[%s335 + $0x28] sm:$0xff]
      %v659 = vld [vmem:[%s335 + $0x30] sm:$0xff]
      %v660 = vld [vmem:[%s335 + $0x38] sm:$0xff]
      %v661 = vld [vmem:[%s335 + $0x40] sm:$0xff]
      %v662 = vld [vmem:[%s335 + $0x48] sm:$0xff]
      %v663 = vld [vmem:[%s335 + $0x50] sm:$0xff]
      %v664 = vld [vmem:[%s335 + $0x58] sm:$0xff]
      %v665 = vld [vmem:[%s335 + $0x60] sm:$0xff]
      %v666 = vld [vmem:[%s335 + $0x68] sm:$0xff]
      %v667 = vld [vmem:[%s335 + $0x70] sm:$0xff]
      %v668 = vld [vmem:[%s335 + $0x78] sm:$0xff]
      %v669 = vld [vmem:[%s335 + $0x80] sm:$0xff]
      %v670 = vld [vmem:[%s335 + $0x88] sm:$0xff]
      %v671 = vld [vmem:[%s335 + $0x90] sm:$0xff]
      %v672 = vld [vmem:[%s335 + $0x98] sm:$0xff]
      %v673 = vld [vmem:[%s335 + $0xa0] sm:$0xff]
      %v674 = vld [vmem:[%s335 + $0xa8] sm:$0xff]
      %v675 = vld [vmem:[%s335 + $0xb0] sm:$0xff]
      %v676 = vld [vmem:[%s335 + $0xb8] sm:$0xff]
      %v677 = vld [vmem:[%s335 + $0xc0] sm:$0xff]
      %v678 = vld [vmem:[%s335 + $0xc8] sm:$0xff]
      %v679 = vld [vmem:[%s335 + $0xd0] sm:$0xff]
      %v680 = vld [vmem:[%s335 + $0xd8] sm:$0xff]
      %v681 = vld [vmem:[%s335 + $0xe0] sm:$0xff]
      %v682 = vld [vmem:[%s335 + $0xe8] sm:$0xff]
      %v683 = vld [vmem:[%s335 + $0xf0] sm:$0xff]
      %v684 = vld [vmem:[%s335 + $0xf8] sm:$0xff]
      %v685 = vadd.f32 %v558, %v653
      %v686 = vadd.f32 %v561, %v654
      %v687 = vadd.f32 %v564, %v655
      %v688 = vadd.f32 %v567, %v656
      %v689 = vadd.f32 %v570, %v657
      %v690 = vadd.f32 %v573, %v658
      %v691 = vadd.f32 %v576, %v659
      %v692 = vadd.f32 %v579, %v660
      %v693 = vadd.f32 %v582, %v661
      %v694 = vadd.f32 %v585, %v662
      %v695 = vadd.f32 %v588, %v663
      %v696 = vadd.f32 %v591, %v664
      %v697 = vadd.f32 %v594, %v665
      %v698 = vadd.f32 %v597, %v666
      %v699 = vadd.f32 %v600, %v667
      %v700 = vadd.f32 %v603, %v668
      %v701 = vadd.f32 %v606, %v669
      %v702 = vadd.f32 %v609, %v670
      %v703 = vadd.f32 %v612, %v671
      %v704 = vadd.f32 %v615, %v672
      %v705 = vadd.f32 %v618, %v673
      %v706 = vadd.f32 %v621, %v674
      %v707 = vadd.f32 %v624, %v675
      %v708 = vadd.f32 %v627, %v676
      %v709 = vadd.f32 %v630, %v677
      %v710 = vadd.f32 %v633, %v678
      %v711 = vadd.f32 %v636, %v679
      %v712 = vadd.f32 %v639, %v680
      %v713 = vadd.f32 %v642, %v681
      %v714 = vadd.f32 %v645, %v682
      %v715 = vadd.f32 %v648, %v683
      %v716 = vadd.f32 %v651, %v684
      %v717 = vld [vmem:[%s3] sm:$0xf]
      %v719 = vsel %vm439, %v348, 0
      %v722 = vsel %vm439, %v349, 0
      %v725 = vsel %vm439, %v351, 0
      %v728 = vsel %vm439, %v352, 0
      %v731 = vsel %vm439, %v354, 0
      %v734 = vsel %vm439, %v355, 0
      %v737 = vsel %vm439, %v357, 0
      %v740 = vsel %vm439, %v358, 0
      %v743 = vsel %vm439, %v360, 0
      %v746 = vsel %vm439, %v361, 0
      %v749 = vsel %vm439, %v363, 0
      %v752 = vsel %vm439, %v364, 0
      %v755 = vsel %vm439, %v366, 0
      %v758 = vsel %vm439, %v367, 0
      %v761 = vsel %vm439, %v369, 0
      %v764 = vsel %vm439, %v370, 0
      %v767 = vsel %vm439, %v372, 0
      %v770 = vsel %vm439, %v373, 0
      %v773 = vsel %vm439, %v375, 0
      %v776 = vsel %vm439, %v376, 0
      %v779 = vsel %vm439, %v378, 0
      %v782 = vsel %vm439, %v379, 0
      %v785 = vsel %vm439, %v381, 0
      %v788 = vsel %vm439, %v382, 0
      %v791 = vsel %vm439, %v384, 0
      %v794 = vsel %vm439, %v385, 0
      %v797 = vsel %vm439, %v387, 0
      %v800 = vsel %vm439, %v388, 0
      %v803 = vsel %vm439, %v390, 0
      %v806 = vsel %vm439, %v391, 0
      %v809 = vsel %vm439, %v393, 0
      %v812 = vsel %vm439, %v394, 0
      %v815 = vsel %vm536, %v717, 0
      %817 = vmatpush.msra.mxu0 0.0
      %818 = vmatpush.msra.mxu0 0.0
      %819 = vmatpush.msra.mxu0 0.0
      %820 = vmatpush.msra.mxu0 0.0
      %821 = vmatpush.msra.mxu0 0.0
      %822 = vmatpush.msra.mxu0 0.0
      %823 = vmatpush.msra.mxu0 0.0
      %824 = vmatpush.msra.mxu0 0.0
      %825 = vmatpush.msra.mxu0 0.0
      %826 = vmatpush.msra.mxu0 0.0
      %827 = vmatpush.msra.mxu0 0.0
      %828 = vmatpush.msra.mxu0 0.0
      %829 = vmatpush.msra.mxu0 0.0
      %830 = vmatpush.msra.mxu0 0.0
      %831 = vmatpush.msra.mxu0 0.0
      %832 = vmatpush.msra.mxu0 %v815
      %833 = vmatmul.f32.gmra.mxu0 %v719
      %v834 = vpop.f32.mrf.mxu0
      %v835 = vadd.f32 0.0, %v834
      %836 = vmatmul.f32.gmra.mxu0 %v722
      %v837 = vpop.f32.mrf.mxu0
      %v838 = vadd.f32 0.0, %v837
      %839 = vmatmul.f32.gmra.mxu0 %v725
      %v840 = vpop.f32.mrf.mxu0
      %v841 = vadd.f32 0.0, %v840
      %842 = vmatmul.f32.gmra.mxu0 %v728
      %v843 = vpop.f32.mrf.mxu0
      %v844 = vadd.f32 0.0, %v843
      %845 = vmatmul.f32.gmra.mxu0 %v731
      %v846 = vpop.f32.mrf.mxu0
      %v847 = vadd.f32 0.0, %v846
      %848 = vmatmul.f32.gmra.mxu0 %v734
      %v849 = vpop.f32.mrf.mxu0
      %v850 = vadd.f32 0.0, %v849
      %851 = vmatmul.f32.gmra.mxu0 %v737
      %v852 = vpop.f32.mrf.mxu0
      %v853 = vadd.f32 0.0, %v852
      %854 = vmatmul.f32.gmra.mxu0 %v740
      %v855 = vpop.f32.mrf.mxu0
      %v856 = vadd.f32 0.0, %v855
      %857 = vmatmul.f32.gmra.mxu0 %v743
      %v858 = vpop.f32.mrf.mxu0
      %v859 = vadd.f32 0.0, %v858
      %860 = vmatmul.f32.gmra.mxu0 %v746
      %v861 = vpop.f32.mrf.mxu0
      %v862 = vadd.f32 0.0, %v861
      %863 = vmatmul.f32.gmra.mxu0 %v749
      %v864 = vpop.f32.mrf.mxu0
      %v865 = vadd.f32 0.0, %v864
      %866 = vmatmul.f32.gmra.mxu0 %v752
      %v867 = vpop.f32.mrf.mxu0
      %v868 = vadd.f32 0.0, %v867
      %869 = vmatmul.f32.gmra.mxu0 %v755
      %v870 = vpop.f32.mrf.mxu0
      %v871 = vadd.f32 0.0, %v870
      %872 = vmatmul.f32.gmra.mxu0 %v758
      %v873 = vpop.f32.mrf.mxu0
      %v874 = vadd.f32 0.0, %v873
      %875 = vmatmul.f32.gmra.mxu0 %v761
      %v876 = vpop.f32.mrf.mxu0
      %v877 = vadd.f32 0.0, %v876
      %878 = vmatmul.f32.gmra.mxu0 %v764
      %v879 = vpop.f32.mrf.mxu0
      %v880 = vadd.f32 0.0, %v879
      %881 = vmatmul.f32.gmra.mxu0 %v767
      %v882 = vpop.f32.mrf.mxu0
      %v883 = vadd.f32 0.0, %v882
      %884 = vmatmul.f32.gmra.mxu0 %v770
      %v885 = vpop.f32.mrf.mxu0
      %v886 = vadd.f32 0.0, %v885
      %887 = vmatmul.f32.gmra.mxu0 %v773
      %v888 = vpop.f32.mrf.mxu0
      %v889 = vadd.f32 0.0, %v888
      %890 = vmatmul.f32.gmra.mxu0 %v776
      %v891 = vpop.f32.mrf.mxu0
      %v892 = vadd.f32 0.0, %v891
      %893 = vmatmul.f32.gmra.mxu0 %v779
      %v894 = vpop.f32.mrf.mxu0
      %v895 = vadd.f32 0.0, %v894
      %896 = vmatmul.f32.gmra.mxu0 %v782
      %v897 = vpop.f32.mrf.mxu0
      %v898 = vadd.f32 0.0, %v897
      %899 = vmatmul.f32.gmra.mxu0 %v785
      %v900 = vpop.f32.mrf.mxu0
      %v901 = vadd.f32 0.0, %v900
      %902 = vmatmul.f32.gmra.mxu0 %v788
      %v903 = vpop.f32.mrf.mxu0
      %v904 = vadd.f32 0.0, %v903
      %905 = vmatmul.f32.gmra.mxu0 %v791
      %v906 = vpop.f32.mrf.mxu0
      %v907 = vadd.f32 0.0, %v906
      %908 = vmatmul.f32.gmra.mxu0 %v794
      %v909 = vpop.f32.mrf.mxu0
      %v910 = vadd.f32 0.0, %v909
      %911 = vmatmul.f32.gmra.mxu0 %v797
      %v912 = vpop.f32.mrf.mxu0
      %v913 = vadd.f32 0.0, %v912
      %914 = vmatmul.f32.gmra.mxu0 %v800
      %v915 = vpop.f32.mrf.mxu0
      %v916 = vadd.f32 0.0, %v915
      %917 = vmatmul.f32.gmra.mxu0 %v803
      %v918 = vpop.f32.mrf.mxu0
      %v919 = vadd.f32 0.0, %v918
      %920 = vmatmul.f32.gmra.mxu0 %v806
      %v921 = vpop.f32.mrf.mxu0
      %v922 = vadd.f32 0.0, %v921
      %923 = vmatmul.f32.gmra.mxu0 %v809
      %v924 = vpop.f32.mrf.mxu0
      %v925 = vadd.f32 0.0, %v924
      %926 = vmatmul.f32.gmra.mxu0 %v812
      %v927 = vpop.f32.mrf.mxu0
      %v928 = vadd.f32 0.0, %v927
      %929 = vdwg.mxu0
      %v930 = vadd.f32 %v685, %v835
      %v931 = vadd.f32 %v686, %v838
      %v932 = vadd.f32 %v687, %v841
      %v933 = vadd.f32 %v688, %v844
      %v934 = vadd.f32 %v689, %v847
      %v935 = vadd.f32 %v690, %v850
      %v936 = vadd.f32 %v691, %v853
      %v937 = vadd.f32 %v692, %v856
      %v938 = vadd.f32 %v693, %v859
      %v939 = vadd.f32 %v694, %v862
      %v940 = vadd.f32 %v695, %v865
      %v941 = vadd.f32 %v696, %v868
      %v942 = vadd.f32 %v697, %v871
      %v943 = vadd.f32 %v698, %v874
      %v944 = vadd.f32 %v699, %v877
      %v945 = vadd.f32 %v700, %v880
      %v946 = vadd.f32 %v701, %v883
      %v947 = vadd.f32 %v702, %v886
      %v948 = vadd.f32 %v703, %v889
      %v949 = vadd.f32 %v704, %v892
      %v950 = vadd.f32 %v705, %v895
      %v951 = vadd.f32 %v706, %v898
      %v952 = vadd.f32 %v707, %v901
      %v953 = vadd.f32 %v708, %v904
      %v954 = vadd.f32 %v709, %v907
      %v955 = vadd.f32 %v710, %v910
      %v956 = vadd.f32 %v711, %v913
      %v957 = vadd.f32 %v712, %v916
      %v958 = vadd.f32 %v713, %v919
      %v959 = vadd.f32 %v714, %v922
      %v960 = vadd.f32 %v715, %v925
      %v961 = vadd.f32 %v716, %v928
      %vm978 = vcmask 1046528
      %v979 = vrot.slane %v348, 1
      %v980 = vrot.slane %v349, 1
      %v981 = vsel %vm978, %v979, %v980
      %v982 = vrot.slane %v350, 1
      %v983 = vsel %vm978, %v980, %v982
      %v984 = vrot.slane %v351, 1
      %v985 = vrot.slane %v352, 1
      %v986 = vsel %vm978, %v984, %v985
      %v987 = vrot.slane %v353, 1
      %v988 = vsel %vm978, %v985, %v987
      %v989 = vrot.slane %v354, 1
      %v990 = vrot.slane %v355, 1
      %v991 = vsel %vm978, %v989, %v990
      %v992 = vrot.slane %v356, 1
      %v993 = vsel %vm978, %v990, %v992
      %v994 = vrot.slane %v357, 1
      %v995 = vrot.slane %v358, 1
      %v996 = vsel %vm978, %v994, %v995
      %v997 = vrot.slane %v359, 1
      %v998 = vsel %vm978, %v995, %v997
      %v999 = vrot.slane %v360, 1
      %v1000 = vrot.slane %v361, 1
      %v1001 = vsel %vm978, %v999, %v1000
      %v1002 = vrot.slane %v362, 1
      %v1003 = vsel %vm978, %v1000, %v1002
      %v1004 = vrot.slane %v363, 1
      %v1005 = vrot.slane %v364, 1
      %v1006 = vsel %vm978, %v1004, %v1005
      %v1007 = vrot.slane %v365, 1
      %v1008 = vsel %vm978, %v1005, %v1007
      %v1009 = vrot.slane %v366, 1
      %v1010 = vrot.slane %v367, 1
      %v1011 = vsel %vm978, %v1009, %v1010
      %v1012 = vrot.slane %v368, 1
      %v1013 = vsel %vm978, %v1010, %v1012
      %v1014 = vrot.slane %v369, 1
      %v1015 = vrot.slane %v370, 1
      %v1016 = vsel %vm978, %v1014, %v1015
      %v1017 = vrot.slane %v371, 1
      %v1018 = vsel %vm978, %v1015, %v1017
      %v1019 = vrot.slane %v372, 1
      %v1020 = vrot.slane %v373, 1
      %v1021 = vsel %vm978, %v1019, %v1020
      %v1022 = vrot.slane %v374, 1
      %v1023 = vsel %vm978, %v1020, %v1022
      %v1024 = vrot.slane %v375, 1
      %v1025 = vrot.slane %v376, 1
      %v1026 = vsel %vm978, %v1024, %v1025
      %v1027 = vrot.slane %v377, 1
      %v1028 = vsel %vm978, %v1025, %v1027
      %v1029 = vrot.slane %v378, 1
      %v1030 = vrot.slane %v379, 1
      %v1031 = vsel %vm978, %v1029, %v1030
      %v1032 = vrot.slane %v380, 1
      %v1033 = vsel %vm978, %v1030, %v1032
      %v1034 = vrot.slane %v381, 1
      %v1035 = vrot.slane %v382, 1
      %v1036 = vsel %vm978, %v1034, %v1035
      %v1037 = vrot.slane %v383, 1
      %v1038 = vsel %vm978, %v1035, %v1037
      %v1039 = vrot.slane %v384, 1
      %v1040 = vrot.slane %v385, 1
      %v1041 = vsel %vm978, %v1039, %v1040
      %v1042 = vrot.slane %v386, 1
      %v1043 = vsel %vm978, %v1040, %v1042
      %v1044 = vrot.slane %v387, 1
      %v1045 = vrot.slane %v388, 1
      %v1046 = vsel %vm978, %v1044, %v1045
      %v1047 = vrot.slane %v389, 1
      %v1048 = vsel %vm978, %v1045, %v1047
      %v1049 = vrot.slane %v390, 1
      %v1050 = vrot.slane %v391, 1
      %v1051 = vsel %vm978, %v1049, %v1050
      %v1052 = vrot.slane %v392, 1
      %v1053 = vsel %vm978, %v1050, %v1052
      %v1054 = vrot.slane %v393, 1
      %v1055 = vrot.slane %v394, 1
      %v1056 = vsel %vm978, %v1054, %v1055
      %v1057 = vrot.slane %v395, 1
      %v1058 = vsel %vm978, %v1055, %v1057
      %s1059 = scalar_lea.vmem %s3, 4
      %v1060 = vld [vmem:[%s1059] sm:$0xf]
      %v1061 = vsel %vm439, %v981, 0
      %v1063 = vsel %vm439, %v983, 0
      %v1065 = vsel %vm439, %v986, 0
      %v1067 = vsel %vm439, %v988, 0
      %v1069 = vsel %vm439, %v991, 0
      %v1071 = vsel %vm439, %v993, 0
      %v1073 = vsel %vm439, %v996, 0
      %v1075 = vsel %vm439, %v998, 0
      %v1077 = vsel %vm439, %v1001, 0
      %v1079 = vsel %vm439, %v1003, 0
      %v1081 = vsel %vm439, %v1006, 0
      %v1083 = vsel %vm439, %v1008, 0
      %v1085 = vsel %vm439, %v1011, 0
      %v1087 = vsel %vm439, %v1013, 0
      %v1089 = vsel %vm439, %v1016, 0
      %v1091 = vsel %vm439, %v1018, 0
      %v1093 = vsel %vm439, %v1021, 0
      %v1095 = vsel %vm439, %v1023, 0
      %v1097 = vsel %vm439, %v1026, 0
      %v1099 = vsel %vm439, %v1028, 0
      %v1101 = vsel %vm439, %v1031, 0
      %v1103 = vsel %vm439, %v1033, 0
      %v1105 = vsel %vm439, %v1036, 0
      %v1107 = vsel %vm439, %v1038, 0
      %v1109 = vsel %vm439, %v1041, 0
      %v1111 = vsel %vm439, %v1043, 0
      %v1113 = vsel %vm439, %v1046, 0
      %v1115 = vsel %vm439, %v1048, 0
      %v1117 = vsel %vm439, %v1051, 0
      %v1119 = vsel %vm439, %v1053, 0
      %v1121 = vsel %vm439, %v1056, 0
      %v1123 = vsel %vm439, %v1058, 0
      %v1126 = vsel %vm536, %v1060, 0
      %1128 = vmatpush.msra.mxu0 0.0
      %1129 = vmatpush.msra.mxu0 0.0
      %1130 = vmatpush.msra.mxu0 0.0
      %1131 = vmatpush.msra.mxu0 0.0
      %1132 = vmatpush.msra.mxu0 0.0
      %1133 = vmatpush.msra.mxu0 0.0
      %1134 = vmatpush.msra.mxu0 0.0
      %1135 = vmatpush.msra.mxu0 0.0
      %1136 = vmatpush.msra.mxu0 0.0
      %1137 = vmatpush.msra.mxu0 0.0
      %1138 = vmatpush.msra.mxu0 0.0
      %1139 = vmatpush.msra.mxu0 0.0
      %1140 = vmatpush.msra.mxu0 0.0
      %1141 = vmatpush.msra.mxu0 0.0
      %1142 = vmatpush.msra.mxu0 0.0
      %1143 = vmatpush.msra.mxu0 %v1126
      %1144 = vmatmul.f32.gmra.mxu0 %v1061
      %v1145 = vpop.f32.mrf.mxu0
      %v1146 = vadd.f32 0.0, %v1145
      %1147 = vmatmul.f32.gmra.mxu0 %v1063
      %v1148 = vpop.f32.mrf.mxu0
      %v1149 = vadd.f32 0.0, %v1148
      %1150 = vmatmul.f32.gmra.mxu0 %v1065
      %v1151 = vpop.f32.mrf.mxu0
      %v1152 = vadd.f32 0.0, %v1151
      %1153 = vmatmul.f32.gmra.mxu0 %v1067
      %v1154 = vpop.f32.mrf.mxu0
      %v1155 = vadd.f32 0.0, %v1154
      %1156 = vmatmul.f32.gmra.mxu0 %v1069
      %v1157 = vpop.f32.mrf.mxu0
      %v1158 = vadd.f32 0.0, %v1157
      %1159 = vmatmul.f32.gmra.mxu0 %v1071
      %v1160 = vpop.f32.mrf.mxu0
      %v1161 = vadd.f32 0.0, %v1160
      %1162 = vmatmul.f32.gmra.mxu0 %v1073
      %v1163 = vpop.f32.mrf.mxu0
      %v1164 = vadd.f32 0.0, %v1163
      %1165 = vmatmul.f32.gmra.mxu0 %v1075
      %v1166 = vpop.f32.mrf.mxu0
      %v1167 = vadd.f32 0.0, %v1166
      %1168 = vmatmul.f32.gmra.mxu0 %v1077
      %v1169 = vpop.f32.mrf.mxu0
      %v1170 = vadd.f32 0.0, %v1169
      %1171 = vmatmul.f32.gmra.mxu0 %v1079
      %v1172 = vpop.f32.mrf.mxu0
      %v1173 = vadd.f32 0.0, %v1172
      %1174 = vmatmul.f32.gmra.mxu0 %v1081
      %v1175 = vpop.f32.mrf.mxu0
      %v1176 = vadd.f32 0.0, %v1175
      %1177 = vmatmul.f32.gmra.mxu0 %v1083
      %v1178 = vpop.f32.mrf.mxu0
      %v1179 = vadd.f32 0.0, %v1178
      %1180 = vmatmul.f32.gmra.mxu0 %v1085
      %v1181 = vpop.f32.mrf.mxu0
      %v1182 = vadd.f32 0.0, %v1181
      %1183 = vmatmul.f32.gmra.mxu0 %v1087
      %v1184 = vpop.f32.mrf.mxu0
      %v1185 = vadd.f32 0.0, %v1184
      %1186 = vmatmul.f32.gmra.mxu0 %v1089
      %v1187 = vpop.f32.mrf.mxu0
      %v1188 = vadd.f32 0.0, %v1187
      %1189 = vmatmul.f32.gmra.mxu0 %v1091
      %v1190 = vpop.f32.mrf.mxu0
      %v1191 = vadd.f32 0.0, %v1190
      %1192 = vmatmul.f32.gmra.mxu0 %v1093
      %v1193 = vpop.f32.mrf.mxu0
      %v1194 = vadd.f32 0.0, %v1193
      %1195 = vmatmul.f32.gmra.mxu0 %v1095
      %v1196 = vpop.f32.mrf.mxu0
      %v1197 = vadd.f32 0.0, %v1196
      %1198 = vmatmul.f32.gmra.mxu0 %v1097
      %v1199 = vpop.f32.mrf.mxu0
      %v1200 = vadd.f32 0.0, %v1199
      %1201 = vmatmul.f32.gmra.mxu0 %v1099
      %v1202 = vpop.f32.mrf.mxu0
      %v1203 = vadd.f32 0.0, %v1202
      %1204 = vmatmul.f32.gmra.mxu0 %v1101
      %v1205 = vpop.f32.mrf.mxu0
      %v1206 = vadd.f32 0.0, %v1205
      %1207 = vmatmul.f32.gmra.mxu0 %v1103
      %v1208 = vpop.f32.mrf.mxu0
      %v1209 = vadd.f32 0.0, %v1208
      %1210 = vmatmul.f32.gmra.mxu0 %v1105
      %v1211 = vpop.f32.mrf.mxu0
      %v1212 = vadd.f32 0.0, %v1211
      %1213 = vmatmul.f32.gmra.mxu0 %v1107
      %v1214 = vpop.f32.mrf.mxu0
      %v1215 = vadd.f32 0.0, %v1214
      %1216 = vmatmul.f32.gmra.mxu0 %v1109
      %v1217 = vpop.f32.mrf.mxu0
      %v1218 = vadd.f32 0.0, %v1217
      %1219 = vmatmul.f32.gmra.mxu0 %v1111
      %v1220 = vpop.f32.mrf.mxu0
      %v1221 = vadd.f32 0.0, %v1220
      %1222 = vmatmul.f32.gmra.mxu0 %v1113
      %v1223 = vpop.f32.mrf.mxu0
      %v1224 = vadd.f32 0.0, %v1223
      %1225 = vmatmul.f32.gmra.mxu0 %v1115
      %v1226 = vpop.f32.mrf.mxu0
      %v1227 = vadd.f32 0.0, %v1226
      %1228 = vmatmul.f32.gmra.mxu0 %v1117
      %v1229 = vpop.f32.mrf.mxu0
      %v1230 = vadd.f32 0.0, %v1229
      %1231 = vmatmul.f32.gmra.mxu0 %v1119
      %v1232 = vpop.f32.mrf.mxu0
      %v1233 = vadd.f32 0.0, %v1232
      %1234 = vmatmul.f32.gmra.mxu0 %v1121
      %v1235 = vpop.f32.mrf.mxu0
      %v1236 = vadd.f32 0.0, %v1235
      %1237 = vmatmul.f32.gmra.mxu0 %v1123
      %v1238 = vpop.f32.mrf.mxu0
      %v1239 = vadd.f32 0.0, %v1238
      %1240 = vdwg.mxu0
      %v1241 = vadd.f32 %v930, %v1146
      %v1242 = vadd.f32 %v931, %v1149
      %v1243 = vadd.f32 %v932, %v1152
      %v1244 = vadd.f32 %v933, %v1155
      %v1245 = vadd.f32 %v934, %v1158
      %v1246 = vadd.f32 %v935, %v1161
      %v1247 = vadd.f32 %v936, %v1164
      %v1248 = vadd.f32 %v937, %v1167
      %v1249 = vadd.f32 %v938, %v1170
      %v1250 = vadd.f32 %v939, %v1173
      %v1251 = vadd.f32 %v940, %v1176
      %v1252 = vadd.f32 %v941, %v1179
      %v1253 = vadd.f32 %v942, %v1182
      %v1254 = vadd.f32 %v943, %v1185
      %v1255 = vadd.f32 %v944, %v1188
      %v1256 = vadd.f32 %v945, %v1191
      %v1257 = vadd.f32 %v946, %v1194
      %v1258 = vadd.f32 %v947, %v1197
      %v1259 = vadd.f32 %v948, %v1200
      %v1260 = vadd.f32 %v949, %v1203
      %v1261 = vadd.f32 %v950, %v1206
      %v1262 = vadd.f32 %v951, %v1209
      %v1263 = vadd.f32 %v952, %v1212
      %v1264 = vadd.f32 %v953, %v1215
      %v1265 = vadd.f32 %v954, %v1218
      %v1266 = vadd.f32 %v955, %v1221
      %v1267 = vadd.f32 %v956, %v1224
      %v1268 = vadd.f32 %v957, %v1227
      %v1269 = vadd.f32 %v958, %v1230
      %v1270 = vadd.f32 %v959, %v1233
      %v1271 = vadd.f32 %v960, %v1236
      %v1272 = vadd.f32 %v961, %v1239
      %vm1273 = vcmask 1045504
      %v1274 = vrot.slane %v348, 2
      %v1275 = vrot.slane %v349, 2
      %v1276 = vsel %vm1273, %v1274, %v1275
      %v1277 = vrot.slane %v350, 2
      %v1278 = vsel %vm1273, %v1275, %v1277
      %v1279 = vrot.slane %v351, 2
      %v1280 = vrot.slane %v352, 2
      %v1281 = vsel %vm1273, %v1279, %v1280
      %v1282 = vrot.slane %v353, 2
      %v1283 = vsel %vm1273, %v1280, %v1282
      %v1284 = vrot.slane %v354, 2
      %v1285 = vrot.slane %v355, 2
      %v1286 = vsel %vm1273, %v1284, %v1285
      %v1287 = vrot.slane %v356, 2
      %v1288 = vsel %vm1273, %v1285, %v1287
      %v1289 = vrot.slane %v357, 2
      %v1290 = vrot.slane %v358, 2
      %v1291 = vsel %vm1273, %v1289, %v1290
      %v1292 = vrot.slane %v359, 2
      %v1293 = vsel %vm1273, %v1290, %v1292
      %v1294 = vrot.slane %v360, 2
      %v1295 = vrot.slane %v361, 2
      %v1296 = vsel %vm1273, %v1294, %v1295
      %v1297 = vrot.slane %v362, 2
      %v1298 = vsel %vm1273, %v1295, %v1297
      %v1299 = vrot.slane %v363, 2
      %v1300 = vrot.slane %v364, 2
      %v1301 = vsel %vm1273, %v1299, %v1300
      %v1302 = vrot.slane %v365, 2
      %v1303 = vsel %vm1273, %v1300, %v1302
      %v1304 = vrot.slane %v366, 2
      %v1305 = vrot.slane %v367, 2
      %v1306 = vsel %vm1273, %v1304, %v1305
      %v1307 = vrot.slane %v368, 2
      %v1308 = vsel %vm1273, %v1305, %v1307
      %v1309 = vrot.slane %v369, 2
      %v1310 = vrot.slane %v370, 2
      %v1311 = vsel %vm1273, %v1309, %v1310
      %v1312 = vrot.slane %v371, 2
      %v1313 = vsel %vm1273, %v1310, %v1312
      %v1314 = vrot.slane %v372, 2
      %v1315 = vrot.slane %v373, 2
      %v1316 = vsel %vm1273, %v1314, %v1315
      %v1317 = vrot.slane %v374, 2
      %v1318 = vsel %vm1273, %v1315, %v1317
      %v1319 = vrot.slane %v375, 2
      %v1320 = vrot.slane %v376, 2
      %v1321 = vsel %vm1273, %v1319, %v1320
      %v1322 = vrot.slane %v377, 2
      %v1323 = vsel %vm1273, %v1320, %v1322
      %v1324 = vrot.slane %v378, 2
      %v1325 = vrot.slane %v379, 2
      %v1326 = vsel %vm1273, %v1324, %v1325
      %v1327 = vrot.slane %v380, 2
      %v1328 = vsel %vm1273, %v1325, %v1327
      %v1329 = vrot.slane %v381, 2
      %v1330 = vrot.slane %v382, 2
      %v1331 = vsel %vm1273, %v1329, %v1330
      %v1332 = vrot.slane %v383, 2
      %v1333 = vsel %vm1273, %v1330, %v1332
      %v1334 = vrot.slane %v384, 2
      %v1335 = vrot.slane %v385, 2
      %v1336 = vsel %vm1273, %v1334, %v1335
      %v1337 = vrot.slane %v386, 2
      %v1338 = vsel %vm1273, %v1335, %v1337
      %v1339 = vrot.slane %v387, 2
      %v1340 = vrot.slane %v388, 2
      %v1341 = vsel %vm1273, %v1339, %v1340
      %v1342 = vrot.slane %v389, 2
      %v1343 = vsel %vm1273, %v1340, %v1342
      %v1344 = vrot.slane %v390, 2
      %v1345 = vrot.slane %v391, 2
      %v1346 = vsel %vm1273, %v1344, %v1345
      %v1347 = vrot.slane %v392, 2
      %v1348 = vsel %vm1273, %v1345, %v1347
      %v1349 = vrot.slane %v393, 2
      %v1350 = vrot.slane %v394, 2
      %v1351 = vsel %vm1273, %v1349, %v1350
      %v1352 = vrot.slane %v395, 2
      %v1353 = vsel %vm1273, %v1350, %v1352
      %s1354 = scalar_lea.vmem %s3, 8
      %v1355 = vld [vmem:[%s1354] sm:$0xf]
      %v1356 = vsel %vm439, %v1276, 0
      %v1358 = vsel %vm439, %v1278, 0
      %v1360 = vsel %vm439, %v1281, 0
      %v1362 = vsel %vm439, %v1283, 0
      %v1364 = vsel %vm439, %v1286, 0
      %v1366 = vsel %vm439, %v1288, 0
      %v1368 = vsel %vm439, %v1291, 0
      %v1370 = vsel %vm439, %v1293, 0
      %v1372 = vsel %vm439, %v1296, 0
      %v1374 = vsel %vm439, %v1298, 0
      %v1376 = vsel %vm439, %v1301, 0
      %v1378 = vsel %vm439, %v1303, 0
      %v1380 = vsel %vm439, %v1306, 0
      %v1382 = vsel %vm439, %v1308, 0
      %v1384 = vsel %vm439, %v1311, 0
      %v1386 = vsel %vm439, %v1313, 0
      %v1388 = vsel %vm439, %v1316, 0
      %v1390 = vsel %vm439, %v1318, 0
      %v1392 = vsel %vm439, %v1321, 0
      %v1394 = vsel %vm439, %v1323, 0
      %v1396 = vsel %vm439, %v1326, 0
      %v1398 = vsel %vm439, %v1328, 0
      %v1400 = vsel %vm439, %v1331, 0
      %v1402 = vsel %vm439, %v1333, 0
      %v1404 = vsel %vm439, %v1336, 0
      %v1406 = vsel %vm439, %v1338, 0
      %v1408 = vsel %vm439, %v1341, 0
      %v1410 = vsel %vm439, %v1343, 0
      %v1412 = vsel %vm439, %v1346, 0
      %v1414 = vsel %vm439, %v1348, 0
      %v1416 = vsel %vm439, %v1351, 0
      %v1418 = vsel %vm439, %v1353, 0
      %v1421 = vsel %vm536, %v1355, 0
      %1423 = vmatpush.msra.mxu0 0.0
      %1424 = vmatpush.msra.mxu0 0.0
      %1425 = vmatpush.msra.mxu0 0.0
      %1426 = vmatpush.msra.mxu0 0.0
      %1427 = vmatpush.msra.mxu0 0.0
      %1428 = vmatpush.msra.mxu0 0.0
      %1429 = vmatpush.msra.mxu0 0.0
      %1430 = vmatpush.msra.mxu0 0.0
      %1431 = vmatpush.msra.mxu0 0.0
      %1432 = vmatpush.msra.mxu0 0.0
      %1433 = vmatpush.msra.mxu0 0.0
      %1434 = vmatpush.msra.mxu0 0.0
      %1435 = vmatpush.msra.mxu0 0.0
      %1436 = vmatpush.msra.mxu0 0.0
      %1437 = vmatpush.msra.mxu0 0.0
      %1438 = vmatpush.msra.mxu0 %v1421
      %1439 = vmatmul.f32.gmra.mxu0 %v1356
      %v1440 = vpop.f32.mrf.mxu0
      %v1441 = vadd.f32 0.0, %v1440
      %1442 = vmatmul.f32.gmra.mxu0 %v1358
      %v1443 = vpop.f32.mrf.mxu0
      %v1444 = vadd.f32 0.0, %v1443
      %1445 = vmatmul.f32.gmra.mxu0 %v1360
      %v1446 = vpop.f32.mrf.mxu0
      %v1447 = vadd.f32 0.0, %v1446
      %1448 = vmatmul.f32.gmra.mxu0 %v1362
      %v1449 = vpop.f32.mrf.mxu0
      %v1450 = vadd.f32 0.0, %v1449
      %1451 = vmatmul.f32.gmra.mxu0 %v1364
      %v1452 = vpop.f32.mrf.mxu0
      %v1453 = vadd.f32 0.0, %v1452
      %1454 = vmatmul.f32.gmra.mxu0 %v1366
      %v1455 = vpop.f32.mrf.mxu0
      %v1456 = vadd.f32 0.0, %v1455
      %1457 = vmatmul.f32.gmra.mxu0 %v1368
      %v1458 = vpop.f32.mrf.mxu0
      %v1459 = vadd.f32 0.0, %v1458
      %1460 = vmatmul.f32.gmra.mxu0 %v1370
      %v1461 = vpop.f32.mrf.mxu0
      %v1462 = vadd.f32 0.0, %v1461
      %1463 = vmatmul.f32.gmra.mxu0 %v1372
      %v1464 = vpop.f32.mrf.mxu0
      %v1465 = vadd.f32 0.0, %v1464
      %1466 = vmatmul.f32.gmra.mxu0 %v1374
      %v1467 = vpop.f32.mrf.mxu0
      %v1468 = vadd.f32 0.0, %v1467
      %1469 = vmatmul.f32.gmra.mxu0 %v1376
      %v1470 = vpop.f32.mrf.mxu0
      %v1471 = vadd.f32 0.0, %v1470
      %1472 = vmatmul.f32.gmra.mxu0 %v1378
      %v1473 = vpop.f32.mrf.mxu0
      %v1474 = vadd.f32 0.0, %v1473
      %1475 = vmatmul.f32.gmra.mxu0 %v1380
      %v1476 = vpop.f32.mrf.mxu0
      %v1477 = vadd.f32 0.0, %v1476
      %1478 = vmatmul.f32.gmra.mxu0 %v1382
      %v1479 = vpop.f32.mrf.mxu0
      %v1480 = vadd.f32 0.0, %v1479
      %1481 = vmatmul.f32.gmra.mxu0 %v1384
      %v1482 = vpop.f32.mrf.mxu0
      %v1483 = vadd.f32 0.0, %v1482
      %1484 = vmatmul.f32.gmra.mxu0 %v1386
      %v1485 = vpop.f32.mrf.mxu0
      %v1486 = vadd.f32 0.0, %v1485
      %1487 = vmatmul.f32.gmra.mxu0 %v1388
      %v1488 = vpop.f32.mrf.mxu0
      %v1489 = vadd.f32 0.0, %v1488
      %1490 = vmatmul.f32.gmra.mxu0 %v1390
      %v1491 = vpop.f32.mrf.mxu0
      %v1492 = vadd.f32 0.0, %v1491
      %1493 = vmatmul.f32.gmra.mxu0 %v1392
      %v1494 = vpop.f32.mrf.mxu0
      %v1495 = vadd.f32 0.0, %v1494
      %1496 = vmatmul.f32.gmra.mxu0 %v1394
      %v1497 = vpop.f32.mrf.mxu0
      %v1498 = vadd.f32 0.0, %v1497
      %1499 = vmatmul.f32.gmra.mxu0 %v1396
      %v1500 = vpop.f32.mrf.mxu0
      %v1501 = vadd.f32 0.0, %v1500
      %1502 = vmatmul.f32.gmra.mxu0 %v1398
      %v1503 = vpop.f32.mrf.mxu0
      %v1504 = vadd.f32 0.0, %v1503
      %1505 = vmatmul.f32.gmra.mxu0 %v1400
      %v1506 = vpop.f32.mrf.mxu0
      %v1507 = vadd.f32 0.0, %v1506
      %1508 = vmatmul.f32.gmra.mxu0 %v1402
      %v1509 = vpop.f32.mrf.mxu0
      %v1510 = vadd.f32 0.0, %v1509
      %1511 = vmatmul.f32.gmra.mxu0 %v1404
      %v1512 = vpop.f32.mrf.mxu0
      %v1513 = vadd.f32 0.0, %v1512
      %1514 = vmatmul.f32.gmra.mxu0 %v1406
      %v1515 = vpop.f32.mrf.mxu0
      %v1516 = vadd.f32 0.0, %v1515
      %1517 = vmatmul.f32.gmra.mxu0 %v1408
      %v1518 = vpop.f32.mrf.mxu0
      %v1519 = vadd.f32 0.0, %v1518
      %1520 = vmatmul.f32.gmra.mxu0 %v1410
      %v1521 = vpop.f32.mrf.mxu0
      %v1522 = vadd.f32 0.0, %v1521
      %1523 = vmatmul.f32.gmra.mxu0 %v1412
      %v1524 = vpop.f32.mrf.mxu0
      %v1525 = vadd.f32 0.0, %v1524
      %1526 = vmatmul.f32.gmra.mxu0 %v1414
      %v1527 = vpop.f32.mrf.mxu0
      %v1528 = vadd.f32 0.0, %v1527
      %1529 = vmatmul.f32.gmra.mxu0 %v1416
      %v1530 = vpop.f32.mrf.mxu0
      %v1531 = vadd.f32 0.0, %v1530
      %1532 = vmatmul.f32.gmra.mxu0 %v1418
      %v1533 = vpop.f32.mrf.mxu0
      %v1534 = vadd.f32 0.0, %v1533
      %1535 = vdwg.mxu0
      %v1536 = vadd.f32 %v1241, %v1441
      %v1537 = vadd.f32 %v1242, %v1444
      %v1538 = vadd.f32 %v1243, %v1447
      %v1539 = vadd.f32 %v1244, %v1450
      %v1540 = vadd.f32 %v1245, %v1453
      %v1541 = vadd.f32 %v1246, %v1456
      %v1542 = vadd.f32 %v1247, %v1459
      %v1543 = vadd.f32 %v1248, %v1462
      %v1544 = vadd.f32 %v1249, %v1465
      %v1545 = vadd.f32 %v1250, %v1468
      %v1546 = vadd.f32 %v1251, %v1471
      %v1547 = vadd.f32 %v1252, %v1474
      %v1548 = vadd.f32 %v1253, %v1477
      %v1549 = vadd.f32 %v1254, %v1480
      %v1550 = vadd.f32 %v1255, %v1483
      %v1551 = vadd.f32 %v1256, %v1486
      %v1552 = vadd.f32 %v1257, %v1489
      %v1553 = vadd.f32 %v1258, %v1492
      %v1554 = vadd.f32 %v1259, %v1495
      %v1555 = vadd.f32 %v1260, %v1498
      %v1556 = vadd.f32 %v1261, %v1501
      %v1557 = vadd.f32 %v1262, %v1504
      %v1558 = vadd.f32 %v1263, %v1507
      %v1559 = vadd.f32 %v1264, %v1510
      %v1560 = vadd.f32 %v1265, %v1513
      %v1561 = vadd.f32 %v1266, %v1516
      %v1562 = vadd.f32 %v1267, %v1519
      %v1563 = vadd.f32 %v1268, %v1522
      %v1564 = vadd.f32 %v1269, %v1525
      %v1565 = vadd.f32 %v1270, %v1528
      %v1566 = vadd.f32 %v1271, %v1531
      %v1567 = vadd.f32 %v1272, %v1534
      %s1568 = scalar_lea.vmem %s3, 12
      %v1569 = vld [vmem:[%s1568] sm:$0xf]
      %v1571 = vsel %vm439, %v396, 0
      %v1574 = vsel %vm439, %v397, 0
      %v1577 = vsel %vm536, %v1569, 0
      %1579 = vmatpush.msra.mxu0 0.0
      %1580 = vmatpush.msra.mxu0 0.0
      %1581 = vmatpush.msra.mxu0 0.0
      %1582 = vmatpush.msra.mxu0 0.0
      %1583 = vmatpush.msra.mxu0 0.0
      %1584 = vmatpush.msra.mxu0 0.0
      %1585 = vmatpush.msra.mxu0 0.0
      %1586 = vmatpush.msra.mxu0 0.0
      %1587 = vmatpush.msra.mxu0 0.0
      %1588 = vmatpush.msra.mxu0 0.0
      %1589 = vmatpush.msra.mxu0 0.0
      %1590 = vmatpush.msra.mxu0 0.0
      %1591 = vmatpush.msra.mxu0 0.0
      %1592 = vmatpush.msra.mxu0 0.0
      %1593 = vmatpush.msra.mxu0 0.0
      %1594 = vmatpush.msra.mxu0 %v1577
      %1595 = vmatmul.f32.gmra.mxu0 %v725
      %v1596 = vpop.f32.mrf.mxu0
      %v1597 = vadd.f32 0.0, %v1596
      %1598 = vmatmul.f32.gmra.mxu0 %v728
      %v1599 = vpop.f32.mrf.mxu0
      %v1600 = vadd.f32 0.0, %v1599
      %1601 = vmatmul.f32.gmra.mxu0 %v731
      %v1602 = vpop.f32.mrf.mxu0
      %v1603 = vadd.f32 0.0, %v1602
      %1604 = vmatmul.f32.gmra.mxu0 %v734
      %v1605 = vpop.f32.mrf.mxu0
      %v1606 = vadd.f32 0.0, %v1605
      %1607 = vmatmul.f32.gmra.mxu0 %v737
      %v1608 = vpop.f32.mrf.mxu0
      %v1609 = vadd.f32 0.0, %v1608
      %1610 = vmatmul.f32.gmra.mxu0 %v740
      %v1611 = vpop.f32.mrf.mxu0
      %v1612 = vadd.f32 0.0, %v1611
      %1613 = vmatmul.f32.gmra.mxu0 %v743
      %v1614 = vpop.f32.mrf.mxu0
      %v1615 = vadd.f32 0.0, %v1614
      %1616 = vmatmul.f32.gmra.mxu0 %v746
      %v1617 = vpop.f32.mrf.mxu0
      %v1618 = vadd.f32 0.0, %v1617
      %1619 = vmatmul.f32.gmra.mxu0 %v749
      %v1620 = vpop.f32.mrf.mxu0
      %v1621 = vadd.f32 0.0, %v1620
      %1622 = vmatmul.f32.gmra.mxu0 %v752
      %v1623 = vpop.f32.mrf.mxu0
      %v1624 = vadd.f32 0.0, %v1623
      %1625 = vmatmul.f32.gmra.mxu0 %v755
      %v1626 = vpop.f32.mrf.mxu0
      %v1627 = vadd.f32 0.0, %v1626
      %1628 = vmatmul.f32.gmra.mxu0 %v758
      %v1629 = vpop.f32.mrf.mxu0
      %v1630 = vadd.f32 0.0, %v1629
      %1631 = vmatmul.f32.gmra.mxu0 %v761
      %v1632 = vpop.f32.mrf.mxu0
      %v1633 = vadd.f32 0.0, %v1632
      %1634 = vmatmul.f32.gmra.mxu0 %v764
      %v1635 = vpop.f32.mrf.mxu0
      %v1636 = vadd.f32 0.0, %v1635
      %1637 = vmatmul.f32.gmra.mxu0 %v767
      %v1638 = vpop.f32.mrf.mxu0
      %v1639 = vadd.f32 0.0, %v1638
      %1640 = vmatmul.f32.gmra.mxu0 %v770
      %v1641 = vpop.f32.mrf.mxu0
      %v1642 = vadd.f32 0.0, %v1641
      %1643 = vmatmul.f32.gmra.mxu0 %v773
      %v1644 = vpop.f32.mrf.mxu0
      %v1645 = vadd.f32 0.0, %v1644
      %1646 = vmatmul.f32.gmra.mxu0 %v776
      %v1647 = vpop.f32.mrf.mxu0
      %v1648 = vadd.f32 0.0, %v1647
      %1649 = vmatmul.f32.gmra.mxu0 %v779
      %v1650 = vpop.f32.mrf.mxu0
      %v1651 = vadd.f32 0.0, %v1650
      %1652 = vmatmul.f32.gmra.mxu0 %v782
      %v1653 = vpop.f32.mrf.mxu0
      %v1654 = vadd.f32 0.0, %v1653
      %1655 = vmatmul.f32.gmra.mxu0 %v785
      %v1656 = vpop.f32.mrf.mxu0
      %v1657 = vadd.f32 0.0, %v1656
      %1658 = vmatmul.f32.gmra.mxu0 %v788
      %v1659 = vpop.f32.mrf.mxu0
      %v1660 = vadd.f32 0.0, %v1659
      %1661 = vmatmul.f32.gmra.mxu0 %v791
      %v1662 = vpop.f32.mrf.mxu0
      %v1663 = vadd.f32 0.0, %v1662
      %1664 = vmatmul.f32.gmra.mxu0 %v794
      %v1665 = vpop.f32.mrf.mxu0
      %v1666 = vadd.f32 0.0, %v1665
      %1667 = vmatmul.f32.gmra.mxu0 %v797
      %v1668 = vpop.f32.mrf.mxu0
      %v1669 = vadd.f32 0.0, %v1668
      %1670 = vmatmul.f32.gmra.mxu0 %v800
      %v1671 = vpop.f32.mrf.mxu0
      %v1672 = vadd.f32 0.0, %v1671
      %1673 = vmatmul.f32.gmra.mxu0 %v803
      %v1674 = vpop.f32.mrf.mxu0
      %v1675 = vadd.f32 0.0, %v1674
      %1676 = vmatmul.f32.gmra.mxu0 %v806
      %v1677 = vpop.f32.mrf.mxu0
      %v1678 = vadd.f32 0.0, %v1677
      %1679 = vmatmul.f32.gmra.mxu0 %v809
      %v1680 = vpop.f32.mrf.mxu0
      %v1681 = vadd.f32 0.0, %v1680
      %1682 = vmatmul.f32.gmra.mxu0 %v812
      %v1683 = vpop.f32.mrf.mxu0
      %v1684 = vadd.f32 0.0, %v1683
      %1685 = vmatmul.f32.gmra.mxu0 %v1571
      %v1686 = vpop.f32.mrf.mxu0
      %v1687 = vadd.f32 0.0, %v1686
      %1688 = vmatmul.f32.gmra.mxu0 %v1574
      %v1689 = vpop.f32.mrf.mxu0
      %v1690 = vadd.f32 0.0, %v1689
      %1691 = vdwg.mxu0
      %v1692 = vadd.f32 %v1536, %v1597
      %v1693 = vadd.f32 %v1537, %v1600
      %v1694 = vadd.f32 %v1538, %v1603
      %v1695 = vadd.f32 %v1539, %v1606
      %v1696 = vadd.f32 %v1540, %v1609
      %v1697 = vadd.f32 %v1541, %v1612
      %v1698 = vadd.f32 %v1542, %v1615
      %v1699 = vadd.f32 %v1543, %v1618
      %v1700 = vadd.f32 %v1544, %v1621
      %v1701 = vadd.f32 %v1545, %v1624
      %v1702 = vadd.f32 %v1546, %v1627
      %v1703 = vadd.f32 %v1547, %v1630
      %v1704 = vadd.f32 %v1548, %v1633
      %v1705 = vadd.f32 %v1549, %v1636
      %v1706 = vadd.f32 %v1550, %v1639
      %v1707 = vadd.f32 %v1551, %v1642
      %v1708 = vadd.f32 %v1552, %v1645
      %v1709 = vadd.f32 %v1553, %v1648
      %v1710 = vadd.f32 %v1554, %v1651
      %v1711 = vadd.f32 %v1555, %v1654
      %v1712 = vadd.f32 %v1556, %v1657
      %v1713 = vadd.f32 %v1557, %v1660
      %v1714 = vadd.f32 %v1558, %v1663
      %v1715 = vadd.f32 %v1559, %v1666
      %v1716 = vadd.f32 %v1560, %v1669
      %v1717 = vadd.f32 %v1561, %v1672
      %v1718 = vadd.f32 %v1562, %v1675
      %v1719 = vadd.f32 %v1563, %v1678
      %v1720 = vadd.f32 %v1564, %v1681
      %v1721 = vadd.f32 %v1565, %v1684
      %v1722 = vadd.f32 %v1566, %v1687
      %v1723 = vadd.f32 %v1567, %v1690
      %v1725 = vrot.slane %v396, 1
      %v1726 = vrot.slane %v397, 1
      %v1727 = vsel %vm978, %v1725, %v1726
      %v1728 = vrot.slane %v398, 1
      %v1729 = vsel %vm978, %v1726, %v1728
      %s1730 = scalar_lea.vmem %s3, 16
      %v1731 = vld [vmem:[%s1730] sm:$0xf]
      %v1732 = vsel %vm439, %v1727, 0
      %v1734 = vsel %vm439, %v1729, 0
      %v1737 = vsel %vm536, %v1731, 0
      %1739 = vmatpush.msra.mxu0 0.0
      %1740 = vmatpush.msra.mxu0 0.0
      %1741 = vmatpush.msra.mxu0 0.0
      %1742 = vmatpush.msra.mxu0 0.0
      %1743 = vmatpush.msra.mxu0 0.0
      %1744 = vmatpush.msra.mxu0 0.0
      %1745 = vmatpush.msra.mxu0 0.0
      %1746 = vmatpush.msra.mxu0 0.0
      %1747 = vmatpush.msra.mxu0 0.0
      %1748 = vmatpush.msra.mxu0 0.0
      %1749 = vmatpush.msra.mxu0 0.0
      %1750 = vmatpush.msra.mxu0 0.0
      %1751 = vmatpush.msra.mxu0 0.0
      %1752 = vmatpush.msra.mxu0 0.0
      %1753 = vmatpush.msra.mxu0 0.0
      %1754 = vmatpush.msra.mxu0 %v1737
      %1755 = vmatmul.f32.gmra.mxu0 %v1065
      %v1756 = vpop.f32.mrf.mxu0
      %v1757 = vadd.f32 0.0, %v1756
      %1758 = vmatmul.f32.gmra.mxu0 %v1067
      %v1759 = vpop.f32.mrf.mxu0
      %v1760 = vadd.f32 0.0, %v1759
      %1761 = vmatmul.f32.gmra.mxu0 %v1069
      %v1762 = vpop.f32.mrf.mxu0
      %v1763 = vadd.f32 0.0, %v1762
      %1764 = vmatmul.f32.gmra.mxu0 %v1071
      %v1765 = vpop.f32.mrf.mxu0
      %v1766 = vadd.f32 0.0, %v1765
      %1767 = vmatmul.f32.gmra.mxu0 %v1073
      %v1768 = vpop.f32.mrf.mxu0
      %v1769 = vadd.f32 0.0, %v1768
      %1770 = vmatmul.f32.gmra.mxu0 %v1075
      %v1771 = vpop.f32.mrf.mxu0
      %v1772 = vadd.f32 0.0, %v1771
      %1773 = vmatmul.f32.gmra.mxu0 %v1077
      %v1774 = vpop.f32.mrf.mxu0
      %v1775 = vadd.f32 0.0, %v1774
      %1776 = vmatmul.f32.gmra.mxu0 %v1079
      %v1777 = vpop.f32.mrf.mxu0
      %v1778 = vadd.f32 0.0, %v1777
      %1779 = vmatmul.f32.gmra.mxu0 %v1081
      %v1780 = vpop.f32.mrf.mxu0
      %v1781 = vadd.f32 0.0, %v1780
      %1782 = vmatmul.f32.gmra.mxu0 %v1083
      %v1783 = vpop.f32.mrf.mxu0
      %v1784 = vadd.f32 0.0, %v1783
      %1785 = vmatmul.f32.gmra.mxu0 %v1085
      %v1786 = vpop.f32.mrf.mxu0
      %v1787 = vadd.f32 0.0, %v1786
      %1788 = vmatmul.f32.gmra.mxu0 %v1087
      %v1789 = vpop.f32.mrf.mxu0
      %v1790 = vadd.f32 0.0, %v1789
      %1791 = vmatmul.f32.gmra.mxu0 %v1089
      %v1792 = vpop.f32.mrf.mxu0
      %v1793 = vadd.f32 0.0, %v1792
      %1794 = vmatmul.f32.gmra.mxu0 %v1091
      %v1795 = vpop.f32.mrf.mxu0
      %v1796 = vadd.f32 0.0, %v1795
      %1797 = vmatmul.f32.gmra.mxu0 %v1093
      %v1798 = vpop.f32.mrf.mxu0
      %v1799 = vadd.f32 0.0, %v1798
      %1800 = vmatmul.f32.gmra.mxu0 %v1095
      %v1801 = vpop.f32.mrf.mxu0
      %v1802 = vadd.f32 0.0, %v1801
      %1803 = vmatmul.f32.gmra.mxu0 %v1097
      %v1804 = vpop.f32.mrf.mxu0
      %v1805 = vadd.f32 0.0, %v1804
      %1806 = vmatmul.f32.gmra.mxu0 %v1099
      %v1807 = vpop.f32.mrf.mxu0
      %v1808 = vadd.f32 0.0, %v1807
      %1809 = vmatmul.f32.gmra.mxu0 %v1101
      %v1810 = vpop.f32.mrf.mxu0
      %v1811 = vadd.f32 0.0, %v1810
      %1812 = vmatmul.f32.gmra.mxu0 %v1103
      %v1813 = vpop.f32.mrf.mxu0
      %v1814 = vadd.f32 0.0, %v1813
      %1815 = vmatmul.f32.gmra.mxu0 %v1105
      %v1816 = vpop.f32.mrf.mxu0
      %v1817 = vadd.f32 0.0, %v1816
      %1818 = vmatmul.f32.gmra.mxu0 %v1107
      %v1819 = vpop.f32.mrf.mxu0
      %v1820 = vadd.f32 0.0, %v1819
      %1821 = vmatmul.f32.gmra.mxu0 %v1109
      %v1822 = vpop.f32.mrf.mxu0
      %v1823 = vadd.f32 0.0, %v1822
      %1824 = vmatmul.f32.gmra.mxu0 %v1111
      %v1825 = vpop.f32.mrf.mxu0
      %v1826 = vadd.f32 0.0, %v1825
      %1827 = vmatmul.f32.gmra.mxu0 %v1113
      %v1828 = vpop.f32.mrf.mxu0
      %v1829 = vadd.f32 0.0, %v1828
      %1830 = vmatmul.f32.gmra.mxu0 %v1115
      %v1831 = vpop.f32.mrf.mxu0
      %v1832 = vadd.f32 0.0, %v1831
      %1833 = vmatmul.f32.gmra.mxu0 %v1117
      %v1834 = vpop.f32.mrf.mxu0
      %v1835 = vadd.f32 0.0, %v1834
      %1836 = vmatmul.f32.gmra.mxu0 %v1119
      %v1837 = vpop.f32.mrf.mxu0
      %v1838 = vadd.f32 0.0, %v1837
      %1839 = vmatmul.f32.gmra.mxu0 %v1121
      %v1840 = vpop.f32.mrf.mxu0
      %v1841 = vadd.f32 0.0, %v1840
      %1842 = vmatmul.f32.gmra.mxu0 %v1123
      %v1843 = vpop.f32.mrf.mxu0
      %v1844 = vadd.f32 0.0, %v1843
      %1845 = vmatmul.f32.gmra.mxu0 %v1732
      %v1846 = vpop.f32.mrf.mxu0
      %v1847 = vadd.f32 0.0, %v1846
      %1848 = vmatmul.f32.gmra.mxu0 %v1734
      %v1849 = vpop.f32.mrf.mxu0
      %v1850 = vadd.f32 0.0, %v1849
      %1851 = vdwg.mxu0
      %v1852 = vadd.f32 %v1692, %v1757
      %v1853 = vadd.f32 %v1693, %v1760
      %v1854 = vadd.f32 %v1694, %v1763
      %v1855 = vadd.f32 %v1695, %v1766
      %v1856 = vadd.f32 %v1696, %v1769
      %v1857 = vadd.f32 %v1697, %v1772
      %v1858 = vadd.f32 %v1698, %v1775
      %v1859 = vadd.f32 %v1699, %v1778
      %v1860 = vadd.f32 %v1700, %v1781
      %v1861 = vadd.f32 %v1701, %v1784
      %v1862 = vadd.f32 %v1702, %v1787
      %v1863 = vadd.f32 %v1703, %v1790
      %v1864 = vadd.f32 %v1704, %v1793
      %v1865 = vadd.f32 %v1705, %v1796
      %v1866 = vadd.f32 %v1706, %v1799
      %v1867 = vadd.f32 %v1707, %v1802
      %v1868 = vadd.f32 %v1708, %v1805
      %v1869 = vadd.f32 %v1709, %v1808
      %v1870 = vadd.f32 %v1710, %v1811
      %v1871 = vadd.f32 %v1711, %v1814
      %v1872 = vadd.f32 %v1712, %v1817
      %v1873 = vadd.f32 %v1713, %v1820
      %v1874 = vadd.f32 %v1714, %v1823
      %v1875 = vadd.f32 %v1715, %v1826
      %v1876 = vadd.f32 %v1716, %v1829
      %v1877 = vadd.f32 %v1717, %v1832
      %v1878 = vadd.f32 %v1718, %v1835
      %v1879 = vadd.f32 %v1719, %v1838
      %v1880 = vadd.f32 %v1720, %v1841
      %v1881 = vadd.f32 %v1721, %v1844
      %v1882 = vadd.f32 %v1722, %v1847
      %v1883 = vadd.f32 %v1723, %v1850
      %v1884 = vrot.slane %v396, 2
      %v1885 = vrot.slane %v397, 2
      %v1886 = vsel %vm1273, %v1884, %v1885
      %v1887 = vrot.slane %v398, 2
      %v1888 = vsel %vm1273, %v1885, %v1887
      %s1889 = scalar_lea.vmem %s3, 20
      %v1890 = vld [vmem:[%s1889] sm:$0xf]
      %v1891 = vsel %vm439, %v1886, 0
      %v1893 = vsel %vm439, %v1888, 0
      %v1896 = vsel %vm536, %v1890, 0
      %1898 = vmatpush.msra.mxu0 0.0
      %1899 = vmatpush.msra.mxu0 0.0
      %1900 = vmatpush.msra.mxu0 0.0
      %1901 = vmatpush.msra.mxu0 0.0
      %1902 = vmatpush.msra.mxu0 0.0
      %1903 = vmatpush.msra.mxu0 0.0
      %1904 = vmatpush.msra.mxu0 0.0
      %1905 = vmatpush.msra.mxu0 0.0
      %1906 = vmatpush.msra.mxu0 0.0
      %1907 = vmatpush.msra.mxu0 0.0
      %1908 = vmatpush.msra.mxu0 0.0
      %1909 = vmatpush.msra.mxu0 0.0
      %1910 = vmatpush.msra.mxu0 0.0
      %1911 = vmatpush.msra.mxu0 0.0
      %1912 = vmatpush.msra.mxu0 0.0
      %1913 = vmatpush.msra.mxu0 %v1896
      %1914 = vmatmul.f32.gmra.mxu0 %v1360
      %v1915 = vpop.f32.mrf.mxu0
      %v1916 = vadd.f32 0.0, %v1915
      %1917 = vmatmul.f32.gmra.mxu0 %v1362
      %v1918 = vpop.f32.mrf.mxu0
      %v1919 = vadd.f32 0.0, %v1918
      %1920 = vmatmul.f32.gmra.mxu0 %v1364
      %v1921 = vpop.f32.mrf.mxu0
      %v1922 = vadd.f32 0.0, %v1921
      %1923 = vmatmul.f32.gmra.mxu0 %v1366
      %v1924 = vpop.f32.mrf.mxu0
      %v1925 = vadd.f32 0.0, %v1924
      %1926 = vmatmul.f32.gmra.mxu0 %v1368
      %v1927 = vpop.f32.mrf.mxu0
      %v1928 = vadd.f32 0.0, %v1927
      %1929 = vmatmul.f32.gmra.mxu0 %v1370
      %v1930 = vpop.f32.mrf.mxu0
      %v1931 = vadd.f32 0.0, %v1930
      %1932 = vmatmul.f32.gmra.mxu0 %v1372
      %v1933 = vpop.f32.mrf.mxu0
      %v1934 = vadd.f32 0.0, %v1933
      %1935 = vmatmul.f32.gmra.mxu0 %v1374
      %v1936 = vpop.f32.mrf.mxu0
      %v1937 = vadd.f32 0.0, %v1936
      %1938 = vmatmul.f32.gmra.mxu0 %v1376
      %v1939 = vpop.f32.mrf.mxu0
      %v1940 = vadd.f32 0.0, %v1939
      %1941 = vmatmul.f32.gmra.mxu0 %v1378
      %v1942 = vpop.f32.mrf.mxu0
      %v1943 = vadd.f32 0.0, %v1942
      %1944 = vmatmul.f32.gmra.mxu0 %v1380
      %v1945 = vpop.f32.mrf.mxu0
      %v1946 = vadd.f32 0.0, %v1945
      %1947 = vmatmul.f32.gmra.mxu0 %v1382
      %v1948 = vpop.f32.mrf.mxu0
      %v1949 = vadd.f32 0.0, %v1948
      %1950 = vmatmul.f32.gmra.mxu0 %v1384
      %v1951 = vpop.f32.mrf.mxu0
      %v1952 = vadd.f32 0.0, %v1951
      %1953 = vmatmul.f32.gmra.mxu0 %v1386
      %v1954 = vpop.f32.mrf.mxu0
      %v1955 = vadd.f32 0.0, %v1954
      %1956 = vmatmul.f32.gmra.mxu0 %v1388
      %v1957 = vpop.f32.mrf.mxu0
      %v1958 = vadd.f32 0.0, %v1957
      %1959 = vmatmul.f32.gmra.mxu0 %v1390
      %v1960 = vpop.f32.mrf.mxu0
      %v1961 = vadd.f32 0.0, %v1960
      %1962 = vmatmul.f32.gmra.mxu0 %v1392
      %v1963 = vpop.f32.mrf.mxu0
      %v1964 = vadd.f32 0.0, %v1963
      %1965 = vmatmul.f32.gmra.mxu0 %v1394
      %v1966 = vpop.f32.mrf.mxu0
      %v1967 = vadd.f32 0.0, %v1966
      %1968 = vmatmul.f32.gmra.mxu0 %v1396
      %v1969 = vpop.f32.mrf.mxu0
      %v1970 = vadd.f32 0.0, %v1969
      %1971 = vmatmul.f32.gmra.mxu0 %v1398
      %v1972 = vpop.f32.mrf.mxu0
      %v1973 = vadd.f32 0.0, %v1972
      %1974 = vmatmul.f32.gmra.mxu0 %v1400
      %v1975 = vpop.f32.mrf.mxu0
      %v1976 = vadd.f32 0.0, %v1975
      %1977 = vmatmul.f32.gmra.mxu0 %v1402
      %v1978 = vpop.f32.mrf.mxu0
      %v1979 = vadd.f32 0.0, %v1978
      %1980 = vmatmul.f32.gmra.mxu0 %v1404
      %v1981 = vpop.f32.mrf.mxu0
      %v1982 = vadd.f32 0.0, %v1981
      %1983 = vmatmul.f32.gmra.mxu0 %v1406
      %v1984 = vpop.f32.mrf.mxu0
      %v1985 = vadd.f32 0.0, %v1984
      %1986 = vmatmul.f32.gmra.mxu0 %v1408
      %v1987 = vpop.f32.mrf.mxu0
      %v1988 = vadd.f32 0.0, %v1987
      %1989 = vmatmul.f32.gmra.mxu0 %v1410
      %v1990 = vpop.f32.mrf.mxu0
      %v1991 = vadd.f32 0.0, %v1990
      %1992 = vmatmul.f32.gmra.mxu0 %v1412
      %v1993 = vpop.f32.mrf.mxu0
      %v1994 = vadd.f32 0.0, %v1993
      %1995 = vmatmul.f32.gmra.mxu0 %v1414
      %v1996 = vpop.f32.mrf.mxu0
      %v1997 = vadd.f32 0.0, %v1996
      %1998 = vmatmul.f32.gmra.mxu0 %v1416
      %v1999 = vpop.f32.mrf.mxu0
      %v2000 = vadd.f32 0.0, %v1999
      %2001 = vmatmul.f32.gmra.mxu0 %v1418
      %v2002 = vpop.f32.mrf.mxu0
      %v2003 = vadd.f32 0.0, %v2002
      %2004 = vmatmul.f32.gmra.mxu0 %v1891
      %v2005 = vpop.f32.mrf.mxu0
      %v2006 = vadd.f32 0.0, %v2005
      %2007 = vmatmul.f32.gmra.mxu0 %v1893
      %v2008 = vpop.f32.mrf.mxu0
      %v2009 = vadd.f32 0.0, %v2008
      %2010 = vdwg.mxu0
      %v2011 = vadd.f32 %v1852, %v1916
      %v2012 = vadd.f32 %v1853, %v1919
      %v2013 = vadd.f32 %v1854, %v1922
      %v2014 = vadd.f32 %v1855, %v1925
      %v2015 = vadd.f32 %v1856, %v1928
      %v2016 = vadd.f32 %v1857, %v1931
      %v2017 = vadd.f32 %v1858, %v1934
      %v2018 = vadd.f32 %v1859, %v1937
      %v2019 = vadd.f32 %v1860, %v1940
      %v2020 = vadd.f32 %v1861, %v1943
      %v2021 = vadd.f32 %v1862, %v1946
      %v2022 = vadd.f32 %v1863, %v1949
      %v2023 = vadd.f32 %v1864, %v1952
      %v2024 = vadd.f32 %v1865, %v1955
      %v2025 = vadd.f32 %v1866, %v1958
      %v2026 = vadd.f32 %v1867, %v1961
      %v2027 = vadd.f32 %v1868, %v1964
      %v2028 = vadd.f32 %v1869, %v1967
      %v2029 = vadd.f32 %v1870, %v1970
      %v2030 = vadd.f32 %v1871, %v1973
      %v2031 = vadd.f32 %v1872, %v1976
      %v2032 = vadd.f32 %v1873, %v1979
      %v2033 = vadd.f32 %v1874, %v1982
      %v2034 = vadd.f32 %v1875, %v1985
      %v2035 = vadd.f32 %v1876, %v1988
      %v2036 = vadd.f32 %v1877, %v1991
      %v2037 = vadd.f32 %v1878, %v1994
      %v2038 = vadd.f32 %v1879, %v1997
      %v2039 = vadd.f32 %v1880, %v2000
      %v2040 = vadd.f32 %v1881, %v2003
      %v2041 = vadd.f32 %v1882, %v2006
      %v2042 = vadd.f32 %v1883, %v2009
      %s2043 = scalar_lea.vmem %s3, 24
      %v2044 = vld [vmem:[%s2043] sm:$0xf]
      %v2046 = vsel %vm439, %v399, 0
      %v2049 = vsel %vm439, %v400, 0
      %v2052 = vsel %vm536, %v2044, 0
      %2054 = vmatpush.msra.mxu0 0.0
      %2055 = vmatpush.msra.mxu0 0.0
      %2056 = vmatpush.msra.mxu0 0.0
      %2057 = vmatpush.msra.mxu0 0.0
      %2058 = vmatpush.msra.mxu0 0.0
      %2059 = vmatpush.msra.mxu0 0.0
      %2060 = vmatpush.msra.mxu0 0.0
      %2061 = vmatpush.msra.mxu0 0.0
      %2062 = vmatpush.msra.mxu0 0.0
      %2063 = vmatpush.msra.mxu0 0.0
      %2064 = vmatpush.msra.mxu0 0.0
      %2065 = vmatpush.msra.mxu0 0.0
      %2066 = vmatpush.msra.mxu0 0.0
      %2067 = vmatpush.msra.mxu0 0.0
      %2068 = vmatpush.msra.mxu0 0.0
      %2069 = vmatpush.msra.mxu0 %v2052
      %2070 = vmatmul.f32.gmra.mxu0 %v731
      %v2071 = vpop.f32.mrf.mxu0
      %v2072 = vadd.f32 0.0, %v2071
      %2073 = vmatmul.f32.gmra.mxu0 %v734
      %v2074 = vpop.f32.mrf.mxu0
      %v2075 = vadd.f32 0.0, %v2074
      %2076 = vmatmul.f32.gmra.mxu0 %v737
      %v2077 = vpop.f32.mrf.mxu0
      %v2078 = vadd.f32 0.0, %v2077
      %2079 = vmatmul.f32.gmra.mxu0 %v740
      %v2080 = vpop.f32.mrf.mxu0
      %v2081 = vadd.f32 0.0, %v2080
      %2082 = vmatmul.f32.gmra.mxu0 %v743
      %v2083 = vpop.f32.mrf.mxu0
      %v2084 = vadd.f32 0.0, %v2083
      %2085 = vmatmul.f32.gmra.mxu0 %v746
      %v2086 = vpop.f32.mrf.mxu0
      %v2087 = vadd.f32 0.0, %v2086
      %2088 = vmatmul.f32.gmra.mxu0 %v749
      %v2089 = vpop.f32.mrf.mxu0
      %v2090 = vadd.f32 0.0, %v2089
      %2091 = vmatmul.f32.gmra.mxu0 %v752
      %v2092 = vpop.f32.mrf.mxu0
      %v2093 = vadd.f32 0.0, %v2092
      %2094 = vmatmul.f32.gmra.mxu0 %v755
      %v2095 = vpop.f32.mrf.mxu0
      %v2096 = vadd.f32 0.0, %v2095
      %2097 = vmatmul.f32.gmra.mxu0 %v758
      %v2098 = vpop.f32.mrf.mxu0
      %v2099 = vadd.f32 0.0, %v2098
      %2100 = vmatmul.f32.gmra.mxu0 %v761
      %v2101 = vpop.f32.mrf.mxu0
      %v2102 = vadd.f32 0.0, %v2101
      %2103 = vmatmul.f32.gmra.mxu0 %v764
      %v2104 = vpop.f32.mrf.mxu0
      %v2105 = vadd.f32 0.0, %v2104
      %2106 = vmatmul.f32.gmra.mxu0 %v767
      %v2107 = vpop.f32.mrf.mxu0
      %v2108 = vadd.f32 0.0, %v2107
      %2109 = vmatmul.f32.gmra.mxu0 %v770
      %v2110 = vpop.f32.mrf.mxu0
      %v2111 = vadd.f32 0.0, %v2110
      %2112 = vmatmul.f32.gmra.mxu0 %v773
      %v2113 = vpop.f32.mrf.mxu0
      %v2114 = vadd.f32 0.0, %v2113
      %2115 = vmatmul.f32.gmra.mxu0 %v776
      %v2116 = vpop.f32.mrf.mxu0
      %v2117 = vadd.f32 0.0, %v2116
      %2118 = vmatmul.f32.gmra.mxu0 %v779
      %v2119 = vpop.f32.mrf.mxu0
      %v2120 = vadd.f32 0.0, %v2119
      %2121 = vmatmul.f32.gmra.mxu0 %v782
      %v2122 = vpop.f32.mrf.mxu0
      %v2123 = vadd.f32 0.0, %v2122
      %2124 = vmatmul.f32.gmra.mxu0 %v785
      %v2125 = vpop.f32.mrf.mxu0
      %v2126 = vadd.f32 0.0, %v2125
      %2127 = vmatmul.f32.gmra.mxu0 %v788
      %v2128 = vpop.f32.mrf.mxu0
      %v2129 = vadd.f32 0.0, %v2128
      %2130 = vmatmul.f32.gmra.mxu0 %v791
      %v2131 = vpop.f32.mrf.mxu0
      %v2132 = vadd.f32 0.0, %v2131
      %2133 = vmatmul.f32.gmra.mxu0 %v794
      %v2134 = vpop.f32.mrf.mxu0
      %v2135 = vadd.f32 0.0, %v2134
      %2136 = vmatmul.f32.gmra.mxu0 %v797
      %v2137 = vpop.f32.mrf.mxu0
      %v2138 = vadd.f32 0.0, %v2137
      %2139 = vmatmul.f32.gmra.mxu0 %v800
      %v2140 = vpop.f32.mrf.mxu0
      %v2141 = vadd.f32 0.0, %v2140
      %2142 = vmatmul.f32.gmra.mxu0 %v803
      %v2143 = vpop.f32.mrf.mxu0
      %v2144 = vadd.f32 0.0, %v2143
      %2145 = vmatmul.f32.gmra.mxu0 %v806
      %v2146 = vpop.f32.mrf.mxu0
      %v2147 = vadd.f32 0.0, %v2146
      %2148 = vmatmul.f32.gmra.mxu0 %v809
      %v2149 = vpop.f32.mrf.mxu0
      %v2150 = vadd.f32 0.0, %v2149
      %2151 = vmatmul.f32.gmra.mxu0 %v812
      %v2152 = vpop.f32.mrf.mxu0
      %v2153 = vadd.f32 0.0, %v2152
      %2154 = vmatmul.f32.gmra.mxu0 %v1571
      %v2155 = vpop.f32.mrf.mxu0
      %v2156 = vadd.f32 0.0, %v2155
      %2157 = vmatmul.f32.gmra.mxu0 %v1574
      %v2158 = vpop.f32.mrf.mxu0
      %v2159 = vadd.f32 0.0, %v2158
      %2160 = vmatmul.f32.gmra.mxu0 %v2046
      %v2161 = vpop.f32.mrf.mxu0
      %v2162 = vadd.f32 0.0, %v2161
      %2163 = vmatmul.f32.gmra.mxu0 %v2049
      %v2164 = vpop.f32.mrf.mxu0
      %v2165 = vadd.f32 0.0, %v2164
      %2166 = vdwg.mxu0
      %v2167 = vadd.f32 %v2011, %v2072
      %v2168 = vadd.f32 %v2012, %v2075
      %v2169 = vadd.f32 %v2013, %v2078
      %v2170 = vadd.f32 %v2014, %v2081
      %v2171 = vadd.f32 %v2015, %v2084
      %v2172 = vadd.f32 %v2016, %v2087
      %v2173 = vadd.f32 %v2017, %v2090
      %v2174 = vadd.f32 %v2018, %v2093
      %v2175 = vadd.f32 %v2019, %v2096
      %v2176 = vadd.f32 %v2020, %v2099
      %v2177 = vadd.f32 %v2021, %v2102
      %v2178 = vadd.f32 %v2022, %v2105
      %v2179 = vadd.f32 %v2023, %v2108
      %v2180 = vadd.f32 %v2024, %v2111
      %v2181 = vadd.f32 %v2025, %v2114
      %v2182 = vadd.f32 %v2026, %v2117
      %v2183 = vadd.f32 %v2027, %v2120
      %v2184 = vadd.f32 %v2028, %v2123
      %v2185 = vadd.f32 %v2029, %v2126
      %v2186 = vadd.f32 %v2030, %v2129
      %v2187 = vadd.f32 %v2031, %v2132
      %v2188 = vadd.f32 %v2032, %v2135
      %v2189 = vadd.f32 %v2033, %v2138
      %v2190 = vadd.f32 %v2034, %v2141
      %v2191 = vadd.f32 %v2035, %v2144
      %v2192 = vadd.f32 %v2036, %v2147
      %v2193 = vadd.f32 %v2037, %v2150
      %v2194 = vadd.f32 %v2038, %v2153
      %v2195 = vadd.f32 %v2039, %v2156
      %v2196 = vadd.f32 %v2040, %v2159
      %v2197 = vadd.f32 %v2041, %v2162
      %v2198 = vadd.f32 %v2042, %v2165
      %v2200 = vrot.slane %v399, 1
      %v2201 = vrot.slane %v400, 1
      %v2202 = vsel %vm978, %v2200, %v2201
      %v2203 = vrot.slane %v401, 1
      %v2204 = vsel %vm978, %v2201, %v2203
      %s2205 = scalar_lea.vmem %s3, 28
      %v2206 = vld [vmem:[%s2205] sm:$0xf]
      %v2207 = vsel %vm439, %v2202, 0
      %v2209 = vsel %vm439, %v2204, 0
      %v2212 = vsel %vm536, %v2206, 0
      %2214 = vmatpush.msra.mxu0 0.0
      %2215 = vmatpush.msra.mxu0 0.0
      %2216 = vmatpush.msra.mxu0 0.0
      %2217 = vmatpush.msra.mxu0 0.0
      %2218 = vmatpush.msra.mxu0 0.0
      %2219 = vmatpush.msra.mxu0 0.0
      %2220 = vmatpush.msra.mxu0 0.0
      %2221 = vmatpush.msra.mxu0 0.0
      %2222 = vmatpush.msra.mxu0 0.0
      %2223 = vmatpush.msra.mxu0 0.0
      %2224 = vmatpush.msra.mxu0 0.0
      %2225 = vmatpush.msra.mxu0 0.0
      %2226 = vmatpush.msra.mxu0 0.0
      %2227 = vmatpush.msra.mxu0 0.0
      %2228 = vmatpush.msra.mxu0 0.0
      %2229 = vmatpush.msra.mxu0 %v2212
      %2230 = vmatmul.f32.gmra.mxu0 %v1069
      %v2231 = vpop.f32.mrf.mxu0
      %v2232 = vadd.f32 0.0, %v2231
      %2233 = vmatmul.f32.gmra.mxu0 %v1071
      %v2234 = vpop.f32.mrf.mxu0
      %v2235 = vadd.f32 0.0, %v2234
      %2236 = vmatmul.f32.gmra.mxu0 %v1073
      %v2237 = vpop.f32.mrf.mxu0
      %v2238 = vadd.f32 0.0, %v2237
      %2239 = vmatmul.f32.gmra.mxu0 %v1075
      %v2240 = vpop.f32.mrf.mxu0
      %v2241 = vadd.f32 0.0, %v2240
      %2242 = vmatmul.f32.gmra.mxu0 %v1077
      %v2243 = vpop.f32.mrf.mxu0
      %v2244 = vadd.f32 0.0, %v2243
      %2245 = vmatmul.f32.gmra.mxu0 %v1079
      %v2246 = vpop.f32.mrf.mxu0
      %v2247 = vadd.f32 0.0, %v2246
      %2248 = vmatmul.f32.gmra.mxu0 %v1081
      %v2249 = vpop.f32.mrf.mxu0
      %v2250 = vadd.f32 0.0, %v2249
      %2251 = vmatmul.f32.gmra.mxu0 %v1083
      %v2252 = vpop.f32.mrf.mxu0
      %v2253 = vadd.f32 0.0, %v2252
      %2254 = vmatmul.f32.gmra.mxu0 %v1085
      %v2255 = vpop.f32.mrf.mxu0
      %v2256 = vadd.f32 0.0, %v2255
      %2257 = vmatmul.f32.gmra.mxu0 %v1087
      %v2258 = vpop.f32.mrf.mxu0
      %v2259 = vadd.f32 0.0, %v2258
      %2260 = vmatmul.f32.gmra.mxu0 %v1089
      %v2261 = vpop.f32.mrf.mxu0
      %v2262 = vadd.f32 0.0, %v2261
      %2263 = vmatmul.f32.gmra.mxu0 %v1091
      %v2264 = vpop.f32.mrf.mxu0
      %v2265 = vadd.f32 0.0, %v2264
      %2266 = vmatmul.f32.gmra.mxu0 %v1093
      %v2267 = vpop.f32.mrf.mxu0
      %v2268 = vadd.f32 0.0, %v2267
      %2269 = vmatmul.f32.gmra.mxu0 %v1095
      %v2270 = vpop.f32.mrf.mxu0
      %v2271 = vadd.f32 0.0, %v2270
      %2272 = vmatmul.f32.gmra.mxu0 %v1097
      %v2273 = vpop.f32.mrf.mxu0
      %v2274 = vadd.f32 0.0, %v2273
      %2275 = vmatmul.f32.gmra.mxu0 %v1099
      %v2276 = vpop.f32.mrf.mxu0
      %v2277 = vadd.f32 0.0, %v2276
      %2278 = vmatmul.f32.gmra.mxu0 %v1101
      %v2279 = vpop.f32.mrf.mxu0
      %v2280 = vadd.f32 0.0, %v2279
      %2281 = vmatmul.f32.gmra.mxu0 %v1103
      %v2282 = vpop.f32.mrf.mxu0
      %v2283 = vadd.f32 0.0, %v2282
      %2284 = vmatmul.f32.gmra.mxu0 %v1105
      %v2285 = vpop.f32.mrf.mxu0
      %v2286 = vadd.f32 0.0, %v2285
      %2287 = vmatmul.f32.gmra.mxu0 %v1107
      %v2288 = vpop.f32.mrf.mxu0
      %v2289 = vadd.f32 0.0, %v2288
      %2290 = vmatmul.f32.gmra.mxu0 %v1109
      %v2291 = vpop.f32.mrf.mxu0
      %v2292 = vadd.f32 0.0, %v2291
      %2293 = vmatmul.f32.gmra.mxu0 %v1111
      %v2294 = vpop.f32.mrf.mxu0
      %v2295 = vadd.f32 0.0, %v2294
      %2296 = vmatmul.f32.gmra.mxu0 %v1113
      %v2297 = vpop.f32.mrf.mxu0
      %v2298 = vadd.f32 0.0, %v2297
      %2299 = vmatmul.f32.gmra.mxu0 %v1115
      %v2300 = vpop.f32.mrf.mxu0
      %v2301 = vadd.f32 0.0, %v2300
      %2302 = vmatmul.f32.gmra.mxu0 %v1117
      %v2303 = vpop.f32.mrf.mxu0
      %v2304 = vadd.f32 0.0, %v2303
      %2305 = vmatmul.f32.gmra.mxu0 %v1119
      %v2306 = vpop.f32.mrf.mxu0
      %v2307 = vadd.f32 0.0, %v2306
      %2308 = vmatmul.f32.gmra.mxu0 %v1121
      %v2309 = vpop.f32.mrf.mxu0
      %v2310 = vadd.f32 0.0, %v2309
      %2311 = vmatmul.f32.gmra.mxu0 %v1123
      %v2312 = vpop.f32.mrf.mxu0
      %v2313 = vadd.f32 0.0, %v2312
      %2314 = vmatmul.f32.gmra.mxu0 %v1732
      %v2315 = vpop.f32.mrf.mxu0
      %v2316 = vadd.f32 0.0, %v2315
      %2317 = vmatmul.f32.gmra.mxu0 %v1734
      %v2318 = vpop.f32.mrf.mxu0
      %v2319 = vadd.f32 0.0, %v2318
      %2320 = vmatmul.f32.gmra.mxu0 %v2207
      %v2321 = vpop.f32.mrf.mxu0
      %v2322 = vadd.f32 0.0, %v2321
      %2323 = vmatmul.f32.gmra.mxu0 %v2209
      %v2324 = vpop.f32.mrf.mxu0
      %v2325 = vadd.f32 0.0, %v2324
      %2326 = vdwg.mxu0
      %v2327 = vadd.f32 %v2167, %v2232
      %v2328 = vadd.f32 %v2168, %v2235
      %v2329 = vadd.f32 %v2169, %v2238
      %v2330 = vadd.f32 %v2170, %v2241
      %v2331 = vadd.f32 %v2171, %v2244
      %v2332 = vadd.f32 %v2172, %v2247
      %v2333 = vadd.f32 %v2173, %v2250
      %v2334 = vadd.f32 %v2174, %v2253
      %v2335 = vadd.f32 %v2175, %v2256
      %v2336 = vadd.f32 %v2176, %v2259
      %v2337 = vadd.f32 %v2177, %v2262
      %v2338 = vadd.f32 %v2178, %v2265
      %v2339 = vadd.f32 %v2179, %v2268
      %v2340 = vadd.f32 %v2180, %v2271
      %v2341 = vadd.f32 %v2181, %v2274
      %v2342 = vadd.f32 %v2182, %v2277
      %v2343 = vadd.f32 %v2183, %v2280
      %v2344 = vadd.f32 %v2184, %v2283
      %v2345 = vadd.f32 %v2185, %v2286
      %v2346 = vadd.f32 %v2186, %v2289
      %v2347 = vadd.f32 %v2187, %v2292
      %v2348 = vadd.f32 %v2188, %v2295
      %v2349 = vadd.f32 %v2189, %v2298
      %v2350 = vadd.f32 %v2190, %v2301
      %v2351 = vadd.f32 %v2191, %v2304
      %v2352 = vadd.f32 %v2192, %v2307
      %v2353 = vadd.f32 %v2193, %v2310
      %v2354 = vadd.f32 %v2194, %v2313
      %v2355 = vadd.f32 %v2195, %v2316
      %v2356 = vadd.f32 %v2196, %v2319
      %v2357 = vadd.f32 %v2197, %v2322
      %v2358 = vadd.f32 %v2198, %v2325
      %v2359 = vrot.slane %v399, 2
      %v2360 = vrot.slane %v400, 2
      %v2361 = vsel %vm1273, %v2359, %v2360
      %v2362 = vrot.slane %v401, 2
      %v2363 = vsel %vm1273, %v2360, %v2362
      %s2364 = scalar_lea.vmem %s3, 32
      %v2365 = vld [vmem:[%s2364] sm:$0xf]
      %v2366 = vsel %vm439, %v2361, 0
      %v2368 = vsel %vm439, %v2363, 0
      %v2371 = vsel %vm536, %v2365, 0
      %2373 = vmatpush.msra.mxu0 0.0
      %2374 = vmatpush.msra.mxu0 0.0
      %2375 = vmatpush.msra.mxu0 0.0
      %2376 = vmatpush.msra.mxu0 0.0
      %2377 = vmatpush.msra.mxu0 0.0
      %2378 = vmatpush.msra.mxu0 0.0
      %2379 = vmatpush.msra.mxu0 0.0
      %2380 = vmatpush.msra.mxu0 0.0
      %2381 = vmatpush.msra.mxu0 0.0
      %2382 = vmatpush.msra.mxu0 0.0
      %2383 = vmatpush.msra.mxu0 0.0
      %2384 = vmatpush.msra.mxu0 0.0
      %2385 = vmatpush.msra.mxu0 0.0
      %2386 = vmatpush.msra.mxu0 0.0
      %2387 = vmatpush.msra.mxu0 0.0
      %2388 = vmatpush.msra.mxu0 %v2371
      %2389 = vmatmul.f32.gmra.mxu0 %v1364
      %v2390 = vpop.f32.mrf.mxu0
      %v2391 = vadd.f32 0.0, %v2390
      %2392 = vmatmul.f32.gmra.mxu0 %v1366
      %v2393 = vpop.f32.mrf.mxu0
      %v2394 = vadd.f32 0.0, %v2393
      %2395 = vmatmul.f32.gmra.mxu0 %v1368
      %v2396 = vpop.f32.mrf.mxu0
      %v2397 = vadd.f32 0.0, %v2396
      %2398 = vmatmul.f32.gmra.mxu0 %v1370
      %v2399 = vpop.f32.mrf.mxu0
      %v2400 = vadd.f32 0.0, %v2399
      %2401 = vmatmul.f32.gmra.mxu0 %v1372
      %v2402 = vpop.f32.mrf.mxu0
      %v2403 = vadd.f32 0.0, %v2402
      %2404 = vmatmul.f32.gmra.mxu0 %v1374
      %v2405 = vpop.f32.mrf.mxu0
      %v2406 = vadd.f32 0.0, %v2405
      %2407 = vmatmul.f32.gmra.mxu0 %v1376
      %v2408 = vpop.f32.mrf.mxu0
      %v2409 = vadd.f32 0.0, %v2408
      %2410 = vmatmul.f32.gmra.mxu0 %v1378
      %v2411 = vpop.f32.mrf.mxu0
      %v2412 = vadd.f32 0.0, %v2411
      %2413 = vmatmul.f32.gmra.mxu0 %v1380
      %v2414 = vpop.f32.mrf.mxu0
      %v2415 = vadd.f32 0.0, %v2414
      %2416 = vmatmul.f32.gmra.mxu0 %v1382
      %v2417 = vpop.f32.mrf.mxu0
      %v2418 = vadd.f32 0.0, %v2417
      %2419 = vmatmul.f32.gmra.mxu0 %v1384
      %v2420 = vpop.f32.mrf.mxu0
      %v2421 = vadd.f32 0.0, %v2420
      %2422 = vmatmul.f32.gmra.mxu0 %v1386
      %v2423 = vpop.f32.mrf.mxu0
      %v2424 = vadd.f32 0.0, %v2423
      %2425 = vmatmul.f32.gmra.mxu0 %v1388
      %v2426 = vpop.f32.mrf.mxu0
      %v2427 = vadd.f32 0.0, %v2426
      %2428 = vmatmul.f32.gmra.mxu0 %v1390
      %v2429 = vpop.f32.mrf.mxu0
      %v2430 = vadd.f32 0.0, %v2429
      %2431 = vmatmul.f32.gmra.mxu0 %v1392
      %v2432 = vpop.f32.mrf.mxu0
      %v2433 = vadd.f32 0.0, %v2432
      %2434 = vmatmul.f32.gmra.mxu0 %v1394
      %v2435 = vpop.f32.mrf.mxu0
      %v2436 = vadd.f32 0.0, %v2435
      %2437 = vmatmul.f32.gmra.mxu0 %v1396
      %v2438 = vpop.f32.mrf.mxu0
      %v2439 = vadd.f32 0.0, %v2438
      %2440 = vmatmul.f32.gmra.mxu0 %v1398
      %v2441 = vpop.f32.mrf.mxu0
      %v2442 = vadd.f32 0.0, %v2441
      %2443 = vmatmul.f32.gmra.mxu0 %v1400
      %v2444 = vpop.f32.mrf.mxu0
      %v2445 = vadd.f32 0.0, %v2444
      %2446 = vmatmul.f32.gmra.mxu0 %v1402
      %v2447 = vpop.f32.mrf.mxu0
      %v2448 = vadd.f32 0.0, %v2447
      %2449 = vmatmul.f32.gmra.mxu0 %v1404
      %v2450 = vpop.f32.mrf.mxu0
      %v2451 = vadd.f32 0.0, %v2450
      %2452 = vmatmul.f32.gmra.mxu0 %v1406
      %v2453 = vpop.f32.mrf.mxu0
      %v2454 = vadd.f32 0.0, %v2453
      %2455 = vmatmul.f32.gmra.mxu0 %v1408
      %v2456 = vpop.f32.mrf.mxu0
      %v2457 = vadd.f32 0.0, %v2456
      %2458 = vmatmul.f32.gmra.mxu0 %v1410
      %v2459 = vpop.f32.mrf.mxu0
      %v2460 = vadd.f32 0.0, %v2459
      %2461 = vmatmul.f32.gmra.mxu0 %v1412
      %v2462 = vpop.f32.mrf.mxu0
      %v2463 = vadd.f32 0.0, %v2462
      %2464 = vmatmul.f32.gmra.mxu0 %v1414
      %v2465 = vpop.f32.mrf.mxu0
      %v2466 = vadd.f32 0.0, %v2465
      %2467 = vmatmul.f32.gmra.mxu0 %v1416
      %v2468 = vpop.f32.mrf.mxu0
      %v2469 = vadd.f32 0.0, %v2468
      %2470 = vmatmul.f32.gmra.mxu0 %v1418
      %v2471 = vpop.f32.mrf.mxu0
      %v2472 = vadd.f32 0.0, %v2471
      %2473 = vmatmul.f32.gmra.mxu0 %v1891
      %v2474 = vpop.f32.mrf.mxu0
      %v2475 = vadd.f32 0.0, %v2474
      %2476 = vmatmul.f32.gmra.mxu0 %v1893
      %v2477 = vpop.f32.mrf.mxu0
      %v2478 = vadd.f32 0.0, %v2477
      %2479 = vmatmul.f32.gmra.mxu0 %v2366
      %v2480 = vpop.f32.mrf.mxu0
      %v2481 = vadd.f32 0.0, %v2480
      %2482 = vmatmul.f32.gmra.mxu0 %v2368
      %v2483 = vpop.f32.mrf.mxu0
      %v2484 = vadd.f32 0.0, %v2483
      %2485 = vdwg.mxu0
      %v2486 = vadd.f32 %v2327, %v2391
      %v2487 = vadd.f32 %v2328, %v2394
      %v2488 = vadd.f32 %v2329, %v2397
      %v2489 = vadd.f32 %v2330, %v2400
      %v2490 = vadd.f32 %v2331, %v2403
      %v2491 = vadd.f32 %v2332, %v2406
      %v2492 = vadd.f32 %v2333, %v2409
      %v2493 = vadd.f32 %v2334, %v2412
      %v2494 = vadd.f32 %v2335, %v2415
      %v2495 = vadd.f32 %v2336, %v2418
      %v2496 = vadd.f32 %v2337, %v2421
      %v2497 = vadd.f32 %v2338, %v2424
      %v2498 = vadd.f32 %v2339, %v2427
      %v2499 = vadd.f32 %v2340, %v2430
      %v2500 = vadd.f32 %v2341, %v2433
      %v2501 = vadd.f32 %v2342, %v2436
      %v2502 = vadd.f32 %v2343, %v2439
      %v2503 = vadd.f32 %v2344, %v2442
      %v2504 = vadd.f32 %v2345, %v2445
      %v2505 = vadd.f32 %v2346, %v2448
      %v2506 = vadd.f32 %v2347, %v2451
      %v2507 = vadd.f32 %v2348, %v2454
      %v2508 = vadd.f32 %v2349, %v2457
      %v2509 = vadd.f32 %v2350, %v2460
      %v2510 = vadd.f32 %v2351, %v2463
      %v2511 = vadd.f32 %v2352, %v2466
      %v2512 = vadd.f32 %v2353, %v2469
      %v2513 = vadd.f32 %v2354, %v2472
      %v2514 = vadd.f32 %v2355, %v2475
      %v2515 = vadd.f32 %v2356, %v2478
      %v2516 = vadd.f32 %v2357, %v2481
      %v2517 = vadd.f32 %v2358, %v2484
      %vm2518 = vcmask 261120
      %2519 = vst.msk [vmem:[%s346] sm:$0xff] %vm2518, %v2486
      %2520 = vst.msk [vmem:[%s346 + $0x8] sm:$0xff] %vm2518, %v2487
      %2521 = vst.msk [vmem:[%s346 + $0x10] sm:$0xff] %vm2518, %v2488
      %2522 = vst.msk [vmem:[%s346 + $0x18] sm:$0xff] %vm2518, %v2489
      %2523 = vst.msk [vmem:[%s346 + $0x20] sm:$0xff] %vm2518, %v2490
      %2524 = vst.msk [vmem:[%s346 + $0x28] sm:$0xff] %vm2518, %v2491
      %2525 = vst.msk [vmem:[%s346 + $0x30] sm:$0xff] %vm2518, %v2492
      %2526 = vst.msk [vmem:[%s346 + $0x38] sm:$0xff] %vm2518, %v2493
      %2527 = vst.msk [vmem:[%s346 + $0x40] sm:$0xff] %vm2518, %v2494
      %2528 = vst.msk [vmem:[%s346 + $0x48] sm:$0xff] %vm2518, %v2495
      %2529 = vst.msk [vmem:[%s346 + $0x50] sm:$0xff] %vm2518, %v2496
      %2530 = vst.msk [vmem:[%s346 + $0x58] sm:$0xff] %vm2518, %v2497
      %2531 = vst.msk [vmem:[%s346 + $0x60] sm:$0xff] %vm2518, %v2498
      %2532 = vst.msk [vmem:[%s346 + $0x68] sm:$0xff] %vm2518, %v2499
      %2533 = vst.msk [vmem:[%s346 + $0x70] sm:$0xff] %vm2518, %v2500
      %2534 = vst.msk [vmem:[%s346 + $0x78] sm:$0xff] %vm2518, %v2501
      %2535 = vst.msk [vmem:[%s346 + $0x80] sm:$0xff] %vm2518, %v2502
      %2536 = vst.msk [vmem:[%s346 + $0x88] sm:$0xff] %vm2518, %v2503
      %2537 = vst.msk [vmem:[%s346 + $0x90] sm:$0xff] %vm2518, %v2504
      %2538 = vst.msk [vmem:[%s346 + $0x98] sm:$0xff] %vm2518, %v2505
      %2539 = vst.msk [vmem:[%s346 + $0xa0] sm:$0xff] %vm2518, %v2506
      %2540 = vst.msk [vmem:[%s346 + $0xa8] sm:$0xff] %vm2518, %v2507
      %2541 = vst.msk [vmem:[%s346 + $0xb0] sm:$0xff] %vm2518, %v2508
      %2542 = vst.msk [vmem:[%s346 + $0xb8] sm:$0xff] %vm2518, %v2509
      %2543 = vst.msk [vmem:[%s346 + $0xc0] sm:$0xff] %vm2518, %v2510
      %2544 = vst.msk [vmem:[%s346 + $0xc8] sm:$0xff] %vm2518, %v2511
      %2545 = vst.msk [vmem:[%s346 + $0xd0] sm:$0xff] %vm2518, %v2512
      %2546 = vst.msk [vmem:[%s346 + $0xd8] sm:$0xff] %vm2518, %v2513
      %2547 = vst.msk [vmem:[%s346 + $0xe0] sm:$0xff] %vm2518, %v2514
      %2548 = vst.msk [vmem:[%s346 + $0xe8] sm:$0xff] %vm2518, %v2515
      %2549 = vst.msk [vmem:[%s346 + $0xf0] sm:$0xff] %vm2518, %v2516
      %2550 = vst.msk [vmem:[%s346 + $0xf8] sm:$0xff] %vm2518, %v2517
      %s2551 = smul.u32 16, %s22
      %p2552 = scmp.lt.s32.totalorder %s21, 1
      %s2553 = scalar_select %p2552, %s21, 1
      %p2554 = scmp.lt.s32.totalorder %s2551, 15
      %s2555 = scalar_select %p2554, %s2551, 15
      %s2556 = smul.addr %s2555, 2
      %s2557 = smul.addr %s2553, 32
      %s2558 = sadd.s32 %s2556, %s2557
      %s2559 = smul.addr %s2558, 8
      %s2560 = scalar_lea.vmem %s6, %s2559
      // Predicated region
      $region45: #{skip_forward.4} parent=43 // pred_check
        %p2561 = pneg %p194
      $region46: #{skip_forward.4} parent=43 // pred_check_branch
        %2563 = sbr.rel (%p2561) target = $region48
      $region47: #{skip_forward.4} parent=43 // pred_region
        %s2564 = smul.u32 16, %s22
      $region48: #{skip_forward.4} parent=43 // pred_fallthru
        _
    $region44: #{skip_forward.4} parent=5 // pred_fallthru
      _
    %p2565 = scmp.le.s32.totalorder 2, %s12
    // Predicated region
    $region49: #{skip_forward.4} parent=5 // pred_check
      %p2566 = pneg %p2565
    $region50: #{skip_forward.4} parent=5 // pred_check_branch
      %2568 = sbr.rel (%p2566) target = $region52
    $region51: #{skip_forward.4} parent=5 // pred_region
      %s2569 = ssub.s32 %s12, 2
      // Predicated region
      $region53: #{skip_forward.4} parent=51 // pred_check
        %p2570 = pneg %p200
      $region54: #{skip_forward.4} parent=51 // pred_check_branch
        %2572 = sbr.rel (%p2570) target = $region56
      $region55: #{skip_forward.4} parent=51 // pred_region
        %s2573 = smul.u32 16, %s24
        %p2574 = scmp.lt.s32.totalorder %s23, 1
        %s2575 = scalar_select %p2574, %s23, 1
        %p2576 = scmp.lt.s32.totalorder %s2573, 15
        %s2577 = scalar_select %p2576, %s2573, 15
        %s2578 = smul.addr %s2577, 2
        %s2579 = smul.addr %s2575, 32
        %s2580 = sadd.s32 %s2578, %s2579
        %s2581 = smul.addr %s2580, 8
        %s2582 = scalar_lea.vmem %s6, %s2581
      $region56: #{skip_forward.4} parent=51 // pred_fallthru
        _
    $region52: #{skip_forward.4} parent=5 // pred_fallthru
      _
  $region6: #{skip_forward.4} parent=0 // loop_footer
    %s16 = sadd.s32 1, %s12
  $region7: #{skip_forward.4} parent=0 // loop_footer_branch
    %11 = sbr.rel target = $region3
  $region8: #{skip_forward.4} parent=0 // loop_exit
    _

</llo_original>
